<compile_context>
chip_gen: v7x
topology: tpu7x:2x2x1
jax: 0.10.0
libtpu: 0.0.40
codegen_flags: <defaults>
</compile_context>

<pallas_src>
import functools

import jax
import jax.numpy as jnp
from jax.experimental import pallas as pl
from jax.experimental.pallas import tpu as pltpu

EPS = 1e-3                       # BatchNorm eps=0.001
_VMEM_LIMIT = 32 * 1024 * 1024   # safe on v5e/v6e (128 MiB) and v7x (64 MiB)


def _round_up(x, m):
    return (x + m - 1) // m * m


def _choose_m_tile(M):
    """Pick (tm, padded_M).  Never degrades to 128-row tiles for large M and
    exposes >=2 grid steps where possible (v7x megacore)."""
    Mp = _round_up(M, 128)
    if Mp <= 256:
        return Mp, Mp
    if Mp <= 1024:
        return Mp // 2, Mp            # 2 parallel steps, no extra padding
    return 512, _round_up(M, 512)     # large M: 512-row tiles


# ----------------------------------------------------------------------------
# Pallas kernels
# ----------------------------------------------------------------------------
def _mm_bias_relu_kernel(a_ref, w_ref, b_ref, o_ref):
    acc = jnp.dot(a_ref[...], w_ref[...], preferred_element_type=jnp.float32)
    o_ref[...] = jnp.maximum(acc + b_ref[...], 0.0).astype(o_ref.dtype)


def _stem_dual_kernel(a_ref, w1_ref, b1_ref, w2_ref, b2_ref, o1_ref, o2_ref):
    a = a_ref[...]
    acc1 = jnp.dot(a, w1_ref[...], preferred_element_type=jnp.float32)
    o1_ref[...] = jnp.maximum(acc1 + b1_ref[...], 0.0).astype(o1_ref.dtype)
    acc2 = jnp.dot(a, w2_ref[...], preferred_element_type=jnp.float32)
    o2_ref[...] = jnp.maximum(acc2 + b2_ref[...], 0.0).astype(o2_ref.dtype)


# ----------------------------------------------------------------------------
# Pallas wrappers
# ----------------------------------------------------------------------------
def matmul_bias_relu(a, w, bias, out_dtype):
    """relu(a @ w + bias).  a:[M,K] bf16, w:[K,N] bf16, bias:[1,N] f32.
    Full-K, full-N blocks; grid over M only ('parallel')."""
    M, K = a.shape
    K2, N = w.shape
    assert K == K2 and bias.shape == (1, N)
    tm, Mp = _choose_m_tile(M)
    if Mp != M:
        a = jnp.pad(a, ((0, Mp - M), (0, 0)))
    out = pl.pallas_call(
        _mm_bias_relu_kernel,
        out_shape=jax.ShapeDtypeStruct((Mp, N), out_dtype),
        grid_spec=pltpu.PrefetchScalarGridSpec(
            num_scalar_prefetch=0,
            grid=(Mp // tm,),
            in_specs=[
                pl.BlockSpec((tm, K), lambda i: (i, 0)),   # full-K A block
                pl.BlockSpec((K, N), lambda i: (0, 0)),    # full weight, resident
                pl.BlockSpec((1, N), lambda i: (0, 0)),
            ],
            out_specs=pl.BlockSpec((tm, N), lambda i: (i, 0)),
        ),
        compiler_params=pltpu.CompilerParams(
            dimension_semantics=("parallel",),
            vmem_limit_bytes=_VMEM_LIMIT,
        ),
        cost_estimate=pl.CostEstimate(
            flops=2 * Mp * K * N,
            transcendentals=0,
            bytes_accessed=Mp * K * 2 + K * N * 2
            + Mp * N * jnp.dtype(out_dtype).itemsize),
    )(a, w, bias)
    return out[:M] if Mp != M else out


def stem_dual_conv(a, prep1, prep2, out_dtype=jnp.bfloat16):
    """Two BN-folded 1x1 convs on the same input, emitted as two separate
    outputs from a single pallas_call (A read from HBM once, no 192-col
    mid-lane slice afterwards)."""
    w1, b1 = prep1["w"], prep1["b"]
    w2, b2 = prep2["w"], prep2["b"]
    M, K = a.shape
    n1, n2 = w1.shape[1], w2.shape[1]
    tm, Mp = _choose_m_tile(M)
    if Mp != M:
        a = jnp.pad(a, ((0, Mp - M), (0, 0)))
    osz = jnp.dtype(out_dtype).itemsize
    o1, o2 = pl.pallas_call(
        _stem_dual_kernel,
        out_shape=(jax.ShapeDtypeStruct((Mp, n1), out_dtype),
                   jax.ShapeDtypeStruct((Mp, n2), out_dtype)),
        grid_spec=pltpu.PrefetchScalarGridSpec(
            num_scalar_prefetch=0,
            grid=(Mp // tm,),
            in_specs=[
                pl.BlockSpec((tm, K), lambda i: (i, 0)),
                pl.BlockSpec((K, n1), lambda i: (0, 0)),
                pl.BlockSpec((1, n1), lambda i: (0, 0)),
                pl.BlockSpec((K, n2), lambda i: (0, 0)),
                pl.BlockSpec((1, n2), lambda i: (0, 0)),
            ],
            out_specs=(pl.BlockSpec((tm, n1), lambda i: (i, 0)),
                       pl.BlockSpec((tm, n2), lambda i: (i, 0))),
        ),
        compiler_params=pltpu.CompilerParams(
            dimension_semantics=("parallel",),
            vmem_limit_bytes=_VMEM_LIMIT,
        ),
        cost_estimate=pl.CostEstimate(
            flops=2 * Mp * K * (n1 + n2),
            transcendentals=0,
            bytes_accessed=Mp * K * 2 + K * (n1 + n2) * 2
            + Mp * (n1 + n2) * osz),
    )(a, w1, b1, w2, b2)
    if Mp != M:
        o1, o2 = o1[:M], o2[:M]
    return o1, o2


# ----------------------------------------------------------------------------
# Glue: im2col patch extraction (stride support), max pool
# ----------------------------------------------------------------------------
def im2col(x_nhwc, kh, kw, ph, pw, sh, sw, k_total):
    """NHWC -> [N*Ho*Wo, k_total] patches (same dtype as x).  Trailing zero
    columns pad kh*kw*C up to k_total (contraction-dim alignment)."""
    # TODO(synk): the patch extraction still materializes the activation
    # kh*kw times in HBM; folding the tap loop into the Pallas kernel (extra
    # 'arbitrary' grid axis + shifted BlockSpecs) would remove this traffic.
    N, H, W, C = x_nhwc.shape
    Ho = (H + 2 * ph - kh) // sh + 1
    Wo = (W + 2 * pw - kw) // sw + 1
    xp = jnp.pad(x_nhwc, ((0, 0), (ph, ph), (pw, pw), (0, 0)))
    cols = []
    for dy in range(kh):
        for dx in range(kw):
            cols.append(xp[:, dy:dy + sh * (Ho - 1) + 1:sh,
                           dx:dx + sw * (Wo - 1) + 1:sw, :])
    k_real = kh * kw * C
    assert k_total >= k_real
    if k_total > k_real:
        cols.append(jnp.zeros((N, Ho, Wo, k_total - k_real), x_nhwc.dtype))
    patches = jnp.concatenate(cols, axis=-1)
    return patches.reshape(N * Ho * Wo, k_total), Ho, Wo


def conv_bn_relu(x_nhwc, prep, *, kh, kw, ph, pw, sh=1, sw=1,
                 out_dtype=jnp.bfloat16):
    """Conv2d -> BatchNorm2d(eps=1e-3) -> ReLU via one fused Pallas matmul."""
    N = x_nhwc.shape[0]
    a, Ho, Wo = im2col(x_nhwc, kh, kw, ph, pw, sh, sw, prep["w"].shape[0])
    out = matmul_bias_relu(a, prep["w"], prep["b"], out_dtype)
    return out.reshape(N, Ho, Wo, prep["w"].shape[1])


def max_pool_3x3_s2(x_nhwc):
    # TODO(synk): tiny stride-2 window max done as plain-JAX strided-slice
    # maxima (pure VPU work); not worth a dedicated Pallas kernel at this size.
    N, H, W, C = x_nhwc.shape
    Ho = (H - 3) // 2 + 1
    Wo = (W - 3) // 2 + 1
    vals = []
    for dy in range(3):
        for dx in range(3):
            vals.append(x_nhwc[:, dy:dy + 2 * (Ho - 1) + 1:2,
                               dx:dx + 2 * (Wo - 1) + 1:2, :])
    return functools.reduce(jnp.maximum, vals)


# ----------------------------------------------------------------------------
# Parameters: init + one-time prep (BN fold, reshape, K pad, bf16 cast)
# ----------------------------------------------------------------------------
def init_basic_conv(key, cin, cout, kh, kw):
    ks = jax.random.split(key, 5)
    return dict(
        w=0.05 * jax.random.normal(ks[0], (cout, cin, kh, kw), jnp.float32),
        gamma=1.0 + 0.1 * jax.random.normal(ks[1], (cout,), jnp.float32),
        beta=0.1 * jax.random.normal(ks[2], (cout,), jnp.float32),
        mean=0.1 * jax.random.normal(ks[3], (cout,), jnp.float32),
        var=jnp.abs(jax.random.normal(ks[4], (cout,), jnp.float32)) + 0.5,
    )


def init_inception_d(key, in_channels):
    ks = jax.random.split(key, 6)
    return dict(
        branch3x3_1=init_basic_conv(ks[0], in_channels, 192, 1, 1),
        branch3x3_2=init_basic_conv(ks[1], 192, 320, 3, 3),
        branch7x7x3_1=init_basic_conv(ks[2], in_channels, 192, 1, 1),
        branch7x7x3_2=init_basic_conv(ks[3], 192, 192, 1, 7),
        branch7x7x3_3=init_basic_conv(ks[4], 192, 192, 7, 1),
        branch7x7x3_4=init_basic_conv(ks[5], 192, 192, 3, 3),
    )


def prepare_inception_d(params):
    """One-time prep: fold BN scale into the conv weight, reshape OIHW ->
    [kh*kw*cin, cout], pad K to a 128 multiple (im2col convs only), cast to
    bf16.  Removes all per-forward transpose/scale/pad/cast work."""
    prepped = {}
    for name, p in params.items():
        cout, cin, kh, kw = p["w"].shape
        scale = p["gamma"] * jax.lax.rsqrt(p["var"] + EPS)
        w2 = jnp.transpose(p["w"], (2, 3, 1, 0)).reshape(kh * kw * cin, cout)
        w2 = w2 * scale[None, :]
        bias = (p["beta"] - p["mean"] * scale).reshape(1, cout)
        k_real = kh * kw * cin
        k_pad = _round_up(k_real, 128) if kh * kw > 1 else k_real
        if k_pad > k_real:
            w2 = jnp.pad(w2, ((0, k_pad - k_real), (0, 0)))
        prepped[name] = dict(w=w2.astype(jnp.bfloat16),
                             b=bias.astype(jnp.float32))
    return prepped


# ----------------------------------------------------------------------------
# InceptionD forward (Pallas path)
# ----------------------------------------------------------------------------
def inception_d_forward(prepped, x_nchw):
    x = jnp.transpose(x_nchw, (0, 2, 3, 1))            # NCHW -> NHWC (f32)
    N, H, W, C = x.shape
    x_bf = x.astype(jnp.bfloat16)                       # activations bf16 e2e

    # Fused stem: branch3x3_1 + branch7x7x3_1 are both 1x1 convs on x; one
    # pallas_call with two 192-wide outputs (A read once, no mid-lane split).
    b3, b7 = stem_dual_conv(x_bf.reshape(N * H * W, C),
                            prepped["branch3x3_1"], prepped["branch7x7x3_1"])
    b3 = b3.reshape(N, H, W, 192)
    b7 = b7.reshape(N, H, W, 192)

    # branch3x3: 3x3, stride 2, no padding (final output in f32)
    branch3x3 = conv_bn_relu(b3, prepped["branch3x3_2"],
                             kh=3, kw=3, ph=0, pw=0, sh=2, sw=2,
                             out_dtype=jnp.float32)

    # branch7x7x3: 1x7 -> 7x1 -> 3x3 stride 2
    b7 = conv_bn_relu(b7, prepped["branch7x7x3_2"], kh=1, kw=7, ph=0, pw=3)
    b7 = conv_bn_relu(b7, prepped["branch7x7x3_3"], kh=7, kw=1, ph=3, pw=0)
    branch7x7x3 = conv_bn_relu(b7, prepped["branch7x7x3_4"],
                               kh=3, kw=3, ph=0, pw=0, sh=2, sw=2,
                               out_dtype=jnp.float32)

    # branch_pool: max_pool2d(kernel=3, stride=2, padding=0) on the f32 input
    branch_pool = max_pool_3x3_s2(x)

    out = jnp.concatenate([branch3x3, branch7x7x3, branch_pool], axis=-1)
    return jnp.transpose(out, (0, 3, 1, 2))             # NHWC -> NCHW


# ----------------------------------------------------------------------------
# Pure-JAX reference (sanity check only)
# ----------------------------------------------------------------------------
def _ref_basic_conv(x_nchw, p, *, padding, stride=(1, 1)):
    out = jax.lax.conv_general_dilated(
        x_nchw, p["w"], window_strides=stride, padding=padding,
        dimension_numbers=("NCHW", "OIHW", "NCHW"),
        precision=jax.lax.Precision.HIGHEST)
    scale = (p["gamma"] / jnp.sqrt(p["var"] + EPS))[None, :, None, None]
    out = (out - p["mean"][None, :, None, None]) * scale \
        + p["beta"][None, :, None, None]
    return jnp.maximum(out, 0.0)


def _ref_forward(params, x):
    b3 = _ref_basic_conv(x, params["branch3x3_1"], padding=((0, 0), (0, 0)))
    b3 = _ref_basic_conv(b3, params["branch3x3_2"], padding=((0, 0), (0, 0)),
                         stride=(2, 2))
    b7 = _ref_basic_conv(x, params["branch7x7x3_1"], padding=((0, 0), (0, 0)))
    b7 = _ref_basic_conv(b7, params["branch7x7x3_2"], padding=((0, 0), (3, 3)))
    b7 = _ref_basic_conv(b7, params["branch7x7x3_3"], padding=((3, 3), (0, 0)))
    b7 = _ref_basic_conv(b7, params["branch7x7x3_4"], padding=((0, 0), (0, 0)),
                         stride=(2, 2))
    bp = jax.lax.reduce_window(x, -jnp.inf, jax.lax.max,
                               (1, 1, 3, 3), (1, 1, 2, 2), "VALID")
    return jnp.concatenate([b3, b7, bp], axis=1)


if __name__ == "__main__":
    key = jax.random.PRNGKey(0)
    k_param, k_x = jax.random.split(key)

    N, C_IN, H, W = 2, 16, 16, 16
    params = init_inception_d(k_param, C_IN)
    x = jax.random.normal(k_x, (N, C_IN, H, W), jnp.float32)   # NCHW input

    prepped = prepare_inception_d(params)                      # one-time prep

    out = jax.jit(inception_d_forward)(prepped, x)
    out = jax.block_until_ready(out)

    Ho = (H - 3) // 2 + 1
    assert out.shape == (N, 320 + 192 + C_IN, Ho, Ho), out.shape

    ref = jax.block_until_ready(_ref_forward(params, x))
    max_err = float(jnp.max(jnp.abs(out - ref)))
    assert jnp.allclose(out, ref, rtol=5e-2, atol=5e-2), max_err

    print("KERNEL_OK")
</pallas_src>

<mosaic_0001>
module attributes {stable_mosaic.version = 11 : i64} {
  func.func @_stem_dual_kernel(%arg0: i32, %arg1: memref<256x16xbf16, #tpu.memory_space<vmem>>, %arg2: memref<16x192xbf16, #tpu.memory_space<vmem>>, %arg3: memref<1x192xf32, #tpu.memory_space<vmem>>, %arg4: memref<16x192xbf16, #tpu.memory_space<vmem>>, %arg5: memref<1x192xf32, #tpu.memory_space<vmem>>, %arg6: memref<256x192xbf16, #tpu.memory_space<vmem>>, %arg7: memref<256x192xbf16, #tpu.memory_space<vmem>>) attributes {dimension_semantics = [#tpu.dimension_semantics<parallel>], iteration_bounds = array<i64: 2>, scalar_prefetch = 0 : i64, scratch_operands = 0 : i64, tpu.core_type = #tpu.core_type<tc>, window_params = [{transform_indices = @transform_0, window_bounds = array<i64: 256, 16>}, {pipeline_mode = #tpu.pipeline_mode<synchronous>, transform_indices = @transform_1, window_bounds = array<i64: 16, 192>}, {pipeline_mode = #tpu.pipeline_mode<synchronous>, transform_indices = @transform_2, window_bounds = array<i64: 1, 192>}, {pipeline_mode = #tpu.pipeline_mode<synchronous>, transform_indices = @transform_3, window_bounds = array<i64: 16, 192>}, {pipeline_mode = #tpu.pipeline_mode<synchronous>, transform_indices = @transform_4, window_bounds = array<i64: 1, 192>}, {transform_indices = @transform_5, window_bounds = array<i64: 256, 192>}, {transform_indices = @transform_6, window_bounds = array<i64: 256, 192>}]} {
    %c0 = arith.constant 0 : index
    %c0_0 = arith.constant 0 : index
    %0 = vector.load %arg1[%c0, %c0_0] : memref<256x16xbf16, #tpu.memory_space<vmem>>, vector<256x16xbf16>
    %c0_1 = arith.constant 0 : index
    %c0_2 = arith.constant 0 : index
    %1 = vector.load %arg2[%c0_1, %c0_2] : memref<16x192xbf16, #tpu.memory_space<vmem>>, vector<16x192xbf16>
    %cst = arith.constant dense<0.000000e+00> : vector<256x192xf32>
    %2 = tpu.matmul %0, %1, %cst {dimension_numbers = #tpu.dot_dimension_numbers<[1], [0], [0], [1], [0, 0, 1, 1], [], []>} : vector<256x16xbf16>, vector<16x192xbf16>, vector<256x192xf32> -> vector<256x192xf32>
    %c0_3 = arith.constant 0 : index
    %c0_4 = arith.constant 0 : index
    %3 = vector.load %arg3[%c0_3, %c0_4] : memref<1x192xf32, #tpu.memory_space<vmem>>, vector<1x192xf32>
    %4 = vector.broadcast %3 : vector<1x192xf32> to vector<256x192xf32>
    %5 = arith.addf %2, %4 : vector<256x192xf32>
    %cst_5 = arith.constant 0.000000e+00 : f32
    %6 = vector.broadcast %cst_5 : f32 to vector<256x192xf32>
    %7 = arith.maximumf %5, %6 : vector<256x192xf32>
    %8 = arith.truncf %7 : vector<256x192xf32> to vector<256x192xbf16>
    %c0_6 = arith.constant 0 : index
    %c0_7 = arith.constant 0 : index
    %9 = vector.load %arg6[%c0_6, %c0_7] : memref<256x192xbf16, #tpu.memory_space<vmem>>, vector<256x192xbf16>
    tpu.vector_store %arg6[%c0_6, %c0_7], %8 {strides = array<i32>} : memref<256x192xbf16, #tpu.memory_space<vmem>>, vector<256x192xbf16>,
    %c0_8 = arith.constant 0 : index
    %c0_9 = arith.constant 0 : index
    %10 = vector.load %arg4[%c0_8, %c0_9] : memref<16x192xbf16, #tpu.memory_space<vmem>>, vector<16x192xbf16>
    %cst_10 = arith.constant dense<0.000000e+00> : vector<256x192xf32>
    %11 = tpu.matmul %0, %10, %cst_10 {dimension_numbers = #tpu.dot_dimension_numbers<[1], [0], [0], [1], [0, 0, 1, 1], [], []>} : vector<256x16xbf16>, vector<16x192xbf16>, vector<256x192xf32> -> vector<256x192xf32>
    %c0_11 = arith.constant 0 : index
    %c0_12 = arith.constant 0 : index
    %12 = vector.load %arg5[%c0_11, %c0_12] : memref<1x192xf32, #tpu.memory_space<vmem>>, vector<1x192xf32>
    %13 = vector.broadcast %12 : vector<1x192xf32> to vector<256x192xf32>
    %14 = arith.addf %11, %13 : vector<256x192xf32>
    %cst_13 = arith.constant 0.000000e+00 : f32
    %15 = vector.broadcast %cst_13 : f32 to vector<256x192xf32>
    %16 = arith.maximumf %14, %15 : vector<256x192xf32>
    %17 = arith.truncf %16 : vector<256x192xf32> to vector<256x192xbf16>
    %c0_14 = arith.constant 0 : index
    %c0_15 = arith.constant 0 : index
    %18 = vector.load %arg7[%c0_14, %c0_15] : memref<256x192xbf16, #tpu.memory_space<vmem>>, vector<256x192xbf16>
    tpu.vector_store %arg7[%c0_14, %c0_15], %17 {strides = array<i32>} : memref<256x192xbf16, #tpu.memory_space<vmem>>, vector<256x192xbf16>,
    return
  }
  func.func @transform_0(%arg0: i32) -> (i32, i32) {
    %c0_i32 = arith.constant 0 : i32
    %c0_i32_0 = arith.constant 0 : i32
    return %arg0, %c0_i32 : i32, i32
  }
  func.func @transform_1(%arg0: i32) -> (i32, i32) {
    %c0_i32 = arith.constant 0 : i32
    %c0_i32_0 = arith.constant 0 : i32
    %c0_i32_1 = arith.constant 0 : i32
    return %c0_i32, %c0_i32_0 : i32, i32
  }
  func.func @transform_2(%arg0: i32) -> (i32, i32) {
    %c0_i32 = arith.constant 0 : i32
    %c0_i32_0 = arith.constant 0 : i32
    %c0_i32_1 = arith.constant 0 : i32
    return %c0_i32, %c0_i32_0 : i32, i32
  }
  func.func @transform_3(%arg0: i32) -> (i32, i32) {
    %c0_i32 = arith.constant 0 : i32
    %c0_i32_0 = arith.constant 0 : i32
    %c0_i32_1 = arith.constant 0 : i32
    return %c0_i32, %c0_i32_0 : i32, i32
  }
  func.func @transform_4(%arg0: i32) -> (i32, i32) {
    %c0_i32 = arith.constant 0 : i32
    %c0_i32_0 = arith.constant 0 : i32
    %c0_i32_1 = arith.constant 0 : i32
    return %c0_i32, %c0_i32_0 : i32, i32
  }
  func.func @transform_5(%arg0: i32) -> (i32, i32) {
    %c0_i32 = arith.constant 0 : i32
    %c0_i32_0 = arith.constant 0 : i32
    return %arg0, %c0_i32 : i32, i32
  }
  func.func @transform_6(%arg0: i32) -> (i32, i32) {
    %c0_i32 = arith.constant 0 : i32
    %c0_i32_0 = arith.constant 0 : i32
    return %arg0, %c0_i32 : i32, i32
  }
}

module attributes {stable_mosaic.version = 11 : i64} {
  func.func @_mm_bias_relu_kernel(%arg0: i32, %arg1: memref<256x1408xbf16, #tpu.memory_space<vmem>>, %arg2: memref<1408x192xbf16, #tpu.memory_space<vmem>>, %arg3: memref<1x192xf32, #tpu.memory_space<vmem>>, %arg4: memref<256x192xbf16, #tpu.memory_space<vmem>>) attributes {dimension_semantics = [#tpu.dimension_semantics<parallel>], iteration_bounds = array<i64: 2>, scalar_prefetch = 0 : i64, scratch_operands = 0 : i64, tpu.core_type = #tpu.core_type<tc>, window_params = [{transform_indices = @transform_0, window_bounds = array<i64: 256, 1408>}, {pipeline_mode = #tpu.pipeline_mode<synchronous>, transform_indices = @transform_1, window_bounds = array<i64: 1408, 192>}, {pipeline_mode = #tpu.pipeline_mode<synchronous>, transform_indices = @transform_2, window_bounds = array<i64: 1, 192>}, {transform_indices = @transform_3, window_bounds = array<i64: 256, 192>}]} {
    %c0 = arith.constant 0 : index
    %c0_0 = arith.constant 0 : index
    %0 = vector.load %arg1[%c0, %c0_0] : memref<256x1408xbf16, #tpu.memory_space<vmem>>, vector<256x1408xbf16>
    %c0_1 = arith.constant 0 : index
    %c0_2 = arith.constant 0 : index
    %1 = vector.load %arg2[%c0_1, %c0_2] : memref<1408x192xbf16, #tpu.memory_space<vmem>>, vector<1408x192xbf16>
    %cst = arith.constant dense<0.000000e+00> : vector<256x192xf32>
    %2 = tpu.matmul %0, %1, %cst {dimension_numbers = #tpu.dot_dimension_numbers<[1], [0], [0], [1], [0, 0, 1, 1], [], []>} : vector<256x1408xbf16>, vector<1408x192xbf16>, vector<256x192xf32> -> vector<256x192xf32>
    %c0_3 = arith.constant 0 : index
    %c0_4 = arith.constant 0 : index
    %3 = vector.load %arg3[%c0_3, %c0_4] : memref<1x192xf32, #tpu.memory_space<vmem>>, vector<1x192xf32>
    %4 = vector.broadcast %3 : vector<1x192xf32> to vector<256x192xf32>
    %5 = arith.addf %2, %4 : vector<256x192xf32>
    %cst_5 = arith.constant 0.000000e+00 : f32
    %6 = vector.broadcast %cst_5 : f32 to vector<256x192xf32>
    %7 = arith.maximumf %5, %6 : vector<256x192xf32>
    %8 = arith.truncf %7 : vector<256x192xf32> to vector<256x192xbf16>
    %c0_6 = arith.constant 0 : index
    %c0_7 = arith.constant 0 : index
    %9 = vector.load %arg4[%c0_6, %c0_7] : memref<256x192xbf16, #tpu.memory_space<vmem>>, vector<256x192xbf16>
    tpu.vector_store %arg4[%c0_6, %c0_7], %8 {strides = array<i32>} : memref<256x192xbf16, #tpu.memory_space<vmem>>, vector<256x192xbf16>,
    return
  }
  func.func @transform_0(%arg0: i32) -> (i32, i32) {
    %c0_i32 = arith.constant 0 : i32
    %c0_i32_0 = arith.constant 0 : i32
    return %arg0, %c0_i32 : i32, i32
  }
  func.func @transform_1(%arg0: i32) -> (i32, i32) {
    %c0_i32 = arith.constant 0 : i32
    %c0_i32_0 = arith.constant 0 : i32
    %c0_i32_1 = arith.constant 0 : i32
    return %c0_i32, %c0_i32_0 : i32, i32
  }
  func.func @transform_2(%arg0: i32) -> (i32, i32) {
    %c0_i32 = arith.constant 0 : i32
    %c0_i32_0 = arith.constant 0 : i32
    %c0_i32_1 = arith.constant 0 : i32
    return %c0_i32, %c0_i32_0 : i32, i32
  }
  func.func @transform_3(%arg0: i32) -> (i32, i32) {
    %c0_i32 = arith.constant 0 : i32
    %c0_i32_0 = arith.constant 0 : i32
    return %arg0, %c0_i32 : i32, i32
  }
}

module attributes {stable_mosaic.version = 11 : i64} {
  func.func @_mm_bias_relu_kernel(%arg0: i32, %arg1: memref<128x1792xbf16, #tpu.memory_space<vmem>>, %arg2: memref<1792x192xbf16, #tpu.memory_space<vmem>>, %arg3: memref<1x192xf32, #tpu.memory_space<vmem>>, %arg4: memref<128x192xf32, #tpu.memory_space<vmem>>) attributes {dimension_semantics = [#tpu.dimension_semantics<parallel>], iteration_bounds = array<i64: 1>, scalar_prefetch = 0 : i64, scratch_operands = 0 : i64, tpu.core_type = #tpu.core_type<tc>, window_params = [{transform_indices = @transform_0, window_bounds = array<i64: 128, 1792>}, {pipeline_mode = #tpu.pipeline_mode<synchronous>, transform_indices = @transform_1, window_bounds = array<i64: 1792, 192>}, {pipeline_mode = #tpu.pipeline_mode<synchronous>, transform_indices = @transform_2, window_bounds = array<i64: 1, 192>}, {transform_indices = @transform_3, window_bounds = array<i64: 128, 192>}]} {
    %c0 = arith.constant 0 : index
    %c0_0 = arith.constant 0 : index
    %0 = vector.load %arg1[%c0, %c0_0] : memref<128x1792xbf16, #tpu.memory_space<vmem>>, vector<128x1792xbf16>
    %c0_1 = arith.constant 0 : index
    %c0_2 = arith.constant 0 : index
    %1 = vector.load %arg2[%c0_1, %c0_2] : memref<1792x192xbf16, #tpu.memory_space<vmem>>, vector<1792x192xbf16>
    %cst = arith.constant dense<0.000000e+00> : vector<128x192xf32>
    %2 = tpu.matmul %0, %1, %cst {dimension_numbers = #tpu.dot_dimension_numbers<[1], [0], [0], [1], [0, 0, 1, 1], [], []>} : vector<128x1792xbf16>, vector<1792x192xbf16>, vector<128x192xf32> -> vector<128x192xf32>
    %c0_3 = arith.constant 0 : index
    %c0_4 = arith.constant 0 : index
    %3 = vector.load %arg3[%c0_3, %c0_4] : memref<1x192xf32, #tpu.memory_space<vmem>>, vector<1x192xf32>
    %4 = vector.broadcast %3 : vector<1x192xf32> to vector<128x192xf32>
    %5 = arith.addf %2, %4 : vector<128x192xf32>
    %cst_5 = arith.constant 0.000000e+00 : f32
    %6 = vector.broadcast %cst_5 : f32 to vector<128x192xf32>
    %7 = arith.maximumf %5, %6 : vector<128x192xf32>
    %c0_6 = arith.constant 0 : index
    %c0_7 = arith.constant 0 : index
    %8 = vector.load %arg4[%c0_6, %c0_7] : memref<128x192xf32, #tpu.memory_space<vmem>>, vector<128x192xf32>
    tpu.vector_store %arg4[%c0_6, %c0_7], %7 {strides = array<i32>} : memref<128x192xf32, #tpu.memory_space<vmem>>, vector<128x192xf32>,
    return
  }
  func.func @transform_0(%arg0: i32) -> (i32, i32) {
    %c0_i32 = arith.constant 0 : i32
    %c0_i32_0 = arith.constant 0 : i32
    return %arg0, %c0_i32 : i32, i32
  }
  func.func @transform_1(%arg0: i32) -> (i32, i32) {
    %c0_i32 = arith.constant 0 : i32
    %c0_i32_0 = arith.constant 0 : i32
    %c0_i32_1 = arith.constant 0 : i32
    return %c0_i32, %c0_i32_0 : i32, i32
  }
  func.func @transform_2(%arg0: i32) -> (i32, i32) {
    %c0_i32 = arith.constant 0 : i32
    %c0_i32_0 = arith.constant 0 : i32
    %c0_i32_1 = arith.constant 0 : i32
    return %c0_i32, %c0_i32_0 : i32, i32
  }
  func.func @transform_3(%arg0: i32) -> (i32, i32) {
    %c0_i32 = arith.constant 0 : i32
    %c0_i32_0 = arith.constant 0 : i32
    return %arg0, %c0_i32 : i32, i32
  }
}

module attributes {stable_mosaic.version = 11 : i64} {
  func.func @_mm_bias_relu_kernel(%arg0: i32, %arg1: memref<128x1792xbf16, #tpu.memory_space<vmem>>, %arg2: memref<1792x320xbf16, #tpu.memory_space<vmem>>, %arg3: memref<1x320xf32, #tpu.memory_space<vmem>>, %arg4: memref<128x320xf32, #tpu.memory_space<vmem>>) attributes {dimension_semantics = [#tpu.dimension_semantics<parallel>], iteration_bounds = array<i64: 1>, scalar_prefetch = 0 : i64, scratch_operands = 0 : i64, tpu.core_type = #tpu.core_type<tc>, window_params = [{transform_indices = @transform_0, window_bounds = array<i64: 128, 1792>}, {pipeline_mode = #tpu.pipeline_mode<synchronous>, transform_indices = @transform_1, window_bounds = array<i64: 1792, 320>}, {pipeline_mode = #tpu.pipeline_mode<synchronous>, transform_indices = @transform_2, window_bounds = array<i64: 1, 320>}, {transform_indices = @transform_3, window_bounds = array<i64: 128, 320>}]} {
    %c0 = arith.constant 0 : index
    %c0_0 = arith.constant 0 : index
    %0 = vector.load %arg1[%c0, %c0_0] : memref<128x1792xbf16, #tpu.memory_space<vmem>>, vector<128x1792xbf16>
    %c0_1 = arith.constant 0 : index
    %c0_2 = arith.constant 0 : index
    %1 = vector.load %arg2[%c0_1, %c0_2] : memref<1792x320xbf16, #tpu.memory_space<vmem>>, vector<1792x320xbf16>
    %cst = arith.constant dense<0.000000e+00> : vector<128x320xf32>
    %2 = tpu.matmul %0, %1, %cst {dimension_numbers = #tpu.dot_dimension_numbers<[1], [0], [0], [1], [0, 0, 1, 1], [], []>} : vector<128x1792xbf16>, vector<1792x320xbf16>, vector<128x320xf32> -> vector<128x320xf32>
    %c0_3 = arith.constant 0 : index
    %c0_4 = arith.constant 0 : index
    %3 = vector.load %arg3[%c0_3, %c0_4] : memref<1x320xf32, #tpu.memory_space<vmem>>, vector<1x320xf32>
    %4 = vector.broadcast %3 : vector<1x320xf32> to vector<128x320xf32>
    %5 = arith.addf %2, %4 : vector<128x320xf32>
    %cst_5 = arith.constant 0.000000e+00 : f32
    %6 = vector.broadcast %cst_5 : f32 to vector<128x320xf32>
    %7 = arith.maximumf %5, %6 : vector<128x320xf32>
    %c0_6 = arith.constant 0 : index
    %c0_7 = arith.constant 0 : index
    %8 = vector.load %arg4[%c0_6, %c0_7] : memref<128x320xf32, #tpu.memory_space<vmem>>, vector<128x320xf32>
    tpu.vector_store %arg4[%c0_6, %c0_7], %7 {strides = array<i32>} : memref<128x320xf32, #tpu.memory_space<vmem>>, vector<128x320xf32>,
    return
  }
  func.func @transform_0(%arg0: i32) -> (i32, i32) {
    %c0_i32 = arith.constant 0 : i32
    %c0_i32_0 = arith.constant 0 : i32
    return %arg0, %c0_i32 : i32, i32
  }
  func.func @transform_1(%arg0: i32) -> (i32, i32) {
    %c0_i32 = arith.constant 0 : i32
    %c0_i32_0 = arith.constant 0 : i32
    %c0_i32_1 = arith.constant 0 : i32
    return %c0_i32, %c0_i32_0 : i32, i32
  }
  func.func @transform_2(%arg0: i32) -> (i32, i32) {
    %c0_i32 = arith.constant 0 : i32
    %c0_i32_0 = arith.constant 0 : i32
    %c0_i32_1 = arith.constant 0 : i32
    return %c0_i32, %c0_i32_0 : i32, i32
  }
  func.func @transform_3(%arg0: i32) -> (i32, i32) {
    %c0_i32 = arith.constant 0 : i32
    %c0_i32_0 = arith.constant 0 : i32
    return %arg0, %c0_i32 : i32, i32
  }
}

</mosaic_0001>

<llo_original>
// kernel: inception_d_forward.5
$region0: #{inception_d_forward.5}
  #allocation0 [shape = 'u32[]', space=smem, size = 0x4, offset = 0x4, fixed_abs, tag = 'smem constant byte address 0x4 - core index']
  #allocation1 [shape = 'u32[144,128]{1,0:T(1,128)}', space=vmem, size = 0x12000, scoped, tag = 'internal scratch']
  %s0 = inlined_call_operand.vmem [shape: bf16[512,16], index: 0, kind: input, shape index: {}]
  %s1 = inlined_call_operand.vmem [shape: bf16[16,192], index: 1, kind: input, shape index: {}]
  %s2 = inlined_call_operand.vmem [shape: f32[1,192], index: 2, kind: input, shape index: {}]
  %s3 = inlined_call_operand.vmem [shape: bf16[16,192], index: 3, kind: input, shape index: {}]
  %s4 = inlined_call_operand.vmem [shape: f32[1,192], index: 4, kind: input, shape index: {}]
  %s5 = inlined_call_operand.vmem [shape: bf16[512,192], index: 5, kind: output, shape index: {0}]
  %s6 = inlined_call_operand.vmem [shape: bf16[512,192], index: 6, kind: output, shape index: {1}]
  %7 = xla_tuple %s5, %s6
  %s8 = sld [smem:[#allocation0]]
  $region61: #{inception_d_forward.5} parent=0
    _
  %s10 = ssub.s32 1, %s8
  %s11 = scalar_select 0, %s10, %s8
  loop: start=0, step=1, limit=4
  $region2: #{inception_d_forward.5} parent=0 // loop_pre_header
    _
  $region3: #{inception_d_forward.5} parent=0 // loop_header
    %s13 = sphi 0, %s17
    %p14 = scmp.ge.s32.totalorder %s13, 4
    %s23 = sphi 0, %s25
    %s26 = sphi 0, %s23
    %s27 = sphi 0, %s26
    %s43 = sphi 0, %s27
    %s47 = sphi 0, %s47
    %s49 = sphi 0, %s47
    %s50 = sphi 0, %s49
    %s64 = sphi 0, %s50
    %s68 = sphi 0, %s68
    %s70 = sphi 0, %s68
    %s71 = sphi 0, %s70
    %s85 = sphi 0, %s71
    %s89 = sphi 0, %s89
    %s91 = sphi 0, %s89
    %s92 = sphi 0, %s91
    %s106 = sphi 0, %s92
    %s110 = sphi 0, %s110
    %s112 = sphi 0, %s110
    %s113 = sphi 0, %s112
    %s127 = sphi 0, %s113
    %s133 = sphi 0, %s135
    %s136 = sphi 0, %s133
    %s137 = sphi 0, %s136
    %s153 = sphi 0, %s137
    %s159 = sphi 0, %s161
    %s162 = sphi 0, %s159
    %s163 = sphi 0, %s162
    %s179 = sphi 0, %s163
  $region4: #{inception_d_forward.5} parent=0 // loop_header_branch
    %16 = sbr.rel (%p14) target = $region8
  $region5: #{inception_d_forward.5} parent=0 // loop_body
    %s18 = ssub.s32 %s13, 1
    %s19 = ssub.s32 %s13, 2
    %s20 = sadd.s32 %s13, 1
    %s21 = ssub.s32 %s13, %s20
    %p22 = scmp.eq.s32.totalorder %s21, 0
    %s24 = sadd.s32 %s23, 1
    %s25 = scalar_select %p22, %s23, %s24
    %p28 = pneg %p22
    %p29 = scmp.eq.s32.totalorder %s13, 1
    %p30 = por %p28, %p29
    %p31 = scmp.ne.s32.totalorder %s23, %s26
    %p32 = scmp.eq.s32.totalorder %s13, 0
    %p33 = por %p31, %p32
    %p34 = scmp.ne.s32.totalorder %s23, %s26
    %p35 = scmp.eq.s32.totalorder %s18, 1
    %p36 = por %p34, %p35
    %p37 = scmp.ne.s32.totalorder %s26, %s27
    %p38 = scmp.eq.s32.totalorder %s18, 0
    %p39 = por %p37, %p38
    %p40 = scmp.ne.s32.totalorder %s26, %s27
    %p41 = scmp.eq.s32.totalorder %s19, 1
    %p42 = por %p40, %p41
    %p44 = scmp.ne.s32.totalorder %s27, %s43
    %p45 = scmp.eq.s32.totalorder %s19, 0
    %p46 = por %p44, %p45
    %s48 = sadd.s32 %s47, 1
    %p51 = scmp.eq.s32.totalorder %s13, 1
    %p52 = scmp.ne.s32.totalorder %s47, %s49
    %p53 = scmp.eq.s32.totalorder %s13, 0
    %p54 = por %p52, %p53
    %p55 = scmp.ne.s32.totalorder %s47, %s49
    %p56 = scmp.eq.s32.totalorder %s18, 1
    %p57 = por %p55, %p56
    %p58 = scmp.ne.s32.totalorder %s49, %s50
    %p59 = scmp.eq.s32.totalorder %s18, 0
    %p60 = por %p58, %p59
    %p61 = scmp.ne.s32.totalorder %s49, %s50
    %p62 = scmp.eq.s32.totalorder %s19, 1
    %p63 = por %p61, %p62
    %p65 = scmp.ne.s32.totalorder %s50, %s64
    %p66 = scmp.eq.s32.totalorder %s19, 0
    %p67 = por %p65, %p66
    %s69 = sadd.s32 %s68, 1
    %p72 = scmp.eq.s32.totalorder %s13, 1
    %p73 = scmp.ne.s32.totalorder %s68, %s70
    %p74 = scmp.eq.s32.totalorder %s13, 0
    %p75 = por %p73, %p74
    %p76 = scmp.ne.s32.totalorder %s68, %s70
    %p77 = scmp.eq.s32.totalorder %s18, 1
    %p78 = por %p76, %p77
    %p79 = scmp.ne.s32.totalorder %s70, %s71
    %p80 = scmp.eq.s32.totalorder %s18, 0
    %p81 = por %p79, %p80
    %p82 = scmp.ne.s32.totalorder %s70, %s71
    %p83 = scmp.eq.s32.totalorder %s19, 1
    %p84 = por %p82, %p83
    %p86 = scmp.ne.s32.totalorder %s71, %s85
    %p87 = scmp.eq.s32.totalorder %s19, 0
    %p88 = por %p86, %p87
    %s90 = sadd.s32 %s89, 1
    %p93 = scmp.eq.s32.totalorder %s13, 1
    %p94 = scmp.ne.s32.totalorder %s89, %s91
    %p95 = scmp.eq.s32.totalorder %s13, 0
    %p96 = por %p94, %p95
    %p97 = scmp.ne.s32.totalorder %s89, %s91
    %p98 = scmp.eq.s32.totalorder %s18, 1
    %p99 = por %p97, %p98
    %p100 = scmp.ne.s32.totalorder %s91, %s92
    %p101 = scmp.eq.s32.totalorder %s18, 0
    %p102 = por %p100, %p101
    %p103 = scmp.ne.s32.totalorder %s91, %s92
    %p104 = scmp.eq.s32.totalorder %s19, 1
    %p105 = por %p103, %p104
    %p107 = scmp.ne.s32.totalorder %s92, %s106
    %p108 = scmp.eq.s32.totalorder %s19, 0
    %p109 = por %p107, %p108
    %s111 = sadd.s32 %s110, 1
    %p114 = scmp.eq.s32.totalorder %s13, 1
    %p115 = scmp.ne.s32.totalorder %s110, %s112
    %p116 = scmp.eq.s32.totalorder %s13, 0
    %p117 = por %p115, %p116
    %p118 = scmp.ne.s32.totalorder %s110, %s112
    %p119 = scmp.eq.s32.totalorder %s18, 1
    %p120 = por %p118, %p119
    %p121 = scmp.ne.s32.totalorder %s112, %s113
    %p122 = scmp.eq.s32.totalorder %s18, 0
    %p123 = por %p121, %p122
    %p124 = scmp.ne.s32.totalorder %s112, %s113
    %p125 = scmp.eq.s32.totalorder %s19, 1
    %p126 = por %p124, %p125
    %p128 = scmp.ne.s32.totalorder %s113, %s127
    %p129 = scmp.eq.s32.totalorder %s19, 0
    %p130 = por %p128, %p129
    %s131 = ssub.s32 %s13, %s20
    %p132 = scmp.eq.s32.totalorder %s131, 0
    %s134 = sadd.s32 %s133, 1
    %s135 = scalar_select %p132, %s133, %s134
    %p138 = pneg %p132
    %p139 = scmp.eq.s32.totalorder %s13, 1
    %p140 = por %p138, %p139
    %p141 = scmp.ne.s32.totalorder %s133, %s136
    %p142 = scmp.eq.s32.totalorder %s13, 0
    %p143 = por %p141, %p142
    %p144 = scmp.ne.s32.totalorder %s133, %s136
    %p145 = scmp.eq.s32.totalorder %s18, 1
    %p146 = por %p144, %p145
    %p147 = scmp.ne.s32.totalorder %s136, %s137
    %p148 = scmp.eq.s32.totalorder %s18, 0
    %p149 = por %p147, %p148
    %p150 = scmp.ne.s32.totalorder %s136, %s137
    %p151 = scmp.eq.s32.totalorder %s19, 1
    %p152 = por %p150, %p151
    %p154 = scmp.ne.s32.totalorder %s137, %s153
    %p155 = scmp.eq.s32.totalorder %s19, 0
    %p156 = por %p154, %p155
    %s157 = ssub.s32 %s13, %s20
    %p158 = scmp.eq.s32.totalorder %s157, 0
    %s160 = sadd.s32 %s159, 1
    %s161 = scalar_select %p158, %s159, %s160
    %p164 = pneg %p158
    %p165 = scmp.eq.s32.totalorder %s13, 1
    %p166 = por %p164, %p165
    %p167 = scmp.ne.s32.totalorder %s159, %s162
    %p168 = scmp.eq.s32.totalorder %s13, 0
    %p169 = por %p167, %p168
    %p170 = scmp.ne.s32.totalorder %s159, %s162
    %p171 = scmp.eq.s32.totalorder %s18, 1
    %p172 = por %p170, %p171
    %p173 = scmp.ne.s32.totalorder %s162, %s163
    %p174 = scmp.eq.s32.totalorder %s18, 0
    %p175 = por %p173, %p174
    %p176 = scmp.ne.s32.totalorder %s162, %s163
    %p177 = scmp.eq.s32.totalorder %s19, 1
    %p178 = por %p176, %p177
    %p180 = scmp.ne.s32.totalorder %s163, %s179
    %p181 = scmp.eq.s32.totalorder %s19, 0
    %p182 = por %p180, %p181
    %p183 = scmp.le.s32.totalorder 1, %s13
    %p184 = scmp.lt.s32.totalorder %s13, 3
    %p185 = pnand %p183, %p184
    %p186 = pneg %p185
    // Predicated region
    $region9: #{inception_d_forward.5} parent=5 // pred_check
      _
    $region10: #{inception_d_forward.5} parent=5 // pred_check_branch
      %188 = sbr.rel (%p185) target = $region12
    $region11: #{inception_d_forward.5} parent=5 // pred_region
      %s189 = ssub.s32 %s13, 1
      // Predicated region
      $region13: #{inception_d_forward.5} parent=11 // pred_check
        %p190 = pneg %p60
      $region14: #{inception_d_forward.5} parent=11 // pred_check_branch
        %192 = sbr.rel (%p190) target = $region16
      $region15: #{inception_d_forward.5} parent=11 // pred_region
        _
      $region16: #{inception_d_forward.5} parent=11 // pred_fallthru
        _
      // Predicated region
      $region17: #{inception_d_forward.5} parent=11 // pred_check
        %p193 = pneg %p81
      $region18: #{inception_d_forward.5} parent=11 // pred_check_branch
        %195 = sbr.rel (%p193) target = $region20
      $region19: #{inception_d_forward.5} parent=11 // pred_region
        _
      $region20: #{inception_d_forward.5} parent=11 // pred_fallthru
        _
      // Predicated region
      $region21: #{inception_d_forward.5} parent=11 // pred_check
        %p196 = pneg %p102
      $region22: #{inception_d_forward.5} parent=11 // pred_check_branch
        %198 = sbr.rel (%p196) target = $region24
      $region23: #{inception_d_forward.5} parent=11 // pred_region
        _
      $region24: #{inception_d_forward.5} parent=11 // pred_fallthru
        _
      // Predicated region
      $region25: #{inception_d_forward.5} parent=11 // pred_check
        %p199 = pneg %p123
      $region26: #{inception_d_forward.5} parent=11 // pred_check_branch
        %201 = sbr.rel (%p199) target = $region28
      $region27: #{inception_d_forward.5} parent=11 // pred_region
        _
      $region28: #{inception_d_forward.5} parent=11 // pred_fallthru
        _
    $region12: #{inception_d_forward.5} parent=5 // pred_fallthru
      _
    %p202 = scmp.lt.s32.totalorder %s13, 2
    // Predicated region
    $region29: #{inception_d_forward.5} parent=5 // pred_check
      %p203 = pneg %p202
    $region30: #{inception_d_forward.5} parent=5 // pred_check_branch
      %205 = sbr.rel (%p203) target = $region32
    $region31: #{inception_d_forward.5} parent=5 // pred_region
      // Predicated region
      $region33: #{inception_d_forward.5} parent=31 // pred_check
        %p206 = pneg %p33
      $region34: #{inception_d_forward.5} parent=31 // pred_check_branch
        %208 = sbr.rel (%p206) target = $region36
      $region35: #{inception_d_forward.5} parent=31 // pred_region
        %s209 = smul.u32 32, %s13
        %p210 = scmp.lt.s32.totalorder %s209, 63
        %s211 = scalar_select %p210, %s209, 63
        %s212 = smul.addr %s211, 4
        %s213 = scalar_lea.vmem %s0, %s212
        %s214 = smul.u32 32, %s13
      $region36: #{inception_d_forward.5} parent=31 // pred_fallthru
        _
    $region32: #{inception_d_forward.5} parent=5 // pred_fallthru
      _
    %p215 = scmp.le.s32.totalorder 1, %s13
    %p216 = scmp.lt.s32.totalorder %s13, 3
    %p217 = pnand %p215, %p216
    %p218 = pneg %p217
    // Predicated region
    $region37: #{inception_d_forward.5} parent=5 // pred_check
      _
    $region38: #{inception_d_forward.5} parent=5 // pred_check_branch
      %220 = sbr.rel (%p217) target = $region40
    $region39: #{inception_d_forward.5} parent=5 // pred_region
      %s221 = ssub.s32 %s13, 1
      %s222 = smul.u32 32, %s18
      %p223 = scmp.lt.s32.totalorder %s222, 63
      %s224 = scalar_select %p223, %s222, 63
      %s225 = smul.addr %s224, 4
      %s226 = scalar_lea.vmem %s0, %s225
      %p227 = pneg %p39
      %p228 = pneg %p36
      %p229 = pneg %p60
      %p230 = pneg %p57
      %p231 = pneg %p81
      %p232 = pneg %p78
      %p233 = pneg %p102
      %p234 = pneg %p99
      %p235 = pneg %p123
      %p236 = pneg %p120
      %p237 = pneg %p149
      %p238 = pneg %p146
      %s239 = smul.u32 32, %s18
      %p240 = scmp.lt.s32.totalorder %s239, 63
      %s241 = scalar_select %p240, %s239, 63
      %s242 = smul.addr %s241, 2
      %s243 = smul.addr %s242, 4
      %s244 = scalar_lea.vmem %s5, %s243
      %p245 = pneg %p175
      %p246 = pneg %p172
      %s247 = smul.u32 32, %s18
      %p248 = scmp.lt.s32.totalorder %s247, 63
      %s249 = scalar_select %p248, %s247, 63
      %s250 = smul.addr %s249, 2
      %s251 = smul.addr %s250, 4
      %s252 = scalar_lea.vmem %s6, %s251
      %s253 = smul.u32 32, %s18
      %p254 = scmp.lt.s32.totalorder %s253, 63
      %s255 = scalar_select %p254, %s253, 63
      %s256 = smul.addr %s255, 4
      %s257 = scalar_lea.vmem %s0, %s256
      %s258 = smul.u32 32, %s18
      %s259 = smul.u32 32, %s18
      %p260 = scmp.lt.s32.totalorder %s259, 63
      %s261 = scalar_select %p260, %s259, 63
      %s262 = smul.addr %s261, 2
      %s263 = smul.addr %s262, 4
      %s264 = scalar_lea.vmem %s5, %s263
      %s265 = smul.u32 32, %s18
      %s266 = smul.u32 32, %s18
      %p267 = scmp.lt.s32.totalorder %s266, 63
      %s268 = scalar_select %p267, %s266, 63
      %s269 = smul.addr %s268, 2
      %s270 = smul.addr %s269, 4
      %s271 = scalar_lea.vmem %s6, %s270
      %s272 = smul.u32 32, %s18
      %v274 = vld [vmem:[%s257] sm:$0xf]
      %v275 = vld [vmem:[%s257 + $0x4] sm:$0xf]
      %v276 = vld [vmem:[%s257 + $0x8] sm:$0xf]
      %v277 = vld [vmem:[%s257 + $0xc] sm:$0xf]
      %v278 = vld [vmem:[%s257 + $0x10] sm:$0xf]
      %v279 = vld [vmem:[%s257 + $0x14] sm:$0xf]
      %v280 = vld [vmem:[%s257 + $0x18] sm:$0xf]
      %v281 = vld [vmem:[%s257 + $0x1c] sm:$0xf]
      %v282 = vld [vmem:[%s257 + $0x20] sm:$0xf]
      %v283 = vld [vmem:[%s257 + $0x24] sm:$0xf]
      %v284 = vld [vmem:[%s257 + $0x28] sm:$0xf]
      %v285 = vld [vmem:[%s257 + $0x2c] sm:$0xf]
      %v286 = vld [vmem:[%s257 + $0x30] sm:$0xf]
      %v287 = vld [vmem:[%s257 + $0x34] sm:$0xf]
      %v288 = vld [vmem:[%s257 + $0x38] sm:$0xf]
      %v289 = vld [vmem:[%s257 + $0x3c] sm:$0xf]
      %v290 = vld [vmem:[%s257 + $0x40] sm:$0xf]
      %v291 = vld [vmem:[%s257 + $0x44] sm:$0xf]
      %v292 = vld [vmem:[%s257 + $0x48] sm:$0xf]
      %v293 = vld [vmem:[%s257 + $0x4c] sm:$0xf]
      %v294 = vld [vmem:[%s257 + $0x50] sm:$0xf]
      %v295 = vld [vmem:[%s257 + $0x54] sm:$0xf]
      %v296 = vld [vmem:[%s257 + $0x58] sm:$0xf]
      %v297 = vld [vmem:[%s257 + $0x5c] sm:$0xf]
      %v298 = vld [vmem:[%s257 + $0x60] sm:$0xf]
      %v299 = vld [vmem:[%s257 + $0x64] sm:$0xf]
      %v300 = vld [vmem:[%s257 + $0x68] sm:$0xf]
      %v301 = vld [vmem:[%s257 + $0x6c] sm:$0xf]
      %v302 = vld [vmem:[%s257 + $0x70] sm:$0xf]
      %v303 = vld [vmem:[%s257 + $0x74] sm:$0xf]
      %v304 = vld [vmem:[%s257 + $0x78] sm:$0xf]
      %v305 = vld [vmem:[%s257 + $0x7c] sm:$0xf]
      %v306 = vld [vmem:[%s1] sm:$0xff]
      %v307 = vld [vmem:[%s1 + $0x8] sm:$0xff]
      %v308 = vld [vmem:[%s2] sm:$0x3]
      %v310 = vlaneseq
      %v311 = vshrl.u32 %v310, 7
      %v312 = vsub.s32 0, %v311
      %v313 = vrot.slane %v308, %v312
      %v314 = vlaneseq
      %v315 = vshrl.u32 %v314, 7
      %v316 = vsub.s32 1, %v315
      %v317 = vrot.slane %v308, %v316
      %v352 = vunpack.c.l.b16 %v274
      %v353 = vunpack.c.l.b16 %v275
      %v354 = vunpack.c.l.b16 %v276
      %v355 = vunpack.c.l.b16 %v277
      %v356 = vunpack.c.l.b16 %v278
      %v357 = vunpack.c.l.b16 %v279
      %v358 = vunpack.c.l.b16 %v280
      %v359 = vunpack.c.l.b16 %v281
      %v360 = vunpack.c.l.b16 %v282
      %v361 = vunpack.c.l.b16 %v283
      %v362 = vunpack.c.l.b16 %v284
      %v363 = vunpack.c.l.b16 %v285
      %v364 = vunpack.c.l.b16 %v286
      %v365 = vunpack.c.l.b16 %v287
      %v366 = vunpack.c.l.b16 %v288
      %v367 = vunpack.c.l.b16 %v289
      %v368 = vunpack.c.l.b16 %v290
      %v369 = vunpack.c.l.b16 %v291
      %v370 = vunpack.c.l.b16 %v292
      %v371 = vunpack.c.l.b16 %v293
      %v372 = vunpack.c.l.b16 %v294
      %v373 = vunpack.c.l.b16 %v295
      %v374 = vunpack.c.l.b16 %v296
      %v375 = vunpack.c.l.b16 %v297
      %v376 = vunpack.c.l.b16 %v298
      %v377 = vunpack.c.l.b16 %v299
      %v378 = vunpack.c.l.b16 %v300
      %v379 = vunpack.c.l.b16 %v301
      %v380 = vunpack.c.l.b16 %v302
      %v381 = vunpack.c.l.b16 %v303
      %v382 = vunpack.c.l.b16 %v304
      %v383 = vunpack.c.l.b16 %v305
      %v384 = vpack.c.b16 %v353, %v352
      %v385 = vpack.c.b16 %v355, %v354
      %v386 = vpack.c.b16 %v357, %v356
      %v387 = vpack.c.b16 %v359, %v358
      %v388 = vpack.c.b16 %v361, %v360
      %v389 = vpack.c.b16 %v363, %v362
      %v390 = vpack.c.b16 %v365, %v364
      %v391 = vpack.c.b16 %v367, %v366
      %v392 = vpack.c.b16 %v369, %v368
      %v393 = vpack.c.b16 %v371, %v370
      %v394 = vpack.c.b16 %v373, %v372
      %v395 = vpack.c.b16 %v375, %v374
      %v396 = vpack.c.b16 %v377, %v376
      %v397 = vpack.c.b16 %v379, %v378
      %v398 = vpack.c.b16 %v381, %v380
      %v399 = vpack.c.b16 %v383, %v382
      %v402 = vunpack.c.l.b16 %v306
      %v403 = vunpack.c.h.b16 %v306
      %v404 = vunpack.c.l.b16 %v307
      %v405 = vunpack.c.h.b16 %v307
      %v406 = vpack.c.b16 %v404, %v402
      %v407 = vpack.c.b16 %v405, %v403
      %vm410 = vcmask 130048
      %v412 = vsel %vm410, %v384, 0
      %v415 = vsel %vm410, %v385, 0
      %v418 = vsel %vm410, %v386, 0
      %v421 = vsel %vm410, %v387, 0
      %v424 = vsel %vm410, %v388, 0
      %v427 = vsel %vm410, %v389, 0
      %v430 = vsel %vm410, %v390, 0
      %v433 = vsel %vm410, %v391, 0
      %v436 = vsel %vm410, %v392, 0
      %v439 = vsel %vm410, %v393, 0
      %v442 = vsel %vm410, %v394, 0
      %v445 = vsel %vm410, %v395, 0
      %v448 = vsel %vm410, %v396, 0
      %v451 = vsel %vm410, %v397, 0
      %v454 = vsel %vm410, %v398, 0
      %v457 = vsel %vm410, %v399, 0
      %459 = vmatprep.subr.bf16.mxu0 %v407
      %460 = vmatpush1.bf16.msra.mxu0 %v406
      %461 = vmatprep.subr.bf16.mxu0 0
      %462 = vmatpush1.bf16.msra.mxu0 0
      %463 = vmatprep.subr.bf16.mxu0 0
      %464 = vmatpush1.bf16.msra.mxu0 0
      %465 = vmatprep.subr.bf16.mxu0 0
      %466 = vmatpush1.bf16.msra.mxu0 0
      %467 = vmatprep.subr.bf16.mxu0 0
      %468 = vmatpush1.bf16.msra.mxu0 0
      %469 = vmatprep.subr.bf16.mxu0 0
      %470 = vmatpush1.bf16.msra.mxu0 0
      %471 = vmatprep.subr.bf16.mxu0 0
      %472 = vmatpush1.bf16.msra.mxu0 0
      %473 = vmatprep.subr.bf16.mxu0 0
      %474 = vmatpush1.bf16.msra.mxu0 0
      %475 = vmatprep.subr.bf16.mxu0 0
      %476 = vmatpush1.bf16.msra.mxu0 0
      %477 = vmatprep.subr.bf16.mxu0 0
      %478 = vmatpush1.bf16.msra.mxu0 0
      %479 = vmatprep.subr.bf16.mxu0 0
      %480 = vmatpush1.bf16.msra.mxu0 0
      %481 = vmatprep.subr.bf16.mxu0 0
      %482 = vmatpush1.bf16.msra.mxu0 0
      %483 = vmatprep.subr.bf16.mxu0 0
      %484 = vmatpush1.bf16.msra.mxu0 0
      %485 = vmatprep.subr.bf16.mxu0 0
      %486 = vmatpush1.bf16.msra.mxu0 0
      %487 = vmatprep.subr.bf16.mxu0 0
      %488 = vmatpush1.bf16.msra.mxu0 0
      %489 = vmatprep.subr.bf16.mxu0 0
      %490 = vmatpush1.bf16.msra.mxu0 0
      %491 = vmatprep.mubr.bf16.mxu0 0
      %492 = vmatmul.mubr.bf16.gmra.mrb[0].mxu0 %v412
      %v493 = vpop.f32.mrb[0].mxu0
      %v494 = vadd.f32 %v313, %v493
      %v495 = vpop.f32.mrb[0].mxu0
      %v496 = vadd.f32 %v317, %v495
      %v497 = vpop.f32.mrb[0].mxu0
      %v498 = vadd.f32 %v313, %v497
      %v499 = vpop.f32.mrb[0].mxu0
      %v500 = vadd.f32 %v317, %v499
      %501 = vmatprep.mubr.bf16.mxu0 0
      %502 = vmatmul.mubr.bf16.gmra.mrb[0].mxu0 %v415
      %v503 = vpop.f32.mrb[0].mxu0
      %v504 = vadd.f32 %v313, %v503
      %v505 = vpop.f32.mrb[0].mxu0
      %v506 = vadd.f32 %v317, %v505
      %v507 = vpop.f32.mrb[0].mxu0
      %v508 = vadd.f32 %v313, %v507
      %v509 = vpop.f32.mrb[0].mxu0
      %v510 = vadd.f32 %v317, %v509
      %511 = vmatprep.mubr.bf16.mxu0 0
      %512 = vmatmul.mubr.bf16.gmra.mrb[0].mxu0 %v418
      %v513 = vpop.f32.mrb[0].mxu0
      %v514 = vadd.f32 %v313, %v513
      %v515 = vpop.f32.mrb[0].mxu0
      %v516 = vadd.f32 %v317, %v515
      %v517 = vpop.f32.mrb[0].mxu0
      %v518 = vadd.f32 %v313, %v517
      %v519 = vpop.f32.mrb[0].mxu0
      %v520 = vadd.f32 %v317, %v519
      %521 = vmatprep.mubr.bf16.mxu0 0
      %522 = vmatmul.mubr.bf16.gmra.mrb[0].mxu0 %v421
      %v523 = vpop.f32.mrb[0].mxu0
      %v524 = vadd.f32 %v313, %v523
      %v525 = vpop.f32.mrb[0].mxu0
      %v526 = vadd.f32 %v317, %v525
      %v527 = vpop.f32.mrb[0].mxu0
      %v528 = vadd.f32 %v313, %v527
      %v529 = vpop.f32.mrb[0].mxu0
      %v530 = vadd.f32 %v317, %v529
      %531 = vmatprep.mubr.bf16.mxu0 0
      %532 = vmatmul.mubr.bf16.gmra.mrb[0].mxu0 %v424
      %v533 = vpop.f32.mrb[0].mxu0
      %v534 = vadd.f32 %v313, %v533
      %v535 = vpop.f32.mrb[0].mxu0
      %v536 = vadd.f32 %v317, %v535
      %v537 = vpop.f32.mrb[0].mxu0
      %v538 = vadd.f32 %v313, %v537
      %v539 = vpop.f32.mrb[0].mxu0
      %v540 = vadd.f32 %v317, %v539
      %541 = vmatprep.mubr.bf16.mxu0 0
      %542 = vmatmul.mubr.bf16.gmra.mrb[0].mxu0 %v427
      %v543 = vpop.f32.mrb[0].mxu0
      %v544 = vadd.f32 %v313, %v543
      %v545 = vpop.f32.mrb[0].mxu0
      %v546 = vadd.f32 %v317, %v545
      %v547 = vpop.f32.mrb[0].mxu0
      %v548 = vadd.f32 %v313, %v547
      %v549 = vpop.f32.mrb[0].mxu0
      %v550 = vadd.f32 %v317, %v549
      %551 = vmatprep.mubr.bf16.mxu0 0
      %552 = vmatmul.mubr.bf16.gmra.mrb[0].mxu0 %v430
      %v553 = vpop.f32.mrb[0].mxu0
      %v554 = vadd.f32 %v313, %v553
      %v555 = vpop.f32.mrb[0].mxu0
      %v556 = vadd.f32 %v317, %v555
      %v557 = vpop.f32.mrb[0].mxu0
      %v558 = vadd.f32 %v313, %v557
      %v559 = vpop.f32.mrb[0].mxu0
      %v560 = vadd.f32 %v317, %v559
      %561 = vmatprep.mubr.bf16.mxu0 0
      %562 = vmatmul.mubr.bf16.gmra.mrb[0].mxu0 %v433
      %v563 = vpop.f32.mrb[0].mxu0
      %v564 = vadd.f32 %v313, %v563
      %v565 = vpop.f32.mrb[0].mxu0
      %v566 = vadd.f32 %v317, %v565
      %v567 = vpop.f32.mrb[0].mxu0
      %v568 = vadd.f32 %v313, %v567
      %v569 = vpop.f32.mrb[0].mxu0
      %v570 = vadd.f32 %v317, %v569
      %571 = vmatprep.mubr.bf16.mxu0 0
      %572 = vmatmul.mubr.bf16.gmra.mrb[0].mxu0 %v436
      %v573 = vpop.f32.mrb[0].mxu0
      %v574 = vadd.f32 %v313, %v573
      %v575 = vpop.f32.mrb[0].mxu0
      %v576 = vadd.f32 %v317, %v575
      %v577 = vpop.f32.mrb[0].mxu0
      %v578 = vadd.f32 %v313, %v577
      %v579 = vpop.f32.mrb[0].mxu0
      %v580 = vadd.f32 %v317, %v579
      %581 = vmatprep.mubr.bf16.mxu0 0
      %582 = vmatmul.mubr.bf16.gmra.mrb[0].mxu0 %v439
      %v583 = vpop.f32.mrb[0].mxu0
      %v584 = vadd.f32 %v313, %v583
      %v585 = vpop.f32.mrb[0].mxu0
      %v586 = vadd.f32 %v317, %v585
      %v587 = vpop.f32.mrb[0].mxu0
      %v588 = vadd.f32 %v313, %v587
      %v589 = vpop.f32.mrb[0].mxu0
      %v590 = vadd.f32 %v317, %v589
      %591 = vmatprep.mubr.bf16.mxu0 0
      %592 = vmatmul.mubr.bf16.gmra.mrb[0].mxu0 %v442
      %v593 = vpop.f32.mrb[0].mxu0
      %v594 = vadd.f32 %v313, %v593
      %v595 = vpop.f32.mrb[0].mxu0
      %v596 = vadd.f32 %v317, %v595
      %v597 = vpop.f32.mrb[0].mxu0
      %v598 = vadd.f32 %v313, %v597
      %v599 = vpop.f32.mrb[0].mxu0
      %v600 = vadd.f32 %v317, %v599
      %601 = vmatprep.mubr.bf16.mxu0 0
      %602 = vmatmul.mubr.bf16.gmra.mrb[0].mxu0 %v445
      %v603 = vpop.f32.mrb[0].mxu0
      %v604 = vadd.f32 %v313, %v603
      %v605 = vpop.f32.mrb[0].mxu0
      %v606 = vadd.f32 %v317, %v605
      %v607 = vpop.f32.mrb[0].mxu0
      %v608 = vadd.f32 %v313, %v607
      %v609 = vpop.f32.mrb[0].mxu0
      %v610 = vadd.f32 %v317, %v609
      %611 = vmatprep.mubr.bf16.mxu0 0
      %612 = vmatmul.mubr.bf16.gmra.mrb[0].mxu0 %v448
      %v613 = vpop.f32.mrb[0].mxu0
      %v614 = vadd.f32 %v313, %v613
      %v615 = vpop.f32.mrb[0].mxu0
      %v616 = vadd.f32 %v317, %v615
      %v617 = vpop.f32.mrb[0].mxu0
      %v618 = vadd.f32 %v313, %v617
      %v619 = vpop.f32.mrb[0].mxu0
      %v620 = vadd.f32 %v317, %v619
      %621 = vmatprep.mubr.bf16.mxu0 0
      %622 = vmatmul.mubr.bf16.gmra.mrb[0].mxu0 %v451
      %v623 = vpop.f32.mrb[0].mxu0
      %v624 = vadd.f32 %v313, %v623
      %v625 = vpop.f32.mrb[0].mxu0
      %v626 = vadd.f32 %v317, %v625
      %v627 = vpop.f32.mrb[0].mxu0
      %v628 = vadd.f32 %v313, %v627
      %v629 = vpop.f32.mrb[0].mxu0
      %v630 = vadd.f32 %v317, %v629
      %631 = vmatprep.mubr.bf16.mxu0 0
      %632 = vmatmul.mubr.bf16.gmra.mrb[0].mxu0 %v454
      %v633 = vpop.f32.mrb[0].mxu0
      %v634 = vadd.f32 %v313, %v633
      %v635 = vpop.f32.mrb[0].mxu0
      %v636 = vadd.f32 %v317, %v635
      %v637 = vpop.f32.mrb[0].mxu0
      %v638 = vadd.f32 %v313, %v637
      %v639 = vpop.f32.mrb[0].mxu0
      %v640 = vadd.f32 %v317, %v639
      %641 = vmatprep.mubr.bf16.mxu0 0
      %642 = vmatmul.mubr.bf16.gmra.mrb[0].mxu0 %v457
      %v643 = vpop.f32.mrb[0].mxu0
      %v644 = vadd.f32 %v313, %v643
      %v645 = vpop.f32.mrb[0].mxu0
      %v646 = vadd.f32 %v317, %v645
      %v647 = vpop.f32.mrb[0].mxu0
      %v648 = vadd.f32 %v313, %v647
      %v649 = vpop.f32.mrb[0].mxu0
      %v650 = vadd.f32 %v317, %v649
      %651 = vdwg.mxu0
      %v652 = vmax.f32 %v494, 0.0
      %v653 = vmax.f32 %v496, 0.0
      %v654 = vmax.f32 %v498, 0.0
      %v655 = vmax.f32 %v500, 0.0
      %v656 = vmax.f32 %v504, 0.0
      %v657 = vmax.f32 %v506, 0.0
      %v658 = vmax.f32 %v508, 0.0
      %v659 = vmax.f32 %v510, 0.0
      %v660 = vmax.f32 %v514, 0.0
      %v661 = vmax.f32 %v516, 0.0
      %v662 = vmax.f32 %v518, 0.0
      %v663 = vmax.f32 %v520, 0.0
      %v664 = vmax.f32 %v524, 0.0
      %v665 = vmax.f32 %v526, 0.0
      %v666 = vmax.f32 %v528, 0.0
      %v667 = vmax.f32 %v530, 0.0
      %v668 = vmax.f32 %v534, 0.0
      %v669 = vmax.f32 %v536, 0.0
      %v670 = vmax.f32 %v538, 0.0
      %v671 = vmax.f32 %v540, 0.0
      %v672 = vmax.f32 %v544, 0.0
      %v673 = vmax.f32 %v546, 0.0
      %v674 = vmax.f32 %v548, 0.0
      %v675 = vmax.f32 %v550, 0.0
      %v676 = vmax.f32 %v554, 0.0
      %v677 = vmax.f32 %v556, 0.0
      %v678 = vmax.f32 %v558, 0.0
      %v679 = vmax.f32 %v560, 0.0
      %v680 = vmax.f32 %v564, 0.0
      %v681 = vmax.f32 %v566, 0.0
      %v682 = vmax.f32 %v568, 0.0
      %v683 = vmax.f32 %v570, 0.0
      %v684 = vmax.f32 %v574, 0.0
      %v685 = vmax.f32 %v576, 0.0
      %v686 = vmax.f32 %v578, 0.0
      %v687 = vmax.f32 %v580, 0.0
      %v688 = vmax.f32 %v584, 0.0
      %v689 = vmax.f32 %v586, 0.0
      %v690 = vmax.f32 %v588, 0.0
      %v691 = vmax.f32 %v590, 0.0
      %v692 = vmax.f32 %v594, 0.0
      %v693 = vmax.f32 %v596, 0.0
      %v694 = vmax.f32 %v598, 0.0
      %v695 = vmax.f32 %v600, 0.0
      %v696 = vmax.f32 %v604, 0.0
      %v697 = vmax.f32 %v606, 0.0
      %v698 = vmax.f32 %v608, 0.0
      %v699 = vmax.f32 %v610, 0.0
      %v700 = vmax.f32 %v614, 0.0
      %v701 = vmax.f32 %v616, 0.0
      %v702 = vmax.f32 %v618, 0.0
      %v703 = vmax.f32 %v620, 0.0
      %v704 = vmax.f32 %v624, 0.0
      %v705 = vmax.f32 %v626, 0.0
      %v706 = vmax.f32 %v628, 0.0
      %v707 = vmax.f32 %v630, 0.0
      %v708 = vmax.f32 %v634, 0.0
      %v709 = vmax.f32 %v636, 0.0
      %v710 = vmax.f32 %v638, 0.0
      %v711 = vmax.f32 %v640, 0.0
      %v712 = vmax.f32 %v644, 0.0
      %v713 = vmax.f32 %v646, 0.0
      %v714 = vmax.f32 %v648, 0.0
      %v715 = vmax.f32 %v650, 0.0
      %v716 = vpack.c.bf16 %v654, %v652
      %v717 = vpack.c.bf16 %v655, %v653
      %v718 = vpack.c.bf16 %v658, %v656
      %v719 = vpack.c.bf16 %v659, %v657
      %v720 = vpack.c.bf16 %v662, %v660
      %v721 = vpack.c.bf16 %v663, %v661
      %v722 = vpack.c.bf16 %v666, %v664
      %v723 = vpack.c.bf16 %v667, %v665
      %v724 = vpack.c.bf16 %v670, %v668
      %v725 = vpack.c.bf16 %v671, %v669
      %v726 = vpack.c.bf16 %v674, %v672
      %v727 = vpack.c.bf16 %v675, %v673
      %v728 = vpack.c.bf16 %v678, %v676
      %v729 = vpack.c.bf16 %v679, %v677
      %v730 = vpack.c.bf16 %v682, %v680
      %v731 = vpack.c.bf16 %v683, %v681
      %v732 = vpack.c.bf16 %v686, %v684
      %v733 = vpack.c.bf16 %v687, %v685
      %v734 = vpack.c.bf16 %v690, %v688
      %v735 = vpack.c.bf16 %v691, %v689
      %v736 = vpack.c.bf16 %v694, %v692
      %v737 = vpack.c.bf16 %v695, %v693
      %v738 = vpack.c.bf16 %v698, %v696
      %v739 = vpack.c.bf16 %v699, %v697
      %v740 = vpack.c.bf16 %v702, %v700
      %v741 = vpack.c.bf16 %v703, %v701
      %v742 = vpack.c.bf16 %v706, %v704
      %v743 = vpack.c.bf16 %v707, %v705
      %v744 = vpack.c.bf16 %v710, %v708
      %v745 = vpack.c.bf16 %v711, %v709
      %v746 = vpack.c.bf16 %v714, %v712
      %v747 = vpack.c.bf16 %v715, %v713
      %v780 = vunpack.c.l.b16 %v716
      %v781 = vunpack.c.l.b16 %v717
      %v782 = vunpack.c.h.b16 %v716
      %v783 = vunpack.c.h.b16 %v717
      %v784 = vunpack.c.l.b16 %v718
      %v785 = vunpack.c.l.b16 %v719
      %v786 = vunpack.c.h.b16 %v718
      %v787 = vunpack.c.h.b16 %v719
      %v788 = vunpack.c.l.b16 %v720
      %v789 = vunpack.c.l.b16 %v721
      %v790 = vunpack.c.h.b16 %v720
      %v791 = vunpack.c.h.b16 %v721
      %v792 = vunpack.c.l.b16 %v722
      %v793 = vunpack.c.l.b16 %v723
      %v794 = vunpack.c.h.b16 %v722
      %v795 = vunpack.c.h.b16 %v723
      %v796 = vunpack.c.l.b16 %v724
      %v797 = vunpack.c.l.b16 %v725
      %v798 = vunpack.c.h.b16 %v724
      %v799 = vunpack.c.h.b16 %v725
      %v800 = vunpack.c.l.b16 %v726
      %v801 = vunpack.c.l.b16 %v727
      %v802 = vunpack.c.h.b16 %v726
      %v803 = vunpack.c.h.b16 %v727
      %v804 = vunpack.c.l.b16 %v728
      %v805 = vunpack.c.l.b16 %v729
      %v806 = vunpack.c.h.b16 %v728
      %v807 = vunpack.c.h.b16 %v729
      %v808 = vunpack.c.l.b16 %v730
      %v809 = vunpack.c.l.b16 %v731
      %v810 = vunpack.c.h.b16 %v730
      %v811 = vunpack.c.h.b16 %v731
      %v812 = vunpack.c.l.b16 %v732
      %v813 = vunpack.c.l.b16 %v733
      %v814 = vunpack.c.h.b16 %v732
      %v815 = vunpack.c.h.b16 %v733
      %v816 = vunpack.c.l.b16 %v734
      %v817 = vunpack.c.l.b16 %v735
      %v818 = vunpack.c.h.b16 %v734
      %v819 = vunpack.c.h.b16 %v735
      %v820 = vunpack.c.l.b16 %v736
      %v821 = vunpack.c.l.b16 %v737
      %v822 = vunpack.c.h.b16 %v736
      %v823 = vunpack.c.h.b16 %v737
      %v824 = vunpack.c.l.b16 %v738
      %v825 = vunpack.c.l.b16 %v739
      %v826 = vunpack.c.h.b16 %v738
      %v827 = vunpack.c.h.b16 %v739
      %v828 = vunpack.c.l.b16 %v740
      %v829 = vunpack.c.l.b16 %v741
      %v830 = vunpack.c.h.b16 %v740
      %v831 = vunpack.c.h.b16 %v741
      %v832 = vunpack.c.l.b16 %v742
      %v833 = vunpack.c.l.b16 %v743
      %v834 = vunpack.c.h.b16 %v742
      %v835 = vunpack.c.h.b16 %v743
      %v836 = vunpack.c.l.b16 %v744
      %v837 = vunpack.c.l.b16 %v745
      %v838 = vunpack.c.h.b16 %v744
      %v839 = vunpack.c.h.b16 %v745
      %v840 = vunpack.c.l.b16 %v746
      %v841 = vunpack.c.l.b16 %v747
      %v842 = vunpack.c.h.b16 %v746
      %v843 = vunpack.c.h.b16 %v747
      %v844 = vpack.c.b16 %v781, %v780
      %v845 = vpack.c.b16 %v783, %v782
      %v846 = vpack.c.b16 %v785, %v784
      %v847 = vpack.c.b16 %v787, %v786
      %v848 = vpack.c.b16 %v789, %v788
      %v849 = vpack.c.b16 %v791, %v790
      %v850 = vpack.c.b16 %v793, %v792
      %v851 = vpack.c.b16 %v795, %v794
      %v852 = vpack.c.b16 %v797, %v796
      %v853 = vpack.c.b16 %v799, %v798
      %v854 = vpack.c.b16 %v801, %v800
      %v855 = vpack.c.b16 %v803, %v802
      %v856 = vpack.c.b16 %v805, %v804
      %v857 = vpack.c.b16 %v807, %v806
      %v858 = vpack.c.b16 %v809, %v808
      %v859 = vpack.c.b16 %v811, %v810
      %v860 = vpack.c.b16 %v813, %v812
      %v861 = vpack.c.b16 %v815, %v814
      %v862 = vpack.c.b16 %v817, %v816
      %v863 = vpack.c.b16 %v819, %v818
      %v864 = vpack.c.b16 %v821, %v820
      %v865 = vpack.c.b16 %v823, %v822
      %v866 = vpack.c.b16 %v825, %v824
      %v867 = vpack.c.b16 %v827, %v826
      %v868 = vpack.c.b16 %v829, %v828
      %v869 = vpack.c.b16 %v831, %v830
      %v870 = vpack.c.b16 %v833, %v832
      %v871 = vpack.c.b16 %v835, %v834
      %v872 = vpack.c.b16 %v837, %v836
      %v873 = vpack.c.b16 %v839, %v838
      %v874 = vpack.c.b16 %v841, %v840
      %v875 = vpack.c.b16 %v843, %v842
      %vm908 = vcmask 1043456
      %vm909 = vcmask 523268
      %vm910 = vmor %vm909, %vm908
      %911 = vst.msk [vmem:[%s264] sm:$0xff] %vm910, %v844
      %912 = vst.msk [vmem:[%s264 + $0x8] sm:$0xff] %vm910, %v845
      %913 = vst.msk [vmem:[%s264 + $0x10] sm:$0xff] %vm910, %v846
      %914 = vst.msk [vmem:[%s264 + $0x18] sm:$0xff] %vm910, %v847
      %915 = vst.msk [vmem:[%s264 + $0x20] sm:$0xff] %vm910, %v848
      %916 = vst.msk [vmem:[%s264 + $0x28] sm:$0xff] %vm910, %v849
      %917 = vst.msk [vmem:[%s264 + $0x30] sm:$0xff] %vm910, %v850
      %918 = vst.msk [vmem:[%s264 + $0x38] sm:$0xff] %vm910, %v851
      %919 = vst.msk [vmem:[%s264 + $0x40] sm:$0xff] %vm910, %v852
      %920 = vst.msk [vmem:[%s264 + $0x48] sm:$0xff] %vm910, %v853
      %921 = vst.msk [vmem:[%s264 + $0x50] sm:$0xff] %vm910, %v854
      %922 = vst.msk [vmem:[%s264 + $0x58] sm:$0xff] %vm910, %v855
      %923 = vst.msk [vmem:[%s264 + $0x60] sm:$0xff] %vm910, %v856
      %924 = vst.msk [vmem:[%s264 + $0x68] sm:$0xff] %vm910, %v857
      %925 = vst.msk [vmem:[%s264 + $0x70] sm:$0xff] %vm910, %v858
      %926 = vst.msk [vmem:[%s264 + $0x78] sm:$0xff] %vm910, %v859
      %927 = vst.msk [vmem:[%s264 + $0x80] sm:$0xff] %vm910, %v860
      %928 = vst.msk [vmem:[%s264 + $0x88] sm:$0xff] %vm910, %v861
      %929 = vst.msk [vmem:[%s264 + $0x90] sm:$0xff] %vm910, %v862
      %930 = vst.msk [vmem:[%s264 + $0x98] sm:$0xff] %vm910, %v863
      %931 = vst.msk [vmem:[%s264 + $0xa0] sm:$0xff] %vm910, %v864
      %932 = vst.msk [vmem:[%s264 + $0xa8] sm:$0xff] %vm910, %v865
      %933 = vst.msk [vmem:[%s264 + $0xb0] sm:$0xff] %vm910, %v866
      %934 = vst.msk [vmem:[%s264 + $0xb8] sm:$0xff] %vm910, %v867
      %935 = vst.msk [vmem:[%s264 + $0xc0] sm:$0xff] %vm910, %v868
      %936 = vst.msk [vmem:[%s264 + $0xc8] sm:$0xff] %vm910, %v869
      %937 = vst.msk [vmem:[%s264 + $0xd0] sm:$0xff] %vm910, %v870
      %938 = vst.msk [vmem:[%s264 + $0xd8] sm:$0xff] %vm910, %v871
      %939 = vst.msk [vmem:[%s264 + $0xe0] sm:$0xff] %vm910, %v872
      %940 = vst.msk [vmem:[%s264 + $0xe8] sm:$0xff] %vm910, %v873
      %941 = vst.msk [vmem:[%s264 + $0xf0] sm:$0xff] %vm910, %v874
      %942 = vst.msk [vmem:[%s264 + $0xf8] sm:$0xff] %vm910, %v875
      %v943 = vld [vmem:[%s3] sm:$0xff]
      %v944 = vld [vmem:[%s3 + $0x8] sm:$0xff]
      %v945 = vld [vmem:[%s4] sm:$0x3]
      %v947 = vlaneseq
      %v948 = vshrl.u32 %v947, 7
      %v949 = vsub.s32 0, %v948
      %v950 = vrot.slane %v945, %v949
      %v951 = vlaneseq
      %v952 = vshrl.u32 %v951, 7
      %v953 = vsub.s32 1, %v952
      %v954 = vrot.slane %v945, %v953
      %v959 = vunpack.c.l.b16 %v943
      %v960 = vunpack.c.h.b16 %v943
      %v961 = vunpack.c.l.b16 %v944
      %v962 = vunpack.c.h.b16 %v944
      %v963 = vpack.c.b16 %v961, %v959
      %v964 = vpack.c.b16 %v962, %v960
      %967 = vmatprep.subr.bf16.mxu0 %v964
      %968 = vmatpush1.bf16.msra.mxu0 %v963
      %969 = vmatprep.subr.bf16.mxu0 0
      %970 = vmatpush1.bf16.msra.mxu0 0
      %971 = vmatprep.subr.bf16.mxu0 0
      %972 = vmatpush1.bf16.msra.mxu0 0
      %973 = vmatprep.subr.bf16.mxu0 0
      %974 = vmatpush1.bf16.msra.mxu0 0
      %975 = vmatprep.subr.bf16.mxu0 0
      %976 = vmatpush1.bf16.msra.mxu0 0
      %977 = vmatprep.subr.bf16.mxu0 0
      %978 = vmatpush1.bf16.msra.mxu0 0
      %979 = vmatprep.subr.bf16.mxu0 0
      %980 = vmatpush1.bf16.msra.mxu0 0
      %981 = vmatprep.subr.bf16.mxu0 0
      %982 = vmatpush1.bf16.msra.mxu0 0
      %983 = vmatprep.subr.bf16.mxu0 0
      %984 = vmatpush1.bf16.msra.mxu0 0
      %985 = vmatprep.subr.bf16.mxu0 0
      %986 = vmatpush1.bf16.msra.mxu0 0
      %987 = vmatprep.subr.bf16.mxu0 0
      %988 = vmatpush1.bf16.msra.mxu0 0
      %989 = vmatprep.subr.bf16.mxu0 0
      %990 = vmatpush1.bf16.msra.mxu0 0
      %991 = vmatprep.subr.bf16.mxu0 0
      %992 = vmatpush1.bf16.msra.mxu0 0
      %993 = vmatprep.subr.bf16.mxu0 0
      %994 = vmatpush1.bf16.msra.mxu0 0
      %995 = vmatprep.subr.bf16.mxu0 0
      %996 = vmatpush1.bf16.msra.mxu0 0
      %997 = vmatprep.subr.bf16.mxu0 0
      %998 = vmatpush1.bf16.msra.mxu0 0
      %999 = vmatprep.mubr.bf16.mxu0 0
      %1000 = vmatmul.mubr.bf16.gmra.mrb[0].mxu0 %v412
      %v1001 = vpop.f32.mrb[0].mxu0
      %v1002 = vadd.f32 %v950, %v1001
      %v1003 = vpop.f32.mrb[0].mxu0
      %v1004 = vadd.f32 %v954, %v1003
      %v1005 = vpop.f32.mrb[0].mxu0
      %v1006 = vadd.f32 %v950, %v1005
      %v1007 = vpop.f32.mrb[0].mxu0
      %v1008 = vadd.f32 %v954, %v1007
      %1009 = vmatprep.mubr.bf16.mxu0 0
      %1010 = vmatmul.mubr.bf16.gmra.mrb[0].mxu0 %v415
      %v1011 = vpop.f32.mrb[0].mxu0
      %v1012 = vadd.f32 %v950, %v1011
      %v1013 = vpop.f32.mrb[0].mxu0
      %v1014 = vadd.f32 %v954, %v1013
      %v1015 = vpop.f32.mrb[0].mxu0
      %v1016 = vadd.f32 %v950, %v1015
      %v1017 = vpop.f32.mrb[0].mxu0
      %v1018 = vadd.f32 %v954, %v1017
      %1019 = vmatprep.mubr.bf16.mxu0 0
      %1020 = vmatmul.mubr.bf16.gmra.mrb[0].mxu0 %v418
      %v1021 = vpop.f32.mrb[0].mxu0
      %v1022 = vadd.f32 %v950, %v1021
      %v1023 = vpop.f32.mrb[0].mxu0
      %v1024 = vadd.f32 %v954, %v1023
      %v1025 = vpop.f32.mrb[0].mxu0
      %v1026 = vadd.f32 %v950, %v1025
      %v1027 = vpop.f32.mrb[0].mxu0
      %v1028 = vadd.f32 %v954, %v1027
      %1029 = vmatprep.mubr.bf16.mxu0 0
      %1030 = vmatmul.mubr.bf16.gmra.mrb[0].mxu0 %v421
      %v1031 = vpop.f32.mrb[0].mxu0
      %v1032 = vadd.f32 %v950, %v1031
      %v1033 = vpop.f32.mrb[0].mxu0
      %v1034 = vadd.f32 %v954, %v1033
      %v1035 = vpop.f32.mrb[0].mxu0
      %v1036 = vadd.f32 %v950, %v1035
      %v1037 = vpop.f32.mrb[0].mxu0
      %v1038 = vadd.f32 %v954, %v1037
      %1039 = vmatprep.mubr.bf16.mxu0 0
      %1040 = vmatmul.mubr.bf16.gmra.mrb[0].mxu0 %v424
      %v1041 = vpop.f32.mrb[0].mxu0
      %v1042 = vadd.f32 %v950, %v1041
      %v1043 = vpop.f32.mrb[0].mxu0
      %v1044 = vadd.f32 %v954, %v1043
      %v1045 = vpop.f32.mrb[0].mxu0
      %v1046 = vadd.f32 %v950, %v1045
      %v1047 = vpop.f32.mrb[0].mxu0
      %v1048 = vadd.f32 %v954, %v1047
      %1049 = vmatprep.mubr.bf16.mxu0 0
      %1050 = vmatmul.mubr.bf16.gmra.mrb[0].mxu0 %v427
      %v1051 = vpop.f32.mrb[0].mxu0
      %v1052 = vadd.f32 %v950, %v1051
      %v1053 = vpop.f32.mrb[0].mxu0
      %v1054 = vadd.f32 %v954, %v1053
      %v1055 = vpop.f32.mrb[0].mxu0
      %v1056 = vadd.f32 %v950, %v1055
      %v1057 = vpop.f32.mrb[0].mxu0
      %v1058 = vadd.f32 %v954, %v1057
      %1059 = vmatprep.mubr.bf16.mxu0 0
      %1060 = vmatmul.mubr.bf16.gmra.mrb[0].mxu0 %v430
      %v1061 = vpop.f32.mrb[0].mxu0
      %v1062 = vadd.f32 %v950, %v1061
      %v1063 = vpop.f32.mrb[0].mxu0
      %v1064 = vadd.f32 %v954, %v1063
      %v1065 = vpop.f32.mrb[0].mxu0
      %v1066 = vadd.f32 %v950, %v1065
      %v1067 = vpop.f32.mrb[0].mxu0
      %v1068 = vadd.f32 %v954, %v1067
      %1069 = vmatprep.mubr.bf16.mxu0 0
      %1070 = vmatmul.mubr.bf16.gmra.mrb[0].mxu0 %v433
      %v1071 = vpop.f32.mrb[0].mxu0
      %v1072 = vadd.f32 %v950, %v1071
      %v1073 = vpop.f32.mrb[0].mxu0
      %v1074 = vadd.f32 %v954, %v1073
      %v1075 = vpop.f32.mrb[0].mxu0
      %v1076 = vadd.f32 %v950, %v1075
      %v1077 = vpop.f32.mrb[0].mxu0
      %v1078 = vadd.f32 %v954, %v1077
      %1079 = vmatprep.mubr.bf16.mxu0 0
      %1080 = vmatmul.mubr.bf16.gmra.mrb[0].mxu0 %v436
      %v1081 = vpop.f32.mrb[0].mxu0
      %v1082 = vadd.f32 %v950, %v1081
      %v1083 = vpop.f32.mrb[0].mxu0
      %v1084 = vadd.f32 %v954, %v1083
      %v1085 = vpop.f32.mrb[0].mxu0
      %v1086 = vadd.f32 %v950, %v1085
      %v1087 = vpop.f32.mrb[0].mxu0
      %v1088 = vadd.f32 %v954, %v1087
      %1089 = vmatprep.mubr.bf16.mxu0 0
      %1090 = vmatmul.mubr.bf16.gmra.mrb[0].mxu0 %v439
      %v1091 = vpop.f32.mrb[0].mxu0
      %v1092 = vadd.f32 %v950, %v1091
      %v1093 = vpop.f32.mrb[0].mxu0
      %v1094 = vadd.f32 %v954, %v1093
      %v1095 = vpop.f32.mrb[0].mxu0
      %v1096 = vadd.f32 %v950, %v1095
      %v1097 = vpop.f32.mrb[0].mxu0
      %v1098 = vadd.f32 %v954, %v1097
      %1099 = vmatprep.mubr.bf16.mxu0 0
      %1100 = vmatmul.mubr.bf16.gmra.mrb[0].mxu0 %v442
      %v1101 = vpop.f32.mrb[0].mxu0
      %v1102 = vadd.f32 %v950, %v1101
      %v1103 = vpop.f32.mrb[0].mxu0
      %v1104 = vadd.f32 %v954, %v1103
      %v1105 = vpop.f32.mrb[0].mxu0
      %v1106 = vadd.f32 %v950, %v1105
      %v1107 = vpop.f32.mrb[0].mxu0
      %v1108 = vadd.f32 %v954, %v1107
      %1109 = vmatprep.mubr.bf16.mxu0 0
      %1110 = vmatmul.mubr.bf16.gmra.mrb[0].mxu0 %v445
      %v1111 = vpop.f32.mrb[0].mxu0
      %v1112 = vadd.f32 %v950, %v1111
      %v1113 = vpop.f32.mrb[0].mxu0
      %v1114 = vadd.f32 %v954, %v1113
      %v1115 = vpop.f32.mrb[0].mxu0
      %v1116 = vadd.f32 %v950, %v1115
      %v1117 = vpop.f32.mrb[0].mxu0
      %v1118 = vadd.f32 %v954, %v1117
      %1119 = vmatprep.mubr.bf16.mxu0 0
      %1120 = vmatmul.mubr.bf16.gmra.mrb[0].mxu0 %v448
      %v1121 = vpop.f32.mrb[0].mxu0
      %v1122 = vadd.f32 %v950, %v1121
      %v1123 = vpop.f32.mrb[0].mxu0
      %v1124 = vadd.f32 %v954, %v1123
      %v1125 = vpop.f32.mrb[0].mxu0
      %v1126 = vadd.f32 %v950, %v1125
      %v1127 = vpop.f32.mrb[0].mxu0
      %v1128 = vadd.f32 %v954, %v1127
      %1129 = vmatprep.mubr.bf16.mxu0 0
      %1130 = vmatmul.mubr.bf16.gmra.mrb[0].mxu0 %v451
      %v1131 = vpop.f32.mrb[0].mxu0
      %v1132 = vadd.f32 %v950, %v1131
      %v1133 = vpop.f32.mrb[0].mxu0
      %v1134 = vadd.f32 %v954, %v1133
      %v1135 = vpop.f32.mrb[0].mxu0
      %v1136 = vadd.f32 %v950, %v1135
      %v1137 = vpop.f32.mrb[0].mxu0
      %v1138 = vadd.f32 %v954, %v1137
      %1139 = vmatprep.mubr.bf16.mxu0 0
      %1140 = vmatmul.mubr.bf16.gmra.mrb[0].mxu0 %v454
      %v1141 = vpop.f32.mrb[0].mxu0
      %v1142 = vadd.f32 %v950, %v1141
      %v1143 = vpop.f32.mrb[0].mxu0
      %v1144 = vadd.f32 %v954, %v1143
      %v1145 = vpop.f32.mrb[0].mxu0
      %v1146 = vadd.f32 %v950, %v1145
      %v1147 = vpop.f32.mrb[0].mxu0
      %v1148 = vadd.f32 %v954, %v1147
      %1149 = vmatprep.mubr.bf16.mxu0 0
      %1150 = vmatmul.mubr.bf16.gmra.mrb[0].mxu0 %v457
      %v1151 = vpop.f32.mrb[0].mxu0
      %v1152 = vadd.f32 %v950, %v1151
      %v1153 = vpop.f32.mrb[0].mxu0
      %v1154 = vadd.f32 %v954, %v1153
      %v1155 = vpop.f32.mrb[0].mxu0
      %v1156 = vadd.f32 %v950, %v1155
      %v1157 = vpop.f32.mrb[0].mxu0
      %v1158 = vadd.f32 %v954, %v1157
      %1159 = vdwg.mxu0
      %v1160 = vmax.f32 %v1002, 0.0
      %v1161 = vmax.f32 %v1004, 0.0
      %v1162 = vmax.f32 %v1006, 0.0
      %v1163 = vmax.f32 %v1008, 0.0
      %v1164 = vmax.f32 %v1012, 0.0
      %v1165 = vmax.f32 %v1014, 0.0
      %v1166 = vmax.f32 %v1016, 0.0
      %v1167 = vmax.f32 %v1018, 0.0
      %v1168 = vmax.f32 %v1022, 0.0
      %v1169 = vmax.f32 %v1024, 0.0
      %v1170 = vmax.f32 %v1026, 0.0
      %v1171 = vmax.f32 %v1028, 0.0
      %v1172 = vmax.f32 %v1032, 0.0
      %v1173 = vmax.f32 %v1034, 0.0
      %v1174 = vmax.f32 %v1036, 0.0
      %v1175 = vmax.f32 %v1038, 0.0
      %v1176 = vmax.f32 %v1042, 0.0
      %v1177 = vmax.f32 %v1044, 0.0
      %v1178 = vmax.f32 %v1046, 0.0
      %v1179 = vmax.f32 %v1048, 0.0
      %v1180 = vmax.f32 %v1052, 0.0
      %v1181 = vmax.f32 %v1054, 0.0
      %v1182 = vmax.f32 %v1056, 0.0
      %v1183 = vmax.f32 %v1058, 0.0
      %v1184 = vmax.f32 %v1062, 0.0
      %v1185 = vmax.f32 %v1064, 0.0
      %v1186 = vmax.f32 %v1066, 0.0
      %v1187 = vmax.f32 %v1068, 0.0
      %v1188 = vmax.f32 %v1072, 0.0
      %v1189 = vmax.f32 %v1074, 0.0
      %v1190 = vmax.f32 %v1076, 0.0
      %v1191 = vmax.f32 %v1078, 0.0
      %v1192 = vmax.f32 %v1082, 0.0
      %v1193 = vmax.f32 %v1084, 0.0
      %v1194 = vmax.f32 %v1086, 0.0
      %v1195 = vmax.f32 %v1088, 0.0
      %v1196 = vmax.f32 %v1092, 0.0
      %v1197 = vmax.f32 %v1094, 0.0
      %v1198 = vmax.f32 %v1096, 0.0
      %v1199 = vmax.f32 %v1098, 0.0
      %v1200 = vmax.f32 %v1102, 0.0
      %v1201 = vmax.f32 %v1104, 0.0
      %v1202 = vmax.f32 %v1106, 0.0
      %v1203 = vmax.f32 %v1108, 0.0
      %v1204 = vmax.f32 %v1112, 0.0
      %v1205 = vmax.f32 %v1114, 0.0
      %v1206 = vmax.f32 %v1116, 0.0
      %v1207 = vmax.f32 %v1118, 0.0
      %v1208 = vmax.f32 %v1122, 0.0
      %v1209 = vmax.f32 %v1124, 0.0
      %v1210 = vmax.f32 %v1126, 0.0
      %v1211 = vmax.f32 %v1128, 0.0
      %v1212 = vmax.f32 %v1132, 0.0
      %v1213 = vmax.f32 %v1134, 0.0
      %v1214 = vmax.f32 %v1136, 0.0
      %v1215 = vmax.f32 %v1138, 0.0
      %v1216 = vmax.f32 %v1142, 0.0
      %v1217 = vmax.f32 %v1144, 0.0
      %v1218 = vmax.f32 %v1146, 0.0
      %v1219 = vmax.f32 %v1148, 0.0
      %v1220 = vmax.f32 %v1152, 0.0
      %v1221 = vmax.f32 %v1154, 0.0
      %v1222 = vmax.f32 %v1156, 0.0
      %v1223 = vmax.f32 %v1158, 0.0
      %v1224 = vpack.c.bf16 %v1162, %v1160
      %v1225 = vpack.c.bf16 %v1163, %v1161
      %v1226 = vpack.c.bf16 %v1166, %v1164
      %v1227 = vpack.c.bf16 %v1167, %v1165
      %v1228 = vpack.c.bf16 %v1170, %v1168
      %v1229 = vpack.c.bf16 %v1171, %v1169
      %v1230 = vpack.c.bf16 %v1174, %v1172
      %v1231 = vpack.c.bf16 %v1175, %v1173
      %v1232 = vpack.c.bf16 %v1178, %v1176
      %v1233 = vpack.c.bf16 %v1179, %v1177
      %v1234 = vpack.c.bf16 %v1182, %v1180
      %v1235 = vpack.c.bf16 %v1183, %v1181
      %v1236 = vpack.c.bf16 %v1186, %v1184
      %v1237 = vpack.c.bf16 %v1187, %v1185
      %v1238 = vpack.c.bf16 %v1190, %v1188
      %v1239 = vpack.c.bf16 %v1191, %v1189
      %v1240 = vpack.c.bf16 %v1194, %v1192
      %v1241 = vpack.c.bf16 %v1195, %v1193
      %v1242 = vpack.c.bf16 %v1198, %v1196
      %v1243 = vpack.c.bf16 %v1199, %v1197
      %v1244 = vpack.c.bf16 %v1202, %v1200
      %v1245 = vpack.c.bf16 %v1203, %v1201
      %v1246 = vpack.c.bf16 %v1206, %v1204
      %v1247 = vpack.c.bf16 %v1207, %v1205
      %v1248 = vpack.c.bf16 %v1210, %v1208
      %v1249 = vpack.c.bf16 %v1211, %v1209
      %v1250 = vpack.c.bf16 %v1214, %v1212
      %v1251 = vpack.c.bf16 %v1215, %v1213
      %v1252 = vpack.c.bf16 %v1218, %v1216
      %v1253 = vpack.c.bf16 %v1219, %v1217
      %v1254 = vpack.c.bf16 %v1222, %v1220
      %v1255 = vpack.c.bf16 %v1223, %v1221
      %v1288 = vunpack.c.l.b16 %v1224
      %v1289 = vunpack.c.l.b16 %v1225
      %v1290 = vunpack.c.h.b16 %v1224
      %v1291 = vunpack.c.h.b16 %v1225
      %v1292 = vunpack.c.l.b16 %v1226
      %v1293 = vunpack.c.l.b16 %v1227
      %v1294 = vunpack.c.h.b16 %v1226
      %v1295 = vunpack.c.h.b16 %v1227
      %v1296 = vunpack.c.l.b16 %v1228
      %v1297 = vunpack.c.l.b16 %v1229
      %v1298 = vunpack.c.h.b16 %v1228
      %v1299 = vunpack.c.h.b16 %v1229
      %v1300 = vunpack.c.l.b16 %v1230
      %v1301 = vunpack.c.l.b16 %v1231
      %v1302 = vunpack.c.h.b16 %v1230
      %v1303 = vunpack.c.h.b16 %v1231
      %v1304 = vunpack.c.l.b16 %v1232
      %v1305 = vunpack.c.l.b16 %v1233
      %v1306 = vunpack.c.h.b16 %v1232
      %v1307 = vunpack.c.h.b16 %v1233
      %v1308 = vunpack.c.l.b16 %v1234
      %v1309 = vunpack.c.l.b16 %v1235
      %v1310 = vunpack.c.h.b16 %v1234
      %v1311 = vunpack.c.h.b16 %v1235
      %v1312 = vunpack.c.l.b16 %v1236
      %v1313 = vunpack.c.l.b16 %v1237
      %v1314 = vunpack.c.h.b16 %v1236
      %v1315 = vunpack.c.h.b16 %v1237
      %v1316 = vunpack.c.l.b16 %v1238
      %v1317 = vunpack.c.l.b16 %v1239
      %v1318 = vunpack.c.h.b16 %v1238
      %v1319 = vunpack.c.h.b16 %v1239
      %v1320 = vunpack.c.l.b16 %v1240
      %v1321 = vunpack.c.l.b16 %v1241
      %v1322 = vunpack.c.h.b16 %v1240
      %v1323 = vunpack.c.h.b16 %v1241
      %v1324 = vunpack.c.l.b16 %v1242
      %v1325 = vunpack.c.l.b16 %v1243
      %v1326 = vunpack.c.h.b16 %v1242
      %v1327 = vunpack.c.h.b16 %v1243
      %v1328 = vunpack.c.l.b16 %v1244
      %v1329 = vunpack.c.l.b16 %v1245
      %v1330 = vunpack.c.h.b16 %v1244
      %v1331 = vunpack.c.h.b16 %v1245
      %v1332 = vunpack.c.l.b16 %v1246
      %v1333 = vunpack.c.l.b16 %v1247
      %v1334 = vunpack.c.h.b16 %v1246
      %v1335 = vunpack.c.h.b16 %v1247
      %v1336 = vunpack.c.l.b16 %v1248
      %v1337 = vunpack.c.l.b16 %v1249
      %v1338 = vunpack.c.h.b16 %v1248
      %v1339 = vunpack.c.h.b16 %v1249
      %v1340 = vunpack.c.l.b16 %v1250
      %v1341 = vunpack.c.l.b16 %v1251
      %v1342 = vunpack.c.h.b16 %v1250
      %v1343 = vunpack.c.h.b16 %v1251
      %v1344 = vunpack.c.l.b16 %v1252
      %v1345 = vunpack.c.l.b16 %v1253
      %v1346 = vunpack.c.h.b16 %v1252
      %v1347 = vunpack.c.h.b16 %v1253
      %v1348 = vunpack.c.l.b16 %v1254
      %v1349 = vunpack.c.l.b16 %v1255
      %v1350 = vunpack.c.h.b16 %v1254
      %v1351 = vunpack.c.h.b16 %v1255
      %v1352 = vpack.c.b16 %v1289, %v1288
      %v1353 = vpack.c.b16 %v1291, %v1290
      %v1354 = vpack.c.b16 %v1293, %v1292
      %v1355 = vpack.c.b16 %v1295, %v1294
      %v1356 = vpack.c.b16 %v1297, %v1296
      %v1357 = vpack.c.b16 %v1299, %v1298
      %v1358 = vpack.c.b16 %v1301, %v1300
      %v1359 = vpack.c.b16 %v1303, %v1302
      %v1360 = vpack.c.b16 %v1305, %v1304
      %v1361 = vpack.c.b16 %v1307, %v1306
      %v1362 = vpack.c.b16 %v1309, %v1308
      %v1363 = vpack.c.b16 %v1311, %v1310
      %v1364 = vpack.c.b16 %v1313, %v1312
      %v1365 = vpack.c.b16 %v1315, %v1314
      %v1366 = vpack.c.b16 %v1317, %v1316
      %v1367 = vpack.c.b16 %v1319, %v1318
      %v1368 = vpack.c.b16 %v1321, %v1320
      %v1369 = vpack.c.b16 %v1323, %v1322
      %v1370 = vpack.c.b16 %v1325, %v1324
      %v1371 = vpack.c.b16 %v1327, %v1326
      %v1372 = vpack.c.b16 %v1329, %v1328
      %v1373 = vpack.c.b16 %v1331, %v1330
      %v1374 = vpack.c.b16 %v1333, %v1332
      %v1375 = vpack.c.b16 %v1335, %v1334
      %v1376 = vpack.c.b16 %v1337, %v1336
      %v1377 = vpack.c.b16 %v1339, %v1338
      %v1378 = vpack.c.b16 %v1341, %v1340
      %v1379 = vpack.c.b16 %v1343, %v1342
      %v1380 = vpack.c.b16 %v1345, %v1344
      %v1381 = vpack.c.b16 %v1347, %v1346
      %v1382 = vpack.c.b16 %v1349, %v1348
      %v1383 = vpack.c.b16 %v1351, %v1350
      %1416 = vst.msk [vmem:[%s271] sm:$0xff] %vm910, %v1352
      %1417 = vst.msk [vmem:[%s271 + $0x8] sm:$0xff] %vm910, %v1353
      %1418 = vst.msk [vmem:[%s271 + $0x10] sm:$0xff] %vm910, %v1354
      %1419 = vst.msk [vmem:[%s271 + $0x18] sm:$0xff] %vm910, %v1355
      %1420 = vst.msk [vmem:[%s271 + $0x20] sm:$0xff] %vm910, %v1356
      %1421 = vst.msk [vmem:[%s271 + $0x28] sm:$0xff] %vm910, %v1357
      %1422 = vst.msk [vmem:[%s271 + $0x30] sm:$0xff] %vm910, %v1358
      %1423 = vst.msk [vmem:[%s271 + $0x38] sm:$0xff] %vm910, %v1359
      %1424 = vst.msk [vmem:[%s271 + $0x40] sm:$0xff] %vm910, %v1360
      %1425 = vst.msk [vmem:[%s271 + $0x48] sm:$0xff] %vm910, %v1361
      %1426 = vst.msk [vmem:[%s271 + $0x50] sm:$0xff] %vm910, %v1362
      %1427 = vst.msk [vmem:[%s271 + $0x58] sm:$0xff] %vm910, %v1363
      %1428 = vst.msk [vmem:[%s271 + $0x60] sm:$0xff] %vm910, %v1364
      %1429 = vst.msk [vmem:[%s271 + $0x68] sm:$0xff] %vm910, %v1365
      %1430 = vst.msk [vmem:[%s271 + $0x70] sm:$0xff] %vm910, %v1366
      %1431 = vst.msk [vmem:[%s271 + $0x78] sm:$0xff] %vm910, %v1367
      %1432 = vst.msk [vmem:[%s271 + $0x80] sm:$0xff] %vm910, %v1368
      %1433 = vst.msk [vmem:[%s271 + $0x88] sm:$0xff] %vm910, %v1369
      %1434 = vst.msk [vmem:[%s271 + $0x90] sm:$0xff] %vm910, %v1370
      %1435 = vst.msk [vmem:[%s271 + $0x98] sm:$0xff] %vm910, %v1371
      %1436 = vst.msk [vmem:[%s271 + $0xa0] sm:$0xff] %vm910, %v1372
      %1437 = vst.msk [vmem:[%s271 + $0xa8] sm:$0xff] %vm910, %v1373
      %1438 = vst.msk [vmem:[%s271 + $0xb0] sm:$0xff] %vm910, %v1374
      %1439 = vst.msk [vmem:[%s271 + $0xb8] sm:$0xff] %vm910, %v1375
      %1440 = vst.msk [vmem:[%s271 + $0xc0] sm:$0xff] %vm910, %v1376
      %1441 = vst.msk [vmem:[%s271 + $0xc8] sm:$0xff] %vm910, %v1377
      %1442 = vst.msk [vmem:[%s271 + $0xd0] sm:$0xff] %vm910, %v1378
      %1443 = vst.msk [vmem:[%s271 + $0xd8] sm:$0xff] %vm910, %v1379
      %1444 = vst.msk [vmem:[%s271 + $0xe0] sm:$0xff] %vm910, %v1380
      %1445 = vst.msk [vmem:[%s271 + $0xe8] sm:$0xff] %vm910, %v1381
      %1446 = vst.msk [vmem:[%s271 + $0xf0] sm:$0xff] %vm910, %v1382
      %1447 = vst.msk [vmem:[%s271 + $0xf8] sm:$0xff] %vm910, %v1383
      %s1448 = smul.u32 32, %s18
      %p1449 = scmp.lt.s32.totalorder %s1448, 63
      %s1450 = scalar_select %p1449, %s1448, 63
      %s1451 = smul.addr %s1450, 2
      %s1452 = smul.addr %s1451, 4
      %s1453 = scalar_lea.vmem %s5, %s1452
      %s1454 = smul.u32 32, %s18
      %p1455 = scmp.lt.s32.totalorder %s1454, 63
      %s1456 = scalar_select %p1455, %s1454, 63
      %s1457 = smul.addr %s1456, 2
      %s1458 = smul.addr %s1457, 4
      %s1459 = scalar_lea.vmem %s6, %s1458
      // Predicated region
      $region41: #{inception_d_forward.5} parent=39 // pred_check
        %p1460 = pneg %p146
      $region42: #{inception_d_forward.5} parent=39 // pred_check_branch
        %1462 = sbr.rel (%p1460) target = $region44
      $region43: #{inception_d_forward.5} parent=39 // pred_region
        %s1463 = smul.u32 32, %s18
      $region44: #{inception_d_forward.5} parent=39 // pred_fallthru
        _
      // Predicated region
      $region45: #{inception_d_forward.5} parent=39 // pred_check
        %p1464 = pneg %p172
      $region46: #{inception_d_forward.5} parent=39 // pred_check_branch
        %1466 = sbr.rel (%p1464) target = $region48
      $region47: #{inception_d_forward.5} parent=39 // pred_region
        %s1467 = smul.u32 32, %s18
      $region48: #{inception_d_forward.5} parent=39 // pred_fallthru
        _
    $region40: #{inception_d_forward.5} parent=5 // pred_fallthru
      _
    %p1468 = scmp.le.s32.totalorder 2, %s13
    // Predicated region
    $region49: #{inception_d_forward.5} parent=5 // pred_check
      %p1469 = pneg %p1468
    $region50: #{inception_d_forward.5} parent=5 // pred_check_branch
      %1471 = sbr.rel (%p1469) target = $region52
    $region51: #{inception_d_forward.5} parent=5 // pred_region
      %s1472 = ssub.s32 %s13, 2
      // Predicated region
      $region53: #{inception_d_forward.5} parent=51 // pred_check
        %p1473 = pneg %p152
      $region54: #{inception_d_forward.5} parent=51 // pred_check_branch
        %1475 = sbr.rel (%p1473) target = $region56
      $region55: #{inception_d_forward.5} parent=51 // pred_region
        %s1476 = smul.u32 32, %s19
        %p1477 = scmp.lt.s32.totalorder %s1476, 63
        %s1478 = scalar_select %p1477, %s1476, 63
        %s1479 = smul.addr %s1478, 2
        %s1480 = smul.addr %s1479, 4
        %s1481 = scalar_lea.vmem %s5, %s1480
      $region56: #{inception_d_forward.5} parent=51 // pred_fallthru
        _
      // Predicated region
      $region57: #{inception_d_forward.5} parent=51 // pred_check
        %p1482 = pneg %p178
      $region58: #{inception_d_forward.5} parent=51 // pred_check_branch
        %1484 = sbr.rel (%p1482) target = $region60
      $region59: #{inception_d_forward.5} parent=51 // pred_region
        %s1485 = smul.u32 32, %s19
        %p1486 = scmp.lt.s32.totalorder %s1485, 63
        %s1487 = scalar_select %p1486, %s1485, 63
        %s1488 = smul.addr %s1487, 2
        %s1489 = smul.addr %s1488, 4
        %s1490 = scalar_lea.vmem %s6, %s1489
      $region60: #{inception_d_forward.5} parent=51 // pred_fallthru
        _
    $region52: #{inception_d_forward.5} parent=5 // pred_fallthru
      _
  $region6: #{inception_d_forward.5} parent=0 // loop_footer
    %s17 = sadd.s32 1, %s13
  $region7: #{inception_d_forward.5} parent=0 // loop_footer_branch
    %12 = sbr.rel target = $region3
  $region8: #{inception_d_forward.5} parent=0 // loop_exit
    _

// kernel: inception_d_forward.7
$region0: #{inception_d_forward.7}
  #allocation0 [shape = 'u32[]', space=smem, size = 0x4, offset = 0x4, fixed_abs, tag = 'smem constant byte address 0x4 - core index']
  #allocation1 [shape = 'u32[144,128]{1,0:T(1,128)}', space=vmem, size = 0x12000, scoped, tag = 'internal scratch']
  %s0 = inlined_call_operand.vmem [shape: bf16[512,1408], index: 0, kind: input, shape index: {}]
  %s1 = inlined_call_operand.vmem [shape: bf16[1408,192], index: 1, kind: input, shape index: {}]
  %s2 = inlined_call_operand.vmem [shape: f32[1,192], index: 2, kind: input, shape index: {}]
  %s3 = inlined_call_operand.vmem [shape: bf16[512,192], index: 3, kind: output, shape index: {}]
  %s4 = sld [smem:[#allocation0]]
  $region45: #{inception_d_forward.7} parent=0
    _
  %s6 = ssub.s32 1, %s4
  %s7 = scalar_select 0, %s6, %s4
  loop: start=0, step=1, limit=4
  $region2: #{inception_d_forward.7} parent=0 // loop_pre_header
    _
  $region3: #{inception_d_forward.7} parent=0 // loop_header
    %s9 = sphi 0, %s13
    %p10 = scmp.ge.s32.totalorder %s9, 4
    %s19 = sphi 0, %s21
    %s22 = sphi 0, %s19
    %s23 = sphi 0, %s22
    %s39 = sphi 0, %s23
    %s43 = sphi 0, %s43
    %s45 = sphi 0, %s43
    %s46 = sphi 0, %s45
    %s60 = sphi 0, %s46
    %s64 = sphi 0, %s64
    %s66 = sphi 0, %s64
    %s67 = sphi 0, %s66
    %s81 = sphi 0, %s67
    %s87 = sphi 0, %s89
    %s90 = sphi 0, %s87
    %s91 = sphi 0, %s90
    %s107 = sphi 0, %s91
  $region4: #{inception_d_forward.7} parent=0 // loop_header_branch
    %12 = sbr.rel (%p10) target = $region8
  $region5: #{inception_d_forward.7} parent=0 // loop_body
    %s14 = ssub.s32 %s9, 1
    %s15 = ssub.s32 %s9, 2
    %s16 = sadd.s32 %s9, 1
    %s17 = ssub.s32 %s9, %s16
    %p18 = scmp.eq.s32.totalorder %s17, 0
    %s20 = sadd.s32 %s19, 1
    %s21 = scalar_select %p18, %s19, %s20
    %p24 = pneg %p18
    %p25 = scmp.eq.s32.totalorder %s9, 1
    %p26 = por %p24, %p25
    %p27 = scmp.ne.s32.totalorder %s19, %s22
    %p28 = scmp.eq.s32.totalorder %s9, 0
    %p29 = por %p27, %p28
    %p30 = scmp.ne.s32.totalorder %s19, %s22
    %p31 = scmp.eq.s32.totalorder %s14, 1
    %p32 = por %p30, %p31
    %p33 = scmp.ne.s32.totalorder %s22, %s23
    %p34 = scmp.eq.s32.totalorder %s14, 0
    %p35 = por %p33, %p34
    %p36 = scmp.ne.s32.totalorder %s22, %s23
    %p37 = scmp.eq.s32.totalorder %s15, 1
    %p38 = por %p36, %p37
    %p40 = scmp.ne.s32.totalorder %s23, %s39
    %p41 = scmp.eq.s32.totalorder %s15, 0
    %p42 = por %p40, %p41
    %s44 = sadd.s32 %s43, 1
    %p47 = scmp.eq.s32.totalorder %s9, 1
    %p48 = scmp.ne.s32.totalorder %s43, %s45
    %p49 = scmp.eq.s32.totalorder %s9, 0
    %p50 = por %p48, %p49
    %p51 = scmp.ne.s32.totalorder %s43, %s45
    %p52 = scmp.eq.s32.totalorder %s14, 1
    %p53 = por %p51, %p52
    %p54 = scmp.ne.s32.totalorder %s45, %s46
    %p55 = scmp.eq.s32.totalorder %s14, 0
    %p56 = por %p54, %p55
    %p57 = scmp.ne.s32.totalorder %s45, %s46
    %p58 = scmp.eq.s32.totalorder %s15, 1
    %p59 = por %p57, %p58
    %p61 = scmp.ne.s32.totalorder %s46, %s60
    %p62 = scmp.eq.s32.totalorder %s15, 0
    %p63 = por %p61, %p62
    %s65 = sadd.s32 %s64, 1
    %p68 = scmp.eq.s32.totalorder %s9, 1
    %p69 = scmp.ne.s32.totalorder %s64, %s66
    %p70 = scmp.eq.s32.totalorder %s9, 0
    %p71 = por %p69, %p70
    %p72 = scmp.ne.s32.totalorder %s64, %s66
    %p73 = scmp.eq.s32.totalorder %s14, 1
    %p74 = por %p72, %p73
    %p75 = scmp.ne.s32.totalorder %s66, %s67
    %p76 = scmp.eq.s32.totalorder %s14, 0
    %p77 = por %p75, %p76
    %p78 = scmp.ne.s32.totalorder %s66, %s67
    %p79 = scmp.eq.s32.totalorder %s15, 1
    %p80 = por %p78, %p79
    %p82 = scmp.ne.s32.totalorder %s67, %s81
    %p83 = scmp.eq.s32.totalorder %s15, 0
    %p84 = por %p82, %p83
    %s85 = ssub.s32 %s9, %s16
    %p86 = scmp.eq.s32.totalorder %s85, 0
    %s88 = sadd.s32 %s87, 1
    %s89 = scalar_select %p86, %s87, %s88
    %p92 = pneg %p86
    %p93 = scmp.eq.s32.totalorder %s9, 1
    %p94 = por %p92, %p93
    %p95 = scmp.ne.s32.totalorder %s87, %s90
    %p96 = scmp.eq.s32.totalorder %s9, 0
    %p97 = por %p95, %p96
    %p98 = scmp.ne.s32.totalorder %s87, %s90
    %p99 = scmp.eq.s32.totalorder %s14, 1
    %p100 = por %p98, %p99
    %p101 = scmp.ne.s32.totalorder %s90, %s91
    %p102 = scmp.eq.s32.totalorder %s14, 0
    %p103 = por %p101, %p102
    %p104 = scmp.ne.s32.totalorder %s90, %s91
    %p105 = scmp.eq.s32.totalorder %s15, 1
    %p106 = por %p104, %p105
    %p108 = scmp.ne.s32.totalorder %s91, %s107
    %p109 = scmp.eq.s32.totalorder %s15, 0
    %p110 = por %p108, %p109
    %p111 = scmp.le.s32.totalorder 1, %s9
    %p112 = scmp.lt.s32.totalorder %s9, 3
    %p113 = pnand %p111, %p112
    %p114 = pneg %p113
    // Predicated region
    $region9: #{inception_d_forward.7} parent=5 // pred_check
      _
    $region10: #{inception_d_forward.7} parent=5 // pred_check_branch
      %116 = sbr.rel (%p113) target = $region12
    $region11: #{inception_d_forward.7} parent=5 // pred_region
      %s117 = ssub.s32 %s9, 1
      // Predicated region
      $region13: #{inception_d_forward.7} parent=11 // pred_check
        %p118 = pneg %p56
      $region14: #{inception_d_forward.7} parent=11 // pred_check_branch
        %120 = sbr.rel (%p118) target = $region16
      $region15: #{inception_d_forward.7} parent=11 // pred_region
        _
      $region16: #{inception_d_forward.7} parent=11 // pred_fallthru
        _
      // Predicated region
      $region17: #{inception_d_forward.7} parent=11 // pred_check
        %p121 = pneg %p77
      $region18: #{inception_d_forward.7} parent=11 // pred_check_branch
        %123 = sbr.rel (%p121) target = $region20
      $region19: #{inception_d_forward.7} parent=11 // pred_region
        _
      $region20: #{inception_d_forward.7} parent=11 // pred_fallthru
        _
    $region12: #{inception_d_forward.7} parent=5 // pred_fallthru
      _
    %p124 = scmp.lt.s32.totalorder %s9, 2
    // Predicated region
    $region21: #{inception_d_forward.7} parent=5 // pred_check
      %p125 = pneg %p124
    $region22: #{inception_d_forward.7} parent=5 // pred_check_branch
      %127 = sbr.rel (%p125) target = $region24
    $region23: #{inception_d_forward.7} parent=5 // pred_region
      // Predicated region
      $region25: #{inception_d_forward.7} parent=23 // pred_check
        %p128 = pneg %p29
      $region26: #{inception_d_forward.7} parent=23 // pred_check_branch
        %130 = sbr.rel (%p128) target = $region28
      $region27: #{inception_d_forward.7} parent=23 // pred_region
        %s131 = smul.u32 32, %s9
        %p132 = scmp.lt.s32.totalorder %s131, 63
        %s133 = scalar_select %p132, %s131, 63
        %s134 = smul.addr %s133, 11
        %s135 = smul.addr %s134, 4
        %s136 = scalar_lea.vmem %s0, %s135
        %s137 = smul.u32 32, %s9
      $region28: #{inception_d_forward.7} parent=23 // pred_fallthru
        _
    $region24: #{inception_d_forward.7} parent=5 // pred_fallthru
      _
    %p138 = scmp.le.s32.totalorder 1, %s9
    %p139 = scmp.lt.s32.totalorder %s9, 3
    %p140 = pnand %p138, %p139
    %p141 = pneg %p140
    // Predicated region
    $region29: #{inception_d_forward.7} parent=5 // pred_check
      _
    $region30: #{inception_d_forward.7} parent=5 // pred_check_branch
      %143 = sbr.rel (%p140) target = $region32
    $region31: #{inception_d_forward.7} parent=5 // pred_region
      %s144 = ssub.s32 %s9, 1
      %s145 = smul.u32 32, %s14
      %p146 = scmp.lt.s32.totalorder %s145, 63
      %s147 = scalar_select %p146, %s145, 63
      %s148 = smul.addr %s147, 11
      %s149 = smul.addr %s148, 4
      %s150 = scalar_lea.vmem %s0, %s149
      %p151 = pneg %p35
      %p152 = pneg %p32
      %p153 = pneg %p56
      %p154 = pneg %p53
      %p155 = pneg %p77
      %p156 = pneg %p74
      %p157 = pneg %p103
      %p158 = pneg %p100
      %s159 = smul.u32 32, %s14
      %p160 = scmp.lt.s32.totalorder %s159, 63
      %s161 = scalar_select %p160, %s159, 63
      %s162 = smul.addr %s161, 2
      %s163 = smul.addr %s162, 4
      %s164 = scalar_lea.vmem %s3, %s163
      %s165 = smul.u32 32, %s14
      %p166 = scmp.lt.s32.totalorder %s165, 63
      %s167 = scalar_select %p166, %s165, 63
      %s168 = smul.addr %s167, 11
      %s169 = smul.addr %s168, 4
      %s170 = scalar_lea.vmem %s0, %s169
      %s171 = smul.u32 32, %s14
      %s172 = smul.u32 32, %s14
      %p173 = scmp.lt.s32.totalorder %s172, 63
      %s174 = scalar_select %p173, %s172, 63
      %s175 = smul.addr %s174, 2
      %s176 = smul.addr %s175, 4
      %s177 = scalar_lea.vmem %s3, %s176
      %s178 = smul.u32 32, %s14
      %v180 = vld [vmem:[%s170] sm:$0xff]
      %v181 = vld [vmem:[%s170 + $0x8] sm:$0xff]
      %v182 = vld [vmem:[%s170 + $0x10] sm:$0xff]
      %v183 = vld [vmem:[%s170 + $0x18] sm:$0xff]
      %v184 = vld [vmem:[%s170 + $0x20] sm:$0xff]
      %v185 = vld [vmem:[%s170 + $0x28] sm:$0xf]
      %v186 = vld [vmem:[%s170 + $0x2c] sm:$0xff]
      %v187 = vld [vmem:[%s170 + $0x34] sm:$0xff]
      %v188 = vld [vmem:[%s170 + $0x3c] sm:$0xff]
      %v189 = vld [vmem:[%s170 + $0x44] sm:$0xff]
      %v190 = vld [vmem:[%s170 + $0x4c] sm:$0xff]
      %v191 = vld [vmem:[%s170 + $0x54] sm:$0xf]
      %v192 = vld [vmem:[%s170 + $0x58] sm:$0xff]
      %v193 = vld [vmem:[%s170 + $0x60] sm:$0xff]
      %v194 = vld [vmem:[%s170 + $0x68] sm:$0xff]
      %v195 = vld [vmem:[%s170 + $0x70] sm:$0xff]
      %v196 = vld [vmem:[%s170 + $0x78] sm:$0xff]
      %v197 = vld [vmem:[%s170 + $0x80] sm:$0xf]
      %v198 = vld [vmem:[%s170 + $0x84] sm:$0xff]
      %v199 = vld [vmem:[%s170 + $0x8c] sm:$0xff]
      %v200 = vld [vmem:[%s170 + $0x94] sm:$0xff]
      %v201 = vld [vmem:[%s170 + $0x9c] sm:$0xff]
      %v202 = vld [vmem:[%s170 + $0xa4] sm:$0xff]
      %v203 = vld [vmem:[%s170 + $0xac] sm:$0xf]
      %v204 = vld [vmem:[%s170 + $0xb0] sm:$0xff]
      %v205 = vld [vmem:[%s170 + $0xb8] sm:$0xff]
      %v206 = vld [vmem:[%s170 + $0xc0] sm:$0xff]
      %v207 = vld [vmem:[%s170 + $0xc8] sm:$0xff]
      %v208 = vld [vmem:[%s170 + $0xd0] sm:$0xff]
      %v209 = vld [vmem:[%s170 + $0xd8] sm:$0xf]
      %v210 = vld [vmem:[%s170 + $0xdc] sm:$0xff]
      %v211 = vld [vmem:[%s170 + $0xe4] sm:$0xff]
      %v212 = vld [vmem:[%s170 + $0xec] sm:$0xff]
      %v213 = vld [vmem:[%s170 + $0xf4] sm:$0xff]
      %v214 = vld [vmem:[%s170 + $0xfc] sm:$0xff]
      %v215 = vld [vmem:[%s170 + $0x104] sm:$0xf]
      %v216 = vld [vmem:[%s170 + $0x108] sm:$0xff]
      %v217 = vld [vmem:[%s170 + $0x110] sm:$0xff]
      %v218 = vld [vmem:[%s170 + $0x118] sm:$0xff]
      %v219 = vld [vmem:[%s170 + $0x120] sm:$0xff]
      %v220 = vld [vmem:[%s170 + $0x128] sm:$0xff]
      %v221 = vld [vmem:[%s170 + $0x130] sm:$0xf]
      %v222 = vld [vmem:[%s170 + $0x134] sm:$0xff]
      %v223 = vld [vmem:[%s170 + $0x13c] sm:$0xff]
      %v224 = vld [vmem:[%s170 + $0x144] sm:$0xff]
      %v225 = vld [vmem:[%s170 + $0x14c] sm:$0xff]
      %v226 = vld [vmem:[%s170 + $0x154] sm:$0xff]
      %v227 = vld [vmem:[%s170 + $0x15c] sm:$0xf]
      %v228 = vld [vmem:[%s170 + $0x160] sm:$0xff]
      %v229 = vld [vmem:[%s170 + $0x168] sm:$0xff]
      %v230 = vld [vmem:[%s170 + $0x170] sm:$0xff]
      %v231 = vld [vmem:[%s170 + $0x178] sm:$0xff]
      %v232 = vld [vmem:[%s170 + $0x180] sm:$0xff]
      %v233 = vld [vmem:[%s170 + $0x188] sm:$0xf]
      %v234 = vld [vmem:[%s170 + $0x18c] sm:$0xff]
      %v235 = vld [vmem:[%s170 + $0x194] sm:$0xff]
      %v236 = vld [vmem:[%s170 + $0x19c] sm:$0xff]
      %v237 = vld [vmem:[%s170 + $0x1a4] sm:$0xff]
      %v238 = vld [vmem:[%s170 + $0x1ac] sm:$0xff]
      %v239 = vld [vmem:[%s170 + $0x1b4] sm:$0xf]
      %v240 = vld [vmem:[%s170 + $0x1b8] sm:$0xff]
      %v241 = vld [vmem:[%s170 + $0x1c0] sm:$0xff]
      %v242 = vld [vmem:[%s170 + $0x1c8] sm:$0xff]
      %v243 = vld [vmem:[%s170 + $0x1d0] sm:$0xff]
      %v244 = vld [vmem:[%s170 + $0x1d8] sm:$0xff]
      %v245 = vld [vmem:[%s170 + $0x1e0] sm:$0xf]
      %v246 = vld [vmem:[%s170 + $0x1e4] sm:$0xff]
      %v247 = vld [vmem:[%s170 + $0x1ec] sm:$0xff]
      %v248 = vld [vmem:[%s170 + $0x1f4] sm:$0xff]
      %v249 = vld [vmem:[%s170 + $0x1fc] sm:$0xff]
      %v250 = vld [vmem:[%s170 + $0x204] sm:$0xff]
      %v251 = vld [vmem:[%s170 + $0x20c] sm:$0xf]
      %v252 = vld [vmem:[%s170 + $0x210] sm:$0xff]
      %v253 = vld [vmem:[%s170 + $0x218] sm:$0xff]
      %v254 = vld [vmem:[%s170 + $0x220] sm:$0xff]
      %v255 = vld [vmem:[%s170 + $0x228] sm:$0xff]
      %v256 = vld [vmem:[%s170 + $0x230] sm:$0xff]
      %v257 = vld [vmem:[%s170 + $0x238] sm:$0xf]
      %v258 = vld [vmem:[%s170 + $0x23c] sm:$0xff]
      %v259 = vld [vmem:[%s170 + $0x244] sm:$0xff]
      %v260 = vld [vmem:[%s170 + $0x24c] sm:$0xff]
      %v261 = vld [vmem:[%s170 + $0x254] sm:$0xff]
      %v262 = vld [vmem:[%s170 + $0x25c] sm:$0xff]
      %v263 = vld [vmem:[%s170 + $0x264] sm:$0xf]
      %v264 = vld [vmem:[%s170 + $0x268] sm:$0xff]
      %v265 = vld [vmem:[%s170 + $0x270] sm:$0xff]
      %v266 = vld [vmem:[%s170 + $0x278] sm:$0xff]
      %v267 = vld [vmem:[%s170 + $0x280] sm:$0xff]
      %v268 = vld [vmem:[%s170 + $0x288] sm:$0xff]
      %v269 = vld [vmem:[%s170 + $0x290] sm:$0xf]
      %v270 = vld [vmem:[%s170 + $0x294] sm:$0xff]
      %v271 = vld [vmem:[%s170 + $0x29c] sm:$0xff]
      %v272 = vld [vmem:[%s170 + $0x2a4] sm:$0xff]
      %v273 = vld [vmem:[%s170 + $0x2ac] sm:$0xff]
      %v274 = vld [vmem:[%s170 + $0x2b4] sm:$0xff]
      %v275 = vld [vmem:[%s170 + $0x2bc] sm:$0xf]
      %v276 = vld [vmem:[%s170 + $0x2c0] sm:$0xff]
      %v277 = vld [vmem:[%s170 + $0x2c8] sm:$0xff]
      %v278 = vld [vmem:[%s170 + $0x2d0] sm:$0xff]
      %v279 = vld [vmem:[%s170 + $0x2d8] sm:$0xff]
      %v280 = vld [vmem:[%s170 + $0x2e0] sm:$0xff]
      %v281 = vld [vmem:[%s170 + $0x2e8] sm:$0xf]
      %v282 = vld [vmem:[%s170 + $0x2ec] sm:$0xff]
      %v283 = vld [vmem:[%s170 + $0x2f4] sm:$0xff]
      %v284 = vld [vmem:[%s170 + $0x2fc] sm:$0xff]
      %v285 = vld [vmem:[%s170 + $0x304] sm:$0xff]
      %v286 = vld [vmem:[%s170 + $0x30c] sm:$0xff]
      %v287 = vld [vmem:[%s170 + $0x314] sm:$0xf]
      %v288 = vld [vmem:[%s170 + $0x318] sm:$0xff]
      %v289 = vld [vmem:[%s170 + $0x320] sm:$0xff]
      %v290 = vld [vmem:[%s170 + $0x328] sm:$0xff]
      %v291 = vld [vmem:[%s170 + $0x330] sm:$0xff]
      %v292 = vld [vmem:[%s170 + $0x338] sm:$0xff]
      %v293 = vld [vmem:[%s170 + $0x340] sm:$0xf]
      %v294 = vld [vmem:[%s170 + $0x344] sm:$0xff]
      %v295 = vld [vmem:[%s170 + $0x34c] sm:$0xff]
      %v296 = vld [vmem:[%s170 + $0x354] sm:$0xff]
      %v297 = vld [vmem:[%s170 + $0x35c] sm:$0xff]
      %v298 = vld [vmem:[%s170 + $0x364] sm:$0xff]
      %v299 = vld [vmem:[%s170 + $0x36c] sm:$0xf]
      %v300 = vld [vmem:[%s170 + $0x370] sm:$0xff]
      %v301 = vld [vmem:[%s170 + $0x378] sm:$0xff]
      %v302 = vld [vmem:[%s170 + $0x380] sm:$0xff]
      %v303 = vld [vmem:[%s170 + $0x388] sm:$0xff]
      %v304 = vld [vmem:[%s170 + $0x390] sm:$0xff]
      %v305 = vld [vmem:[%s170 + $0x398] sm:$0xf]
      %v306 = vld [vmem:[%s170 + $0x39c] sm:$0xff]
      %v307 = vld [vmem:[%s170 + $0x3a4] sm:$0xff]
      %v308 = vld [vmem:[%s170 + $0x3ac] sm:$0xff]
      %v309 = vld [vmem:[%s170 + $0x3b4] sm:$0xff]
      %v310 = vld [vmem:[%s170 + $0x3bc] sm:$0xff]
      %v311 = vld [vmem:[%s170 + $0x3c4] sm:$0xf]
      %v312 = vld [vmem:[%s170 + $0x3c8] sm:$0xff]
      %v313 = vld [vmem:[%s170 + $0x3d0] sm:$0xff]
      %v314 = vld [vmem:[%s170 + $0x3d8] sm:$0xff]
      %v315 = vld [vmem:[%s170 + $0x3e0] sm:$0xff]
      %v316 = vld [vmem:[%s170 + $0x3e8] sm:$0xff]
      %v317 = vld [vmem:[%s170 + $0x3f0] sm:$0xf]
      %v318 = vld [vmem:[%s170 + $0x3f4] sm:$0xff]
      %v319 = vld [vmem:[%s170 + $0x3fc] sm:$0xff]
      %v320 = vld [vmem:[%s170 + $0x404] sm:$0xff]
      %v321 = vld [vmem:[%s170 + $0x40c] sm:$0xff]
      %v322 = vld [vmem:[%s170 + $0x414] sm:$0xff]
      %v323 = vld [vmem:[%s170 + $0x41c] sm:$0xf]
      %v324 = vld [vmem:[%s170 + $0x420] sm:$0xff]
      %v325 = vld [vmem:[%s170 + $0x428] sm:$0xff]
      %v326 = vld [vmem:[%s170 + $0x430] sm:$0xff]
      %v327 = vld [vmem:[%s170 + $0x438] sm:$0xff]
      %v328 = vld [vmem:[%s170 + $0x440] sm:$0xff]
      %v329 = vld [vmem:[%s170 + $0x448] sm:$0xf]
      %v330 = vld [vmem:[%s170 + $0x44c] sm:$0xff]
      %v331 = vld [vmem:[%s170 + $0x454] sm:$0xff]
      %v332 = vld [vmem:[%s170 + $0x45c] sm:$0xff]
      %v333 = vld [vmem:[%s170 + $0x464] sm:$0xff]
      %v334 = vld [vmem:[%s170 + $0x46c] sm:$0xff]
      %v335 = vld [vmem:[%s170 + $0x474] sm:$0xf]
      %v336 = vld [vmem:[%s170 + $0x478] sm:$0xff]
      %v337 = vld [vmem:[%s170 + $0x480] sm:$0xff]
      %v338 = vld [vmem:[%s170 + $0x488] sm:$0xff]
      %v339 = vld [vmem:[%s170 + $0x490] sm:$0xff]
      %v340 = vld [vmem:[%s170 + $0x498] sm:$0xff]
      %v341 = vld [vmem:[%s170 + $0x4a0] sm:$0xf]
      %v342 = vld [vmem:[%s170 + $0x4a4] sm:$0xff]
      %v343 = vld [vmem:[%s170 + $0x4ac] sm:$0xff]
      %v344 = vld [vmem:[%s170 + $0x4b4] sm:$0xff]
      %v345 = vld [vmem:[%s170 + $0x4bc] sm:$0xff]
      %v346 = vld [vmem:[%s170 + $0x4c4] sm:$0xff]
      %v347 = vld [vmem:[%s170 + $0x4cc] sm:$0xf]
      %v348 = vld [vmem:[%s170 + $0x4d0] sm:$0xff]
      %v349 = vld [vmem:[%s170 + $0x4d8] sm:$0xff]
      %v350 = vld [vmem:[%s170 + $0x4e0] sm:$0xff]
      %v351 = vld [vmem:[%s170 + $0x4e8] sm:$0xff]
      %v352 = vld [vmem:[%s170 + $0x4f0] sm:$0xff]
      %v353 = vld [vmem:[%s170 + $0x4f8] sm:$0xf]
      %v354 = vld [vmem:[%s170 + $0x4fc] sm:$0xff]
      %v355 = vld [vmem:[%s170 + $0x504] sm:$0xff]
      %v356 = vld [vmem:[%s170 + $0x50c] sm:$0xff]
      %v357 = vld [vmem:[%s170 + $0x514] sm:$0xff]
      %v358 = vld [vmem:[%s170 + $0x51c] sm:$0xff]
      %v359 = vld [vmem:[%s170 + $0x524] sm:$0xf]
      %v360 = vld [vmem:[%s170 + $0x528] sm:$0xff]
      %v361 = vld [vmem:[%s170 + $0x530] sm:$0xff]
      %v362 = vld [vmem:[%s170 + $0x538] sm:$0xff]
      %v363 = vld [vmem:[%s170 + $0x540] sm:$0xff]
      %v364 = vld [vmem:[%s170 + $0x548] sm:$0xff]
      %v365 = vld [vmem:[%s170 + $0x550] sm:$0xf]
      %v366 = vld [vmem:[%s170 + $0x554] sm:$0xff]
      %v367 = vld [vmem:[%s170 + $0x55c] sm:$0xff]
      %v368 = vld [vmem:[%s170 + $0x564] sm:$0xff]
      %v369 = vld [vmem:[%s170 + $0x56c] sm:$0xff]
      %v370 = vld [vmem:[%s170 + $0x574] sm:$0xff]
      %v371 = vld [vmem:[%s170 + $0x57c] sm:$0xf]
      %v372 = vld [vmem:[%s1] sm:$0xff]
      %v373 = vld [vmem:[%s1 + $0x8] sm:$0xff]
      %v374 = vld [vmem:[%s1 + $0x10] sm:$0xff]
      %v375 = vld [vmem:[%s1 + $0x18] sm:$0xff]
      %v376 = vld [vmem:[%s1 + $0x20] sm:$0xff]
      %v377 = vld [vmem:[%s1 + $0x28] sm:$0xff]
      %v378 = vld [vmem:[%s1 + $0x30] sm:$0xff]
      %v379 = vld [vmem:[%s1 + $0x38] sm:$0xff]
      %v380 = vld [vmem:[%s1 + $0x40] sm:$0xff]
      %v381 = vld [vmem:[%s1 + $0x48] sm:$0xff]
      %v382 = vld [vmem:[%s1 + $0x50] sm:$0xff]
      %v383 = vld [vmem:[%s1 + $0x58] sm:$0xff]
      %v384 = vld [vmem:[%s1 + $0x60] sm:$0xff]
      %v385 = vld [vmem:[%s1 + $0x68] sm:$0xff]
      %v386 = vld [vmem:[%s1 + $0x70] sm:$0xff]
      %v387 = vld [vmem:[%s1 + $0x78] sm:$0xff]
      %v388 = vld [vmem:[%s1 + $0x80] sm:$0xff]
      %v389 = vld [vmem:[%s1 + $0x88] sm:$0xff]
      %v390 = vld [vmem:[%s1 + $0x90] sm:$0xff]
      %v391 = vld [vmem:[%s1 + $0x98] sm:$0xff]
      %v392 = vld [vmem:[%s1 + $0xa0] sm:$0xff]
      %v393 = vld [vmem:[%s1 + $0xa8] sm:$0xff]
      %v394 = vld [vmem:[%s1 + $0xb0] sm:$0xff]
      %v395 = vld [vmem:[%s1 + $0xb8] sm:$0xff]
      %v396 = vld [vmem:[%s1 + $0xc0] sm:$0xff]
      %v397 = vld [vmem:[%s1 + $0xc8] sm:$0xff]
      %v398 = vld [vmem:[%s1 + $0xd0] sm:$0xff]
      %v399 = vld [vmem:[%s1 + $0xd8] sm:$0xff]
      %v400 = vld [vmem:[%s1 + $0xe0] sm:$0xff]
      %v401 = vld [vmem:[%s1 + $0xe8] sm:$0xff]
      %v402 = vld [vmem:[%s1 + $0xf0] sm:$0xff]
      %v403 = vld [vmem:[%s1 + $0xf8] sm:$0xff]
      %v404 = vld [vmem:[%s1 + $0x100] sm:$0xff]
      %v405 = vld [vmem:[%s1 + $0x108] sm:$0xff]
      %v406 = vld [vmem:[%s1 + $0x110] sm:$0xff]
      %v407 = vld [vmem:[%s1 + $0x118] sm:$0xff]
      %v408 = vld [vmem:[%s1 + $0x120] sm:$0xff]
      %v409 = vld [vmem:[%s1 + $0x128] sm:$0xff]
      %v410 = vld [vmem:[%s1 + $0x130] sm:$0xff]
      %v411 = vld [vmem:[%s1 + $0x138] sm:$0xff]
      %v412 = vld [vmem:[%s1 + $0x140] sm:$0xff]
      %v413 = vld [vmem:[%s1 + $0x148] sm:$0xff]
      %v414 = vld [vmem:[%s1 + $0x150] sm:$0xff]
      %v415 = vld [vmem:[%s1 + $0x158] sm:$0xff]
      %v416 = vld [vmem:[%s1 + $0x160] sm:$0xff]
      %v417 = vld [vmem:[%s1 + $0x168] sm:$0xff]
      %v418 = vld [vmem:[%s1 + $0x170] sm:$0xff]
      %v419 = vld [vmem:[%s1 + $0x178] sm:$0xff]
      %v420 = vld [vmem:[%s1 + $0x180] sm:$0xff]
      %v421 = vld [vmem:[%s1 + $0x188] sm:$0xff]
      %v422 = vld [vmem:[%s1 + $0x190] sm:$0xff]
      %v423 = vld [vmem:[%s1 + $0x198] sm:$0xff]
      %v424 = vld [vmem:[%s1 + $0x1a0] sm:$0xff]
      %v425 = vld [vmem:[%s1 + $0x1a8] sm:$0xff]
      %v426 = vld [vmem:[%s1 + $0x1b0] sm:$0xff]
      %v427 = vld [vmem:[%s1 + $0x1b8] sm:$0xff]
      %v428 = vld [vmem:[%s1 + $0x1c0] sm:$0xff]
      %v429 = vld [vmem:[%s1 + $0x1c8] sm:$0xff]
      %v430 = vld [vmem:[%s1 + $0x1d0] sm:$0xff]
      %v431 = vld [vmem:[%s1 + $0x1d8] sm:$0xff]
      %v432 = vld [vmem:[%s1 + $0x1e0] sm:$0xff]
      %v433 = vld [vmem:[%s1 + $0x1e8] sm:$0xff]
      %v434 = vld [vmem:[%s1 + $0x1f0] sm:$0xff]
      %v435 = vld [vmem:[%s1 + $0x1f8] sm:$0xff]
      %v436 = vld [vmem:[%s1 + $0x200] sm:$0xff]
      %v437 = vld [vmem:[%s1 + $0x208] sm:$0xff]
      %v438 = vld [vmem:[%s1 + $0x210] sm:$0xff]
      %v439 = vld [vmem:[%s1 + $0x218] sm:$0xff]
      %v440 = vld [vmem:[%s1 + $0x220] sm:$0xff]
      %v441 = vld [vmem:[%s1 + $0x228] sm:$0xff]
      %v442 = vld [vmem:[%s1 + $0x230] sm:$0xff]
      %v443 = vld [vmem:[%s1 + $0x238] sm:$0xff]
      %v444 = vld [vmem:[%s1 + $0x240] sm:$0xff]
      %v445 = vld [vmem:[%s1 + $0x248] sm:$0xff]
      %v446 = vld [vmem:[%s1 + $0x250] sm:$0xff]
      %v447 = vld [vmem:[%s1 + $0x258] sm:$0xff]
      %v448 = vld [vmem:[%s1 + $0x260] sm:$0xff]
      %v449 = vld [vmem:[%s1 + $0x268] sm:$0xff]
      %v450 = vld [vmem:[%s1 + $0x270] sm:$0xff]
      %v451 = vld [vmem:[%s1 + $0x278] sm:$0xff]
      %v452 = vld [vmem:[%s1 + $0x280] sm:$0xff]
      %v453 = vld [vmem:[%s1 + $0x288] sm:$0xff]
      %v454 = vld [vmem:[%s1 + $0x290] sm:$0xff]
      %v455 = vld [vmem:[%s1 + $0x298] sm:$0xff]
      %v456 = vld [vmem:[%s1 + $0x2a0] sm:$0xff]
      %v457 = vld [vmem:[%s1 + $0x2a8] sm:$0xff]
      %v458 = vld [vmem:[%s1 + $0x2b0] sm:$0xff]
      %v459 = vld [vmem:[%s1 + $0x2b8] sm:$0xff]
      %v460 = vld [vmem:[%s1 + $0x2c0] sm:$0xff]
      %v461 = vld [vmem:[%s1 + $0x2c8] sm:$0xff]
      %v462 = vld [vmem:[%s1 + $0x2d0] sm:$0xff]
      %v463 = vld [vmem:[%s1 + $0x2d8] sm:$0xff]
      %v464 = vld [vmem:[%s1 + $0x2e0] sm:$0xff]
      %v465 = vld [vmem:[%s1 + $0x2e8] sm:$0xff]
      %v466 = vld [vmem:[%s1 + $0x2f0] sm:$0xff]
      %v467 = vld [vmem:[%s1 + $0x2f8] sm:$0xff]
      %v468 = vld [vmem:[%s1 + $0x300] sm:$0xff]
      %v469 = vld [vmem:[%s1 + $0x308] sm:$0xff]
      %v470 = vld [vmem:[%s1 + $0x310] sm:$0xff]
      %v471 = vld [vmem:[%s1 + $0x318] sm:$0xff]
      %v472 = vld [vmem:[%s1 + $0x320] sm:$0xff]
      %v473 = vld [vmem:[%s1 + $0x328] sm:$0xff]
      %v474 = vld [vmem:[%s1 + $0x330] sm:$0xff]
      %v475 = vld [vmem:[%s1 + $0x338] sm:$0xff]
      %v476 = vld [vmem:[%s1 + $0x340] sm:$0xff]
      %v477 = vld [vmem:[%s1 + $0x348] sm:$0xff]
      %v478 = vld [vmem:[%s1 + $0x350] sm:$0xff]
      %v479 = vld [vmem:[%s1 + $0x358] sm:$0xff]
      %v480 = vld [vmem:[%s1 + $0x360] sm:$0xff]
      %v481 = vld [vmem:[%s1 + $0x368] sm:$0xff]
      %v482 = vld [vmem:[%s1 + $0x370] sm:$0xff]
      %v483 = vld [vmem:[%s1 + $0x378] sm:$0xff]
      %v484 = vld [vmem:[%s1 + $0x380] sm:$0xff]
      %v485 = vld [vmem:[%s1 + $0x388] sm:$0xff]
      %v486 = vld [vmem:[%s1 + $0x390] sm:$0xff]
      %v487 = vld [vmem:[%s1 + $0x398] sm:$0xff]
      %v488 = vld [vmem:[%s1 + $0x3a0] sm:$0xff]
      %v489 = vld [vmem:[%s1 + $0x3a8] sm:$0xff]
      %v490 = vld [vmem:[%s1 + $0x3b0] sm:$0xff]
      %v491 = vld [vmem:[%s1 + $0x3b8] sm:$0xff]
      %v492 = vld [vmem:[%s1 + $0x3c0] sm:$0xff]
      %v493 = vld [vmem:[%s1 + $0x3c8] sm:$0xff]
      %v494 = vld [vmem:[%s1 + $0x3d0] sm:$0xff]
      %v495 = vld [vmem:[%s1 + $0x3d8] sm:$0xff]
      %v496 = vld [vmem:[%s1 + $0x3e0] sm:$0xff]
      %v497 = vld [vmem:[%s1 + $0x3e8] sm:$0xff]
      %v498 = vld [vmem:[%s1 + $0x3f0] sm:$0xff]
      %v499 = vld [vmem:[%s1 + $0x3f8] sm:$0xff]
      %v500 = vld [vmem:[%s1 + $0x400] sm:$0xff]
      %v501 = vld [vmem:[%s1 + $0x408] sm:$0xff]
      %v502 = vld [vmem:[%s1 + $0x410] sm:$0xff]
      %v503 = vld [vmem:[%s1 + $0x418] sm:$0xff]
      %v504 = vld [vmem:[%s1 + $0x420] sm:$0xff]
      %v505 = vld [vmem:[%s1 + $0x428] sm:$0xff]
      %v506 = vld [vmem:[%s1 + $0x430] sm:$0xff]
      %v507 = vld [vmem:[%s1 + $0x438] sm:$0xff]
      %v508 = vld [vmem:[%s1 + $0x440] sm:$0xff]
      %v509 = vld [vmem:[%s1 + $0x448] sm:$0xff]
      %v510 = vld [vmem:[%s1 + $0x450] sm:$0xff]
      %v511 = vld [vmem:[%s1 + $0x458] sm:$0xff]
      %v512 = vld [vmem:[%s1 + $0x460] sm:$0xff]
      %v513 = vld [vmem:[%s1 + $0x468] sm:$0xff]
      %v514 = vld [vmem:[%s1 + $0x470] sm:$0xff]
      %v515 = vld [vmem:[%s1 + $0x478] sm:$0xff]
      %v516 = vld [vmem:[%s1 + $0x480] sm:$0xff]
      %v517 = vld [vmem:[%s1 + $0x488] sm:$0xff]
      %v518 = vld [vmem:[%s1 + $0x490] sm:$0xff]
      %v519 = vld [vmem:[%s1 + $0x498] sm:$0xff]
      %v520 = vld [vmem:[%s1 + $0x4a0] sm:$0xff]
      %v521 = vld [vmem:[%s1 + $0x4a8] sm:$0xff]
      %v522 = vld [vmem:[%s1 + $0x4b0] sm:$0xff]
      %v523 = vld [vmem:[%s1 + $0x4b8] sm:$0xff]
      %v524 = vld [vmem:[%s1 + $0x4c0] sm:$0xff]
      %v525 = vld [vmem:[%s1 + $0x4c8] sm:$0xff]
      %v526 = vld [vmem:[%s1 + $0x4d0] sm:$0xff]
      %v527 = vld [vmem:[%s1 + $0x4d8] sm:$0xff]
      %v528 = vld [vmem:[%s1 + $0x4e0] sm:$0xff]
      %v529 = vld [vmem:[%s1 + $0x4e8] sm:$0xff]
      %v530 = vld [vmem:[%s1 + $0x4f0] sm:$0xff]
      %v531 = vld [vmem:[%s1 + $0x4f8] sm:$0xff]
      %v532 = vld [vmem:[%s1 + $0x500] sm:$0xff]
      %v533 = vld [vmem:[%s1 + $0x508] sm:$0xff]
      %v534 = vld [vmem:[%s1 + $0x510] sm:$0xff]
      %v535 = vld [vmem:[%s1 + $0x518] sm:$0xff]
      %v536 = vld [vmem:[%s1 + $0x520] sm:$0xff]
      %v537 = vld [vmem:[%s1 + $0x528] sm:$0xff]
      %v538 = vld [vmem:[%s1 + $0x530] sm:$0xff]
      %v539 = vld [vmem:[%s1 + $0x538] sm:$0xff]
      %v540 = vld [vmem:[%s1 + $0x540] sm:$0xff]
      %v541 = vld [vmem:[%s1 + $0x548] sm:$0xff]
      %v542 = vld [vmem:[%s1 + $0x550] sm:$0xff]
      %v543 = vld [vmem:[%s1 + $0x558] sm:$0xff]
      %v544 = vld [vmem:[%s1 + $0x560] sm:$0xff]
      %v545 = vld [vmem:[%s1 + $0x568] sm:$0xff]
      %v546 = vld [vmem:[%s1 + $0x570] sm:$0xff]
      %v547 = vld [vmem:[%s1 + $0x578] sm:$0xff]
      %v548 = vld [vmem:[%s2] sm:$0x3]
      %v550 = vlaneseq
      %v551 = vshrl.u32 %v550, 7
      %v552 = vsub.s32 0, %v551
      %v553 = vrot.slane %v548, %v552
      %v554 = vlaneseq
      %v555 = vshrl.u32 %v554, 7
      %v556 = vsub.s32 1, %v555
      %v557 = vrot.slane %v548, %v556
      %v752 = vunpack.c.l.b16 %v180
      %v753 = vunpack.c.h.b16 %v180
      %v754 = vunpack.c.l.b16 %v181
      %v755 = vunpack.c.h.b16 %v181
      %v756 = vunpack.c.l.b16 %v182
      %v757 = vunpack.c.h.b16 %v182
      %v758 = vunpack.c.l.b16 %v183
      %v759 = vunpack.c.h.b16 %v183
      %v760 = vunpack.c.l.b16 %v184
      %v761 = vunpack.c.h.b16 %v184
      %v762 = vunpack.c.l.b16 %v185
      %v763 = vunpack.c.l.b16 %v186
      %v764 = vunpack.c.h.b16 %v186
      %v765 = vunpack.c.l.b16 %v187
      %v766 = vunpack.c.h.b16 %v187
      %v767 = vunpack.c.l.b16 %v188
      %v768 = vunpack.c.h.b16 %v188
      %v769 = vunpack.c.l.b16 %v189
      %v770 = vunpack.c.h.b16 %v189
      %v771 = vunpack.c.l.b16 %v190
      %v772 = vunpack.c.h.b16 %v190
      %v773 = vunpack.c.l.b16 %v191
      %v774 = vunpack.c.l.b16 %v192
      %v775 = vunpack.c.h.b16 %v192
      %v776 = vunpack.c.l.b16 %v193
      %v777 = vunpack.c.h.b16 %v193
      %v778 = vunpack.c.l.b16 %v194
      %v779 = vunpack.c.h.b16 %v194
      %v780 = vunpack.c.l.b16 %v195
      %v781 = vunpack.c.h.b16 %v195
      %v782 = vunpack.c.l.b16 %v196
      %v783 = vunpack.c.h.b16 %v196
      %v784 = vunpack.c.l.b16 %v197
      %v785 = vunpack.c.l.b16 %v198
      %v786 = vunpack.c.h.b16 %v198
      %v787 = vunpack.c.l.b16 %v199
      %v788 = vunpack.c.h.b16 %v199
      %v789 = vunpack.c.l.b16 %v200
      %v790 = vunpack.c.h.b16 %v200
      %v791 = vunpack.c.l.b16 %v201
      %v792 = vunpack.c.h.b16 %v201
      %v793 = vunpack.c.l.b16 %v202
      %v794 = vunpack.c.h.b16 %v202
      %v795 = vunpack.c.l.b16 %v203
      %v796 = vunpack.c.l.b16 %v204
      %v797 = vunpack.c.h.b16 %v204
      %v798 = vunpack.c.l.b16 %v205
      %v799 = vunpack.c.h.b16 %v205
      %v800 = vunpack.c.l.b16 %v206
      %v801 = vunpack.c.h.b16 %v206
      %v802 = vunpack.c.l.b16 %v207
      %v803 = vunpack.c.h.b16 %v207
      %v804 = vunpack.c.l.b16 %v208
      %v805 = vunpack.c.h.b16 %v208
      %v806 = vunpack.c.l.b16 %v209
      %v807 = vunpack.c.l.b16 %v210
      %v808 = vunpack.c.h.b16 %v210
      %v809 = vunpack.c.l.b16 %v211
      %v810 = vunpack.c.h.b16 %v211
      %v811 = vunpack.c.l.b16 %v212
      %v812 = vunpack.c.h.b16 %v212
      %v813 = vunpack.c.l.b16 %v213
      %v814 = vunpack.c.h.b16 %v213
      %v815 = vunpack.c.l.b16 %v214
      %v816 = vunpack.c.h.b16 %v214
      %v817 = vunpack.c.l.b16 %v215
      %v818 = vunpack.c.l.b16 %v216
      %v819 = vunpack.c.h.b16 %v216
      %v820 = vunpack.c.l.b16 %v217
      %v821 = vunpack.c.h.b16 %v217
      %v822 = vunpack.c.l.b16 %v218
      %v823 = vunpack.c.h.b16 %v218
      %v824 = vunpack.c.l.b16 %v219
      %v825 = vunpack.c.h.b16 %v219
      %v826 = vunpack.c.l.b16 %v220
      %v827 = vunpack.c.h.b16 %v220
      %v828 = vunpack.c.l.b16 %v221
      %v829 = vunpack.c.l.b16 %v222
      %v830 = vunpack.c.h.b16 %v222
      %v831 = vunpack.c.l.b16 %v223
      %v832 = vunpack.c.h.b16 %v223
      %v833 = vunpack.c.l.b16 %v224
      %v834 = vunpack.c.h.b16 %v224
      %v835 = vunpack.c.l.b16 %v225
      %v836 = vunpack.c.h.b16 %v225
      %v837 = vunpack.c.l.b16 %v226
      %v838 = vunpack.c.h.b16 %v226
      %v839 = vunpack.c.l.b16 %v227
      %v840 = vunpack.c.l.b16 %v228
      %v841 = vunpack.c.h.b16 %v228
      %v842 = vunpack.c.l.b16 %v229
      %v843 = vunpack.c.h.b16 %v229
      %v844 = vunpack.c.l.b16 %v230
      %v845 = vunpack.c.h.b16 %v230
      %v846 = vunpack.c.l.b16 %v231
      %v847 = vunpack.c.h.b16 %v231
      %v848 = vunpack.c.l.b16 %v232
      %v849 = vunpack.c.h.b16 %v232
      %v850 = vunpack.c.l.b16 %v233
      %v851 = vunpack.c.l.b16 %v234
      %v852 = vunpack.c.h.b16 %v234
      %v853 = vunpack.c.l.b16 %v235
      %v854 = vunpack.c.h.b16 %v235
      %v855 = vunpack.c.l.b16 %v236
      %v856 = vunpack.c.h.b16 %v236
      %v857 = vunpack.c.l.b16 %v237
      %v858 = vunpack.c.h.b16 %v237
      %v859 = vunpack.c.l.b16 %v238
      %v860 = vunpack.c.h.b16 %v238
      %v861 = vunpack.c.l.b16 %v239
      %v862 = vunpack.c.l.b16 %v240
      %v863 = vunpack.c.h.b16 %v240
      %v864 = vunpack.c.l.b16 %v241
      %v865 = vunpack.c.h.b16 %v241
      %v866 = vunpack.c.l.b16 %v242
      %v867 = vunpack.c.h.b16 %v242
      %v868 = vunpack.c.l.b16 %v243
      %v869 = vunpack.c.h.b16 %v243
      %v870 = vunpack.c.l.b16 %v244
      %v871 = vunpack.c.h.b16 %v244
      %v872 = vunpack.c.l.b16 %v245
      %v873 = vunpack.c.l.b16 %v246
      %v874 = vunpack.c.h.b16 %v246
      %v875 = vunpack.c.l.b16 %v247
      %v876 = vunpack.c.h.b16 %v247
      %v877 = vunpack.c.l.b16 %v248
      %v878 = vunpack.c.h.b16 %v248
      %v879 = vunpack.c.l.b16 %v249
      %v880 = vunpack.c.h.b16 %v249
      %v881 = vunpack.c.l.b16 %v250
      %v882 = vunpack.c.h.b16 %v250
      %v883 = vunpack.c.l.b16 %v251
      %v884 = vunpack.c.l.b16 %v252
      %v885 = vunpack.c.h.b16 %v252
      %v886 = vunpack.c.l.b16 %v253
      %v887 = vunpack.c.h.b16 %v253
      %v888 = vunpack.c.l.b16 %v254
      %v889 = vunpack.c.h.b16 %v254
      %v890 = vunpack.c.l.b16 %v255
      %v891 = vunpack.c.h.b16 %v255
      %v892 = vunpack.c.l.b16 %v256
      %v893 = vunpack.c.h.b16 %v256
      %v894 = vunpack.c.l.b16 %v257
      %v895 = vunpack.c.l.b16 %v258
      %v896 = vunpack.c.h.b16 %v258
      %v897 = vunpack.c.l.b16 %v259
      %v898 = vunpack.c.h.b16 %v259
      %v899 = vunpack.c.l.b16 %v260
      %v900 = vunpack.c.h.b16 %v260
      %v901 = vunpack.c.l.b16 %v261
      %v902 = vunpack.c.h.b16 %v261
      %v903 = vunpack.c.l.b16 %v262
      %v904 = vunpack.c.h.b16 %v262
      %v905 = vunpack.c.l.b16 %v263
      %v906 = vunpack.c.l.b16 %v264
      %v907 = vunpack.c.h.b16 %v264
      %v908 = vunpack.c.l.b16 %v265
      %v909 = vunpack.c.h.b16 %v265
      %v910 = vunpack.c.l.b16 %v266
      %v911 = vunpack.c.h.b16 %v266
      %v912 = vunpack.c.l.b16 %v267
      %v913 = vunpack.c.h.b16 %v267
      %v914 = vunpack.c.l.b16 %v268
      %v915 = vunpack.c.h.b16 %v268
      %v916 = vunpack.c.l.b16 %v269
      %v917 = vunpack.c.l.b16 %v270
      %v918 = vunpack.c.h.b16 %v270
      %v919 = vunpack.c.l.b16 %v271
      %v920 = vunpack.c.h.b16 %v271
      %v921 = vunpack.c.l.b16 %v272
      %v922 = vunpack.c.h.b16 %v272
      %v923 = vunpack.c.l.b16 %v273
      %v924 = vunpack.c.h.b16 %v273
      %v925 = vunpack.c.l.b16 %v274
      %v926 = vunpack.c.h.b16 %v274
      %v927 = vunpack.c.l.b16 %v275
      %v928 = vunpack.c.l.b16 %v276
      %v929 = vunpack.c.h.b16 %v276
      %v930 = vunpack.c.l.b16 %v277
      %v931 = vunpack.c.h.b16 %v277
      %v932 = vunpack.c.l.b16 %v278
      %v933 = vunpack.c.h.b16 %v278
      %v934 = vunpack.c.l.b16 %v279
      %v935 = vunpack.c.h.b16 %v279
      %v936 = vunpack.c.l.b16 %v280
      %v937 = vunpack.c.h.b16 %v280
      %v938 = vunpack.c.l.b16 %v281
      %v939 = vunpack.c.l.b16 %v282
      %v940 = vunpack.c.h.b16 %v282
      %v941 = vunpack.c.l.b16 %v283
      %v942 = vunpack.c.h.b16 %v283
      %v943 = vunpack.c.l.b16 %v284
      %v944 = vunpack.c.h.b16 %v284
      %v945 = vunpack.c.l.b16 %v285
      %v946 = vunpack.c.h.b16 %v285
      %v947 = vunpack.c.l.b16 %v286
      %v948 = vunpack.c.h.b16 %v286
      %v949 = vunpack.c.l.b16 %v287
      %v950 = vunpack.c.l.b16 %v288
      %v951 = vunpack.c.h.b16 %v288
      %v952 = vunpack.c.l.b16 %v289
      %v953 = vunpack.c.h.b16 %v289
      %v954 = vunpack.c.l.b16 %v290
      %v955 = vunpack.c.h.b16 %v290
      %v956 = vunpack.c.l.b16 %v291
      %v957 = vunpack.c.h.b16 %v291
      %v958 = vunpack.c.l.b16 %v292
      %v959 = vunpack.c.h.b16 %v292
      %v960 = vunpack.c.l.b16 %v293
      %v961 = vunpack.c.l.b16 %v294
      %v962 = vunpack.c.h.b16 %v294
      %v963 = vunpack.c.l.b16 %v295
      %v964 = vunpack.c.h.b16 %v295
      %v965 = vunpack.c.l.b16 %v296
      %v966 = vunpack.c.h.b16 %v296
      %v967 = vunpack.c.l.b16 %v297
      %v968 = vunpack.c.h.b16 %v297
      %v969 = vunpack.c.l.b16 %v298
      %v970 = vunpack.c.h.b16 %v298
      %v971 = vunpack.c.l.b16 %v299
      %v972 = vunpack.c.l.b16 %v300
      %v973 = vunpack.c.h.b16 %v300
      %v974 = vunpack.c.l.b16 %v301
      %v975 = vunpack.c.h.b16 %v301
      %v976 = vunpack.c.l.b16 %v302
      %v977 = vunpack.c.h.b16 %v302
      %v978 = vunpack.c.l.b16 %v303
      %v979 = vunpack.c.h.b16 %v303
      %v980 = vunpack.c.l.b16 %v304
      %v981 = vunpack.c.h.b16 %v304
      %v982 = vunpack.c.l.b16 %v305
      %v983 = vunpack.c.l.b16 %v306
      %v984 = vunpack.c.h.b16 %v306
      %v985 = vunpack.c.l.b16 %v307
      %v986 = vunpack.c.h.b16 %v307
      %v987 = vunpack.c.l.b16 %v308
      %v988 = vunpack.c.h.b16 %v308
      %v989 = vunpack.c.l.b16 %v309
      %v990 = vunpack.c.h.b16 %v309
      %v991 = vunpack.c.l.b16 %v310
      %v992 = vunpack.c.h.b16 %v310
      %v993 = vunpack.c.l.b16 %v311
      %v994 = vunpack.c.l.b16 %v312
      %v995 = vunpack.c.h.b16 %v312
      %v996 = vunpack.c.l.b16 %v313
      %v997 = vunpack.c.h.b16 %v313
      %v998 = vunpack.c.l.b16 %v314
      %v999 = vunpack.c.h.b16 %v314
      %v1000 = vunpack.c.l.b16 %v315
      %v1001 = vunpack.c.h.b16 %v315
      %v1002 = vunpack.c.l.b16 %v316
      %v1003 = vunpack.c.h.b16 %v316
      %v1004 = vunpack.c.l.b16 %v317
      %v1005 = vunpack.c.l.b16 %v318
      %v1006 = vunpack.c.h.b16 %v318
      %v1007 = vunpack.c.l.b16 %v319
      %v1008 = vunpack.c.h.b16 %v319
      %v1009 = vunpack.c.l.b16 %v320
      %v1010 = vunpack.c.h.b16 %v320
      %v1011 = vunpack.c.l.b16 %v321
      %v1012 = vunpack.c.h.b16 %v321
      %v1013 = vunpack.c.l.b16 %v322
      %v1014 = vunpack.c.h.b16 %v322
      %v1015 = vunpack.c.l.b16 %v323
      %v1016 = vunpack.c.l.b16 %v324
      %v1017 = vunpack.c.h.b16 %v324
      %v1018 = vunpack.c.l.b16 %v325
      %v1019 = vunpack.c.h.b16 %v325
      %v1020 = vunpack.c.l.b16 %v326
      %v1021 = vunpack.c.h.b16 %v326
      %v1022 = vunpack.c.l.b16 %v327
      %v1023 = vunpack.c.h.b16 %v327
      %v1024 = vunpack.c.l.b16 %v328
      %v1025 = vunpack.c.h.b16 %v328
      %v1026 = vunpack.c.l.b16 %v329
      %v1027 = vunpack.c.l.b16 %v330
      %v1028 = vunpack.c.h.b16 %v330
      %v1029 = vunpack.c.l.b16 %v331
      %v1030 = vunpack.c.h.b16 %v331
      %v1031 = vunpack.c.l.b16 %v332
      %v1032 = vunpack.c.h.b16 %v332
      %v1033 = vunpack.c.l.b16 %v333
      %v1034 = vunpack.c.h.b16 %v333
      %v1035 = vunpack.c.l.b16 %v334
      %v1036 = vunpack.c.h.b16 %v334
      %v1037 = vunpack.c.l.b16 %v335
      %v1038 = vunpack.c.l.b16 %v336
      %v1039 = vunpack.c.h.b16 %v336
      %v1040 = vunpack.c.l.b16 %v337
      %v1041 = vunpack.c.h.b16 %v337
      %v1042 = vunpack.c.l.b16 %v338
      %v1043 = vunpack.c.h.b16 %v338
      %v1044 = vunpack.c.l.b16 %v339
      %v1045 = vunpack.c.h.b16 %v339
      %v1046 = vunpack.c.l.b16 %v340
      %v1047 = vunpack.c.h.b16 %v340
      %v1048 = vunpack.c.l.b16 %v341
      %v1049 = vunpack.c.l.b16 %v342
      %v1050 = vunpack.c.h.b16 %v342
      %v1051 = vunpack.c.l.b16 %v343
      %v1052 = vunpack.c.h.b16 %v343
      %v1053 = vunpack.c.l.b16 %v344
      %v1054 = vunpack.c.h.b16 %v344
      %v1055 = vunpack.c.l.b16 %v345
      %v1056 = vunpack.c.h.b16 %v345
      %v1057 = vunpack.c.l.b16 %v346
      %v1058 = vunpack.c.h.b16 %v346
      %v1059 = vunpack.c.l.b16 %v347
      %v1060 = vunpack.c.l.b16 %v348
      %v1061 = vunpack.c.h.b16 %v348
      %v1062 = vunpack.c.l.b16 %v349
      %v1063 = vunpack.c.h.b16 %v349
      %v1064 = vunpack.c.l.b16 %v350
      %v1065 = vunpack.c.h.b16 %v350
      %v1066 = vunpack.c.l.b16 %v351
      %v1067 = vunpack.c.h.b16 %v351
      %v1068 = vunpack.c.l.b16 %v352
      %v1069 = vunpack.c.h.b16 %v352
      %v1070 = vunpack.c.l.b16 %v353
      %v1071 = vunpack.c.l.b16 %v354
      %v1072 = vunpack.c.h.b16 %v354
      %v1073 = vunpack.c.l.b16 %v355
      %v1074 = vunpack.c.h.b16 %v355
      %v1075 = vunpack.c.l.b16 %v356
      %v1076 = vunpack.c.h.b16 %v356
      %v1077 = vunpack.c.l.b16 %v357
      %v1078 = vunpack.c.h.b16 %v357
      %v1079 = vunpack.c.l.b16 %v358
      %v1080 = vunpack.c.h.b16 %v358
      %v1081 = vunpack.c.l.b16 %v359
      %v1082 = vunpack.c.l.b16 %v360
      %v1083 = vunpack.c.h.b16 %v360
      %v1084 = vunpack.c.l.b16 %v361
      %v1085 = vunpack.c.h.b16 %v361
      %v1086 = vunpack.c.l.b16 %v362
      %v1087 = vunpack.c.h.b16 %v362
      %v1088 = vunpack.c.l.b16 %v363
      %v1089 = vunpack.c.h.b16 %v363
      %v1090 = vunpack.c.l.b16 %v364
      %v1091 = vunpack.c.h.b16 %v364
      %v1092 = vunpack.c.l.b16 %v365
      %v1093 = vunpack.c.l.b16 %v366
      %v1094 = vunpack.c.h.b16 %v366
      %v1095 = vunpack.c.l.b16 %v367
      %v1096 = vunpack.c.h.b16 %v367
      %v1097 = vunpack.c.l.b16 %v368
      %v1098 = vunpack.c.h.b16 %v368
      %v1099 = vunpack.c.l.b16 %v369
      %v1100 = vunpack.c.h.b16 %v369
      %v1101 = vunpack.c.l.b16 %v370
      %v1102 = vunpack.c.h.b16 %v370
      %v1103 = vunpack.c.l.b16 %v371
      %v1104 = vpack.c.b16 %v763, %v752
      %v1105 = vpack.c.b16 %v764, %v753
      %v1106 = vpack.c.b16 %v765, %v754
      %v1107 = vpack.c.b16 %v766, %v755
      %v1108 = vpack.c.b16 %v767, %v756
      %v1109 = vpack.c.b16 %v768, %v757
      %v1110 = vpack.c.b16 %v769, %v758
      %v1111 = vpack.c.b16 %v770, %v759
      %v1112 = vpack.c.b16 %v771, %v760
      %v1113 = vpack.c.b16 %v772, %v761
      %v1114 = vpack.c.b16 %v773, %v762
      %v1115 = vpack.c.b16 %v785, %v774
      %v1116 = vpack.c.b16 %v786, %v775
      %v1117 = vpack.c.b16 %v787, %v776
      %v1118 = vpack.c.b16 %v788, %v777
      %v1119 = vpack.c.b16 %v789, %v778
      %v1120 = vpack.c.b16 %v790, %v779
      %v1121 = vpack.c.b16 %v791, %v780
      %v1122 = vpack.c.b16 %v792, %v781
      %v1123 = vpack.c.b16 %v793, %v782
      %v1124 = vpack.c.b16 %v794, %v783
      %v1125 = vpack.c.b16 %v795, %v784
      %v1126 = vpack.c.b16 %v807, %v796
      %v1127 = vpack.c.b16 %v808, %v797
      %v1128 = vpack.c.b16 %v809, %v798
      %v1129 = vpack.c.b16 %v810, %v799
      %v1130 = vpack.c.b16 %v811, %v800
      %v1131 = vpack.c.b16 %v812, %v801
      %v1132 = vpack.c.b16 %v813, %v802
      %v1133 = vpack.c.b16 %v814, %v803
      %v1134 = vpack.c.b16 %v815, %v804
      %v1135 = vpack.c.b16 %v816, %v805
      %v1136 = vpack.c.b16 %v817, %v806
      %v1137 = vpack.c.b16 %v829, %v818
      %v1138 = vpack.c.b16 %v830, %v819
      %v1139 = vpack.c.b16 %v831, %v820
      %v1140 = vpack.c.b16 %v832, %v821
      %v1141 = vpack.c.b16 %v833, %v822
      %v1142 = vpack.c.b16 %v834, %v823
      %v1143 = vpack.c.b16 %v835, %v824
      %v1144 = vpack.c.b16 %v836, %v825
      %v1145 = vpack.c.b16 %v837, %v826
      %v1146 = vpack.c.b16 %v838, %v827
      %v1147 = vpack.c.b16 %v839, %v828
      %v1148 = vpack.c.b16 %v851, %v840
      %v1149 = vpack.c.b16 %v852, %v841
      %v1150 = vpack.c.b16 %v853, %v842
      %v1151 = vpack.c.b16 %v854, %v843
      %v1152 = vpack.c.b16 %v855, %v844
      %v1153 = vpack.c.b16 %v856, %v845
      %v1154 = vpack.c.b16 %v857, %v846
      %v1155 = vpack.c.b16 %v858, %v847
      %v1156 = vpack.c.b16 %v859, %v848
      %v1157 = vpack.c.b16 %v860, %v849
      %v1158 = vpack.c.b16 %v861, %v850
      %v1159 = vpack.c.b16 %v873, %v862
      %v1160 = vpack.c.b16 %v874, %v863
      %v1161 = vpack.c.b16 %v875, %v864
      %v1162 = vpack.c.b16 %v876, %v865
      %v1163 = vpack.c.b16 %v877, %v866
      %v1164 = vpack.c.b16 %v878, %v867
      %v1165 = vpack.c.b16 %v879, %v868
      %v1166 = vpack.c.b16 %v880, %v869
      %v1167 = vpack.c.b16 %v881, %v870
      %v1168 = vpack.c.b16 %v882, %v871
      %v1169 = vpack.c.b16 %v883, %v872
      %v1170 = vpack.c.b16 %v895, %v884
      %v1171 = vpack.c.b16 %v896, %v885
      %v1172 = vpack.c.b16 %v897, %v886
      %v1173 = vpack.c.b16 %v898, %v887
      %v1174 = vpack.c.b16 %v899, %v888
      %v1175 = vpack.c.b16 %v900, %v889
      %v1176 = vpack.c.b16 %v901, %v890
      %v1177 = vpack.c.b16 %v902, %v891
      %v1178 = vpack.c.b16 %v903, %v892
      %v1179 = vpack.c.b16 %v904, %v893
      %v1180 = vpack.c.b16 %v905, %v894
      %v1181 = vpack.c.b16 %v917, %v906
      %v1182 = vpack.c.b16 %v918, %v907
      %v1183 = vpack.c.b16 %v919, %v908
      %v1184 = vpack.c.b16 %v920, %v909
      %v1185 = vpack.c.b16 %v921, %v910
      %v1186 = vpack.c.b16 %v922, %v911
      %v1187 = vpack.c.b16 %v923, %v912
      %v1188 = vpack.c.b16 %v924, %v913
      %v1189 = vpack.c.b16 %v925, %v914
      %v1190 = vpack.c.b16 %v926, %v915
      %v1191 = vpack.c.b16 %v927, %v916
      %v1192 = vpack.c.b16 %v939, %v928
      %v1193 = vpack.c.b16 %v940, %v929
      %v1194 = vpack.c.b16 %v941, %v930
      %v1195 = vpack.c.b16 %v942, %v931
      %v1196 = vpack.c.b16 %v943, %v932
      %v1197 = vpack.c.b16 %v944, %v933
      %v1198 = vpack.c.b16 %v945, %v934
      %v1199 = vpack.c.b16 %v946, %v935
      %v1200 = vpack.c.b16 %v947, %v936
      %v1201 = vpack.c.b16 %v948, %v937
      %v1202 = vpack.c.b16 %v949, %v938
      %v1203 = vpack.c.b16 %v961, %v950
      %v1204 = vpack.c.b16 %v962, %v951
      %v1205 = vpack.c.b16 %v963, %v952
      %v1206 = vpack.c.b16 %v964, %v953
      %v1207 = vpack.c.b16 %v965, %v954
      %v1208 = vpack.c.b16 %v966, %v955
      %v1209 = vpack.c.b16 %v967, %v956
      %v1210 = vpack.c.b16 %v968, %v957
      %v1211 = vpack.c.b16 %v969, %v958
      %v1212 = vpack.c.b16 %v970, %v959
      %v1213 = vpack.c.b16 %v971, %v960
      %v1214 = vpack.c.b16 %v983, %v972
      %v1215 = vpack.c.b16 %v984, %v973
      %v1216 = vpack.c.b16 %v985, %v974
      %v1217 = vpack.c.b16 %v986, %v975
      %v1218 = vpack.c.b16 %v987, %v976
      %v1219 = vpack.c.b16 %v988, %v977
      %v1220 = vpack.c.b16 %v989, %v978
      %v1221 = vpack.c.b16 %v990, %v979
      %v1222 = vpack.c.b16 %v991, %v980
      %v1223 = vpack.c.b16 %v992, %v981
      %v1224 = vpack.c.b16 %v993, %v982
      %v1225 = vpack.c.b16 %v1005, %v994
      %v1226 = vpack.c.b16 %v1006, %v995
      %v1227 = vpack.c.b16 %v1007, %v996
      %v1228 = vpack.c.b16 %v1008, %v997
      %v1229 = vpack.c.b16 %v1009, %v998
      %v1230 = vpack.c.b16 %v1010, %v999
      %v1231 = vpack.c.b16 %v1011, %v1000
      %v1232 = vpack.c.b16 %v1012, %v1001
      %v1233 = vpack.c.b16 %v1013, %v1002
      %v1234 = vpack.c.b16 %v1014, %v1003
      %v1235 = vpack.c.b16 %v1015, %v1004
      %v1236 = vpack.c.b16 %v1027, %v1016
      %v1237 = vpack.c.b16 %v1028, %v1017
      %v1238 = vpack.c.b16 %v1029, %v1018
      %v1239 = vpack.c.b16 %v1030, %v1019
      %v1240 = vpack.c.b16 %v1031, %v1020
      %v1241 = vpack.c.b16 %v1032, %v1021
      %v1242 = vpack.c.b16 %v1033, %v1022
      %v1243 = vpack.c.b16 %v1034, %v1023
      %v1244 = vpack.c.b16 %v1035, %v1024
      %v1245 = vpack.c.b16 %v1036, %v1025
      %v1246 = vpack.c.b16 %v1037, %v1026
      %v1247 = vpack.c.b16 %v1049, %v1038
      %v1248 = vpack.c.b16 %v1050, %v1039
      %v1249 = vpack.c.b16 %v1051, %v1040
      %v1250 = vpack.c.b16 %v1052, %v1041
      %v1251 = vpack.c.b16 %v1053, %v1042
      %v1252 = vpack.c.b16 %v1054, %v1043
      %v1253 = vpack.c.b16 %v1055, %v1044
      %v1254 = vpack.c.b16 %v1056, %v1045
      %v1255 = vpack.c.b16 %v1057, %v1046
      %v1256 = vpack.c.b16 %v1058, %v1047
      %v1257 = vpack.c.b16 %v1059, %v1048
      %v1258 = vpack.c.b16 %v1071, %v1060
      %v1259 = vpack.c.b16 %v1072, %v1061
      %v1260 = vpack.c.b16 %v1073, %v1062
      %v1261 = vpack.c.b16 %v1074, %v1063
      %v1262 = vpack.c.b16 %v1075, %v1064
      %v1263 = vpack.c.b16 %v1076, %v1065
      %v1264 = vpack.c.b16 %v1077, %v1066
      %v1265 = vpack.c.b16 %v1078, %v1067
      %v1266 = vpack.c.b16 %v1079, %v1068
      %v1267 = vpack.c.b16 %v1080, %v1069
      %v1268 = vpack.c.b16 %v1081, %v1070
      %v1269 = vpack.c.b16 %v1093, %v1082
      %v1270 = vpack.c.b16 %v1094, %v1083
      %v1271 = vpack.c.b16 %v1095, %v1084
      %v1272 = vpack.c.b16 %v1096, %v1085
      %v1273 = vpack.c.b16 %v1097, %v1086
      %v1274 = vpack.c.b16 %v1098, %v1087
      %v1275 = vpack.c.b16 %v1099, %v1088
      %v1276 = vpack.c.b16 %v1100, %v1089
      %v1277 = vpack.c.b16 %v1101, %v1090
      %v1278 = vpack.c.b16 %v1102, %v1091
      %v1279 = vpack.c.b16 %v1103, %v1092
      %v1632 = vunpack.c.l.b16 %v372
      %v1633 = vunpack.c.h.b16 %v372
      %v1634 = vunpack.c.l.b16 %v373
      %v1635 = vunpack.c.h.b16 %v373
      %v1636 = vunpack.c.l.b16 %v374
      %v1637 = vunpack.c.h.b16 %v374
      %v1638 = vunpack.c.l.b16 %v375
      %v1639 = vunpack.c.h.b16 %v375
      %v1640 = vunpack.c.l.b16 %v376
      %v1641 = vunpack.c.h.b16 %v376
      %v1642 = vunpack.c.l.b16 %v377
      %v1643 = vunpack.c.h.b16 %v377
      %v1644 = vunpack.c.l.b16 %v378
      %v1645 = vunpack.c.h.b16 %v378
      %v1646 = vunpack.c.l.b16 %v379
      %v1647 = vunpack.c.h.b16 %v379
      %v1648 = vunpack.c.l.b16 %v380
      %v1649 = vunpack.c.h.b16 %v380
      %v1650 = vunpack.c.l.b16 %v381
      %v1651 = vunpack.c.h.b16 %v381
      %v1652 = vunpack.c.l.b16 %v382
      %v1653 = vunpack.c.h.b16 %v382
      %v1654 = vunpack.c.l.b16 %v383
      %v1655 = vunpack.c.h.b16 %v383
      %v1656 = vunpack.c.l.b16 %v384
      %v1657 = vunpack.c.h.b16 %v384
      %v1658 = vunpack.c.l.b16 %v385
      %v1659 = vunpack.c.h.b16 %v385
      %v1660 = vunpack.c.l.b16 %v386
      %v1661 = vunpack.c.h.b16 %v386
      %v1662 = vunpack.c.l.b16 %v387
      %v1663 = vunpack.c.h.b16 %v387
      %v1664 = vunpack.c.l.b16 %v388
      %v1665 = vunpack.c.h.b16 %v388
      %v1666 = vunpack.c.l.b16 %v389
      %v1667 = vunpack.c.h.b16 %v389
      %v1668 = vunpack.c.l.b16 %v390
      %v1669 = vunpack.c.h.b16 %v390
      %v1670 = vunpack.c.l.b16 %v391
      %v1671 = vunpack.c.h.b16 %v391
      %v1672 = vunpack.c.l.b16 %v392
      %v1673 = vunpack.c.h.b16 %v392
      %v1674 = vunpack.c.l.b16 %v393
      %v1675 = vunpack.c.h.b16 %v393
      %v1676 = vunpack.c.l.b16 %v394
      %v1677 = vunpack.c.h.b16 %v394
      %v1678 = vunpack.c.l.b16 %v395
      %v1679 = vunpack.c.h.b16 %v395
      %v1680 = vunpack.c.l.b16 %v396
      %v1681 = vunpack.c.h.b16 %v396
      %v1682 = vunpack.c.l.b16 %v397
      %v1683 = vunpack.c.h.b16 %v397
      %v1684 = vunpack.c.l.b16 %v398
      %v1685 = vunpack.c.h.b16 %v398
      %v1686 = vunpack.c.l.b16 %v399
      %v1687 = vunpack.c.h.b16 %v399
      %v1688 = vunpack.c.l.b16 %v400
      %v1689 = vunpack.c.h.b16 %v400
      %v1690 = vunpack.c.l.b16 %v401
      %v1691 = vunpack.c.h.b16 %v401
      %v1692 = vunpack.c.l.b16 %v402
      %v1693 = vunpack.c.h.b16 %v402
      %v1694 = vunpack.c.l.b16 %v403
      %v1695 = vunpack.c.h.b16 %v403
      %v1696 = vunpack.c.l.b16 %v404
      %v1697 = vunpack.c.h.b16 %v404
      %v1698 = vunpack.c.l.b16 %v405
      %v1699 = vunpack.c.h.b16 %v405
      %v1700 = vunpack.c.l.b16 %v406
      %v1701 = vunpack.c.h.b16 %v406
      %v1702 = vunpack.c.l.b16 %v407
      %v1703 = vunpack.c.h.b16 %v407
      %v1704 = vunpack.c.l.b16 %v408
      %v1705 = vunpack.c.h.b16 %v408
      %v1706 = vunpack.c.l.b16 %v409
      %v1707 = vunpack.c.h.b16 %v409
      %v1708 = vunpack.c.l.b16 %v410
      %v1709 = vunpack.c.h.b16 %v410
      %v1710 = vunpack.c.l.b16 %v411
      %v1711 = vunpack.c.h.b16 %v411
      %v1712 = vunpack.c.l.b16 %v412
      %v1713 = vunpack.c.h.b16 %v412
      %v1714 = vunpack.c.l.b16 %v413
      %v1715 = vunpack.c.h.b16 %v413
      %v1716 = vunpack.c.l.b16 %v414
      %v1717 = vunpack.c.h.b16 %v414
      %v1718 = vunpack.c.l.b16 %v415
      %v1719 = vunpack.c.h.b16 %v415
      %v1720 = vunpack.c.l.b16 %v416
      %v1721 = vunpack.c.h.b16 %v416
      %v1722 = vunpack.c.l.b16 %v417
      %v1723 = vunpack.c.h.b16 %v417
      %v1724 = vunpack.c.l.b16 %v418
      %v1725 = vunpack.c.h.b16 %v418
      %v1726 = vunpack.c.l.b16 %v419
      %v1727 = vunpack.c.h.b16 %v419
      %v1728 = vunpack.c.l.b16 %v420
      %v1729 = vunpack.c.h.b16 %v420
      %v1730 = vunpack.c.l.b16 %v421
      %v1731 = vunpack.c.h.b16 %v421
      %v1732 = vunpack.c.l.b16 %v422
      %v1733 = vunpack.c.h.b16 %v422
      %v1734 = vunpack.c.l.b16 %v423
      %v1735 = vunpack.c.h.b16 %v423
      %v1736 = vunpack.c.l.b16 %v424
      %v1737 = vunpack.c.h.b16 %v424
      %v1738 = vunpack.c.l.b16 %v425
      %v1739 = vunpack.c.h.b16 %v425
      %v1740 = vunpack.c.l.b16 %v426
      %v1741 = vunpack.c.h.b16 %v426
      %v1742 = vunpack.c.l.b16 %v427
      %v1743 = vunpack.c.h.b16 %v427
      %v1744 = vunpack.c.l.b16 %v428
      %v1745 = vunpack.c.h.b16 %v428
      %v1746 = vunpack.c.l.b16 %v429
      %v1747 = vunpack.c.h.b16 %v429
      %v1748 = vunpack.c.l.b16 %v430
      %v1749 = vunpack.c.h.b16 %v430
      %v1750 = vunpack.c.l.b16 %v431
      %v1751 = vunpack.c.h.b16 %v431
      %v1752 = vunpack.c.l.b16 %v432
      %v1753 = vunpack.c.h.b16 %v432
      %v1754 = vunpack.c.l.b16 %v433
      %v1755 = vunpack.c.h.b16 %v433
      %v1756 = vunpack.c.l.b16 %v434
      %v1757 = vunpack.c.h.b16 %v434
      %v1758 = vunpack.c.l.b16 %v435
      %v1759 = vunpack.c.h.b16 %v435
      %v1760 = vunpack.c.l.b16 %v436
      %v1761 = vunpack.c.h.b16 %v436
      %v1762 = vunpack.c.l.b16 %v437
      %v1763 = vunpack.c.h.b16 %v437
      %v1764 = vunpack.c.l.b16 %v438
      %v1765 = vunpack.c.h.b16 %v438
      %v1766 = vunpack.c.l.b16 %v439
      %v1767 = vunpack.c.h.b16 %v439
      %v1768 = vunpack.c.l.b16 %v440
      %v1769 = vunpack.c.h.b16 %v440
      %v1770 = vunpack.c.l.b16 %v441
      %v1771 = vunpack.c.h.b16 %v441
      %v1772 = vunpack.c.l.b16 %v442
      %v1773 = vunpack.c.h.b16 %v442
      %v1774 = vunpack.c.l.b16 %v443
      %v1775 = vunpack.c.h.b16 %v443
      %v1776 = vunpack.c.l.b16 %v444
      %v1777 = vunpack.c.h.b16 %v444
      %v1778 = vunpack.c.l.b16 %v445
      %v1779 = vunpack.c.h.b16 %v445
      %v1780 = vunpack.c.l.b16 %v446
      %v1781 = vunpack.c.h.b16 %v446
      %v1782 = vunpack.c.l.b16 %v447
      %v1783 = vunpack.c.h.b16 %v447
      %v1784 = vunpack.c.l.b16 %v448
      %v1785 = vunpack.c.h.b16 %v448
      %v1786 = vunpack.c.l.b16 %v449
      %v1787 = vunpack.c.h.b16 %v449
      %v1788 = vunpack.c.l.b16 %v450
      %v1789 = vunpack.c.h.b16 %v450
      %v1790 = vunpack.c.l.b16 %v451
      %v1791 = vunpack.c.h.b16 %v451
      %v1792 = vunpack.c.l.b16 %v452
      %v1793 = vunpack.c.h.b16 %v452
      %v1794 = vunpack.c.l.b16 %v453
      %v1795 = vunpack.c.h.b16 %v453
      %v1796 = vunpack.c.l.b16 %v454
      %v1797 = vunpack.c.h.b16 %v454
      %v1798 = vunpack.c.l.b16 %v455
      %v1799 = vunpack.c.h.b16 %v455
      %v1800 = vunpack.c.l.b16 %v456
      %v1801 = vunpack.c.h.b16 %v456
      %v1802 = vunpack.c.l.b16 %v457
      %v1803 = vunpack.c.h.b16 %v457
      %v1804 = vunpack.c.l.b16 %v458
      %v1805 = vunpack.c.h.b16 %v458
      %v1806 = vunpack.c.l.b16 %v459
      %v1807 = vunpack.c.h.b16 %v459
      %v1808 = vunpack.c.l.b16 %v460
      %v1809 = vunpack.c.h.b16 %v460
      %v1810 = vunpack.c.l.b16 %v461
      %v1811 = vunpack.c.h.b16 %v461
      %v1812 = vunpack.c.l.b16 %v462
      %v1813 = vunpack.c.h.b16 %v462
      %v1814 = vunpack.c.l.b16 %v463
      %v1815 = vunpack.c.h.b16 %v463
      %v1816 = vunpack.c.l.b16 %v464
      %v1817 = vunpack.c.h.b16 %v464
      %v1818 = vunpack.c.l.b16 %v465
      %v1819 = vunpack.c.h.b16 %v465
      %v1820 = vunpack.c.l.b16 %v466
      %v1821 = vunpack.c.h.b16 %v466
      %v1822 = vunpack.c.l.b16 %v467
      %v1823 = vunpack.c.h.b16 %v467
      %v1824 = vunpack.c.l.b16 %v468
      %v1825 = vunpack.c.h.b16 %v468
      %v1826 = vunpack.c.l.b16 %v469
      %v1827 = vunpack.c.h.b16 %v469
      %v1828 = vunpack.c.l.b16 %v470
      %v1829 = vunpack.c.h.b16 %v470
      %v1830 = vunpack.c.l.b16 %v471
      %v1831 = vunpack.c.h.b16 %v471
      %v1832 = vunpack.c.l.b16 %v472
      %v1833 = vunpack.c.h.b16 %v472
      %v1834 = vunpack.c.l.b16 %v473
      %v1835 = vunpack.c.h.b16 %v473
      %v1836 = vunpack.c.l.b16 %v474
      %v1837 = vunpack.c.h.b16 %v474
      %v1838 = vunpack.c.l.b16 %v475
      %v1839 = vunpack.c.h.b16 %v475
      %v1840 = vunpack.c.l.b16 %v476
      %v1841 = vunpack.c.h.b16 %v476
      %v1842 = vunpack.c.l.b16 %v477
      %v1843 = vunpack.c.h.b16 %v477
      %v1844 = vunpack.c.l.b16 %v478
      %v1845 = vunpack.c.h.b16 %v478
      %v1846 = vunpack.c.l.b16 %v479
      %v1847 = vunpack.c.h.b16 %v479
      %v1848 = vunpack.c.l.b16 %v480
      %v1849 = vunpack.c.h.b16 %v480
      %v1850 = vunpack.c.l.b16 %v481
      %v1851 = vunpack.c.h.b16 %v481
      %v1852 = vunpack.c.l.b16 %v482
      %v1853 = vunpack.c.h.b16 %v482
      %v1854 = vunpack.c.l.b16 %v483
      %v1855 = vunpack.c.h.b16 %v483
      %v1856 = vunpack.c.l.b16 %v484
      %v1857 = vunpack.c.h.b16 %v484
      %v1858 = vunpack.c.l.b16 %v485
      %v1859 = vunpack.c.h.b16 %v485
      %v1860 = vunpack.c.l.b16 %v486
      %v1861 = vunpack.c.h.b16 %v486
      %v1862 = vunpack.c.l.b16 %v487
      %v1863 = vunpack.c.h.b16 %v487
      %v1864 = vunpack.c.l.b16 %v488
      %v1865 = vunpack.c.h.b16 %v488
      %v1866 = vunpack.c.l.b16 %v489
      %v1867 = vunpack.c.h.b16 %v489
      %v1868 = vunpack.c.l.b16 %v490
      %v1869 = vunpack.c.h.b16 %v490
      %v1870 = vunpack.c.l.b16 %v491
      %v1871 = vunpack.c.h.b16 %v491
      %v1872 = vunpack.c.l.b16 %v492
      %v1873 = vunpack.c.h.b16 %v492
      %v1874 = vunpack.c.l.b16 %v493
      %v1875 = vunpack.c.h.b16 %v493
      %v1876 = vunpack.c.l.b16 %v494
      %v1877 = vunpack.c.h.b16 %v494
      %v1878 = vunpack.c.l.b16 %v495
      %v1879 = vunpack.c.h.b16 %v495
      %v1880 = vunpack.c.l.b16 %v496
      %v1881 = vunpack.c.h.b16 %v496
      %v1882 = vunpack.c.l.b16 %v497
      %v1883 = vunpack.c.h.b16 %v497
      %v1884 = vunpack.c.l.b16 %v498
      %v1885 = vunpack.c.h.b16 %v498
      %v1886 = vunpack.c.l.b16 %v499
      %v1887 = vunpack.c.h.b16 %v499
      %v1888 = vunpack.c.l.b16 %v500
      %v1889 = vunpack.c.h.b16 %v500
      %v1890 = vunpack.c.l.b16 %v501
      %v1891 = vunpack.c.h.b16 %v501
      %v1892 = vunpack.c.l.b16 %v502
      %v1893 = vunpack.c.h.b16 %v502
      %v1894 = vunpack.c.l.b16 %v503
      %v1895 = vunpack.c.h.b16 %v503
      %v1896 = vunpack.c.l.b16 %v504
      %v1897 = vunpack.c.h.b16 %v504
      %v1898 = vunpack.c.l.b16 %v505
      %v1899 = vunpack.c.h.b16 %v505
      %v1900 = vunpack.c.l.b16 %v506
      %v1901 = vunpack.c.h.b16 %v506
      %v1902 = vunpack.c.l.b16 %v507
      %v1903 = vunpack.c.h.b16 %v507
      %v1904 = vunpack.c.l.b16 %v508
      %v1905 = vunpack.c.h.b16 %v508
      %v1906 = vunpack.c.l.b16 %v509
      %v1907 = vunpack.c.h.b16 %v509
      %v1908 = vunpack.c.l.b16 %v510
      %v1909 = vunpack.c.h.b16 %v510
      %v1910 = vunpack.c.l.b16 %v511
      %v1911 = vunpack.c.h.b16 %v511
      %v1912 = vunpack.c.l.b16 %v512
      %v1913 = vunpack.c.h.b16 %v512
      %v1914 = vunpack.c.l.b16 %v513
      %v1915 = vunpack.c.h.b16 %v513
      %v1916 = vunpack.c.l.b16 %v514
      %v1917 = vunpack.c.h.b16 %v514
      %v1918 = vunpack.c.l.b16 %v515
      %v1919 = vunpack.c.h.b16 %v515
      %v1920 = vunpack.c.l.b16 %v516
      %v1921 = vunpack.c.h.b16 %v516
      %v1922 = vunpack.c.l.b16 %v517
      %v1923 = vunpack.c.h.b16 %v517
      %v1924 = vunpack.c.l.b16 %v518
      %v1925 = vunpack.c.h.b16 %v518
      %v1926 = vunpack.c.l.b16 %v519
      %v1927 = vunpack.c.h.b16 %v519
      %v1928 = vunpack.c.l.b16 %v520
      %v1929 = vunpack.c.h.b16 %v520
      %v1930 = vunpack.c.l.b16 %v521
      %v1931 = vunpack.c.h.b16 %v521
      %v1932 = vunpack.c.l.b16 %v522
      %v1933 = vunpack.c.h.b16 %v522
      %v1934 = vunpack.c.l.b16 %v523
      %v1935 = vunpack.c.h.b16 %v523
      %v1936 = vunpack.c.l.b16 %v524
      %v1937 = vunpack.c.h.b16 %v524
      %v1938 = vunpack.c.l.b16 %v525
      %v1939 = vunpack.c.h.b16 %v525
      %v1940 = vunpack.c.l.b16 %v526
      %v1941 = vunpack.c.h.b16 %v526
      %v1942 = vunpack.c.l.b16 %v527
      %v1943 = vunpack.c.h.b16 %v527
      %v1944 = vunpack.c.l.b16 %v528
      %v1945 = vunpack.c.h.b16 %v528
      %v1946 = vunpack.c.l.b16 %v529
      %v1947 = vunpack.c.h.b16 %v529
      %v1948 = vunpack.c.l.b16 %v530
      %v1949 = vunpack.c.h.b16 %v530
      %v1950 = vunpack.c.l.b16 %v531
      %v1951 = vunpack.c.h.b16 %v531
      %v1952 = vunpack.c.l.b16 %v532
      %v1953 = vunpack.c.h.b16 %v532
      %v1954 = vunpack.c.l.b16 %v533
      %v1955 = vunpack.c.h.b16 %v533
      %v1956 = vunpack.c.l.b16 %v534
      %v1957 = vunpack.c.h.b16 %v534
      %v1958 = vunpack.c.l.b16 %v535
      %v1959 = vunpack.c.h.b16 %v535
      %v1960 = vunpack.c.l.b16 %v536
      %v1961 = vunpack.c.h.b16 %v536
      %v1962 = vunpack.c.l.b16 %v537
      %v1963 = vunpack.c.h.b16 %v537
      %v1964 = vunpack.c.l.b16 %v538
      %v1965 = vunpack.c.h.b16 %v538
      %v1966 = vunpack.c.l.b16 %v539
      %v1967 = vunpack.c.h.b16 %v539
      %v1968 = vunpack.c.l.b16 %v540
      %v1969 = vunpack.c.h.b16 %v540
      %v1970 = vunpack.c.l.b16 %v541
      %v1971 = vunpack.c.h.b16 %v541
      %v1972 = vunpack.c.l.b16 %v542
      %v1973 = vunpack.c.h.b16 %v542
      %v1974 = vunpack.c.l.b16 %v543
      %v1975 = vunpack.c.h.b16 %v543
      %v1976 = vunpack.c.l.b16 %v544
      %v1977 = vunpack.c.h.b16 %v544
      %v1978 = vunpack.c.l.b16 %v545
      %v1979 = vunpack.c.h.b16 %v545
      %v1980 = vunpack.c.l.b16 %v546
      %v1981 = vunpack.c.h.b16 %v546
      %v1982 = vunpack.c.l.b16 %v547
      %v1983 = vunpack.c.h.b16 %v547
      %v1984 = vpack.c.b16 %v1634, %v1632
      %v1985 = vpack.c.b16 %v1635, %v1633
      %v1986 = vpack.c.b16 %v1638, %v1636
      %v1987 = vpack.c.b16 %v1639, %v1637
      %v1988 = vpack.c.b16 %v1642, %v1640
      %v1989 = vpack.c.b16 %v1643, %v1641
      %v1990 = vpack.c.b16 %v1646, %v1644
      %v1991 = vpack.c.b16 %v1647, %v1645
      %v1992 = vpack.c.b16 %v1650, %v1648
      %v1993 = vpack.c.b16 %v1651, %v1649
      %v1994 = vpack.c.b16 %v1654, %v1652
      %v1995 = vpack.c.b16 %v1655, %v1653
      %v1996 = vpack.c.b16 %v1658, %v1656
      %v1997 = vpack.c.b16 %v1659, %v1657
      %v1998 = vpack.c.b16 %v1662, %v1660
      %v1999 = vpack.c.b16 %v1663, %v1661
      %v2000 = vpack.c.b16 %v1666, %v1664
      %v2001 = vpack.c.b16 %v1667, %v1665
      %v2002 = vpack.c.b16 %v1670, %v1668
      %v2003 = vpack.c.b16 %v1671, %v1669
      %v2004 = vpack.c.b16 %v1674, %v1672
      %v2005 = vpack.c.b16 %v1675, %v1673
      %v2006 = vpack.c.b16 %v1678, %v1676
      %v2007 = vpack.c.b16 %v1679, %v1677
      %v2008 = vpack.c.b16 %v1682, %v1680
      %v2009 = vpack.c.b16 %v1683, %v1681
      %v2010 = vpack.c.b16 %v1686, %v1684
      %v2011 = vpack.c.b16 %v1687, %v1685
      %v2012 = vpack.c.b16 %v1690, %v1688
      %v2013 = vpack.c.b16 %v1691, %v1689
      %v2014 = vpack.c.b16 %v1694, %v1692
      %v2015 = vpack.c.b16 %v1695, %v1693
      %v2016 = vpack.c.b16 %v1698, %v1696
      %v2017 = vpack.c.b16 %v1699, %v1697
      %v2018 = vpack.c.b16 %v1702, %v1700
      %v2019 = vpack.c.b16 %v1703, %v1701
      %v2020 = vpack.c.b16 %v1706, %v1704
      %v2021 = vpack.c.b16 %v1707, %v1705
      %v2022 = vpack.c.b16 %v1710, %v1708
      %v2023 = vpack.c.b16 %v1711, %v1709
      %v2024 = vpack.c.b16 %v1714, %v1712
      %v2025 = vpack.c.b16 %v1715, %v1713
      %v2026 = vpack.c.b16 %v1718, %v1716
      %v2027 = vpack.c.b16 %v1719, %v1717
      %v2028 = vpack.c.b16 %v1722, %v1720
      %v2029 = vpack.c.b16 %v1723, %v1721
      %v2030 = vpack.c.b16 %v1726, %v1724
      %v2031 = vpack.c.b16 %v1727, %v1725
      %v2032 = vpack.c.b16 %v1730, %v1728
      %v2033 = vpack.c.b16 %v1731, %v1729
      %v2034 = vpack.c.b16 %v1734, %v1732
      %v2035 = vpack.c.b16 %v1735, %v1733
      %v2036 = vpack.c.b16 %v1738, %v1736
      %v2037 = vpack.c.b16 %v1739, %v1737
      %v2038 = vpack.c.b16 %v1742, %v1740
      %v2039 = vpack.c.b16 %v1743, %v1741
      %v2040 = vpack.c.b16 %v1746, %v1744
      %v2041 = vpack.c.b16 %v1747, %v1745
      %v2042 = vpack.c.b16 %v1750, %v1748
      %v2043 = vpack.c.b16 %v1751, %v1749
      %v2044 = vpack.c.b16 %v1754, %v1752
      %v2045 = vpack.c.b16 %v1755, %v1753
      %v2046 = vpack.c.b16 %v1758, %v1756
      %v2047 = vpack.c.b16 %v1759, %v1757
      %v2048 = vpack.c.b16 %v1762, %v1760
      %v2049 = vpack.c.b16 %v1763, %v1761
      %v2050 = vpack.c.b16 %v1766, %v1764
      %v2051 = vpack.c.b16 %v1767, %v1765
      %v2052 = vpack.c.b16 %v1770, %v1768
      %v2053 = vpack.c.b16 %v1771, %v1769
      %v2054 = vpack.c.b16 %v1774, %v1772
      %v2055 = vpack.c.b16 %v1775, %v1773
      %v2056 = vpack.c.b16 %v1778, %v1776
      %v2057 = vpack.c.b16 %v1779, %v1777
      %v2058 = vpack.c.b16 %v1782, %v1780
      %v2059 = vpack.c.b16 %v1783, %v1781
      %v2060 = vpack.c.b16 %v1786, %v1784
      %v2061 = vpack.c.b16 %v1787, %v1785
      %v2062 = vpack.c.b16 %v1790, %v1788
      %v2063 = vpack.c.b16 %v1791, %v1789
      %v2064 = vpack.c.b16 %v1794, %v1792
      %v2065 = vpack.c.b16 %v1795, %v1793
      %v2066 = vpack.c.b16 %v1798, %v1796
      %v2067 = vpack.c.b16 %v1799, %v1797
      %v2068 = vpack.c.b16 %v1802, %v1800
      %v2069 = vpack.c.b16 %v1803, %v1801
      %v2070 = vpack.c.b16 %v1806, %v1804
      %v2071 = vpack.c.b16 %v1807, %v1805
      %v2072 = vpack.c.b16 %v1810, %v1808
      %v2073 = vpack.c.b16 %v1811, %v1809
      %v2074 = vpack.c.b16 %v1814, %v1812
      %v2075 = vpack.c.b16 %v1815, %v1813
      %v2076 = vpack.c.b16 %v1818, %v1816
      %v2077 = vpack.c.b16 %v1819, %v1817
      %v2078 = vpack.c.b16 %v1822, %v1820
      %v2079 = vpack.c.b16 %v1823, %v1821
      %v2080 = vpack.c.b16 %v1826, %v1824
      %v2081 = vpack.c.b16 %v1827, %v1825
      %v2082 = vpack.c.b16 %v1830, %v1828
      %v2083 = vpack.c.b16 %v1831, %v1829
      %v2084 = vpack.c.b16 %v1834, %v1832
      %v2085 = vpack.c.b16 %v1835, %v1833
      %v2086 = vpack.c.b16 %v1838, %v1836
      %v2087 = vpack.c.b16 %v1839, %v1837
      %v2088 = vpack.c.b16 %v1842, %v1840
      %v2089 = vpack.c.b16 %v1843, %v1841
      %v2090 = vpack.c.b16 %v1846, %v1844
      %v2091 = vpack.c.b16 %v1847, %v1845
      %v2092 = vpack.c.b16 %v1850, %v1848
      %v2093 = vpack.c.b16 %v1851, %v1849
      %v2094 = vpack.c.b16 %v1854, %v1852
      %v2095 = vpack.c.b16 %v1855, %v1853
      %v2096 = vpack.c.b16 %v1858, %v1856
      %v2097 = vpack.c.b16 %v1859, %v1857
      %v2098 = vpack.c.b16 %v1862, %v1860
      %v2099 = vpack.c.b16 %v1863, %v1861
      %v2100 = vpack.c.b16 %v1866, %v1864
      %v2101 = vpack.c.b16 %v1867, %v1865
      %v2102 = vpack.c.b16 %v1870, %v1868
      %v2103 = vpack.c.b16 %v1871, %v1869
      %v2104 = vpack.c.b16 %v1874, %v1872
      %v2105 = vpack.c.b16 %v1875, %v1873
      %v2106 = vpack.c.b16 %v1878, %v1876
      %v2107 = vpack.c.b16 %v1879, %v1877
      %v2108 = vpack.c.b16 %v1882, %v1880
      %v2109 = vpack.c.b16 %v1883, %v1881
      %v2110 = vpack.c.b16 %v1886, %v1884
      %v2111 = vpack.c.b16 %v1887, %v1885
      %v2112 = vpack.c.b16 %v1890, %v1888
      %v2113 = vpack.c.b16 %v1891, %v1889
      %v2114 = vpack.c.b16 %v1894, %v1892
      %v2115 = vpack.c.b16 %v1895, %v1893
      %v2116 = vpack.c.b16 %v1898, %v1896
      %v2117 = vpack.c.b16 %v1899, %v1897
      %v2118 = vpack.c.b16 %v1902, %v1900
      %v2119 = vpack.c.b16 %v1903, %v1901
      %v2120 = vpack.c.b16 %v1906, %v1904
      %v2121 = vpack.c.b16 %v1907, %v1905
      %v2122 = vpack.c.b16 %v1910, %v1908
      %v2123 = vpack.c.b16 %v1911, %v1909
      %v2124 = vpack.c.b16 %v1914, %v1912
      %v2125 = vpack.c.b16 %v1915, %v1913
      %v2126 = vpack.c.b16 %v1918, %v1916
      %v2127 = vpack.c.b16 %v1919, %v1917
      %v2128 = vpack.c.b16 %v1922, %v1920
      %v2129 = vpack.c.b16 %v1923, %v1921
      %v2130 = vpack.c.b16 %v1926, %v1924
      %v2131 = vpack.c.b16 %v1927, %v1925
      %v2132 = vpack.c.b16 %v1930, %v1928
      %v2133 = vpack.c.b16 %v1931, %v1929
      %v2134 = vpack.c.b16 %v1934, %v1932
      %v2135 = vpack.c.b16 %v1935, %v1933
      %v2136 = vpack.c.b16 %v1938, %v1936
      %v2137 = vpack.c.b16 %v1939, %v1937
      %v2138 = vpack.c.b16 %v1942, %v1940
      %v2139 = vpack.c.b16 %v1943, %v1941
      %v2140 = vpack.c.b16 %v1946, %v1944
      %v2141 = vpack.c.b16 %v1947, %v1945
      %v2142 = vpack.c.b16 %v1950, %v1948
      %v2143 = vpack.c.b16 %v1951, %v1949
      %v2144 = vpack.c.b16 %v1954, %v1952
      %v2145 = vpack.c.b16 %v1955, %v1953
      %v2146 = vpack.c.b16 %v1958, %v1956
      %v2147 = vpack.c.b16 %v1959, %v1957
      %v2148 = vpack.c.b16 %v1962, %v1960
      %v2149 = vpack.c.b16 %v1963, %v1961
      %v2150 = vpack.c.b16 %v1966, %v1964
      %v2151 = vpack.c.b16 %v1967, %v1965
      %v2152 = vpack.c.b16 %v1970, %v1968
      %v2153 = vpack.c.b16 %v1971, %v1969
      %v2154 = vpack.c.b16 %v1974, %v1972
      %v2155 = vpack.c.b16 %v1975, %v1973
      %v2156 = vpack.c.b16 %v1978, %v1976
      %v2157 = vpack.c.b16 %v1979, %v1977
      %v2158 = vpack.c.b16 %v1982, %v1980
      %v2159 = vpack.c.b16 %v1983, %v1981
      %2336 = vmatprep.subr.bf16.mxu0 %v1985
      %2337 = vmatpush1.bf16.msra.mxu0 %v1984
      %2338 = vmatprep.subr.bf16.mxu0 %v1987
      %2339 = vmatpush1.bf16.msra.mxu0 %v1986
      %2340 = vmatprep.subr.bf16.mxu0 %v1989
      %2341 = vmatpush1.bf16.msra.mxu0 %v1988
      %2342 = vmatprep.subr.bf16.mxu0 %v1991
      %2343 = vmatpush1.bf16.msra.mxu0 %v1990
      %2344 = vmatprep.subr.bf16.mxu0 %v1993
      %2345 = vmatpush1.bf16.msra.mxu0 %v1992
      %2346 = vmatprep.subr.bf16.mxu0 %v1995
      %2347 = vmatpush1.bf16.msra.mxu0 %v1994
      %2348 = vmatprep.subr.bf16.mxu0 %v1997
      %2349 = vmatpush1.bf16.msra.mxu0 %v1996
      %2350 = vmatprep.subr.bf16.mxu0 %v1999
      %2351 = vmatpush1.bf16.msra.mxu0 %v1998
      %2352 = vmatprep.subr.bf16.mxu0 %v2001
      %2353 = vmatpush1.bf16.msra.mxu0 %v2000
      %2354 = vmatprep.subr.bf16.mxu0 %v2003
      %2355 = vmatpush1.bf16.msra.mxu0 %v2002
      %2356 = vmatprep.subr.bf16.mxu0 %v2005
      %2357 = vmatpush1.bf16.msra.mxu0 %v2004
      %2358 = vmatprep.subr.bf16.mxu0 %v2007
      %2359 = vmatpush1.bf16.msra.mxu0 %v2006
      %2360 = vmatprep.subr.bf16.mxu0 %v2009
      %2361 = vmatpush1.bf16.msra.mxu0 %v2008
      %2362 = vmatprep.subr.bf16.mxu0 %v2011
      %2363 = vmatpush1.bf16.msra.mxu0 %v2010
      %2364 = vmatprep.subr.bf16.mxu0 %v2013
      %2365 = vmatpush1.bf16.msra.mxu0 %v2012
      %2366 = vmatprep.subr.bf16.mxu0 %v2015
      %2367 = vmatpush1.bf16.msra.mxu0 %v2014
      %2368 = vmatprep.mubr.bf16.mxu0 %v1105
      %2369 = vmatmul.mubr.bf16.gmra.mrb[0].mxu0 %v1104
      %v2370 = vpop.f32.mrb[0].mxu0
      %v2371 = vadd.f32 %v553, %v2370
      %v2372 = vpop.f32.mrb[0].mxu0
      %v2373 = vadd.f32 %v557, %v2372
      %v2374 = vpop.f32.mrb[0].mxu0
      %v2375 = vadd.f32 %v553, %v2374
      %v2376 = vpop.f32.mrb[0].mxu0
      %v2377 = vadd.f32 %v557, %v2376
      %2378 = vmatprep.mubr.bf16.mxu0 %v1116
      %2379 = vmatmul.mubr.bf16.gmra.mrb[0].mxu0 %v1115
      %v2380 = vpop.f32.mrb[0].mxu0
      %v2381 = vadd.f32 %v553, %v2380
      %v2382 = vpop.f32.mrb[0].mxu0
      %v2383 = vadd.f32 %v557, %v2382
      %v2384 = vpop.f32.mrb[0].mxu0
      %v2385 = vadd.f32 %v553, %v2384
      %v2386 = vpop.f32.mrb[0].mxu0
      %v2387 = vadd.f32 %v557, %v2386
      %2388 = vmatprep.mubr.bf16.mxu0 %v1127
      %2389 = vmatmul.mubr.bf16.gmra.mrb[0].mxu0 %v1126
      %v2390 = vpop.f32.mrb[0].mxu0
      %v2391 = vadd.f32 %v553, %v2390
      %v2392 = vpop.f32.mrb[0].mxu0
      %v2393 = vadd.f32 %v557, %v2392
      %v2394 = vpop.f32.mrb[0].mxu0
      %v2395 = vadd.f32 %v553, %v2394
      %v2396 = vpop.f32.mrb[0].mxu0
      %v2397 = vadd.f32 %v557, %v2396
      %2398 = vmatprep.mubr.bf16.mxu0 %v1138
      %2399 = vmatmul.mubr.bf16.gmra.mrb[0].mxu0 %v1137
      %v2400 = vpop.f32.mrb[0].mxu0
      %v2401 = vadd.f32 %v553, %v2400
      %v2402 = vpop.f32.mrb[0].mxu0
      %v2403 = vadd.f32 %v557, %v2402
      %v2404 = vpop.f32.mrb[0].mxu0
      %v2405 = vadd.f32 %v553, %v2404
      %v2406 = vpop.f32.mrb[0].mxu0
      %v2407 = vadd.f32 %v557, %v2406
      %2408 = vmatprep.mubr.bf16.mxu0 %v1149
      %2409 = vmatmul.mubr.bf16.gmra.mrb[0].mxu0 %v1148
      %v2410 = vpop.f32.mrb[0].mxu0
      %v2411 = vadd.f32 %v553, %v2410
      %v2412 = vpop.f32.mrb[0].mxu0
      %v2413 = vadd.f32 %v557, %v2412
      %v2414 = vpop.f32.mrb[0].mxu0
      %v2415 = vadd.f32 %v553, %v2414
      %v2416 = vpop.f32.mrb[0].mxu0
      %v2417 = vadd.f32 %v557, %v2416
      %2418 = vmatprep.mubr.bf16.mxu0 %v1160
      %2419 = vmatmul.mubr.bf16.gmra.mrb[0].mxu0 %v1159
      %v2420 = vpop.f32.mrb[0].mxu0
      %v2421 = vadd.f32 %v553, %v2420
      %v2422 = vpop.f32.mrb[0].mxu0
      %v2423 = vadd.f32 %v557, %v2422
      %v2424 = vpop.f32.mrb[0].mxu0
      %v2425 = vadd.f32 %v553, %v2424
      %v2426 = vpop.f32.mrb[0].mxu0
      %v2427 = vadd.f32 %v557, %v2426
      %2428 = vmatprep.mubr.bf16.mxu0 %v1171
      %2429 = vmatmul.mubr.bf16.gmra.mrb[0].mxu0 %v1170
      %v2430 = vpop.f32.mrb[0].mxu0
      %v2431 = vadd.f32 %v553, %v2430
      %v2432 = vpop.f32.mrb[0].mxu0
      %v2433 = vadd.f32 %v557, %v2432
      %v2434 = vpop.f32.mrb[0].mxu0
      %v2435 = vadd.f32 %v553, %v2434
      %v2436 = vpop.f32.mrb[0].mxu0
      %v2437 = vadd.f32 %v557, %v2436
      %2438 = vmatprep.mubr.bf16.mxu0 %v1182
      %2439 = vmatmul.mubr.bf16.gmra.mrb[0].mxu0 %v1181
      %v2440 = vpop.f32.mrb[0].mxu0
      %v2441 = vadd.f32 %v553, %v2440
      %v2442 = vpop.f32.mrb[0].mxu0
      %v2443 = vadd.f32 %v557, %v2442
      %v2444 = vpop.f32.mrb[0].mxu0
      %v2445 = vadd.f32 %v553, %v2444
      %v2446 = vpop.f32.mrb[0].mxu0
      %v2447 = vadd.f32 %v557, %v2446
      %2448 = vmatprep.mubr.bf16.mxu0 %v1193
      %2449 = vmatmul.mubr.bf16.gmra.mrb[0].mxu0 %v1192
      %v2450 = vpop.f32.mrb[0].mxu0
      %v2451 = vadd.f32 %v553, %v2450
      %v2452 = vpop.f32.mrb[0].mxu0
      %v2453 = vadd.f32 %v557, %v2452
      %v2454 = vpop.f32.mrb[0].mxu0
      %v2455 = vadd.f32 %v553, %v2454
      %v2456 = vpop.f32.mrb[0].mxu0
      %v2457 = vadd.f32 %v557, %v2456
      %2458 = vmatprep.mubr.bf16.mxu0 %v1204
      %2459 = vmatmul.mubr.bf16.gmra.mrb[0].mxu0 %v1203
      %v2460 = vpop.f32.mrb[0].mxu0
      %v2461 = vadd.f32 %v553, %v2460
      %v2462 = vpop.f32.mrb[0].mxu0
      %v2463 = vadd.f32 %v557, %v2462
      %v2464 = vpop.f32.mrb[0].mxu0
      %v2465 = vadd.f32 %v553, %v2464
      %v2466 = vpop.f32.mrb[0].mxu0
      %v2467 = vadd.f32 %v557, %v2466
      %2468 = vmatprep.mubr.bf16.mxu0 %v1215
      %2469 = vmatmul.mubr.bf16.gmra.mrb[0].mxu0 %v1214
      %v2470 = vpop.f32.mrb[0].mxu0
      %v2471 = vadd.f32 %v553, %v2470
      %v2472 = vpop.f32.mrb[0].mxu0
      %v2473 = vadd.f32 %v557, %v2472
      %v2474 = vpop.f32.mrb[0].mxu0
      %v2475 = vadd.f32 %v553, %v2474
      %v2476 = vpop.f32.mrb[0].mxu0
      %v2477 = vadd.f32 %v557, %v2476
      %2478 = vmatprep.mubr.bf16.mxu0 %v1226
      %2479 = vmatmul.mubr.bf16.gmra.mrb[0].mxu0 %v1225
      %v2480 = vpop.f32.mrb[0].mxu0
      %v2481 = vadd.f32 %v553, %v2480
      %v2482 = vpop.f32.mrb[0].mxu0
      %v2483 = vadd.f32 %v557, %v2482
      %v2484 = vpop.f32.mrb[0].mxu0
      %v2485 = vadd.f32 %v553, %v2484
      %v2486 = vpop.f32.mrb[0].mxu0
      %v2487 = vadd.f32 %v557, %v2486
      %2488 = vmatprep.mubr.bf16.mxu0 %v1237
      %2489 = vmatmul.mubr.bf16.gmra.mrb[0].mxu0 %v1236
      %v2490 = vpop.f32.mrb[0].mxu0
      %v2491 = vadd.f32 %v553, %v2490
      %v2492 = vpop.f32.mrb[0].mxu0
      %v2493 = vadd.f32 %v557, %v2492
      %v2494 = vpop.f32.mrb[0].mxu0
      %v2495 = vadd.f32 %v553, %v2494
      %v2496 = vpop.f32.mrb[0].mxu0
      %v2497 = vadd.f32 %v557, %v2496
      %2498 = vmatprep.mubr.bf16.mxu0 %v1248
      %2499 = vmatmul.mubr.bf16.gmra.mrb[0].mxu0 %v1247
      %v2500 = vpop.f32.mrb[0].mxu0
      %v2501 = vadd.f32 %v553, %v2500
      %v2502 = vpop.f32.mrb[0].mxu0
      %v2503 = vadd.f32 %v557, %v2502
      %v2504 = vpop.f32.mrb[0].mxu0
      %v2505 = vadd.f32 %v553, %v2504
      %v2506 = vpop.f32.mrb[0].mxu0
      %v2507 = vadd.f32 %v557, %v2506
      %2508 = vmatprep.mubr.bf16.mxu0 %v1259
      %2509 = vmatmul.mubr.bf16.gmra.mrb[0].mxu0 %v1258
      %v2510 = vpop.f32.mrb[0].mxu0
      %v2511 = vadd.f32 %v553, %v2510
      %v2512 = vpop.f32.mrb[0].mxu0
      %v2513 = vadd.f32 %v557, %v2512
      %v2514 = vpop.f32.mrb[0].mxu0
      %v2515 = vadd.f32 %v553, %v2514
      %v2516 = vpop.f32.mrb[0].mxu0
      %v2517 = vadd.f32 %v557, %v2516
      %2518 = vmatprep.mubr.bf16.mxu0 %v1270
      %2519 = vmatmul.mubr.bf16.gmra.mrb[0].mxu0 %v1269
      %v2520 = vpop.f32.mrb[0].mxu0
      %v2521 = vadd.f32 %v553, %v2520
      %v2522 = vpop.f32.mrb[0].mxu0
      %v2523 = vadd.f32 %v557, %v2522
      %v2524 = vpop.f32.mrb[0].mxu0
      %v2525 = vadd.f32 %v553, %v2524
      %v2526 = vpop.f32.mrb[0].mxu0
      %v2527 = vadd.f32 %v557, %v2526
      %2528 = vdwg.mxu0
      %2529 = vmatprep.subr.bf16.mxu0 %v2017
      %2530 = vmatpush1.bf16.msra.mxu0 %v2016
      %2531 = vmatprep.subr.bf16.mxu0 %v2019
      %2532 = vmatpush1.bf16.msra.mxu0 %v2018
      %2533 = vmatprep.subr.bf16.mxu0 %v2021
      %2534 = vmatpush1.bf16.msra.mxu0 %v2020
      %2535 = vmatprep.subr.bf16.mxu0 %v2023
      %2536 = vmatpush1.bf16.msra.mxu0 %v2022
      %2537 = vmatprep.subr.bf16.mxu0 %v2025
      %2538 = vmatpush1.bf16.msra.mxu0 %v2024
      %2539 = vmatprep.subr.bf16.mxu0 %v2027
      %2540 = vmatpush1.bf16.msra.mxu0 %v2026
      %2541 = vmatprep.subr.bf16.mxu0 %v2029
      %2542 = vmatpush1.bf16.msra.mxu0 %v2028
      %2543 = vmatprep.subr.bf16.mxu0 %v2031
      %2544 = vmatpush1.bf16.msra.mxu0 %v2030
      %2545 = vmatprep.subr.bf16.mxu0 %v2033
      %2546 = vmatpush1.bf16.msra.mxu0 %v2032
      %2547 = vmatprep.subr.bf16.mxu0 %v2035
      %2548 = vmatpush1.bf16.msra.mxu0 %v2034
      %2549 = vmatprep.subr.bf16.mxu0 %v2037
      %2550 = vmatpush1.bf16.msra.mxu0 %v2036
      %2551 = vmatprep.subr.bf16.mxu0 %v2039
      %2552 = vmatpush1.bf16.msra.mxu0 %v2038
      %2553 = vmatprep.subr.bf16.mxu0 %v2041
      %2554 = vmatpush1.bf16.msra.mxu0 %v2040
      %2555 = vmatprep.subr.bf16.mxu0 %v2043
      %2556 = vmatpush1.bf16.msra.mxu0 %v2042
      %2557 = vmatprep.subr.bf16.mxu0 %v2045
      %2558 = vmatpush1.bf16.msra.mxu0 %v2044
      %2559 = vmatprep.subr.bf16.mxu0 %v2047
      %2560 = vmatpush1.bf16.msra.mxu0 %v2046
      %2561 = vmatprep.mubr.bf16.mxu0 %v1107
      %2562 = vmatmul.mubr.bf16.gmra.mrb[0].mxu0 %v1106
      %v2563 = vpop.f32.mrb[0].mxu0
      %v2564 = vadd.f32 %v2371, %v2563
      %v2565 = vpop.f32.mrb[0].mxu0
      %v2566 = vadd.f32 %v2373, %v2565
      %v2567 = vpop.f32.mrb[0].mxu0
      %v2568 = vadd.f32 %v2375, %v2567
      %v2569 = vpop.f32.mrb[0].mxu0
      %v2570 = vadd.f32 %v2377, %v2569
      %2571 = vmatprep.mubr.bf16.mxu0 %v1118
      %2572 = vmatmul.mubr.bf16.gmra.mrb[0].mxu0 %v1117
      %v2573 = vpop.f32.mrb[0].mxu0
      %v2574 = vadd.f32 %v2381, %v2573
      %v2575 = vpop.f32.mrb[0].mxu0
      %v2576 = vadd.f32 %v2383, %v2575
      %v2577 = vpop.f32.mrb[0].mxu0
      %v2578 = vadd.f32 %v2385, %v2577
      %v2579 = vpop.f32.mrb[0].mxu0
      %v2580 = vadd.f32 %v2387, %v2579
      %2581 = vmatprep.mubr.bf16.mxu0 %v1129
      %2582 = vmatmul.mubr.bf16.gmra.mrb[0].mxu0 %v1128
      %v2583 = vpop.f32.mrb[0].mxu0
      %v2584 = vadd.f32 %v2391, %v2583
      %v2585 = vpop.f32.mrb[0].mxu0
      %v2586 = vadd.f32 %v2393, %v2585
      %v2587 = vpop.f32.mrb[0].mxu0
      %v2588 = vadd.f32 %v2395, %v2587
      %v2589 = vpop.f32.mrb[0].mxu0
      %v2590 = vadd.f32 %v2397, %v2589
      %2591 = vmatprep.mubr.bf16.mxu0 %v1140
      %2592 = vmatmul.mubr.bf16.gmra.mrb[0].mxu0 %v1139
      %v2593 = vpop.f32.mrb[0].mxu0
      %v2594 = vadd.f32 %v2401, %v2593
      %v2595 = vpop.f32.mrb[0].mxu0
      %v2596 = vadd.f32 %v2403, %v2595
      %v2597 = vpop.f32.mrb[0].mxu0
      %v2598 = vadd.f32 %v2405, %v2597
      %v2599 = vpop.f32.mrb[0].mxu0
      %v2600 = vadd.f32 %v2407, %v2599
      %2601 = vmatprep.mubr.bf16.mxu0 %v1151
      %2602 = vmatmul.mubr.bf16.gmra.mrb[0].mxu0 %v1150
      %v2603 = vpop.f32.mrb[0].mxu0
      %v2604 = vadd.f32 %v2411, %v2603
      %v2605 = vpop.f32.mrb[0].mxu0
      %v2606 = vadd.f32 %v2413, %v2605
      %v2607 = vpop.f32.mrb[0].mxu0
      %v2608 = vadd.f32 %v2415, %v2607
      %v2609 = vpop.f32.mrb[0].mxu0
      %v2610 = vadd.f32 %v2417, %v2609
      %2611 = vmatprep.mubr.bf16.mxu0 %v1162
      %2612 = vmatmul.mubr.bf16.gmra.mrb[0].mxu0 %v1161
      %v2613 = vpop.f32.mrb[0].mxu0
      %v2614 = vadd.f32 %v2421, %v2613
      %v2615 = vpop.f32.mrb[0].mxu0
      %v2616 = vadd.f32 %v2423, %v2615
      %v2617 = vpop.f32.mrb[0].mxu0
      %v2618 = vadd.f32 %v2425, %v2617
      %v2619 = vpop.f32.mrb[0].mxu0
      %v2620 = vadd.f32 %v2427, %v2619
      %2621 = vmatprep.mubr.bf16.mxu0 %v1173
      %2622 = vmatmul.mubr.bf16.gmra.mrb[0].mxu0 %v1172
      %v2623 = vpop.f32.mrb[0].mxu0
      %v2624 = vadd.f32 %v2431, %v2623
      %v2625 = vpop.f32.mrb[0].mxu0
      %v2626 = vadd.f32 %v2433, %v2625
      %v2627 = vpop.f32.mrb[0].mxu0
      %v2628 = vadd.f32 %v2435, %v2627
      %v2629 = vpop.f32.mrb[0].mxu0
      %v2630 = vadd.f32 %v2437, %v2629
      %2631 = vmatprep.mubr.bf16.mxu0 %v1184
      %2632 = vmatmul.mubr.bf16.gmra.mrb[0].mxu0 %v1183
      %v2633 = vpop.f32.mrb[0].mxu0
      %v2634 = vadd.f32 %v2441, %v2633
      %v2635 = vpop.f32.mrb[0].mxu0
      %v2636 = vadd.f32 %v2443, %v2635
      %v2637 = vpop.f32.mrb[0].mxu0
      %v2638 = vadd.f32 %v2445, %v2637
      %v2639 = vpop.f32.mrb[0].mxu0
      %v2640 = vadd.f32 %v2447, %v2639
      %2641 = vmatprep.mubr.bf16.mxu0 %v1195
      %2642 = vmatmul.mubr.bf16.gmra.mrb[0].mxu0 %v1194
      %v2643 = vpop.f32.mrb[0].mxu0
      %v2644 = vadd.f32 %v2451, %v2643
      %v2645 = vpop.f32.mrb[0].mxu0
      %v2646 = vadd.f32 %v2453, %v2645
      %v2647 = vpop.f32.mrb[0].mxu0
      %v2648 = vadd.f32 %v2455, %v2647
      %v2649 = vpop.f32.mrb[0].mxu0
      %v2650 = vadd.f32 %v2457, %v2649
      %2651 = vmatprep.mubr.bf16.mxu0 %v1206
      %2652 = vmatmul.mubr.bf16.gmra.mrb[0].mxu0 %v1205
      %v2653 = vpop.f32.mrb[0].mxu0
      %v2654 = vadd.f32 %v2461, %v2653
      %v2655 = vpop.f32.mrb[0].mxu0
      %v2656 = vadd.f32 %v2463, %v2655
      %v2657 = vpop.f32.mrb[0].mxu0
      %v2658 = vadd.f32 %v2465, %v2657
      %v2659 = vpop.f32.mrb[0].mxu0
      %v2660 = vadd.f32 %v2467, %v2659
      %2661 = vmatprep.mubr.bf16.mxu0 %v1217
      %2662 = vmatmul.mubr.bf16.gmra.mrb[0].mxu0 %v1216
      %v2663 = vpop.f32.mrb[0].mxu0
      %v2664 = vadd.f32 %v2471, %v2663
      %v2665 = vpop.f32.mrb[0].mxu0
      %v2666 = vadd.f32 %v2473, %v2665
      %v2667 = vpop.f32.mrb[0].mxu0
      %v2668 = vadd.f32 %v2475, %v2667
      %v2669 = vpop.f32.mrb[0].mxu0
      %v2670 = vadd.f32 %v2477, %v2669
      %2671 = vmatprep.mubr.bf16.mxu0 %v1228
      %2672 = vmatmul.mubr.bf16.gmra.mrb[0].mxu0 %v1227
      %v2673 = vpop.f32.mrb[0].mxu0
      %v2674 = vadd.f32 %v2481, %v2673
      %v2675 = vpop.f32.mrb[0].mxu0
      %v2676 = vadd.f32 %v2483, %v2675
      %v2677 = vpop.f32.mrb[0].mxu0
      %v2678 = vadd.f32 %v2485, %v2677
      %v2679 = vpop.f32.mrb[0].mxu0
      %v2680 = vadd.f32 %v2487, %v2679
      %2681 = vmatprep.mubr.bf16.mxu0 %v1239
      %2682 = vmatmul.mubr.bf16.gmra.mrb[0].mxu0 %v1238
      %v2683 = vpop.f32.mrb[0].mxu0
      %v2684 = vadd.f32 %v2491, %v2683
      %v2685 = vpop.f32.mrb[0].mxu0
      %v2686 = vadd.f32 %v2493, %v2685
      %v2687 = vpop.f32.mrb[0].mxu0
      %v2688 = vadd.f32 %v2495, %v2687
      %v2689 = vpop.f32.mrb[0].mxu0
      %v2690 = vadd.f32 %v2497, %v2689
      %2691 = vmatprep.mubr.bf16.mxu0 %v1250
      %2692 = vmatmul.mubr.bf16.gmra.mrb[0].mxu0 %v1249
      %v2693 = vpop.f32.mrb[0].mxu0
      %v2694 = vadd.f32 %v2501, %v2693
      %v2695 = vpop.f32.mrb[0].mxu0
      %v2696 = vadd.f32 %v2503, %v2695
      %v2697 = vpop.f32.mrb[0].mxu0
      %v2698 = vadd.f32 %v2505, %v2697
      %v2699 = vpop.f32.mrb[0].mxu0
      %v2700 = vadd.f32 %v2507, %v2699
      %2701 = vmatprep.mubr.bf16.mxu0 %v1261
      %2702 = vmatmul.mubr.bf16.gmra.mrb[0].mxu0 %v1260
      %v2703 = vpop.f32.mrb[0].mxu0
      %v2704 = vadd.f32 %v2511, %v2703
      %v2705 = vpop.f32.mrb[0].mxu0
      %v2706 = vadd.f32 %v2513, %v2705
      %v2707 = vpop.f32.mrb[0].mxu0
      %v2708 = vadd.f32 %v2515, %v2707
      %v2709 = vpop.f32.mrb[0].mxu0
      %v2710 = vadd.f32 %v2517, %v2709
      %2711 = vmatprep.mubr.bf16.mxu0 %v1272
      %2712 = vmatmul.mubr.bf16.gmra.mrb[0].mxu0 %v1271
      %v2713 = vpop.f32.mrb[0].mxu0
      %v2714 = vadd.f32 %v2521, %v2713
      %v2715 = vpop.f32.mrb[0].mxu0
      %v2716 = vadd.f32 %v2523, %v2715
      %v2717 = vpop.f32.mrb[0].mxu0
      %v2718 = vadd.f32 %v2525, %v2717
      %v2719 = vpop.f32.mrb[0].mxu0
      %v2720 = vadd.f32 %v2527, %v2719
      %2721 = vdwg.mxu0
      %2722 = vmatprep.subr.bf16.mxu0 %v2049
      %2723 = vmatpush1.bf16.msra.mxu0 %v2048
      %2724 = vmatprep.subr.bf16.mxu0 %v2051
      %2725 = vmatpush1.bf16.msra.mxu0 %v2050
      %2726 = vmatprep.subr.bf16.mxu0 %v2053
      %2727 = vmatpush1.bf16.msra.mxu0 %v2052
      %2728 = vmatprep.subr.bf16.mxu0 %v2055
      %2729 = vmatpush1.bf16.msra.mxu0 %v2054
      %2730 = vmatprep.subr.bf16.mxu0 %v2057
      %2731 = vmatpush1.bf16.msra.mxu0 %v2056
      %2732 = vmatprep.subr.bf16.mxu0 %v2059
      %2733 = vmatpush1.bf16.msra.mxu0 %v2058
      %2734 = vmatprep.subr.bf16.mxu0 %v2061
      %2735 = vmatpush1.bf16.msra.mxu0 %v2060
      %2736 = vmatprep.subr.bf16.mxu0 %v2063
      %2737 = vmatpush1.bf16.msra.mxu0 %v2062
      %2738 = vmatprep.subr.bf16.mxu0 %v2065
      %2739 = vmatpush1.bf16.msra.mxu0 %v2064
      %2740 = vmatprep.subr.bf16.mxu0 %v2067
      %2741 = vmatpush1.bf16.msra.mxu0 %v2066
      %2742 = vmatprep.subr.bf16.mxu0 %v2069
      %2743 = vmatpush1.bf16.msra.mxu0 %v2068
      %2744 = vmatprep.subr.bf16.mxu0 %v2071
      %2745 = vmatpush1.bf16.msra.mxu0 %v2070
      %2746 = vmatprep.subr.bf16.mxu0 %v2073
      %2747 = vmatpush1.bf16.msra.mxu0 %v2072
      %2748 = vmatprep.subr.bf16.mxu0 %v2075
      %2749 = vmatpush1.bf16.msra.mxu0 %v2074
      %2750 = vmatprep.subr.bf16.mxu0 %v2077
      %2751 = vmatpush1.bf16.msra.mxu0 %v2076
      %2752 = vmatprep.subr.bf16.mxu0 %v2079
      %2753 = vmatpush1.bf16.msra.mxu0 %v2078
      %2754 = vmatprep.mubr.bf16.mxu0 %v1109
      %2755 = vmatmul.mubr.bf16.gmra.mrb[0].mxu0 %v1108
      %v2756 = vpop.f32.mrb[0].mxu0
      %v2757 = vadd.f32 %v2564, %v2756
      %v2758 = vpop.f32.mrb[0].mxu0
      %v2759 = vadd.f32 %v2566, %v2758
      %v2760 = vpop.f32.mrb[0].mxu0
      %v2761 = vadd.f32 %v2568, %v2760
      %v2762 = vpop.f32.mrb[0].mxu0
      %v2763 = vadd.f32 %v2570, %v2762
      %2764 = vmatprep.mubr.bf16.mxu0 %v1120
      %2765 = vmatmul.mubr.bf16.gmra.mrb[0].mxu0 %v1119
      %v2766 = vpop.f32.mrb[0].mxu0
      %v2767 = vadd.f32 %v2574, %v2766
      %v2768 = vpop.f32.mrb[0].mxu0
      %v2769 = vadd.f32 %v2576, %v2768
      %v2770 = vpop.f32.mrb[0].mxu0
      %v2771 = vadd.f32 %v2578, %v2770
      %v2772 = vpop.f32.mrb[0].mxu0
      %v2773 = vadd.f32 %v2580, %v2772
      %2774 = vmatprep.mubr.bf16.mxu0 %v1131
      %2775 = vmatmul.mubr.bf16.gmra.mrb[0].mxu0 %v1130
      %v2776 = vpop.f32.mrb[0].mxu0
      %v2777 = vadd.f32 %v2584, %v2776
      %v2778 = vpop.f32.mrb[0].mxu0
      %v2779 = vadd.f32 %v2586, %v2778
      %v2780 = vpop.f32.mrb[0].mxu0
      %v2781 = vadd.f32 %v2588, %v2780
      %v2782 = vpop.f32.mrb[0].mxu0
      %v2783 = vadd.f32 %v2590, %v2782
      %2784 = vmatprep.mubr.bf16.mxu0 %v1142
      %2785 = vmatmul.mubr.bf16.gmra.mrb[0].mxu0 %v1141
      %v2786 = vpop.f32.mrb[0].mxu0
      %v2787 = vadd.f32 %v2594, %v2786
      %v2788 = vpop.f32.mrb[0].mxu0
      %v2789 = vadd.f32 %v2596, %v2788
      %v2790 = vpop.f32.mrb[0].mxu0
      %v2791 = vadd.f32 %v2598, %v2790
      %v2792 = vpop.f32.mrb[0].mxu0
      %v2793 = vadd.f32 %v2600, %v2792
      %2794 = vmatprep.mubr.bf16.mxu0 %v1153
      %2795 = vmatmul.mubr.bf16.gmra.mrb[0].mxu0 %v1152
      %v2796 = vpop.f32.mrb[0].mxu0
      %v2797 = vadd.f32 %v2604, %v2796
      %v2798 = vpop.f32.mrb[0].mxu0
      %v2799 = vadd.f32 %v2606, %v2798
      %v2800 = vpop.f32.mrb[0].mxu0
      %v2801 = vadd.f32 %v2608, %v2800
      %v2802 = vpop.f32.mrb[0].mxu0
      %v2803 = vadd.f32 %v2610, %v2802
      %2804 = vmatprep.mubr.bf16.mxu0 %v1164
      %2805 = vmatmul.mubr.bf16.gmra.mrb[0].mxu0 %v1163
      %v2806 = vpop.f32.mrb[0].mxu0
      %v2807 = vadd.f32 %v2614, %v2806
      %v2808 = vpop.f32.mrb[0].mxu0
      %v2809 = vadd.f32 %v2616, %v2808
      %v2810 = vpop.f32.mrb[0].mxu0
      %v2811 = vadd.f32 %v2618, %v2810
      %v2812 = vpop.f32.mrb[0].mxu0
      %v2813 = vadd.f32 %v2620, %v2812
      %2814 = vmatprep.mubr.bf16.mxu0 %v1175
      %2815 = vmatmul.mubr.bf16.gmra.mrb[0].mxu0 %v1174
      %v2816 = vpop.f32.mrb[0].mxu0
      %v2817 = vadd.f32 %v2624, %v2816
      %v2818 = vpop.f32.mrb[0].mxu0
      %v2819 = vadd.f32 %v2626, %v2818
      %v2820 = vpop.f32.mrb[0].mxu0
      %v2821 = vadd.f32 %v2628, %v2820
      %v2822 = vpop.f32.mrb[0].mxu0
      %v2823 = vadd.f32 %v2630, %v2822
      %2824 = vmatprep.mubr.bf16.mxu0 %v1186
      %2825 = vmatmul.mubr.bf16.gmra.mrb[0].mxu0 %v1185
      %v2826 = vpop.f32.mrb[0].mxu0
      %v2827 = vadd.f32 %v2634, %v2826
      %v2828 = vpop.f32.mrb[0].mxu0
      %v2829 = vadd.f32 %v2636, %v2828
      %v2830 = vpop.f32.mrb[0].mxu0
      %v2831 = vadd.f32 %v2638, %v2830
      %v2832 = vpop.f32.mrb[0].mxu0
      %v2833 = vadd.f32 %v2640, %v2832
      %2834 = vmatprep.mubr.bf16.mxu0 %v1197
      %2835 = vmatmul.mubr.bf16.gmra.mrb[0].mxu0 %v1196
      %v2836 = vpop.f32.mrb[0].mxu0
      %v2837 = vadd.f32 %v2644, %v2836
      %v2838 = vpop.f32.mrb[0].mxu0
      %v2839 = vadd.f32 %v2646, %v2838
      %v2840 = vpop.f32.mrb[0].mxu0
      %v2841 = vadd.f32 %v2648, %v2840
      %v2842 = vpop.f32.mrb[0].mxu0
      %v2843 = vadd.f32 %v2650, %v2842
      %2844 = vmatprep.mubr.bf16.mxu0 %v1208
      %2845 = vmatmul.mubr.bf16.gmra.mrb[0].mxu0 %v1207
      %v2846 = vpop.f32.mrb[0].mxu0
      %v2847 = vadd.f32 %v2654, %v2846
      %v2848 = vpop.f32.mrb[0].mxu0
      %v2849 = vadd.f32 %v2656, %v2848
      %v2850 = vpop.f32.mrb[0].mxu0
      %v2851 = vadd.f32 %v2658, %v2850
      %v2852 = vpop.f32.mrb[0].mxu0
      %v2853 = vadd.f32 %v2660, %v2852
      %2854 = vmatprep.mubr.bf16.mxu0 %v1219
      %2855 = vmatmul.mubr.bf16.gmra.mrb[0].mxu0 %v1218
      %v2856 = vpop.f32.mrb[0].mxu0
      %v2857 = vadd.f32 %v2664, %v2856
      %v2858 = vpop.f32.mrb[0].mxu0
      %v2859 = vadd.f32 %v2666, %v2858
      %v2860 = vpop.f32.mrb[0].mxu0
      %v2861 = vadd.f32 %v2668, %v2860
      %v2862 = vpop.f32.mrb[0].mxu0
      %v2863 = vadd.f32 %v2670, %v2862
      %2864 = vmatprep.mubr.bf16.mxu0 %v1230
      %2865 = vmatmul.mubr.bf16.gmra.mrb[0].mxu0 %v1229
      %v2866 = vpop.f32.mrb[0].mxu0
      %v2867 = vadd.f32 %v2674, %v2866
      %v2868 = vpop.f32.mrb[0].mxu0
      %v2869 = vadd.f32 %v2676, %v2868
      %v2870 = vpop.f32.mrb[0].mxu0
      %v2871 = vadd.f32 %v2678, %v2870
      %v2872 = vpop.f32.mrb[0].mxu0
      %v2873 = vadd.f32 %v2680, %v2872
      %2874 = vmatprep.mubr.bf16.mxu0 %v1241
      %2875 = vmatmul.mubr.bf16.gmra.mrb[0].mxu0 %v1240
      %v2876 = vpop.f32.mrb[0].mxu0
      %v2877 = vadd.f32 %v2684, %v2876
      %v2878 = vpop.f32.mrb[0].mxu0
      %v2879 = vadd.f32 %v2686, %v2878
      %v2880 = vpop.f32.mrb[0].mxu0
      %v2881 = vadd.f32 %v2688, %v2880
      %v2882 = vpop.f32.mrb[0].mxu0
      %v2883 = vadd.f32 %v2690, %v2882
      %2884 = vmatprep.mubr.bf16.mxu0 %v1252
      %2885 = vmatmul.mubr.bf16.gmra.mrb[0].mxu0 %v1251
      %v2886 = vpop.f32.mrb[0].mxu0
      %v2887 = vadd.f32 %v2694, %v2886
      %v2888 = vpop.f32.mrb[0].mxu0
      %v2889 = vadd.f32 %v2696, %v2888
      %v2890 = vpop.f32.mrb[0].mxu0
      %v2891 = vadd.f32 %v2698, %v2890
      %v2892 = vpop.f32.mrb[0].mxu0
      %v2893 = vadd.f32 %v2700, %v2892
      %2894 = vmatprep.mubr.bf16.mxu0 %v1263
      %2895 = vmatmul.mubr.bf16.gmra.mrb[0].mxu0 %v1262
      %v2896 = vpop.f32.mrb[0].mxu0
      %v2897 = vadd.f32 %v2704, %v2896
      %v2898 = vpop.f32.mrb[0].mxu0
      %v2899 = vadd.f32 %v2706, %v2898
      %v2900 = vpop.f32.mrb[0].mxu0
      %v2901 = vadd.f32 %v2708, %v2900
      %v2902 = vpop.f32.mrb[0].mxu0
      %v2903 = vadd.f32 %v2710, %v2902
      %2904 = vmatprep.mubr.bf16.mxu0 %v1274
      %2905 = vmatmul.mubr.bf16.gmra.mrb[0].mxu0 %v1273
      %v2906 = vpop.f32.mrb[0].mxu0
      %v2907 = vadd.f32 %v2714, %v2906
      %v2908 = vpop.f32.mrb[0].mxu0
      %v2909 = vadd.f32 %v2716, %v2908
      %v2910 = vpop.f32.mrb[0].mxu0
      %v2911 = vadd.f32 %v2718, %v2910
      %v2912 = vpop.f32.mrb[0].mxu0
      %v2913 = vadd.f32 %v2720, %v2912
      %2914 = vdwg.mxu0
      %2915 = vmatprep.subr.bf16.mxu0 %v2081
      %2916 = vmatpush1.bf16.msra.mxu0 %v2080
      %2917 = vmatprep.subr.bf16.mxu0 %v2083
      %2918 = vmatpush1.bf16.msra.mxu0 %v2082
      %2919 = vmatprep.subr.bf16.mxu0 %v2085
      %2920 = vmatpush1.bf16.msra.mxu0 %v2084
      %2921 = vmatprep.subr.bf16.mxu0 %v2087
      %2922 = vmatpush1.bf16.msra.mxu0 %v2086
      %2923 = vmatprep.subr.bf16.mxu0 %v2089
      %2924 = vmatpush1.bf16.msra.mxu0 %v2088
      %2925 = vmatprep.subr.bf16.mxu0 %v2091
      %2926 = vmatpush1.bf16.msra.mxu0 %v2090
      %2927 = vmatprep.subr.bf16.mxu0 %v2093
      %2928 = vmatpush1.bf16.msra.mxu0 %v2092
      %2929 = vmatprep.subr.bf16.mxu0 %v2095
      %2930 = vmatpush1.bf16.msra.mxu0 %v2094
      %2931 = vmatprep.subr.bf16.mxu0 %v2097
      %2932 = vmatpush1.bf16.msra.mxu0 %v2096
      %2933 = vmatprep.subr.bf16.mxu0 %v2099
      %2934 = vmatpush1.bf16.msra.mxu0 %v2098
      %2935 = vmatprep.subr.bf16.mxu0 %v2101
      %2936 = vmatpush1.bf16.msra.mxu0 %v2100
      %2937 = vmatprep.subr.bf16.mxu0 %v2103
      %2938 = vmatpush1.bf16.msra.mxu0 %v2102
      %2939 = vmatprep.subr.bf16.mxu0 %v2105
      %2940 = vmatpush1.bf16.msra.mxu0 %v2104
      %2941 = vmatprep.subr.bf16.mxu0 %v2107
      %2942 = vmatpush1.bf16.msra.mxu0 %v2106
      %2943 = vmatprep.subr.bf16.mxu0 %v2109
      %2944 = vmatpush1.bf16.msra.mxu0 %v2108
      %2945 = vmatprep.subr.bf16.mxu0 %v2111
      %2946 = vmatpush1.bf16.msra.mxu0 %v2110
      %2947 = vmatprep.mubr.bf16.mxu0 %v1111
      %2948 = vmatmul.mubr.bf16.gmra.mrb[0].mxu0 %v1110
      %v2949 = vpop.f32.mrb[0].mxu0
      %v2950 = vadd.f32 %v2757, %v2949
      %v2951 = vpop.f32.mrb[0].mxu0
      %v2952 = vadd.f32 %v2759, %v2951
      %v2953 = vpop.f32.mrb[0].mxu0
      %v2954 = vadd.f32 %v2761, %v2953
      %v2955 = vpop.f32.mrb[0].mxu0
      %v2956 = vadd.f32 %v2763, %v2955
      %2957 = vmatprep.mubr.bf16.mxu0 %v1122
      %2958 = vmatmul.mubr.bf16.gmra.mrb[0].mxu0 %v1121
      %v2959 = vpop.f32.mrb[0].mxu0
      %v2960 = vadd.f32 %v2767, %v2959
      %v2961 = vpop.f32.mrb[0].mxu0
      %v2962 = vadd.f32 %v2769, %v2961
      %v2963 = vpop.f32.mrb[0].mxu0
      %v2964 = vadd.f32 %v2771, %v2963
      %v2965 = vpop.f32.mrb[0].mxu0
      %v2966 = vadd.f32 %v2773, %v2965
      %2967 = vmatprep.mubr.bf16.mxu0 %v1133
      %2968 = vmatmul.mubr.bf16.gmra.mrb[0].mxu0 %v1132
      %v2969 = vpop.f32.mrb[0].mxu0
      %v2970 = vadd.f32 %v2777, %v2969
      %v2971 = vpop.f32.mrb[0].mxu0
      %v2972 = vadd.f32 %v2779, %v2971
      %v2973 = vpop.f32.mrb[0].mxu0
      %v2974 = vadd.f32 %v2781, %v2973
      %v2975 = vpop.f32.mrb[0].mxu0
      %v2976 = vadd.f32 %v2783, %v2975
      %2977 = vmatprep.mubr.bf16.mxu0 %v1144
      %2978 = vmatmul.mubr.bf16.gmra.mrb[0].mxu0 %v1143
      %v2979 = vpop.f32.mrb[0].mxu0
      %v2980 = vadd.f32 %v2787, %v2979
      %v2981 = vpop.f32.mrb[0].mxu0
      %v2982 = vadd.f32 %v2789, %v2981
      %v2983 = vpop.f32.mrb[0].mxu0
      %v2984 = vadd.f32 %v2791, %v2983
      %v2985 = vpop.f32.mrb[0].mxu0
      %v2986 = vadd.f32 %v2793, %v2985
      %2987 = vmatprep.mubr.bf16.mxu0 %v1155
      %2988 = vmatmul.mubr.bf16.gmra.mrb[0].mxu0 %v1154
      %v2989 = vpop.f32.mrb[0].mxu0
      %v2990 = vadd.f32 %v2797, %v2989
      %v2991 = vpop.f32.mrb[0].mxu0
      %v2992 = vadd.f32 %v2799, %v2991
      %v2993 = vpop.f32.mrb[0].mxu0
      %v2994 = vadd.f32 %v2801, %v2993
      %v2995 = vpop.f32.mrb[0].mxu0
      %v2996 = vadd.f32 %v2803, %v2995
      %2997 = vmatprep.mubr.bf16.mxu0 %v1166
      %2998 = vmatmul.mubr.bf16.gmra.mrb[0].mxu0 %v1165
      %v2999 = vpop.f32.mrb[0].mxu0
      %v3000 = vadd.f32 %v2807, %v2999
      %v3001 = vpop.f32.mrb[0].mxu0
      %v3002 = vadd.f32 %v2809, %v3001
      %v3003 = vpop.f32.mrb[0].mxu0
      %v3004 = vadd.f32 %v2811, %v3003
      %v3005 = vpop.f32.mrb[0].mxu0
      %v3006 = vadd.f32 %v2813, %v3005
      %3007 = vmatprep.mubr.bf16.mxu0 %v1177
      %3008 = vmatmul.mubr.bf16.gmra.mrb[0].mxu0 %v1176
      %v3009 = vpop.f32.mrb[0].mxu0
      %v3010 = vadd.f32 %v2817, %v3009
      %v3011 = vpop.f32.mrb[0].mxu0
      %v3012 = vadd.f32 %v2819, %v3011
      %v3013 = vpop.f32.mrb[0].mxu0
      %v3014 = vadd.f32 %v2821, %v3013
      %v3015 = vpop.f32.mrb[0].mxu0
      %v3016 = vadd.f32 %v2823, %v3015
      %3017 = vmatprep.mubr.bf16.mxu0 %v1188
      %3018 = vmatmul.mubr.bf16.gmra.mrb[0].mxu0 %v1187
      %v3019 = vpop.f32.mrb[0].mxu0
      %v3020 = vadd.f32 %v2827, %v3019
      %v3021 = vpop.f32.mrb[0].mxu0
      %v3022 = vadd.f32 %v2829, %v3021
      %v3023 = vpop.f32.mrb[0].mxu0
      %v3024 = vadd.f32 %v2831, %v3023
      %v3025 = vpop.f32.mrb[0].mxu0
      %v3026 = vadd.f32 %v2833, %v3025
      %3027 = vmatprep.mubr.bf16.mxu0 %v1199
      %3028 = vmatmul.mubr.bf16.gmra.mrb[0].mxu0 %v1198
      %v3029 = vpop.f32.mrb[0].mxu0
      %v3030 = vadd.f32 %v2837, %v3029
      %v3031 = vpop.f32.mrb[0].mxu0
      %v3032 = vadd.f32 %v2839, %v3031
      %v3033 = vpop.f32.mrb[0].mxu0
      %v3034 = vadd.f32 %v2841, %v3033
      %v3035 = vpop.f32.mrb[0].mxu0
      %v3036 = vadd.f32 %v2843, %v3035
      %3037 = vmatprep.mubr.bf16.mxu0 %v1210
      %3038 = vmatmul.mubr.bf16.gmra.mrb[0].mxu0 %v1209
      %v3039 = vpop.f32.mrb[0].mxu0
      %v3040 = vadd.f32 %v2847, %v3039
      %v3041 = vpop.f32.mrb[0].mxu0
      %v3042 = vadd.f32 %v2849, %v3041
      %v3043 = vpop.f32.mrb[0].mxu0
      %v3044 = vadd.f32 %v2851, %v3043
      %v3045 = vpop.f32.mrb[0].mxu0
      %v3046 = vadd.f32 %v2853, %v3045
      %3047 = vmatprep.mubr.bf16.mxu0 %v1221
      %3048 = vmatmul.mubr.bf16.gmra.mrb[0].mxu0 %v1220
      %v3049 = vpop.f32.mrb[0].mxu0
      %v3050 = vadd.f32 %v2857, %v3049
      %v3051 = vpop.f32.mrb[0].mxu0
      %v3052 = vadd.f32 %v2859, %v3051
      %v3053 = vpop.f32.mrb[0].mxu0
      %v3054 = vadd.f32 %v2861, %v3053
      %v3055 = vpop.f32.mrb[0].mxu0
      %v3056 = vadd.f32 %v2863, %v3055
      %3057 = vmatprep.mubr.bf16.mxu0 %v1232
      %3058 = vmatmul.mubr.bf16.gmra.mrb[0].mxu0 %v1231
      %v3059 = vpop.f32.mrb[0].mxu0
      %v3060 = vadd.f32 %v2867, %v3059
      %v3061 = vpop.f32.mrb[0].mxu0
      %v3062 = vadd.f32 %v2869, %v3061
      %v3063 = vpop.f32.mrb[0].mxu0
      %v3064 = vadd.f32 %v2871, %v3063
      %v3065 = vpop.f32.mrb[0].mxu0
      %v3066 = vadd.f32 %v2873, %v3065
      %3067 = vmatprep.mubr.bf16.mxu0 %v1243
      %3068 = vmatmul.mubr.bf16.gmra.mrb[0].mxu0 %v1242
      %v3069 = vpop.f32.mrb[0].mxu0
      %v3070 = vadd.f32 %v2877, %v3069
      %v3071 = vpop.f32.mrb[0].mxu0
      %v3072 = vadd.f32 %v2879, %v3071
      %v3073 = vpop.f32.mrb[0].mxu0
      %v3074 = vadd.f32 %v2881, %v3073
      %v3075 = vpop.f32.mrb[0].mxu0
      %v3076 = vadd.f32 %v2883, %v3075
      %3077 = vmatprep.mubr.bf16.mxu0 %v1254
      %3078 = vmatmul.mubr.bf16.gmra.mrb[0].mxu0 %v1253
      %v3079 = vpop.f32.mrb[0].mxu0
      %v3080 = vadd.f32 %v2887, %v3079
      %v3081 = vpop.f32.mrb[0].mxu0
      %v3082 = vadd.f32 %v2889, %v3081
      %v3083 = vpop.f32.mrb[0].mxu0
      %v3084 = vadd.f32 %v2891, %v3083
      %v3085 = vpop.f32.mrb[0].mxu0
      %v3086 = vadd.f32 %v2893, %v3085
      %3087 = vmatprep.mubr.bf16.mxu0 %v1265
      %3088 = vmatmul.mubr.bf16.gmra.mrb[0].mxu0 %v1264
      %v3089 = vpop.f32.mrb[0].mxu0
      %v3090 = vadd.f32 %v2897, %v3089
      %v3091 = vpop.f32.mrb[0].mxu0
      %v3092 = vadd.f32 %v2899, %v3091
      %v3093 = vpop.f32.mrb[0].mxu0
      %v3094 = vadd.f32 %v2901, %v3093
      %v3095 = vpop.f32.mrb[0].mxu0
      %v3096 = vadd.f32 %v2903, %v3095
      %3097 = vmatprep.mubr.bf16.mxu0 %v1276
      %3098 = vmatmul.mubr.bf16.gmra.mrb[0].mxu0 %v1275
      %v3099 = vpop.f32.mrb[0].mxu0
      %v3100 = vadd.f32 %v2907, %v3099
      %v3101 = vpop.f32.mrb[0].mxu0
      %v3102 = vadd.f32 %v2909, %v3101
      %v3103 = vpop.f32.mrb[0].mxu0
      %v3104 = vadd.f32 %v2911, %v3103
      %v3105 = vpop.f32.mrb[0].mxu0
      %v3106 = vadd.f32 %v2913, %v3105
      %3107 = vdwg.mxu0
      %3108 = vmatprep.subr.bf16.mxu0 %v2113
      %3109 = vmatpush1.bf16.msra.mxu0 %v2112
      %3110 = vmatprep.subr.bf16.mxu0 %v2115
      %3111 = vmatpush1.bf16.msra.mxu0 %v2114
      %3112 = vmatprep.subr.bf16.mxu0 %v2117
      %3113 = vmatpush1.bf16.msra.mxu0 %v2116
      %3114 = vmatprep.subr.bf16.mxu0 %v2119
      %3115 = vmatpush1.bf16.msra.mxu0 %v2118
      %3116 = vmatprep.subr.bf16.mxu0 %v2121
      %3117 = vmatpush1.bf16.msra.mxu0 %v2120
      %3118 = vmatprep.subr.bf16.mxu0 %v2123
      %3119 = vmatpush1.bf16.msra.mxu0 %v2122
      %3120 = vmatprep.subr.bf16.mxu0 %v2125
      %3121 = vmatpush1.bf16.msra.mxu0 %v2124
      %3122 = vmatprep.subr.bf16.mxu0 %v2127
      %3123 = vmatpush1.bf16.msra.mxu0 %v2126
      %3124 = vmatprep.subr.bf16.mxu0 %v2129
      %3125 = vmatpush1.bf16.msra.mxu0 %v2128
      %3126 = vmatprep.subr.bf16.mxu0 %v2131
      %3127 = vmatpush1.bf16.msra.mxu0 %v2130
      %3128 = vmatprep.subr.bf16.mxu0 %v2133
      %3129 = vmatpush1.bf16.msra.mxu0 %v2132
      %3130 = vmatprep.subr.bf16.mxu0 %v2135
      %3131 = vmatpush1.bf16.msra.mxu0 %v2134
      %3132 = vmatprep.subr.bf16.mxu0 %v2137
      %3133 = vmatpush1.bf16.msra.mxu0 %v2136
      %3134 = vmatprep.subr.bf16.mxu0 %v2139
      %3135 = vmatpush1.bf16.msra.mxu0 %v2138
      %3136 = vmatprep.subr.bf16.mxu0 %v2141
      %3137 = vmatpush1.bf16.msra.mxu0 %v2140
      %3138 = vmatprep.subr.bf16.mxu0 %v2143
      %3139 = vmatpush1.bf16.msra.mxu0 %v2142
      %3140 = vmatprep.mubr.bf16.mxu0 %v1113
      %3141 = vmatmul.mubr.bf16.gmra.mrb[0].mxu0 %v1112
      %v3142 = vpop.f32.mrb[0].mxu0
      %v3143 = vadd.f32 %v2950, %v3142
      %v3144 = vpop.f32.mrb[0].mxu0
      %v3145 = vadd.f32 %v2952, %v3144
      %v3146 = vpop.f32.mrb[0].mxu0
      %v3147 = vadd.f32 %v2954, %v3146
      %v3148 = vpop.f32.mrb[0].mxu0
      %v3149 = vadd.f32 %v2956, %v3148
      %3150 = vmatprep.mubr.bf16.mxu0 %v1124
      %3151 = vmatmul.mubr.bf16.gmra.mrb[0].mxu0 %v1123
      %v3152 = vpop.f32.mrb[0].mxu0
      %v3153 = vadd.f32 %v2960, %v3152
      %v3154 = vpop.f32.mrb[0].mxu0
      %v3155 = vadd.f32 %v2962, %v3154
      %v3156 = vpop.f32.mrb[0].mxu0
      %v3157 = vadd.f32 %v2964, %v3156
      %v3158 = vpop.f32.mrb[0].mxu0
      %v3159 = vadd.f32 %v2966, %v3158
      %3160 = vmatprep.mubr.bf16.mxu0 %v1135
      %3161 = vmatmul.mubr.bf16.gmra.mrb[0].mxu0 %v1134
      %v3162 = vpop.f32.mrb[0].mxu0
      %v3163 = vadd.f32 %v2970, %v3162
      %v3164 = vpop.f32.mrb[0].mxu0
      %v3165 = vadd.f32 %v2972, %v3164
      %v3166 = vpop.f32.mrb[0].mxu0
      %v3167 = vadd.f32 %v2974, %v3166
      %v3168 = vpop.f32.mrb[0].mxu0
      %v3169 = vadd.f32 %v2976, %v3168
      %3170 = vmatprep.mubr.bf16.mxu0 %v1146
      %3171 = vmatmul.mubr.bf16.gmra.mrb[0].mxu0 %v1145
      %v3172 = vpop.f32.mrb[0].mxu0
      %v3173 = vadd.f32 %v2980, %v3172
      %v3174 = vpop.f32.mrb[0].mxu0
      %v3175 = vadd.f32 %v2982, %v3174
      %v3176 = vpop.f32.mrb[0].mxu0
      %v3177 = vadd.f32 %v2984, %v3176
      %v3178 = vpop.f32.mrb[0].mxu0
      %v3179 = vadd.f32 %v2986, %v3178
      %3180 = vmatprep.mubr.bf16.mxu0 %v1157
      %3181 = vmatmul.mubr.bf16.gmra.mrb[0].mxu0 %v1156
      %v3182 = vpop.f32.mrb[0].mxu0
      %v3183 = vadd.f32 %v2990, %v3182
      %v3184 = vpop.f32.mrb[0].mxu0
      %v3185 = vadd.f32 %v2992, %v3184
      %v3186 = vpop.f32.mrb[0].mxu0
      %v3187 = vadd.f32 %v2994, %v3186
      %v3188 = vpop.f32.mrb[0].mxu0
      %v3189 = vadd.f32 %v2996, %v3188
      %3190 = vmatprep.mubr.bf16.mxu0 %v1168
      %3191 = vmatmul.mubr.bf16.gmra.mrb[0].mxu0 %v1167
      %v3192 = vpop.f32.mrb[0].mxu0
      %v3193 = vadd.f32 %v3000, %v3192
      %v3194 = vpop.f32.mrb[0].mxu0
      %v3195 = vadd.f32 %v3002, %v3194
      %v3196 = vpop.f32.mrb[0].mxu0
      %v3197 = vadd.f32 %v3004, %v3196
      %v3198 = vpop.f32.mrb[0].mxu0
      %v3199 = vadd.f32 %v3006, %v3198
      %3200 = vmatprep.mubr.bf16.mxu0 %v1179
      %3201 = vmatmul.mubr.bf16.gmra.mrb[0].mxu0 %v1178
      %v3202 = vpop.f32.mrb[0].mxu0
      %v3203 = vadd.f32 %v3010, %v3202
      %v3204 = vpop.f32.mrb[0].mxu0
      %v3205 = vadd.f32 %v3012, %v3204
      %v3206 = vpop.f32.mrb[0].mxu0
      %v3207 = vadd.f32 %v3014, %v3206
      %v3208 = vpop.f32.mrb[0].mxu0
      %v3209 = vadd.f32 %v3016, %v3208
      %3210 = vmatprep.mubr.bf16.mxu0 %v1190
      %3211 = vmatmul.mubr.bf16.gmra.mrb[0].mxu0 %v1189
      %v3212 = vpop.f32.mrb[0].mxu0
      %v3213 = vadd.f32 %v3020, %v3212
      %v3214 = vpop.f32.mrb[0].mxu0
      %v3215 = vadd.f32 %v3022, %v3214
      %v3216 = vpop.f32.mrb[0].mxu0
      %v3217 = vadd.f32 %v3024, %v3216
      %v3218 = vpop.f32.mrb[0].mxu0
      %v3219 = vadd.f32 %v3026, %v3218
      %3220 = vmatprep.mubr.bf16.mxu0 %v1201
      %3221 = vmatmul.mubr.bf16.gmra.mrb[0].mxu0 %v1200
      %v3222 = vpop.f32.mrb[0].mxu0
      %v3223 = vadd.f32 %v3030, %v3222
      %v3224 = vpop.f32.mrb[0].mxu0
      %v3225 = vadd.f32 %v3032, %v3224
      %v3226 = vpop.f32.mrb[0].mxu0
      %v3227 = vadd.f32 %v3034, %v3226
      %v3228 = vpop.f32.mrb[0].mxu0
      %v3229 = vadd.f32 %v3036, %v3228
      %3230 = vmatprep.mubr.bf16.mxu0 %v1212
      %3231 = vmatmul.mubr.bf16.gmra.mrb[0].mxu0 %v1211
      %v3232 = vpop.f32.mrb[0].mxu0
      %v3233 = vadd.f32 %v3040, %v3232
      %v3234 = vpop.f32.mrb[0].mxu0
      %v3235 = vadd.f32 %v3042, %v3234
      %v3236 = vpop.f32.mrb[0].mxu0
      %v3237 = vadd.f32 %v3044, %v3236
      %v3238 = vpop.f32.mrb[0].mxu0
      %v3239 = vadd.f32 %v3046, %v3238
      %3240 = vmatprep.mubr.bf16.mxu0 %v1223
      %3241 = vmatmul.mubr.bf16.gmra.mrb[0].mxu0 %v1222
      %v3242 = vpop.f32.mrb[0].mxu0
      %v3243 = vadd.f32 %v3050, %v3242
      %v3244 = vpop.f32.mrb[0].mxu0
      %v3245 = vadd.f32 %v3052, %v3244
      %v3246 = vpop.f32.mrb[0].mxu0
      %v3247 = vadd.f32 %v3054, %v3246
      %v3248 = vpop.f32.mrb[0].mxu0
      %v3249 = vadd.f32 %v3056, %v3248
      %3250 = vmatprep.mubr.bf16.mxu0 %v1234
      %3251 = vmatmul.mubr.bf16.gmra.mrb[0].mxu0 %v1233
      %v3252 = vpop.f32.mrb[0].mxu0
      %v3253 = vadd.f32 %v3060, %v3252
      %v3254 = vpop.f32.mrb[0].mxu0
      %v3255 = vadd.f32 %v3062, %v3254
      %v3256 = vpop.f32.mrb[0].mxu0
      %v3257 = vadd.f32 %v3064, %v3256
      %v3258 = vpop.f32.mrb[0].mxu0
      %v3259 = vadd.f32 %v3066, %v3258
      %3260 = vmatprep.mubr.bf16.mxu0 %v1245
      %3261 = vmatmul.mubr.bf16.gmra.mrb[0].mxu0 %v1244
      %v3262 = vpop.f32.mrb[0].mxu0
      %v3263 = vadd.f32 %v3070, %v3262
      %v3264 = vpop.f32.mrb[0].mxu0
      %v3265 = vadd.f32 %v3072, %v3264
      %v3266 = vpop.f32.mrb[0].mxu0
      %v3267 = vadd.f32 %v3074, %v3266
      %v3268 = vpop.f32.mrb[0].mxu0
      %v3269 = vadd.f32 %v3076, %v3268
      %3270 = vmatprep.mubr.bf16.mxu0 %v1256
      %3271 = vmatmul.mubr.bf16.gmra.mrb[0].mxu0 %v1255
      %v3272 = vpop.f32.mrb[0].mxu0
      %v3273 = vadd.f32 %v3080, %v3272
      %v3274 = vpop.f32.mrb[0].mxu0
      %v3275 = vadd.f32 %v3082, %v3274
      %v3276 = vpop.f32.mrb[0].mxu0
      %v3277 = vadd.f32 %v3084, %v3276
      %v3278 = vpop.f32.mrb[0].mxu0
      %v3279 = vadd.f32 %v3086, %v3278
      %3280 = vmatprep.mubr.bf16.mxu0 %v1267
      %3281 = vmatmul.mubr.bf16.gmra.mrb[0].mxu0 %v1266
      %v3282 = vpop.f32.mrb[0].mxu0
      %v3283 = vadd.f32 %v3090, %v3282
      %v3284 = vpop.f32.mrb[0].mxu0
      %v3285 = vadd.f32 %v3092, %v3284
      %v3286 = vpop.f32.mrb[0].mxu0
      %v3287 = vadd.f32 %v3094, %v3286
      %v3288 = vpop.f32.mrb[0].mxu0
      %v3289 = vadd.f32 %v3096, %v3288
      %3290 = vmatprep.mubr.bf16.mxu0 %v1278
      %3291 = vmatmul.mubr.bf16.gmra.mrb[0].mxu0 %v1277
      %v3292 = vpop.f32.mrb[0].mxu0
      %v3293 = vadd.f32 %v3100, %v3292
      %v3294 = vpop.f32.mrb[0].mxu0
      %v3295 = vadd.f32 %v3102, %v3294
      %v3296 = vpop.f32.mrb[0].mxu0
      %v3297 = vadd.f32 %v3104, %v3296
      %v3298 = vpop.f32.mrb[0].mxu0
      %v3299 = vadd.f32 %v3106, %v3298
      %3300 = vdwg.mxu0
      %3301 = vmatprep.subr.bf16.mxu0 %v2145
      %3302 = vmatpush1.bf16.msra.mxu0 %v2144
      %3303 = vmatprep.subr.bf16.mxu0 %v2147
      %3304 = vmatpush1.bf16.msra.mxu0 %v2146
      %3305 = vmatprep.subr.bf16.mxu0 %v2149
      %3306 = vmatpush1.bf16.msra.mxu0 %v2148
      %3307 = vmatprep.subr.bf16.mxu0 %v2151
      %3308 = vmatpush1.bf16.msra.mxu0 %v2150
      %3309 = vmatprep.subr.bf16.mxu0 %v2153
      %3310 = vmatpush1.bf16.msra.mxu0 %v2152
      %3311 = vmatprep.subr.bf16.mxu0 %v2155
      %3312 = vmatpush1.bf16.msra.mxu0 %v2154
      %3313 = vmatprep.subr.bf16.mxu0 %v2157
      %3314 = vmatpush1.bf16.msra.mxu0 %v2156
      %3315 = vmatprep.subr.bf16.mxu0 %v2159
      %3316 = vmatpush1.bf16.msra.mxu0 %v2158
      %3317 = vmatprep.subr.bf16.mxu0 0
      %3318 = vmatpush1.bf16.msra.mxu0 0
      %3319 = vmatprep.subr.bf16.mxu0 0
      %3320 = vmatpush1.bf16.msra.mxu0 0
      %3321 = vmatprep.subr.bf16.mxu0 0
      %3322 = vmatpush1.bf16.msra.mxu0 0
      %3323 = vmatprep.subr.bf16.mxu0 0
      %3324 = vmatpush1.bf16.msra.mxu0 0
      %3325 = vmatprep.subr.bf16.mxu0 0
      %3326 = vmatpush1.bf16.msra.mxu0 0
      %3327 = vmatprep.subr.bf16.mxu0 0
      %3328 = vmatpush1.bf16.msra.mxu0 0
      %3329 = vmatprep.subr.bf16.mxu0 0
      %3330 = vmatpush1.bf16.msra.mxu0 0
      %3331 = vmatprep.subr.bf16.mxu0 0
      %3332 = vmatpush1.bf16.msra.mxu0 0
      %3333 = vmatprep.mubr.bf16.mxu0 0
      %3334 = vmatmul.mubr.bf16.gmra.mrb[0].mxu0 %v1114
      %v3335 = vpop.f32.mrb[0].mxu0
      %v3336 = vadd.f32 %v3143, %v3335
      %v3337 = vpop.f32.mrb[0].mxu0
      %v3338 = vadd.f32 %v3145, %v3337
      %v3339 = vpop.f32.mrb[0].mxu0
      %v3340 = vadd.f32 %v3147, %v3339
      %v3341 = vpop.f32.mrb[0].mxu0
      %v3342 = vadd.f32 %v3149, %v3341
      %3343 = vmatprep.mubr.bf16.mxu0 0
      %3344 = vmatmul.mubr.bf16.gmra.mrb[0].mxu0 %v1125
      %v3345 = vpop.f32.mrb[0].mxu0
      %v3346 = vadd.f32 %v3153, %v3345
      %v3347 = vpop.f32.mrb[0].mxu0
      %v3348 = vadd.f32 %v3155, %v3347
      %v3349 = vpop.f32.mrb[0].mxu0
      %v3350 = vadd.f32 %v3157, %v3349
      %v3351 = vpop.f32.mrb[0].mxu0
      %v3352 = vadd.f32 %v3159, %v3351
      %3353 = vmatprep.mubr.bf16.mxu0 0
      %3354 = vmatmul.mubr.bf16.gmra.mrb[0].mxu0 %v1136
      %v3355 = vpop.f32.mrb[0].mxu0
      %v3356 = vadd.f32 %v3163, %v3355
      %v3357 = vpop.f32.mrb[0].mxu0
      %v3358 = vadd.f32 %v3165, %v3357
      %v3359 = vpop.f32.mrb[0].mxu0
      %v3360 = vadd.f32 %v3167, %v3359
      %v3361 = vpop.f32.mrb[0].mxu0
      %v3362 = vadd.f32 %v3169, %v3361
      %3363 = vmatprep.mubr.bf16.mxu0 0
      %3364 = vmatmul.mubr.bf16.gmra.mrb[0].mxu0 %v1147
      %v3365 = vpop.f32.mrb[0].mxu0
      %v3366 = vadd.f32 %v3173, %v3365
      %v3367 = vpop.f32.mrb[0].mxu0
      %v3368 = vadd.f32 %v3175, %v3367
      %v3369 = vpop.f32.mrb[0].mxu0
      %v3370 = vadd.f32 %v3177, %v3369
      %v3371 = vpop.f32.mrb[0].mxu0
      %v3372 = vadd.f32 %v3179, %v3371
      %3373 = vmatprep.mubr.bf16.mxu0 0
      %3374 = vmatmul.mubr.bf16.gmra.mrb[0].mxu0 %v1158
      %v3375 = vpop.f32.mrb[0].mxu0
      %v3376 = vadd.f32 %v3183, %v3375
      %v3377 = vpop.f32.mrb[0].mxu0
      %v3378 = vadd.f32 %v3185, %v3377
      %v3379 = vpop.f32.mrb[0].mxu0
      %v3380 = vadd.f32 %v3187, %v3379
      %v3381 = vpop.f32.mrb[0].mxu0
      %v3382 = vadd.f32 %v3189, %v3381
      %3383 = vmatprep.mubr.bf16.mxu0 0
      %3384 = vmatmul.mubr.bf16.gmra.mrb[0].mxu0 %v1169
      %v3385 = vpop.f32.mrb[0].mxu0
      %v3386 = vadd.f32 %v3193, %v3385
      %v3387 = vpop.f32.mrb[0].mxu0
      %v3388 = vadd.f32 %v3195, %v3387
      %v3389 = vpop.f32.mrb[0].mxu0
      %v3390 = vadd.f32 %v3197, %v3389
      %v3391 = vpop.f32.mrb[0].mxu0
      %v3392 = vadd.f32 %v3199, %v3391
      %3393 = vmatprep.mubr.bf16.mxu0 0
      %3394 = vmatmul.mubr.bf16.gmra.mrb[0].mxu0 %v1180
      %v3395 = vpop.f32.mrb[0].mxu0
      %v3396 = vadd.f32 %v3203, %v3395
      %v3397 = vpop.f32.mrb[0].mxu0
      %v3398 = vadd.f32 %v3205, %v3397
      %v3399 = vpop.f32.mrb[0].mxu0
      %v3400 = vadd.f32 %v3207, %v3399
      %v3401 = vpop.f32.mrb[0].mxu0
      %v3402 = vadd.f32 %v3209, %v3401
      %3403 = vmatprep.mubr.bf16.mxu0 0
      %3404 = vmatmul.mubr.bf16.gmra.mrb[0].mxu0 %v1191
      %v3405 = vpop.f32.mrb[0].mxu0
      %v3406 = vadd.f32 %v3213, %v3405
      %v3407 = vpop.f32.mrb[0].mxu0
      %v3408 = vadd.f32 %v3215, %v3407
      %v3409 = vpop.f32.mrb[0].mxu0
      %v3410 = vadd.f32 %v3217, %v3409
      %v3411 = vpop.f32.mrb[0].mxu0
      %v3412 = vadd.f32 %v3219, %v3411
      %3413 = vmatprep.mubr.bf16.mxu0 0
      %3414 = vmatmul.mubr.bf16.gmra.mrb[0].mxu0 %v1202
      %v3415 = vpop.f32.mrb[0].mxu0
      %v3416 = vadd.f32 %v3223, %v3415
      %v3417 = vpop.f32.mrb[0].mxu0
      %v3418 = vadd.f32 %v3225, %v3417
      %v3419 = vpop.f32.mrb[0].mxu0
      %v3420 = vadd.f32 %v3227, %v3419
      %v3421 = vpop.f32.mrb[0].mxu0
      %v3422 = vadd.f32 %v3229, %v3421
      %3423 = vmatprep.mubr.bf16.mxu0 0
      %3424 = vmatmul.mubr.bf16.gmra.mrb[0].mxu0 %v1213
      %v3425 = vpop.f32.mrb[0].mxu0
      %v3426 = vadd.f32 %v3233, %v3425
      %v3427 = vpop.f32.mrb[0].mxu0
      %v3428 = vadd.f32 %v3235, %v3427
      %v3429 = vpop.f32.mrb[0].mxu0
      %v3430 = vadd.f32 %v3237, %v3429
      %v3431 = vpop.f32.mrb[0].mxu0
      %v3432 = vadd.f32 %v3239, %v3431
      %3433 = vmatprep.mubr.bf16.mxu0 0
      %3434 = vmatmul.mubr.bf16.gmra.mrb[0].mxu0 %v1224
      %v3435 = vpop.f32.mrb[0].mxu0
      %v3436 = vadd.f32 %v3243, %v3435
      %v3437 = vpop.f32.mrb[0].mxu0
      %v3438 = vadd.f32 %v3245, %v3437
      %v3439 = vpop.f32.mrb[0].mxu0
      %v3440 = vadd.f32 %v3247, %v3439
      %v3441 = vpop.f32.mrb[0].mxu0
      %v3442 = vadd.f32 %v3249, %v3441
      %3443 = vmatprep.mubr.bf16.mxu0 0
      %3444 = vmatmul.mubr.bf16.gmra.mrb[0].mxu0 %v1235
      %v3445 = vpop.f32.mrb[0].mxu0
      %v3446 = vadd.f32 %v3253, %v3445
      %v3447 = vpop.f32.mrb[0].mxu0
      %v3448 = vadd.f32 %v3255, %v3447
      %v3449 = vpop.f32.mrb[0].mxu0
      %v3450 = vadd.f32 %v3257, %v3449
      %v3451 = vpop.f32.mrb[0].mxu0
      %v3452 = vadd.f32 %v3259, %v3451
      %3453 = vmatprep.mubr.bf16.mxu0 0
      %3454 = vmatmul.mubr.bf16.gmra.mrb[0].mxu0 %v1246
      %v3455 = vpop.f32.mrb[0].mxu0
      %v3456 = vadd.f32 %v3263, %v3455
      %v3457 = vpop.f32.mrb[0].mxu0
      %v3458 = vadd.f32 %v3265, %v3457
      %v3459 = vpop.f32.mrb[0].mxu0
      %v3460 = vadd.f32 %v3267, %v3459
      %v3461 = vpop.f32.mrb[0].mxu0
      %v3462 = vadd.f32 %v3269, %v3461
      %3463 = vmatprep.mubr.bf16.mxu0 0
      %3464 = vmatmul.mubr.bf16.gmra.mrb[0].mxu0 %v1257
      %v3465 = vpop.f32.mrb[0].mxu0
      %v3466 = vadd.f32 %v3273, %v3465
      %v3467 = vpop.f32.mrb[0].mxu0
      %v3468 = vadd.f32 %v3275, %v3467
      %v3469 = vpop.f32.mrb[0].mxu0
      %v3470 = vadd.f32 %v3277, %v3469
      %v3471 = vpop.f32.mrb[0].mxu0
      %v3472 = vadd.f32 %v3279, %v3471
      %3473 = vmatprep.mubr.bf16.mxu0 0
      %3474 = vmatmul.mubr.bf16.gmra.mrb[0].mxu0 %v1268
      %v3475 = vpop.f32.mrb[0].mxu0
      %v3476 = vadd.f32 %v3283, %v3475
      %v3477 = vpop.f32.mrb[0].mxu0
      %v3478 = vadd.f32 %v3285, %v3477
      %v3479 = vpop.f32.mrb[0].mxu0
      %v3480 = vadd.f32 %v3287, %v3479
      %v3481 = vpop.f32.mrb[0].mxu0
      %v3482 = vadd.f32 %v3289, %v3481
      %3483 = vmatprep.mubr.bf16.mxu0 0
      %3484 = vmatmul.mubr.bf16.gmra.mrb[0].mxu0 %v1279
      %v3485 = vpop.f32.mrb[0].mxu0
      %v3486 = vadd.f32 %v3293, %v3485
      %v3487 = vpop.f32.mrb[0].mxu0
      %v3488 = vadd.f32 %v3295, %v3487
      %v3489 = vpop.f32.mrb[0].mxu0
      %v3490 = vadd.f32 %v3297, %v3489
      %v3491 = vpop.f32.mrb[0].mxu0
      %v3492 = vadd.f32 %v3299, %v3491
      %3493 = vdwg.mxu0
      %v3494 = vmax.f32 %v3336, 0.0
      %v3495 = vmax.f32 %v3338, 0.0
      %v3496 = vmax.f32 %v3340, 0.0
      %v3497 = vmax.f32 %v3342, 0.0
      %v3498 = vmax.f32 %v3346, 0.0
      %v3499 = vmax.f32 %v3348, 0.0
      %v3500 = vmax.f32 %v3350, 0.0
      %v3501 = vmax.f32 %v3352, 0.0
      %v3502 = vmax.f32 %v3356, 0.0
      %v3503 = vmax.f32 %v3358, 0.0
      %v3504 = vmax.f32 %v3360, 0.0
      %v3505 = vmax.f32 %v3362, 0.0
      %v3506 = vmax.f32 %v3366, 0.0
      %v3507 = vmax.f32 %v3368, 0.0
      %v3508 = vmax.f32 %v3370, 0.0
      %v3509 = vmax.f32 %v3372, 0.0
      %v3510 = vmax.f32 %v3376, 0.0
      %v3511 = vmax.f32 %v3378, 0.0
      %v3512 = vmax.f32 %v3380, 0.0
      %v3513 = vmax.f32 %v3382, 0.0
      %v3514 = vmax.f32 %v3386, 0.0
      %v3515 = vmax.f32 %v3388, 0.0
      %v3516 = vmax.f32 %v3390, 0.0
      %v3517 = vmax.f32 %v3392, 0.0
      %v3518 = vmax.f32 %v3396, 0.0
      %v3519 = vmax.f32 %v3398, 0.0
      %v3520 = vmax.f32 %v3400, 0.0
      %v3521 = vmax.f32 %v3402, 0.0
      %v3522 = vmax.f32 %v3406, 0.0
      %v3523 = vmax.f32 %v3408, 0.0
      %v3524 = vmax.f32 %v3410, 0.0
      %v3525 = vmax.f32 %v3412, 0.0
      %v3526 = vmax.f32 %v3416, 0.0
      %v3527 = vmax.f32 %v3418, 0.0
      %v3528 = vmax.f32 %v3420, 0.0
      %v3529 = vmax.f32 %v3422, 0.0
      %v3530 = vmax.f32 %v3426, 0.0
      %v3531 = vmax.f32 %v3428, 0.0
      %v3532 = vmax.f32 %v3430, 0.0
      %v3533 = vmax.f32 %v3432, 0.0
      %v3534 = vmax.f32 %v3436, 0.0
      %v3535 = vmax.f32 %v3438, 0.0
      %v3536 = vmax.f32 %v3440, 0.0
      %v3537 = vmax.f32 %v3442, 0.0
      %v3538 = vmax.f32 %v3446, 0.0
      %v3539 = vmax.f32 %v3448, 0.0
      %v3540 = vmax.f32 %v3450, 0.0
      %v3541 = vmax.f32 %v3452, 0.0
      %v3542 = vmax.f32 %v3456, 0.0
      %v3543 = vmax.f32 %v3458, 0.0
      %v3544 = vmax.f32 %v3460, 0.0
      %v3545 = vmax.f32 %v3462, 0.0
      %v3546 = vmax.f32 %v3466, 0.0
      %v3547 = vmax.f32 %v3468, 0.0
      %v3548 = vmax.f32 %v3470, 0.0
      %v3549 = vmax.f32 %v3472, 0.0
      %v3550 = vmax.f32 %v3476, 0.0
      %v3551 = vmax.f32 %v3478, 0.0
      %v3552 = vmax.f32 %v3480, 0.0
      %v3553 = vmax.f32 %v3482, 0.0
      %v3554 = vmax.f32 %v3486, 0.0
      %v3555 = vmax.f32 %v3488, 0.0
      %v3556 = vmax.f32 %v3490, 0.0
      %v3557 = vmax.f32 %v3492, 0.0
      %v3558 = vpack.c.bf16 %v3496, %v3494
      %v3559 = vpack.c.bf16 %v3497, %v3495
      %v3560 = vpack.c.bf16 %v3500, %v3498
      %v3561 = vpack.c.bf16 %v3501, %v3499
      %v3562 = vpack.c.bf16 %v3504, %v3502
      %v3563 = vpack.c.bf16 %v3505, %v3503
      %v3564 = vpack.c.bf16 %v3508, %v3506
      %v3565 = vpack.c.bf16 %v3509, %v3507
      %v3566 = vpack.c.bf16 %v3512, %v3510
      %v3567 = vpack.c.bf16 %v3513, %v3511
      %v3568 = vpack.c.bf16 %v3516, %v3514
      %v3569 = vpack.c.bf16 %v3517, %v3515
      %v3570 = vpack.c.bf16 %v3520, %v3518
      %v3571 = vpack.c.bf16 %v3521, %v3519
      %v3572 = vpack.c.bf16 %v3524, %v3522
      %v3573 = vpack.c.bf16 %v3525, %v3523
      %v3574 = vpack.c.bf16 %v3528, %v3526
      %v3575 = vpack.c.bf16 %v3529, %v3527
      %v3576 = vpack.c.bf16 %v3532, %v3530
      %v3577 = vpack.c.bf16 %v3533, %v3531
      %v3578 = vpack.c.bf16 %v3536, %v3534
      %v3579 = vpack.c.bf16 %v3537, %v3535
      %v3580 = vpack.c.bf16 %v3540, %v3538
      %v3581 = vpack.c.bf16 %v3541, %v3539
      %v3582 = vpack.c.bf16 %v3544, %v3542
      %v3583 = vpack.c.bf16 %v3545, %v3543
      %v3584 = vpack.c.bf16 %v3548, %v3546
      %v3585 = vpack.c.bf16 %v3549, %v3547
      %v3586 = vpack.c.bf16 %v3552, %v3550
      %v3587 = vpack.c.bf16 %v3553, %v3551
      %v3588 = vpack.c.bf16 %v3556, %v3554
      %v3589 = vpack.c.bf16 %v3557, %v3555
      %v3622 = vunpack.c.l.b16 %v3558
      %v3623 = vunpack.c.l.b16 %v3559
      %v3624 = vunpack.c.h.b16 %v3558
      %v3625 = vunpack.c.h.b16 %v3559
      %v3626 = vunpack.c.l.b16 %v3560
      %v3627 = vunpack.c.l.b16 %v3561
      %v3628 = vunpack.c.h.b16 %v3560
      %v3629 = vunpack.c.h.b16 %v3561
      %v3630 = vunpack.c.l.b16 %v3562
      %v3631 = vunpack.c.l.b16 %v3563
      %v3632 = vunpack.c.h.b16 %v3562
      %v3633 = vunpack.c.h.b16 %v3563
      %v3634 = vunpack.c.l.b16 %v3564
      %v3635 = vunpack.c.l.b16 %v3565
      %v3636 = vunpack.c.h.b16 %v3564
      %v3637 = vunpack.c.h.b16 %v3565
      %v3638 = vunpack.c.l.b16 %v3566
      %v3639 = vunpack.c.l.b16 %v3567
      %v3640 = vunpack.c.h.b16 %v3566
      %v3641 = vunpack.c.h.b16 %v3567
      %v3642 = vunpack.c.l.b16 %v3568
      %v3643 = vunpack.c.l.b16 %v3569
      %v3644 = vunpack.c.h.b16 %v3568
      %v3645 = vunpack.c.h.b16 %v3569
      %v3646 = vunpack.c.l.b16 %v3570
      %v3647 = vunpack.c.l.b16 %v3571
      %v3648 = vunpack.c.h.b16 %v3570
      %v3649 = vunpack.c.h.b16 %v3571
      %v3650 = vunpack.c.l.b16 %v3572
      %v3651 = vunpack.c.l.b16 %v3573
      %v3652 = vunpack.c.h.b16 %v3572
      %v3653 = vunpack.c.h.b16 %v3573
      %v3654 = vunpack.c.l.b16 %v3574
      %v3655 = vunpack.c.l.b16 %v3575
      %v3656 = vunpack.c.h.b16 %v3574
      %v3657 = vunpack.c.h.b16 %v3575
      %v3658 = vunpack.c.l.b16 %v3576
      %v3659 = vunpack.c.l.b16 %v3577
      %v3660 = vunpack.c.h.b16 %v3576
      %v3661 = vunpack.c.h.b16 %v3577
      %v3662 = vunpack.c.l.b16 %v3578
      %v3663 = vunpack.c.l.b16 %v3579
      %v3664 = vunpack.c.h.b16 %v3578
      %v3665 = vunpack.c.h.b16 %v3579
      %v3666 = vunpack.c.l.b16 %v3580
      %v3667 = vunpack.c.l.b16 %v3581
      %v3668 = vunpack.c.h.b16 %v3580
      %v3669 = vunpack.c.h.b16 %v3581
      %v3670 = vunpack.c.l.b16 %v3582
      %v3671 = vunpack.c.l.b16 %v3583
      %v3672 = vunpack.c.h.b16 %v3582
      %v3673 = vunpack.c.h.b16 %v3583
      %v3674 = vunpack.c.l.b16 %v3584
      %v3675 = vunpack.c.l.b16 %v3585
      %v3676 = vunpack.c.h.b16 %v3584
      %v3677 = vunpack.c.h.b16 %v3585
      %v3678 = vunpack.c.l.b16 %v3586
      %v3679 = vunpack.c.l.b16 %v3587
      %v3680 = vunpack.c.h.b16 %v3586
      %v3681 = vunpack.c.h.b16 %v3587
      %v3682 = vunpack.c.l.b16 %v3588
      %v3683 = vunpack.c.l.b16 %v3589
      %v3684 = vunpack.c.h.b16 %v3588
      %v3685 = vunpack.c.h.b16 %v3589
      %v3686 = vpack.c.b16 %v3623, %v3622
      %v3687 = vpack.c.b16 %v3625, %v3624
      %v3688 = vpack.c.b16 %v3627, %v3626
      %v3689 = vpack.c.b16 %v3629, %v3628
      %v3690 = vpack.c.b16 %v3631, %v3630
      %v3691 = vpack.c.b16 %v3633, %v3632
      %v3692 = vpack.c.b16 %v3635, %v3634
      %v3693 = vpack.c.b16 %v3637, %v3636
      %v3694 = vpack.c.b16 %v3639, %v3638
      %v3695 = vpack.c.b16 %v3641, %v3640
      %v3696 = vpack.c.b16 %v3643, %v3642
      %v3697 = vpack.c.b16 %v3645, %v3644
      %v3698 = vpack.c.b16 %v3647, %v3646
      %v3699 = vpack.c.b16 %v3649, %v3648
      %v3700 = vpack.c.b16 %v3651, %v3650
      %v3701 = vpack.c.b16 %v3653, %v3652
      %v3702 = vpack.c.b16 %v3655, %v3654
      %v3703 = vpack.c.b16 %v3657, %v3656
      %v3704 = vpack.c.b16 %v3659, %v3658
      %v3705 = vpack.c.b16 %v3661, %v3660
      %v3706 = vpack.c.b16 %v3663, %v3662
      %v3707 = vpack.c.b16 %v3665, %v3664
      %v3708 = vpack.c.b16 %v3667, %v3666
      %v3709 = vpack.c.b16 %v3669, %v3668
      %v3710 = vpack.c.b16 %v3671, %v3670
      %v3711 = vpack.c.b16 %v3673, %v3672
      %v3712 = vpack.c.b16 %v3675, %v3674
      %v3713 = vpack.c.b16 %v3677, %v3676
      %v3714 = vpack.c.b16 %v3679, %v3678
      %v3715 = vpack.c.b16 %v3681, %v3680
      %v3716 = vpack.c.b16 %v3683, %v3682
      %v3717 = vpack.c.b16 %v3685, %v3684
      %vm3750 = vcmask 1043456
      %vm3751 = vcmask 523268
      %vm3752 = vmor %vm3751, %vm3750
      %3753 = vst.msk [vmem:[%s177] sm:$0xff] %vm3752, %v3686
      %3754 = vst.msk [vmem:[%s177 + $0x8] sm:$0xff] %vm3752, %v3687
      %3755 = vst.msk [vmem:[%s177 + $0x10] sm:$0xff] %vm3752, %v3688
      %3756 = vst.msk [vmem:[%s177 + $0x18] sm:$0xff] %vm3752, %v3689
      %3757 = vst.msk [vmem:[%s177 + $0x20] sm:$0xff] %vm3752, %v3690
      %3758 = vst.msk [vmem:[%s177 + $0x28] sm:$0xff] %vm3752, %v3691
      %3759 = vst.msk [vmem:[%s177 + $0x30] sm:$0xff] %vm3752, %v3692
      %3760 = vst.msk [vmem:[%s177 + $0x38] sm:$0xff] %vm3752, %v3693
      %3761 = vst.msk [vmem:[%s177 + $0x40] sm:$0xff] %vm3752, %v3694
      %3762 = vst.msk [vmem:[%s177 + $0x48] sm:$0xff] %vm3752, %v3695
      %3763 = vst.msk [vmem:[%s177 + $0x50] sm:$0xff] %vm3752, %v3696
      %3764 = vst.msk [vmem:[%s177 + $0x58] sm:$0xff] %vm3752, %v3697
      %3765 = vst.msk [vmem:[%s177 + $0x60] sm:$0xff] %vm3752, %v3698
      %3766 = vst.msk [vmem:[%s177 + $0x68] sm:$0xff] %vm3752, %v3699
      %3767 = vst.msk [vmem:[%s177 + $0x70] sm:$0xff] %vm3752, %v3700
      %3768 = vst.msk [vmem:[%s177 + $0x78] sm:$0xff] %vm3752, %v3701
      %3769 = vst.msk [vmem:[%s177 + $0x80] sm:$0xff] %vm3752, %v3702
      %3770 = vst.msk [vmem:[%s177 + $0x88] sm:$0xff] %vm3752, %v3703
      %3771 = vst.msk [vmem:[%s177 + $0x90] sm:$0xff] %vm3752, %v3704
      %3772 = vst.msk [vmem:[%s177 + $0x98] sm:$0xff] %vm3752, %v3705
      %3773 = vst.msk [vmem:[%s177 + $0xa0] sm:$0xff] %vm3752, %v3706
      %3774 = vst.msk [vmem:[%s177 + $0xa8] sm:$0xff] %vm3752, %v3707
      %3775 = vst.msk [vmem:[%s177 + $0xb0] sm:$0xff] %vm3752, %v3708
      %3776 = vst.msk [vmem:[%s177 + $0xb8] sm:$0xff] %vm3752, %v3709
      %3777 = vst.msk [vmem:[%s177 + $0xc0] sm:$0xff] %vm3752, %v3710
      %3778 = vst.msk [vmem:[%s177 + $0xc8] sm:$0xff] %vm3752, %v3711
      %3779 = vst.msk [vmem:[%s177 + $0xd0] sm:$0xff] %vm3752, %v3712
      %3780 = vst.msk [vmem:[%s177 + $0xd8] sm:$0xff] %vm3752, %v3713
      %3781 = vst.msk [vmem:[%s177 + $0xe0] sm:$0xff] %vm3752, %v3714
      %3782 = vst.msk [vmem:[%s177 + $0xe8] sm:$0xff] %vm3752, %v3715
      %3783 = vst.msk [vmem:[%s177 + $0xf0] sm:$0xff] %vm3752, %v3716
      %3784 = vst.msk [vmem:[%s177 + $0xf8] sm:$0xff] %vm3752, %v3717
      %s3785 = smul.u32 32, %s14
      %p3786 = scmp.lt.s32.totalorder %s3785, 63
      %s3787 = scalar_select %p3786, %s3785, 63
      %s3788 = smul.addr %s3787, 2
      %s3789 = smul.addr %s3788, 4
      %s3790 = scalar_lea.vmem %s3, %s3789
      // Predicated region
      $region33: #{inception_d_forward.7} parent=31 // pred_check
        %p3791 = pneg %p100
      $region34: #{inception_d_forward.7} parent=31 // pred_check_branch
        %3793 = sbr.rel (%p3791) target = $region36
      $region35: #{inception_d_forward.7} parent=31 // pred_region
        %s3794 = smul.u32 32, %s14
      $region36: #{inception_d_forward.7} parent=31 // pred_fallthru
        _
    $region32: #{inception_d_forward.7} parent=5 // pred_fallthru
      _
    %p3795 = scmp.le.s32.totalorder 2, %s9
    // Predicated region
    $region37: #{inception_d_forward.7} parent=5 // pred_check
      %p3796 = pneg %p3795
    $region38: #{inception_d_forward.7} parent=5 // pred_check_branch
      %3798 = sbr.rel (%p3796) target = $region40
    $region39: #{inception_d_forward.7} parent=5 // pred_region
      %s3799 = ssub.s32 %s9, 2
      // Predicated region
      $region41: #{inception_d_forward.7} parent=39 // pred_check
        %p3800 = pneg %p106
      $region42: #{inception_d_forward.7} parent=39 // pred_check_branch
        %3802 = sbr.rel (%p3800) target = $region44
      $region43: #{inception_d_forward.7} parent=39 // pred_region
        %s3803 = smul.u32 32, %s15
        %p3804 = scmp.lt.s32.totalorder %s3803, 63
        %s3805 = scalar_select %p3804, %s3803, 63
        %s3806 = smul.addr %s3805, 2
        %s3807 = smul.addr %s3806, 4
        %s3808 = scalar_lea.vmem %s3, %s3807
      $region44: #{inception_d_forward.7} parent=39 // pred_fallthru
        _
    $region40: #{inception_d_forward.7} parent=5 // pred_fallthru
      _
  $region6: #{inception_d_forward.7} parent=0 // loop_footer
    %s13 = sadd.s32 1, %s9
  $region7: #{inception_d_forward.7} parent=0 // loop_footer_branch
    %8 = sbr.rel target = $region3
  $region8: #{inception_d_forward.7} parent=0 // loop_exit
    _

// kernel: inception_d_forward.9
$region0: #{inception_d_forward.9}
  #allocation0 [shape = 'u32[]', space=smem, size = 0x4, offset = 0x4, fixed_abs, tag = 'smem constant byte address 0x4 - core index']
  #allocation1 [shape = 'u32[144,128]{1,0:T(1,128)}', space=vmem, size = 0x12000, scoped, tag = 'internal scratch']
  %s0 = inlined_call_operand.vmem [shape: bf16[128,1792], index: 0, kind: input, shape index: {}]
  %s1 = inlined_call_operand.vmem [shape: bf16[1792,192], index: 1, kind: input, shape index: {}]
  %s2 = inlined_call_operand.vmem [shape: f32[1,192], index: 2, kind: input, shape index: {}]
  %s3 = inlined_call_operand.vmem [shape: f32[128,192], index: 3, kind: output, shape index: {}]
  %s4 = sld [smem:[#allocation0]]
  $region22: #{inception_d_forward.9} parent=0
    _
  %s6 = ssub.s32 1, %s4
  %s7 = scalar_select 0, %s6, %s4
  // Predicated region
  $region2: #{inception_d_forward.9} parent=0 // pred_check
    _
  $region3: #{inception_d_forward.9} parent=0 // pred_check_branch
    %9 = sbr.rel (0) target = $region5
  $region4: #{inception_d_forward.9} parent=0 // pred_region
    _
  $region5: #{inception_d_forward.9} parent=0 // pred_fallthru
    _
  // Predicated region
  $region6: #{inception_d_forward.9} parent=0 // pred_check
    _
  $region7: #{inception_d_forward.9} parent=0 // pred_check_branch
    %11 = sbr.rel (0) target = $region9
  $region8: #{inception_d_forward.9} parent=0 // pred_region
    _
  $region9: #{inception_d_forward.9} parent=0 // pred_fallthru
    _
  // Predicated region
  $region10: #{inception_d_forward.9} parent=0 // pred_check
    _
  $region11: #{inception_d_forward.9} parent=0 // pred_check_branch
    %13 = sbr.rel (0) target = $region13
  $region12: #{inception_d_forward.9} parent=0 // pred_region
    _
  $region13: #{inception_d_forward.9} parent=0 // pred_fallthru
    _
  %v14 = vld [vmem:[%s0] sm:$0xff]
  %v15 = vld [vmem:[%s0 + $0x8] sm:$0xff]
  %v16 = vld [vmem:[%s0 + $0x10] sm:$0xff]
  %v17 = vld [vmem:[%s0 + $0x18] sm:$0xff]
  %v18 = vld [vmem:[%s0 + $0x20] sm:$0xff]
  %v19 = vld [vmem:[%s0 + $0x28] sm:$0xff]
  %v20 = vld [vmem:[%s0 + $0x30] sm:$0xff]
  %v21 = vld [vmem:[%s0 + $0x38] sm:$0xff]
  %v22 = vld [vmem:[%s0 + $0x40] sm:$0xff]
  %v23 = vld [vmem:[%s0 + $0x48] sm:$0xff]
  %v24 = vld [vmem:[%s0 + $0x50] sm:$0xff]
  %v25 = vld [vmem:[%s0 + $0x58] sm:$0xff]
  %v26 = vld [vmem:[%s0 + $0x60] sm:$0xff]
  %v27 = vld [vmem:[%s0 + $0x68] sm:$0xff]
  %v28 = vld [vmem:[%s0 + $0x70] sm:$0xff]
  %v29 = vld [vmem:[%s0 + $0x78] sm:$0xff]
  %v30 = vld [vmem:[%s0 + $0x80] sm:$0xff]
  %v31 = vld [vmem:[%s0 + $0x88] sm:$0xff]
  %v32 = vld [vmem:[%s0 + $0x90] sm:$0xff]
  %v33 = vld [vmem:[%s0 + $0x98] sm:$0xff]
  %v34 = vld [vmem:[%s0 + $0xa0] sm:$0xff]
  %v35 = vld [vmem:[%s0 + $0xa8] sm:$0xff]
  %v36 = vld [vmem:[%s0 + $0xb0] sm:$0xff]
  %v37 = vld [vmem:[%s0 + $0xb8] sm:$0xff]
  %v38 = vld [vmem:[%s0 + $0xc0] sm:$0xff]
  %v39 = vld [vmem:[%s0 + $0xc8] sm:$0xff]
  %v40 = vld [vmem:[%s0 + $0xd0] sm:$0xff]
  %v41 = vld [vmem:[%s0 + $0xd8] sm:$0xff]
  %v42 = vld [vmem:[%s0 + $0xe0] sm:$0xff]
  %v43 = vld [vmem:[%s0 + $0xe8] sm:$0xff]
  %v44 = vld [vmem:[%s0 + $0xf0] sm:$0xff]
  %v45 = vld [vmem:[%s0 + $0xf8] sm:$0xff]
  %v46 = vld [vmem:[%s0 + $0x100] sm:$0xff]
  %v47 = vld [vmem:[%s0 + $0x108] sm:$0xff]
  %v48 = vld [vmem:[%s0 + $0x110] sm:$0xff]
  %v49 = vld [vmem:[%s0 + $0x118] sm:$0xff]
  %v50 = vld [vmem:[%s0 + $0x120] sm:$0xff]
  %v51 = vld [vmem:[%s0 + $0x128] sm:$0xff]
  %v52 = vld [vmem:[%s0 + $0x130] sm:$0xff]
  %v53 = vld [vmem:[%s0 + $0x138] sm:$0xff]
  %v54 = vld [vmem:[%s0 + $0x140] sm:$0xff]
  %v55 = vld [vmem:[%s0 + $0x148] sm:$0xff]
  %v56 = vld [vmem:[%s0 + $0x150] sm:$0xff]
  %v57 = vld [vmem:[%s0 + $0x158] sm:$0xff]
  %v58 = vld [vmem:[%s0 + $0x160] sm:$0xff]
  %v59 = vld [vmem:[%s0 + $0x168] sm:$0xff]
  %v60 = vld [vmem:[%s0 + $0x170] sm:$0xff]
  %v61 = vld [vmem:[%s0 + $0x178] sm:$0xff]
  %v62 = vld [vmem:[%s0 + $0x180] sm:$0xff]
  %v63 = vld [vmem:[%s0 + $0x188] sm:$0xff]
  %v64 = vld [vmem:[%s0 + $0x190] sm:$0xff]
  %v65 = vld [vmem:[%s0 + $0x198] sm:$0xff]
  %v66 = vld [vmem:[%s0 + $0x1a0] sm:$0xff]
  %v67 = vld [vmem:[%s0 + $0x1a8] sm:$0xff]
  %v68 = vld [vmem:[%s0 + $0x1b0] sm:$0xff]
  %v69 = vld [vmem:[%s0 + $0x1b8] sm:$0xff]
  %v70 = vld [vmem:[%s0 + $0x1c0] sm:$0xff]
  %v71 = vld [vmem:[%s0 + $0x1c8] sm:$0xff]
  %v72 = vld [vmem:[%s0 + $0x1d0] sm:$0xff]
  %v73 = vld [vmem:[%s0 + $0x1d8] sm:$0xff]
  %v74 = vld [vmem:[%s0 + $0x1e0] sm:$0xff]
  %v75 = vld [vmem:[%s0 + $0x1e8] sm:$0xff]
  %v76 = vld [vmem:[%s0 + $0x1f0] sm:$0xff]
  %v77 = vld [vmem:[%s0 + $0x1f8] sm:$0xff]
  %v78 = vld [vmem:[%s0 + $0x200] sm:$0xff]
  %v79 = vld [vmem:[%s0 + $0x208] sm:$0xff]
  %v80 = vld [vmem:[%s0 + $0x210] sm:$0xff]
  %v81 = vld [vmem:[%s0 + $0x218] sm:$0xff]
  %v82 = vld [vmem:[%s0 + $0x220] sm:$0xff]
  %v83 = vld [vmem:[%s0 + $0x228] sm:$0xff]
  %v84 = vld [vmem:[%s0 + $0x230] sm:$0xff]
  %v85 = vld [vmem:[%s0 + $0x238] sm:$0xff]
  %v86 = vld [vmem:[%s0 + $0x240] sm:$0xff]
  %v87 = vld [vmem:[%s0 + $0x248] sm:$0xff]
  %v88 = vld [vmem:[%s0 + $0x250] sm:$0xff]
  %v89 = vld [vmem:[%s0 + $0x258] sm:$0xff]
  %v90 = vld [vmem:[%s0 + $0x260] sm:$0xff]
  %v91 = vld [vmem:[%s0 + $0x268] sm:$0xff]
  %v92 = vld [vmem:[%s0 + $0x270] sm:$0xff]
  %v93 = vld [vmem:[%s0 + $0x278] sm:$0xff]
  %v94 = vld [vmem:[%s0 + $0x280] sm:$0xff]
  %v95 = vld [vmem:[%s0 + $0x288] sm:$0xff]
  %v96 = vld [vmem:[%s0 + $0x290] sm:$0xff]
  %v97 = vld [vmem:[%s0 + $0x298] sm:$0xff]
  %v98 = vld [vmem:[%s0 + $0x2a0] sm:$0xff]
  %v99 = vld [vmem:[%s0 + $0x2a8] sm:$0xff]
  %v100 = vld [vmem:[%s0 + $0x2b0] sm:$0xff]
  %v101 = vld [vmem:[%s0 + $0x2b8] sm:$0xff]
  %v102 = vld [vmem:[%s0 + $0x2c0] sm:$0xff]
  %v103 = vld [vmem:[%s0 + $0x2c8] sm:$0xff]
  %v104 = vld [vmem:[%s0 + $0x2d0] sm:$0xff]
  %v105 = vld [vmem:[%s0 + $0x2d8] sm:$0xff]
  %v106 = vld [vmem:[%s0 + $0x2e0] sm:$0xff]
  %v107 = vld [vmem:[%s0 + $0x2e8] sm:$0xff]
  %v108 = vld [vmem:[%s0 + $0x2f0] sm:$0xff]
  %v109 = vld [vmem:[%s0 + $0x2f8] sm:$0xff]
  %v110 = vld [vmem:[%s0 + $0x300] sm:$0xff]
  %v111 = vld [vmem:[%s0 + $0x308] sm:$0xff]
  %v112 = vld [vmem:[%s0 + $0x310] sm:$0xff]
  %v113 = vld [vmem:[%s0 + $0x318] sm:$0xff]
  %v114 = vld [vmem:[%s0 + $0x320] sm:$0xff]
  %v115 = vld [vmem:[%s0 + $0x328] sm:$0xff]
  %v116 = vld [vmem:[%s0 + $0x330] sm:$0xff]
  %v117 = vld [vmem:[%s0 + $0x338] sm:$0xff]
  %v118 = vld [vmem:[%s0 + $0x340] sm:$0xff]
  %v119 = vld [vmem:[%s0 + $0x348] sm:$0xff]
  %v120 = vld [vmem:[%s0 + $0x350] sm:$0xff]
  %v121 = vld [vmem:[%s0 + $0x358] sm:$0xff]
  %v122 = vld [vmem:[%s0 + $0x360] sm:$0xff]
  %v123 = vld [vmem:[%s0 + $0x368] sm:$0xff]
  %v124 = vld [vmem:[%s0 + $0x370] sm:$0xff]
  %v125 = vld [vmem:[%s0 + $0x378] sm:$0xff]
  %v126 = vld [vmem:[%s1] sm:$0xff]
  %v127 = vld [vmem:[%s1 + $0x8] sm:$0xff]
  %v128 = vld [vmem:[%s1 + $0x10] sm:$0xff]
  %v129 = vld [vmem:[%s1 + $0x18] sm:$0xff]
  %v130 = vld [vmem:[%s1 + $0x20] sm:$0xff]
  %v131 = vld [vmem:[%s1 + $0x28] sm:$0xff]
  %v132 = vld [vmem:[%s1 + $0x30] sm:$0xff]
  %v133 = vld [vmem:[%s1 + $0x38] sm:$0xff]
  %v134 = vld [vmem:[%s1 + $0x40] sm:$0xff]
  %v135 = vld [vmem:[%s1 + $0x48] sm:$0xff]
  %v136 = vld [vmem:[%s1 + $0x50] sm:$0xff]
  %v137 = vld [vmem:[%s1 + $0x58] sm:$0xff]
  %v138 = vld [vmem:[%s1 + $0x60] sm:$0xff]
  %v139 = vld [vmem:[%s1 + $0x68] sm:$0xff]
  %v140 = vld [vmem:[%s1 + $0x70] sm:$0xff]
  %v141 = vld [vmem:[%s1 + $0x78] sm:$0xff]
  %v142 = vld [vmem:[%s1 + $0x80] sm:$0xff]
  %v143 = vld [vmem:[%s1 + $0x88] sm:$0xff]
  %v144 = vld [vmem:[%s1 + $0x90] sm:$0xff]
  %v145 = vld [vmem:[%s1 + $0x98] sm:$0xff]
  %v146 = vld [vmem:[%s1 + $0xa0] sm:$0xff]
  %v147 = vld [vmem:[%s1 + $0xa8] sm:$0xff]
  %v148 = vld [vmem:[%s1 + $0xb0] sm:$0xff]
  %v149 = vld [vmem:[%s1 + $0xb8] sm:$0xff]
  %v150 = vld [vmem:[%s1 + $0xc0] sm:$0xff]
  %v151 = vld [vmem:[%s1 + $0xc8] sm:$0xff]
  %v152 = vld [vmem:[%s1 + $0xd0] sm:$0xff]
  %v153 = vld [vmem:[%s1 + $0xd8] sm:$0xff]
  %v154 = vld [vmem:[%s1 + $0xe0] sm:$0xff]
  %v155 = vld [vmem:[%s1 + $0xe8] sm:$0xff]
  %v156 = vld [vmem:[%s1 + $0xf0] sm:$0xff]
  %v157 = vld [vmem:[%s1 + $0xf8] sm:$0xff]
  %v158 = vld [vmem:[%s1 + $0x100] sm:$0xff]
  %v159 = vld [vmem:[%s1 + $0x108] sm:$0xff]
  %v160 = vld [vmem:[%s1 + $0x110] sm:$0xff]
  %v161 = vld [vmem:[%s1 + $0x118] sm:$0xff]
  %v162 = vld [vmem:[%s1 + $0x120] sm:$0xff]
  %v163 = vld [vmem:[%s1 + $0x128] sm:$0xff]
  %v164 = vld [vmem:[%s1 + $0x130] sm:$0xff]
  %v165 = vld [vmem:[%s1 + $0x138] sm:$0xff]
  %v166 = vld [vmem:[%s1 + $0x140] sm:$0xff]
  %v167 = vld [vmem:[%s1 + $0x148] sm:$0xff]
  %v168 = vld [vmem:[%s1 + $0x150] sm:$0xff]
  %v169 = vld [vmem:[%s1 + $0x158] sm:$0xff]
  %v170 = vld [vmem:[%s1 + $0x160] sm:$0xff]
  %v171 = vld [vmem:[%s1 + $0x168] sm:$0xff]
  %v172 = vld [vmem:[%s1 + $0x170] sm:$0xff]
  %v173 = vld [vmem:[%s1 + $0x178] sm:$0xff]
  %v174 = vld [vmem:[%s1 + $0x180] sm:$0xff]
  %v175 = vld [vmem:[%s1 + $0x188] sm:$0xff]
  %v176 = vld [vmem:[%s1 + $0x190] sm:$0xff]
  %v177 = vld [vmem:[%s1 + $0x198] sm:$0xff]
  %v178 = vld [vmem:[%s1 + $0x1a0] sm:$0xff]
  %v179 = vld [vmem:[%s1 + $0x1a8] sm:$0xff]
  %v180 = vld [vmem:[%s1 + $0x1b0] sm:$0xff]
  %v181 = vld [vmem:[%s1 + $0x1b8] sm:$0xff]
  %v182 = vld [vmem:[%s1 + $0x1c0] sm:$0xff]
  %v183 = vld [vmem:[%s1 + $0x1c8] sm:$0xff]
  %v184 = vld [vmem:[%s1 + $0x1d0] sm:$0xff]
  %v185 = vld [vmem:[%s1 + $0x1d8] sm:$0xff]
  %v186 = vld [vmem:[%s1 + $0x1e0] sm:$0xff]
  %v187 = vld [vmem:[%s1 + $0x1e8] sm:$0xff]
  %v188 = vld [vmem:[%s1 + $0x1f0] sm:$0xff]
  %v189 = vld [vmem:[%s1 + $0x1f8] sm:$0xff]
  %v190 = vld [vmem:[%s1 + $0x200] sm:$0xff]
  %v191 = vld [vmem:[%s1 + $0x208] sm:$0xff]
  %v192 = vld [vmem:[%s1 + $0x210] sm:$0xff]
  %v193 = vld [vmem:[%s1 + $0x218] sm:$0xff]
  %v194 = vld [vmem:[%s1 + $0x220] sm:$0xff]
  %v195 = vld [vmem:[%s1 + $0x228] sm:$0xff]
  %v196 = vld [vmem:[%s1 + $0x230] sm:$0xff]
  %v197 = vld [vmem:[%s1 + $0x238] sm:$0xff]
  %v198 = vld [vmem:[%s1 + $0x240] sm:$0xff]
  %v199 = vld [vmem:[%s1 + $0x248] sm:$0xff]
  %v200 = vld [vmem:[%s1 + $0x250] sm:$0xff]
  %v201 = vld [vmem:[%s1 + $0x258] sm:$0xff]
  %v202 = vld [vmem:[%s1 + $0x260] sm:$0xff]
  %v203 = vld [vmem:[%s1 + $0x268] sm:$0xff]
  %v204 = vld [vmem:[%s1 + $0x270] sm:$0xff]
  %v205 = vld [vmem:[%s1 + $0x278] sm:$0xff]
  %v206 = vld [vmem:[%s1 + $0x280] sm:$0xff]
  %v207 = vld [vmem:[%s1 + $0x288] sm:$0xff]
  %v208 = vld [vmem:[%s1 + $0x290] sm:$0xff]
  %v209 = vld [vmem:[%s1 + $0x298] sm:$0xff]
  %v210 = vld [vmem:[%s1 + $0x2a0] sm:$0xff]
  %v211 = vld [vmem:[%s1 + $0x2a8] sm:$0xff]
  %v212 = vld [vmem:[%s1 + $0x2b0] sm:$0xff]
  %v213 = vld [vmem:[%s1 + $0x2b8] sm:$0xff]
  %v214 = vld [vmem:[%s1 + $0x2c0] sm:$0xff]
  %v215 = vld [vmem:[%s1 + $0x2c8] sm:$0xff]
  %v216 = vld [vmem:[%s1 + $0x2d0] sm:$0xff]
  %v217 = vld [vmem:[%s1 + $0x2d8] sm:$0xff]
  %v218 = vld [vmem:[%s1 + $0x2e0] sm:$0xff]
  %v219 = vld [vmem:[%s1 + $0x2e8] sm:$0xff]
  %v220 = vld [vmem:[%s1 + $0x2f0] sm:$0xff]
  %v221 = vld [vmem:[%s1 + $0x2f8] sm:$0xff]
  %v222 = vld [vmem:[%s1 + $0x300] sm:$0xff]
  %v223 = vld [vmem:[%s1 + $0x308] sm:$0xff]
  %v224 = vld [vmem:[%s1 + $0x310] sm:$0xff]
  %v225 = vld [vmem:[%s1 + $0x318] sm:$0xff]
  %v226 = vld [vmem:[%s1 + $0x320] sm:$0xff]
  %v227 = vld [vmem:[%s1 + $0x328] sm:$0xff]
  %v228 = vld [vmem:[%s1 + $0x330] sm:$0xff]
  %v229 = vld [vmem:[%s1 + $0x338] sm:$0xff]
  %v230 = vld [vmem:[%s1 + $0x340] sm:$0xff]
  %v231 = vld [vmem:[%s1 + $0x348] sm:$0xff]
  %v232 = vld [vmem:[%s1 + $0x350] sm:$0xff]
  %v233 = vld [vmem:[%s1 + $0x358] sm:$0xff]
  %v234 = vld [vmem:[%s1 + $0x360] sm:$0xff]
  %v235 = vld [vmem:[%s1 + $0x368] sm:$0xff]
  %v236 = vld [vmem:[%s1 + $0x370] sm:$0xff]
  %v237 = vld [vmem:[%s1 + $0x378] sm:$0xff]
  %v238 = vld [vmem:[%s1 + $0x380] sm:$0xff]
  %v239 = vld [vmem:[%s1 + $0x388] sm:$0xff]
  %v240 = vld [vmem:[%s1 + $0x390] sm:$0xff]
  %v241 = vld [vmem:[%s1 + $0x398] sm:$0xff]
  %v242 = vld [vmem:[%s1 + $0x3a0] sm:$0xff]
  %v243 = vld [vmem:[%s1 + $0x3a8] sm:$0xff]
  %v244 = vld [vmem:[%s1 + $0x3b0] sm:$0xff]
  %v245 = vld [vmem:[%s1 + $0x3b8] sm:$0xff]
  %v246 = vld [vmem:[%s1 + $0x3c0] sm:$0xff]
  %v247 = vld [vmem:[%s1 + $0x3c8] sm:$0xff]
  %v248 = vld [vmem:[%s1 + $0x3d0] sm:$0xff]
  %v249 = vld [vmem:[%s1 + $0x3d8] sm:$0xff]
  %v250 = vld [vmem:[%s1 + $0x3e0] sm:$0xff]
  %v251 = vld [vmem:[%s1 + $0x3e8] sm:$0xff]
  %v252 = vld [vmem:[%s1 + $0x3f0] sm:$0xff]
  %v253 = vld [vmem:[%s1 + $0x3f8] sm:$0xff]
  %v254 = vld [vmem:[%s1 + $0x400] sm:$0xff]
  %v255 = vld [vmem:[%s1 + $0x408] sm:$0xff]
  %v256 = vld [vmem:[%s1 + $0x410] sm:$0xff]
  %v257 = vld [vmem:[%s1 + $0x418] sm:$0xff]
  %v258 = vld [vmem:[%s1 + $0x420] sm:$0xff]
  %v259 = vld [vmem:[%s1 + $0x428] sm:$0xff]
  %v260 = vld [vmem:[%s1 + $0x430] sm:$0xff]
  %v261 = vld [vmem:[%s1 + $0x438] sm:$0xff]
  %v262 = vld [vmem:[%s1 + $0x440] sm:$0xff]
  %v263 = vld [vmem:[%s1 + $0x448] sm:$0xff]
  %v264 = vld [vmem:[%s1 + $0x450] sm:$0xff]
  %v265 = vld [vmem:[%s1 + $0x458] sm:$0xff]
  %v266 = vld [vmem:[%s1 + $0x460] sm:$0xff]
  %v267 = vld [vmem:[%s1 + $0x468] sm:$0xff]
  %v268 = vld [vmem:[%s1 + $0x470] sm:$0xff]
  %v269 = vld [vmem:[%s1 + $0x478] sm:$0xff]
  %v270 = vld [vmem:[%s1 + $0x480] sm:$0xff]
  %v271 = vld [vmem:[%s1 + $0x488] sm:$0xff]
  %v272 = vld [vmem:[%s1 + $0x490] sm:$0xff]
  %v273 = vld [vmem:[%s1 + $0x498] sm:$0xff]
  %v274 = vld [vmem:[%s1 + $0x4a0] sm:$0xff]
  %v275 = vld [vmem:[%s1 + $0x4a8] sm:$0xff]
  %v276 = vld [vmem:[%s1 + $0x4b0] sm:$0xff]
  %v277 = vld [vmem:[%s1 + $0x4b8] sm:$0xff]
  %v278 = vld [vmem:[%s1 + $0x4c0] sm:$0xff]
  %v279 = vld [vmem:[%s1 + $0x4c8] sm:$0xff]
  %v280 = vld [vmem:[%s1 + $0x4d0] sm:$0xff]
  %v281 = vld [vmem:[%s1 + $0x4d8] sm:$0xff]
  %v282 = vld [vmem:[%s1 + $0x4e0] sm:$0xff]
  %v283 = vld [vmem:[%s1 + $0x4e8] sm:$0xff]
  %v284 = vld [vmem:[%s1 + $0x4f0] sm:$0xff]
  %v285 = vld [vmem:[%s1 + $0x4f8] sm:$0xff]
  %v286 = vld [vmem:[%s1 + $0x500] sm:$0xff]
  %v287 = vld [vmem:[%s1 + $0x508] sm:$0xff]
  %v288 = vld [vmem:[%s1 + $0x510] sm:$0xff]
  %v289 = vld [vmem:[%s1 + $0x518] sm:$0xff]
  %v290 = vld [vmem:[%s1 + $0x520] sm:$0xff]
  %v291 = vld [vmem:[%s1 + $0x528] sm:$0xff]
  %v292 = vld [vmem:[%s1 + $0x530] sm:$0xff]
  %v293 = vld [vmem:[%s1 + $0x538] sm:$0xff]
  %v294 = vld [vmem:[%s1 + $0x540] sm:$0xff]
  %v295 = vld [vmem:[%s1 + $0x548] sm:$0xff]
  %v296 = vld [vmem:[%s1 + $0x550] sm:$0xff]
  %v297 = vld [vmem:[%s1 + $0x558] sm:$0xff]
  %v298 = vld [vmem:[%s1 + $0x560] sm:$0xff]
  %v299 = vld [vmem:[%s1 + $0x568] sm:$0xff]
  %v300 = vld [vmem:[%s1 + $0x570] sm:$0xff]
  %v301 = vld [vmem:[%s1 + $0x578] sm:$0xff]
  %v302 = vld [vmem:[%s1 + $0x580] sm:$0xff]
  %v303 = vld [vmem:[%s1 + $0x588] sm:$0xff]
  %v304 = vld [vmem:[%s1 + $0x590] sm:$0xff]
  %v305 = vld [vmem:[%s1 + $0x598] sm:$0xff]
  %v306 = vld [vmem:[%s1 + $0x5a0] sm:$0xff]
  %v307 = vld [vmem:[%s1 + $0x5a8] sm:$0xff]
  %v308 = vld [vmem:[%s1 + $0x5b0] sm:$0xff]
  %v309 = vld [vmem:[%s1 + $0x5b8] sm:$0xff]
  %v310 = vld [vmem:[%s1 + $0x5c0] sm:$0xff]
  %v311 = vld [vmem:[%s1 + $0x5c8] sm:$0xff]
  %v312 = vld [vmem:[%s1 + $0x5d0] sm:$0xff]
  %v313 = vld [vmem:[%s1 + $0x5d8] sm:$0xff]
  %v314 = vld [vmem:[%s1 + $0x5e0] sm:$0xff]
  %v315 = vld [vmem:[%s1 + $0x5e8] sm:$0xff]
  %v316 = vld [vmem:[%s1 + $0x5f0] sm:$0xff]
  %v317 = vld [vmem:[%s1 + $0x5f8] sm:$0xff]
  %v318 = vld [vmem:[%s1 + $0x600] sm:$0xff]
  %v319 = vld [vmem:[%s1 + $0x608] sm:$0xff]
  %v320 = vld [vmem:[%s1 + $0x610] sm:$0xff]
  %v321 = vld [vmem:[%s1 + $0x618] sm:$0xff]
  %v322 = vld [vmem:[%s1 + $0x620] sm:$0xff]
  %v323 = vld [vmem:[%s1 + $0x628] sm:$0xff]
  %v324 = vld [vmem:[%s1 + $0x630] sm:$0xff]
  %v325 = vld [vmem:[%s1 + $0x638] sm:$0xff]
  %v326 = vld [vmem:[%s1 + $0x640] sm:$0xff]
  %v327 = vld [vmem:[%s1 + $0x648] sm:$0xff]
  %v328 = vld [vmem:[%s1 + $0x650] sm:$0xff]
  %v329 = vld [vmem:[%s1 + $0x658] sm:$0xff]
  %v330 = vld [vmem:[%s1 + $0x660] sm:$0xff]
  %v331 = vld [vmem:[%s1 + $0x668] sm:$0xff]
  %v332 = vld [vmem:[%s1 + $0x670] sm:$0xff]
  %v333 = vld [vmem:[%s1 + $0x678] sm:$0xff]
  %v334 = vld [vmem:[%s1 + $0x680] sm:$0xff]
  %v335 = vld [vmem:[%s1 + $0x688] sm:$0xff]
  %v336 = vld [vmem:[%s1 + $0x690] sm:$0xff]
  %v337 = vld [vmem:[%s1 + $0x698] sm:$0xff]
  %v338 = vld [vmem:[%s1 + $0x6a0] sm:$0xff]
  %v339 = vld [vmem:[%s1 + $0x6a8] sm:$0xff]
  %v340 = vld [vmem:[%s1 + $0x6b0] sm:$0xff]
  %v341 = vld [vmem:[%s1 + $0x6b8] sm:$0xff]
  %v342 = vld [vmem:[%s1 + $0x6c0] sm:$0xff]
  %v343 = vld [vmem:[%s1 + $0x6c8] sm:$0xff]
  %v344 = vld [vmem:[%s1 + $0x6d0] sm:$0xff]
  %v345 = vld [vmem:[%s1 + $0x6d8] sm:$0xff]
  %v346 = vld [vmem:[%s1 + $0x6e0] sm:$0xff]
  %v347 = vld [vmem:[%s1 + $0x6e8] sm:$0xff]
  %v348 = vld [vmem:[%s1 + $0x6f0] sm:$0xff]
  %v349 = vld [vmem:[%s1 + $0x6f8] sm:$0xff]
  %v350 = vld [vmem:[%s2] sm:$0x3]
  %v352 = vlaneseq
  %v353 = vshrl.u32 %v352, 7
  %v354 = vsub.s32 0, %v353
  %v355 = vrot.slane %v350, %v354
  %v356 = vlaneseq
  %v357 = vshrl.u32 %v356, 7
  %v358 = vsub.s32 1, %v357
  %v359 = vrot.slane %v350, %v358
  %v474 = vunpack.c.l.b16 %v14
  %v475 = vunpack.c.h.b16 %v14
  %v476 = vunpack.c.l.b16 %v15
  %v477 = vunpack.c.h.b16 %v15
  %v478 = vunpack.c.l.b16 %v16
  %v479 = vunpack.c.h.b16 %v16
  %v480 = vunpack.c.l.b16 %v17
  %v481 = vunpack.c.h.b16 %v17
  %v482 = vunpack.c.l.b16 %v18
  %v483 = vunpack.c.h.b16 %v18
  %v484 = vunpack.c.l.b16 %v19
  %v485 = vunpack.c.h.b16 %v19
  %v486 = vunpack.c.l.b16 %v20
  %v487 = vunpack.c.h.b16 %v20
  %v488 = vunpack.c.l.b16 %v21
  %v489 = vunpack.c.h.b16 %v21
  %v490 = vunpack.c.l.b16 %v22
  %v491 = vunpack.c.h.b16 %v22
  %v492 = vunpack.c.l.b16 %v23
  %v493 = vunpack.c.h.b16 %v23
  %v494 = vunpack.c.l.b16 %v24
  %v495 = vunpack.c.h.b16 %v24
  %v496 = vunpack.c.l.b16 %v25
  %v497 = vunpack.c.h.b16 %v25
  %v498 = vunpack.c.l.b16 %v26
  %v499 = vunpack.c.h.b16 %v26
  %v500 = vunpack.c.l.b16 %v27
  %v501 = vunpack.c.h.b16 %v27
  %v502 = vunpack.c.l.b16 %v28
  %v503 = vunpack.c.h.b16 %v28
  %v504 = vunpack.c.l.b16 %v29
  %v505 = vunpack.c.h.b16 %v29
  %v506 = vunpack.c.l.b16 %v30
  %v507 = vunpack.c.h.b16 %v30
  %v508 = vunpack.c.l.b16 %v31
  %v509 = vunpack.c.h.b16 %v31
  %v510 = vunpack.c.l.b16 %v32
  %v511 = vunpack.c.h.b16 %v32
  %v512 = vunpack.c.l.b16 %v33
  %v513 = vunpack.c.h.b16 %v33
  %v514 = vunpack.c.l.b16 %v34
  %v515 = vunpack.c.h.b16 %v34
  %v516 = vunpack.c.l.b16 %v35
  %v517 = vunpack.c.h.b16 %v35
  %v518 = vunpack.c.l.b16 %v36
  %v519 = vunpack.c.h.b16 %v36
  %v520 = vunpack.c.l.b16 %v37
  %v521 = vunpack.c.h.b16 %v37
  %v522 = vunpack.c.l.b16 %v38
  %v523 = vunpack.c.h.b16 %v38
  %v524 = vunpack.c.l.b16 %v39
  %v525 = vunpack.c.h.b16 %v39
  %v526 = vunpack.c.l.b16 %v40
  %v527 = vunpack.c.h.b16 %v40
  %v528 = vunpack.c.l.b16 %v41
  %v529 = vunpack.c.h.b16 %v41
  %v530 = vunpack.c.l.b16 %v42
  %v531 = vunpack.c.h.b16 %v42
  %v532 = vunpack.c.l.b16 %v43
  %v533 = vunpack.c.h.b16 %v43
  %v534 = vunpack.c.l.b16 %v44
  %v535 = vunpack.c.h.b16 %v44
  %v536 = vunpack.c.l.b16 %v45
  %v537 = vunpack.c.h.b16 %v45
  %v538 = vunpack.c.l.b16 %v46
  %v539 = vunpack.c.h.b16 %v46
  %v540 = vunpack.c.l.b16 %v47
  %v541 = vunpack.c.h.b16 %v47
  %v542 = vunpack.c.l.b16 %v48
  %v543 = vunpack.c.h.b16 %v48
  %v544 = vunpack.c.l.b16 %v49
  %v545 = vunpack.c.h.b16 %v49
  %v546 = vunpack.c.l.b16 %v50
  %v547 = vunpack.c.h.b16 %v50
  %v548 = vunpack.c.l.b16 %v51
  %v549 = vunpack.c.h.b16 %v51
  %v550 = vunpack.c.l.b16 %v52
  %v551 = vunpack.c.h.b16 %v52
  %v552 = vunpack.c.l.b16 %v53
  %v553 = vunpack.c.h.b16 %v53
  %v554 = vunpack.c.l.b16 %v54
  %v555 = vunpack.c.h.b16 %v54
  %v556 = vunpack.c.l.b16 %v55
  %v557 = vunpack.c.h.b16 %v55
  %v558 = vunpack.c.l.b16 %v56
  %v559 = vunpack.c.h.b16 %v56
  %v560 = vunpack.c.l.b16 %v57
  %v561 = vunpack.c.h.b16 %v57
  %v562 = vunpack.c.l.b16 %v58
  %v563 = vunpack.c.h.b16 %v58
  %v564 = vunpack.c.l.b16 %v59
  %v565 = vunpack.c.h.b16 %v59
  %v566 = vunpack.c.l.b16 %v60
  %v567 = vunpack.c.h.b16 %v60
  %v568 = vunpack.c.l.b16 %v61
  %v569 = vunpack.c.h.b16 %v61
  %v570 = vunpack.c.l.b16 %v62
  %v571 = vunpack.c.h.b16 %v62
  %v572 = vunpack.c.l.b16 %v63
  %v573 = vunpack.c.h.b16 %v63
  %v574 = vunpack.c.l.b16 %v64
  %v575 = vunpack.c.h.b16 %v64
  %v576 = vunpack.c.l.b16 %v65
  %v577 = vunpack.c.h.b16 %v65
  %v578 = vunpack.c.l.b16 %v66
  %v579 = vunpack.c.h.b16 %v66
  %v580 = vunpack.c.l.b16 %v67
  %v581 = vunpack.c.h.b16 %v67
  %v582 = vunpack.c.l.b16 %v68
  %v583 = vunpack.c.h.b16 %v68
  %v584 = vunpack.c.l.b16 %v69
  %v585 = vunpack.c.h.b16 %v69
  %v586 = vunpack.c.l.b16 %v70
  %v587 = vunpack.c.h.b16 %v70
  %v588 = vunpack.c.l.b16 %v71
  %v589 = vunpack.c.h.b16 %v71
  %v590 = vunpack.c.l.b16 %v72
  %v591 = vunpack.c.h.b16 %v72
  %v592 = vunpack.c.l.b16 %v73
  %v593 = vunpack.c.h.b16 %v73
  %v594 = vunpack.c.l.b16 %v74
  %v595 = vunpack.c.h.b16 %v74
  %v596 = vunpack.c.l.b16 %v75
  %v597 = vunpack.c.h.b16 %v75
  %v598 = vunpack.c.l.b16 %v76
  %v599 = vunpack.c.h.b16 %v76
  %v600 = vunpack.c.l.b16 %v77
  %v601 = vunpack.c.h.b16 %v77
  %v602 = vunpack.c.l.b16 %v78
  %v603 = vunpack.c.h.b16 %v78
  %v604 = vunpack.c.l.b16 %v79
  %v605 = vunpack.c.h.b16 %v79
  %v606 = vunpack.c.l.b16 %v80
  %v607 = vunpack.c.h.b16 %v80
  %v608 = vunpack.c.l.b16 %v81
  %v609 = vunpack.c.h.b16 %v81
  %v610 = vunpack.c.l.b16 %v82
  %v611 = vunpack.c.h.b16 %v82
  %v612 = vunpack.c.l.b16 %v83
  %v613 = vunpack.c.h.b16 %v83
  %v614 = vunpack.c.l.b16 %v84
  %v615 = vunpack.c.h.b16 %v84
  %v616 = vunpack.c.l.b16 %v85
  %v617 = vunpack.c.h.b16 %v85
  %v618 = vunpack.c.l.b16 %v86
  %v619 = vunpack.c.h.b16 %v86
  %v620 = vunpack.c.l.b16 %v87
  %v621 = vunpack.c.h.b16 %v87
  %v622 = vunpack.c.l.b16 %v88
  %v623 = vunpack.c.h.b16 %v88
  %v624 = vunpack.c.l.b16 %v89
  %v625 = vunpack.c.h.b16 %v89
  %v626 = vunpack.c.l.b16 %v90
  %v627 = vunpack.c.h.b16 %v90
  %v628 = vunpack.c.l.b16 %v91
  %v629 = vunpack.c.h.b16 %v91
  %v630 = vunpack.c.l.b16 %v92
  %v631 = vunpack.c.h.b16 %v92
  %v632 = vunpack.c.l.b16 %v93
  %v633 = vunpack.c.h.b16 %v93
  %v634 = vunpack.c.l.b16 %v94
  %v635 = vunpack.c.h.b16 %v94
  %v636 = vunpack.c.l.b16 %v95
  %v637 = vunpack.c.h.b16 %v95
  %v638 = vunpack.c.l.b16 %v96
  %v639 = vunpack.c.h.b16 %v96
  %v640 = vunpack.c.l.b16 %v97
  %v641 = vunpack.c.h.b16 %v97
  %v642 = vunpack.c.l.b16 %v98
  %v643 = vunpack.c.h.b16 %v98
  %v644 = vunpack.c.l.b16 %v99
  %v645 = vunpack.c.h.b16 %v99
  %v646 = vunpack.c.l.b16 %v100
  %v647 = vunpack.c.h.b16 %v100
  %v648 = vunpack.c.l.b16 %v101
  %v649 = vunpack.c.h.b16 %v101
  %v650 = vunpack.c.l.b16 %v102
  %v651 = vunpack.c.h.b16 %v102
  %v652 = vunpack.c.l.b16 %v103
  %v653 = vunpack.c.h.b16 %v103
  %v654 = vunpack.c.l.b16 %v104
  %v655 = vunpack.c.h.b16 %v104
  %v656 = vunpack.c.l.b16 %v105
  %v657 = vunpack.c.h.b16 %v105
  %v658 = vunpack.c.l.b16 %v106
  %v659 = vunpack.c.h.b16 %v106
  %v660 = vunpack.c.l.b16 %v107
  %v661 = vunpack.c.h.b16 %v107
  %v662 = vunpack.c.l.b16 %v108
  %v663 = vunpack.c.h.b16 %v108
  %v664 = vunpack.c.l.b16 %v109
  %v665 = vunpack.c.h.b16 %v109
  %v666 = vunpack.c.l.b16 %v110
  %v667 = vunpack.c.h.b16 %v110
  %v668 = vunpack.c.l.b16 %v111
  %v669 = vunpack.c.h.b16 %v111
  %v670 = vunpack.c.l.b16 %v112
  %v671 = vunpack.c.h.b16 %v112
  %v672 = vunpack.c.l.b16 %v113
  %v673 = vunpack.c.h.b16 %v113
  %v674 = vunpack.c.l.b16 %v114
  %v675 = vunpack.c.h.b16 %v114
  %v676 = vunpack.c.l.b16 %v115
  %v677 = vunpack.c.h.b16 %v115
  %v678 = vunpack.c.l.b16 %v116
  %v679 = vunpack.c.h.b16 %v116
  %v680 = vunpack.c.l.b16 %v117
  %v681 = vunpack.c.h.b16 %v117
  %v682 = vunpack.c.l.b16 %v118
  %v683 = vunpack.c.h.b16 %v118
  %v684 = vunpack.c.l.b16 %v119
  %v685 = vunpack.c.h.b16 %v119
  %v686 = vunpack.c.l.b16 %v120
  %v687 = vunpack.c.h.b16 %v120
  %v688 = vunpack.c.l.b16 %v121
  %v689 = vunpack.c.h.b16 %v121
  %v690 = vunpack.c.l.b16 %v122
  %v691 = vunpack.c.h.b16 %v122
  %v692 = vunpack.c.l.b16 %v123
  %v693 = vunpack.c.h.b16 %v123
  %v694 = vunpack.c.l.b16 %v124
  %v695 = vunpack.c.h.b16 %v124
  %v696 = vunpack.c.l.b16 %v125
  %v697 = vunpack.c.h.b16 %v125
  %v698 = vpack.c.b16 %v488, %v474
  %v699 = vpack.c.b16 %v489, %v475
  %v700 = vpack.c.b16 %v490, %v476
  %v701 = vpack.c.b16 %v491, %v477
  %v702 = vpack.c.b16 %v492, %v478
  %v703 = vpack.c.b16 %v493, %v479
  %v704 = vpack.c.b16 %v494, %v480
  %v705 = vpack.c.b16 %v495, %v481
  %v706 = vpack.c.b16 %v496, %v482
  %v707 = vpack.c.b16 %v497, %v483
  %v708 = vpack.c.b16 %v498, %v484
  %v709 = vpack.c.b16 %v499, %v485
  %v710 = vpack.c.b16 %v500, %v486
  %v711 = vpack.c.b16 %v501, %v487
  %v712 = vpack.c.b16 %v516, %v502
  %v713 = vpack.c.b16 %v517, %v503
  %v714 = vpack.c.b16 %v518, %v504
  %v715 = vpack.c.b16 %v519, %v505
  %v716 = vpack.c.b16 %v520, %v506
  %v717 = vpack.c.b16 %v521, %v507
  %v718 = vpack.c.b16 %v522, %v508
  %v719 = vpack.c.b16 %v523, %v509
  %v720 = vpack.c.b16 %v524, %v510
  %v721 = vpack.c.b16 %v525, %v511
  %v722 = vpack.c.b16 %v526, %v512
  %v723 = vpack.c.b16 %v527, %v513
  %v724 = vpack.c.b16 %v528, %v514
  %v725 = vpack.c.b16 %v529, %v515
  %v726 = vpack.c.b16 %v544, %v530
  %v727 = vpack.c.b16 %v545, %v531
  %v728 = vpack.c.b16 %v546, %v532
  %v729 = vpack.c.b16 %v547, %v533
  %v730 = vpack.c.b16 %v548, %v534
  %v731 = vpack.c.b16 %v549, %v535
  %v732 = vpack.c.b16 %v550, %v536
  %v733 = vpack.c.b16 %v551, %v537
  %v734 = vpack.c.b16 %v552, %v538
  %v735 = vpack.c.b16 %v553, %v539
  %v736 = vpack.c.b16 %v554, %v540
  %v737 = vpack.c.b16 %v555, %v541
  %v738 = vpack.c.b16 %v556, %v542
  %v739 = vpack.c.b16 %v557, %v543
  %v740 = vpack.c.b16 %v572, %v558
  %v741 = vpack.c.b16 %v573, %v559
  %v742 = vpack.c.b16 %v574, %v560
  %v743 = vpack.c.b16 %v575, %v561
  %v744 = vpack.c.b16 %v576, %v562
  %v745 = vpack.c.b16 %v577, %v563
  %v746 = vpack.c.b16 %v578, %v564
  %v747 = vpack.c.b16 %v579, %v565
  %v748 = vpack.c.b16 %v580, %v566
  %v749 = vpack.c.b16 %v581, %v567
  %v750 = vpack.c.b16 %v582, %v568
  %v751 = vpack.c.b16 %v583, %v569
  %v752 = vpack.c.b16 %v584, %v570
  %v753 = vpack.c.b16 %v585, %v571
  %v754 = vpack.c.b16 %v600, %v586
  %v755 = vpack.c.b16 %v601, %v587
  %v756 = vpack.c.b16 %v602, %v588
  %v757 = vpack.c.b16 %v603, %v589
  %v758 = vpack.c.b16 %v604, %v590
  %v759 = vpack.c.b16 %v605, %v591
  %v760 = vpack.c.b16 %v606, %v592
  %v761 = vpack.c.b16 %v607, %v593
  %v762 = vpack.c.b16 %v608, %v594
  %v763 = vpack.c.b16 %v609, %v595
  %v764 = vpack.c.b16 %v610, %v596
  %v765 = vpack.c.b16 %v611, %v597
  %v766 = vpack.c.b16 %v612, %v598
  %v767 = vpack.c.b16 %v613, %v599
  %v768 = vpack.c.b16 %v628, %v614
  %v769 = vpack.c.b16 %v629, %v615
  %v770 = vpack.c.b16 %v630, %v616
  %v771 = vpack.c.b16 %v631, %v617
  %v772 = vpack.c.b16 %v632, %v618
  %v773 = vpack.c.b16 %v633, %v619
  %v774 = vpack.c.b16 %v634, %v620
  %v775 = vpack.c.b16 %v635, %v621
  %v776 = vpack.c.b16 %v636, %v622
  %v777 = vpack.c.b16 %v637, %v623
  %v778 = vpack.c.b16 %v638, %v624
  %v779 = vpack.c.b16 %v639, %v625
  %v780 = vpack.c.b16 %v640, %v626
  %v781 = vpack.c.b16 %v641, %v627
  %v782 = vpack.c.b16 %v656, %v642
  %v783 = vpack.c.b16 %v657, %v643
  %v784 = vpack.c.b16 %v658, %v644
  %v785 = vpack.c.b16 %v659, %v645
  %v786 = vpack.c.b16 %v660, %v646
  %v787 = vpack.c.b16 %v661, %v647
  %v788 = vpack.c.b16 %v662, %v648
  %v789 = vpack.c.b16 %v663, %v649
  %v790 = vpack.c.b16 %v664, %v650
  %v791 = vpack.c.b16 %v665, %v651
  %v792 = vpack.c.b16 %v666, %v652
  %v793 = vpack.c.b16 %v667, %v653
  %v794 = vpack.c.b16 %v668, %v654
  %v795 = vpack.c.b16 %v669, %v655
  %v796 = vpack.c.b16 %v684, %v670
  %v797 = vpack.c.b16 %v685, %v671
  %v798 = vpack.c.b16 %v686, %v672
  %v799 = vpack.c.b16 %v687, %v673
  %v800 = vpack.c.b16 %v688, %v674
  %v801 = vpack.c.b16 %v689, %v675
  %v802 = vpack.c.b16 %v690, %v676
  %v803 = vpack.c.b16 %v691, %v677
  %v804 = vpack.c.b16 %v692, %v678
  %v805 = vpack.c.b16 %v693, %v679
  %v806 = vpack.c.b16 %v694, %v680
  %v807 = vpack.c.b16 %v695, %v681
  %v808 = vpack.c.b16 %v696, %v682
  %v809 = vpack.c.b16 %v697, %v683
  %v1146 = vunpack.c.l.b16 %v126
  %v1147 = vunpack.c.h.b16 %v126
  %v1148 = vunpack.c.l.b16 %v127
  %v1149 = vunpack.c.h.b16 %v127
  %v1150 = vunpack.c.l.b16 %v128
  %v1151 = vunpack.c.h.b16 %v128
  %v1152 = vunpack.c.l.b16 %v129
  %v1153 = vunpack.c.h.b16 %v129
  %v1154 = vunpack.c.l.b16 %v130
  %v1155 = vunpack.c.h.b16 %v130
  %v1156 = vunpack.c.l.b16 %v131
  %v1157 = vunpack.c.h.b16 %v131
  %v1158 = vunpack.c.l.b16 %v132
  %v1159 = vunpack.c.h.b16 %v132
  %v1160 = vunpack.c.l.b16 %v133
  %v1161 = vunpack.c.h.b16 %v133
  %v1162 = vunpack.c.l.b16 %v134
  %v1163 = vunpack.c.h.b16 %v134
  %v1164 = vunpack.c.l.b16 %v135
  %v1165 = vunpack.c.h.b16 %v135
  %v1166 = vunpack.c.l.b16 %v136
  %v1167 = vunpack.c.h.b16 %v136
  %v1168 = vunpack.c.l.b16 %v137
  %v1169 = vunpack.c.h.b16 %v137
  %v1170 = vunpack.c.l.b16 %v138
  %v1171 = vunpack.c.h.b16 %v138
  %v1172 = vunpack.c.l.b16 %v139
  %v1173 = vunpack.c.h.b16 %v139
  %v1174 = vunpack.c.l.b16 %v140
  %v1175 = vunpack.c.h.b16 %v140
  %v1176 = vunpack.c.l.b16 %v141
  %v1177 = vunpack.c.h.b16 %v141
  %v1178 = vunpack.c.l.b16 %v142
  %v1179 = vunpack.c.h.b16 %v142
  %v1180 = vunpack.c.l.b16 %v143
  %v1181 = vunpack.c.h.b16 %v143
  %v1182 = vunpack.c.l.b16 %v144
  %v1183 = vunpack.c.h.b16 %v144
  %v1184 = vunpack.c.l.b16 %v145
  %v1185 = vunpack.c.h.b16 %v145
  %v1186 = vunpack.c.l.b16 %v146
  %v1187 = vunpack.c.h.b16 %v146
  %v1188 = vunpack.c.l.b16 %v147
  %v1189 = vunpack.c.h.b16 %v147
  %v1190 = vunpack.c.l.b16 %v148
  %v1191 = vunpack.c.h.b16 %v148
  %v1192 = vunpack.c.l.b16 %v149
  %v1193 = vunpack.c.h.b16 %v149
  %v1194 = vunpack.c.l.b16 %v150
  %v1195 = vunpack.c.h.b16 %v150
  %v1196 = vunpack.c.l.b16 %v151
  %v1197 = vunpack.c.h.b16 %v151
  %v1198 = vunpack.c.l.b16 %v152
  %v1199 = vunpack.c.h.b16 %v152
  %v1200 = vunpack.c.l.b16 %v153
  %v1201 = vunpack.c.h.b16 %v153
  %v1202 = vunpack.c.l.b16 %v154
  %v1203 = vunpack.c.h.b16 %v154
  %v1204 = vunpack.c.l.b16 %v155
  %v1205 = vunpack.c.h.b16 %v155
  %v1206 = vunpack.c.l.b16 %v156
  %v1207 = vunpack.c.h.b16 %v156
  %v1208 = vunpack.c.l.b16 %v157
  %v1209 = vunpack.c.h.b16 %v157
  %v1210 = vunpack.c.l.b16 %v158
  %v1211 = vunpack.c.h.b16 %v158
  %v1212 = vunpack.c.l.b16 %v159
  %v1213 = vunpack.c.h.b16 %v159
  %v1214 = vunpack.c.l.b16 %v160
  %v1215 = vunpack.c.h.b16 %v160
  %v1216 = vunpack.c.l.b16 %v161
  %v1217 = vunpack.c.h.b16 %v161
  %v1218 = vunpack.c.l.b16 %v162
  %v1219 = vunpack.c.h.b16 %v162
  %v1220 = vunpack.c.l.b16 %v163
  %v1221 = vunpack.c.h.b16 %v163
  %v1222 = vunpack.c.l.b16 %v164
  %v1223 = vunpack.c.h.b16 %v164
  %v1224 = vunpack.c.l.b16 %v165
  %v1225 = vunpack.c.h.b16 %v165
  %v1226 = vunpack.c.l.b16 %v166
  %v1227 = vunpack.c.h.b16 %v166
  %v1228 = vunpack.c.l.b16 %v167
  %v1229 = vunpack.c.h.b16 %v167
  %v1230 = vunpack.c.l.b16 %v168
  %v1231 = vunpack.c.h.b16 %v168
  %v1232 = vunpack.c.l.b16 %v169
  %v1233 = vunpack.c.h.b16 %v169
  %v1234 = vunpack.c.l.b16 %v170
  %v1235 = vunpack.c.h.b16 %v170
  %v1236 = vunpack.c.l.b16 %v171
  %v1237 = vunpack.c.h.b16 %v171
  %v1238 = vunpack.c.l.b16 %v172
  %v1239 = vunpack.c.h.b16 %v172
  %v1240 = vunpack.c.l.b16 %v173
  %v1241 = vunpack.c.h.b16 %v173
  %v1242 = vunpack.c.l.b16 %v174
  %v1243 = vunpack.c.h.b16 %v174
  %v1244 = vunpack.c.l.b16 %v175
  %v1245 = vunpack.c.h.b16 %v175
  %v1246 = vunpack.c.l.b16 %v176
  %v1247 = vunpack.c.h.b16 %v176
  %v1248 = vunpack.c.l.b16 %v177
  %v1249 = vunpack.c.h.b16 %v177
  %v1250 = vunpack.c.l.b16 %v178
  %v1251 = vunpack.c.h.b16 %v178
  %v1252 = vunpack.c.l.b16 %v179
  %v1253 = vunpack.c.h.b16 %v179
  %v1254 = vunpack.c.l.b16 %v180
  %v1255 = vunpack.c.h.b16 %v180
  %v1256 = vunpack.c.l.b16 %v181
  %v1257 = vunpack.c.h.b16 %v181
  %v1258 = vunpack.c.l.b16 %v182
  %v1259 = vunpack.c.h.b16 %v182
  %v1260 = vunpack.c.l.b16 %v183
  %v1261 = vunpack.c.h.b16 %v183
  %v1262 = vunpack.c.l.b16 %v184
  %v1263 = vunpack.c.h.b16 %v184
  %v1264 = vunpack.c.l.b16 %v185
  %v1265 = vunpack.c.h.b16 %v185
  %v1266 = vunpack.c.l.b16 %v186
  %v1267 = vunpack.c.h.b16 %v186
  %v1268 = vunpack.c.l.b16 %v187
  %v1269 = vunpack.c.h.b16 %v187
  %v1270 = vunpack.c.l.b16 %v188
  %v1271 = vunpack.c.h.b16 %v188
  %v1272 = vunpack.c.l.b16 %v189
  %v1273 = vunpack.c.h.b16 %v189
  %v1274 = vunpack.c.l.b16 %v190
  %v1275 = vunpack.c.h.b16 %v190
  %v1276 = vunpack.c.l.b16 %v191
  %v1277 = vunpack.c.h.b16 %v191
  %v1278 = vunpack.c.l.b16 %v192
  %v1279 = vunpack.c.h.b16 %v192
  %v1280 = vunpack.c.l.b16 %v193
  %v1281 = vunpack.c.h.b16 %v193
  %v1282 = vunpack.c.l.b16 %v194
  %v1283 = vunpack.c.h.b16 %v194
  %v1284 = vunpack.c.l.b16 %v195
  %v1285 = vunpack.c.h.b16 %v195
  %v1286 = vunpack.c.l.b16 %v196
  %v1287 = vunpack.c.h.b16 %v196
  %v1288 = vunpack.c.l.b16 %v197
  %v1289 = vunpack.c.h.b16 %v197
  %v1290 = vunpack.c.l.b16 %v198
  %v1291 = vunpack.c.h.b16 %v198
  %v1292 = vunpack.c.l.b16 %v199
  %v1293 = vunpack.c.h.b16 %v199
  %v1294 = vunpack.c.l.b16 %v200
  %v1295 = vunpack.c.h.b16 %v200
  %v1296 = vunpack.c.l.b16 %v201
  %v1297 = vunpack.c.h.b16 %v201
  %v1298 = vunpack.c.l.b16 %v202
  %v1299 = vunpack.c.h.b16 %v202
  %v1300 = vunpack.c.l.b16 %v203
  %v1301 = vunpack.c.h.b16 %v203
  %v1302 = vunpack.c.l.b16 %v204
  %v1303 = vunpack.c.h.b16 %v204
  %v1304 = vunpack.c.l.b16 %v205
  %v1305 = vunpack.c.h.b16 %v205
  %v1306 = vunpack.c.l.b16 %v206
  %v1307 = vunpack.c.h.b16 %v206
  %v1308 = vunpack.c.l.b16 %v207
  %v1309 = vunpack.c.h.b16 %v207
  %v1310 = vunpack.c.l.b16 %v208
  %v1311 = vunpack.c.h.b16 %v208
  %v1312 = vunpack.c.l.b16 %v209
  %v1313 = vunpack.c.h.b16 %v209
  %v1314 = vunpack.c.l.b16 %v210
  %v1315 = vunpack.c.h.b16 %v210
  %v1316 = vunpack.c.l.b16 %v211
  %v1317 = vunpack.c.h.b16 %v211
  %v1318 = vunpack.c.l.b16 %v212
  %v1319 = vunpack.c.h.b16 %v212
  %v1320 = vunpack.c.l.b16 %v213
  %v1321 = vunpack.c.h.b16 %v213
  %v1322 = vunpack.c.l.b16 %v214
  %v1323 = vunpack.c.h.b16 %v214
  %v1324 = vunpack.c.l.b16 %v215
  %v1325 = vunpack.c.h.b16 %v215
  %v1326 = vunpack.c.l.b16 %v216
  %v1327 = vunpack.c.h.b16 %v216
  %v1328 = vunpack.c.l.b16 %v217
  %v1329 = vunpack.c.h.b16 %v217
  %v1330 = vunpack.c.l.b16 %v218
  %v1331 = vunpack.c.h.b16 %v218
  %v1332 = vunpack.c.l.b16 %v219
  %v1333 = vunpack.c.h.b16 %v219
  %v1334 = vunpack.c.l.b16 %v220
  %v1335 = vunpack.c.h.b16 %v220
  %v1336 = vunpack.c.l.b16 %v221
  %v1337 = vunpack.c.h.b16 %v221
  %v1338 = vunpack.c.l.b16 %v222
  %v1339 = vunpack.c.h.b16 %v222
  %v1340 = vunpack.c.l.b16 %v223
  %v1341 = vunpack.c.h.b16 %v223
  %v1342 = vunpack.c.l.b16 %v224
  %v1343 = vunpack.c.h.b16 %v224
  %v1344 = vunpack.c.l.b16 %v225
  %v1345 = vunpack.c.h.b16 %v225
  %v1346 = vunpack.c.l.b16 %v226
  %v1347 = vunpack.c.h.b16 %v226
  %v1348 = vunpack.c.l.b16 %v227
  %v1349 = vunpack.c.h.b16 %v227
  %v1350 = vunpack.c.l.b16 %v228
  %v1351 = vunpack.c.h.b16 %v228
  %v1352 = vunpack.c.l.b16 %v229
  %v1353 = vunpack.c.h.b16 %v229
  %v1354 = vunpack.c.l.b16 %v230
  %v1355 = vunpack.c.h.b16 %v230
  %v1356 = vunpack.c.l.b16 %v231
  %v1357 = vunpack.c.h.b16 %v231
  %v1358 = vunpack.c.l.b16 %v232
  %v1359 = vunpack.c.h.b16 %v232
  %v1360 = vunpack.c.l.b16 %v233
  %v1361 = vunpack.c.h.b16 %v233
  %v1362 = vunpack.c.l.b16 %v234
  %v1363 = vunpack.c.h.b16 %v234
  %v1364 = vunpack.c.l.b16 %v235
  %v1365 = vunpack.c.h.b16 %v235
  %v1366 = vunpack.c.l.b16 %v236
  %v1367 = vunpack.c.h.b16 %v236
  %v1368 = vunpack.c.l.b16 %v237
  %v1369 = vunpack.c.h.b16 %v237
  %v1370 = vunpack.c.l.b16 %v238
  %v1371 = vunpack.c.h.b16 %v238
  %v1372 = vunpack.c.l.b16 %v239
  %v1373 = vunpack.c.h.b16 %v239
  %v1374 = vunpack.c.l.b16 %v240
  %v1375 = vunpack.c.h.b16 %v240
  %v1376 = vunpack.c.l.b16 %v241
  %v1377 = vunpack.c.h.b16 %v241
  %v1378 = vunpack.c.l.b16 %v242
  %v1379 = vunpack.c.h.b16 %v242
  %v1380 = vunpack.c.l.b16 %v243
  %v1381 = vunpack.c.h.b16 %v243
  %v1382 = vunpack.c.l.b16 %v244
  %v1383 = vunpack.c.h.b16 %v244
  %v1384 = vunpack.c.l.b16 %v245
  %v1385 = vunpack.c.h.b16 %v245
  %v1386 = vunpack.c.l.b16 %v246
  %v1387 = vunpack.c.h.b16 %v246
  %v1388 = vunpack.c.l.b16 %v247
  %v1389 = vunpack.c.h.b16 %v247
  %v1390 = vunpack.c.l.b16 %v248
  %v1391 = vunpack.c.h.b16 %v248
  %v1392 = vunpack.c.l.b16 %v249
  %v1393 = vunpack.c.h.b16 %v249
  %v1394 = vunpack.c.l.b16 %v250
  %v1395 = vunpack.c.h.b16 %v250
  %v1396 = vunpack.c.l.b16 %v251
  %v1397 = vunpack.c.h.b16 %v251
  %v1398 = vunpack.c.l.b16 %v252
  %v1399 = vunpack.c.h.b16 %v252
  %v1400 = vunpack.c.l.b16 %v253
  %v1401 = vunpack.c.h.b16 %v253
  %v1402 = vunpack.c.l.b16 %v254
  %v1403 = vunpack.c.h.b16 %v254
  %v1404 = vunpack.c.l.b16 %v255
  %v1405 = vunpack.c.h.b16 %v255
  %v1406 = vunpack.c.l.b16 %v256
  %v1407 = vunpack.c.h.b16 %v256
  %v1408 = vunpack.c.l.b16 %v257
  %v1409 = vunpack.c.h.b16 %v257
  %v1410 = vunpack.c.l.b16 %v258
  %v1411 = vunpack.c.h.b16 %v258
  %v1412 = vunpack.c.l.b16 %v259
  %v1413 = vunpack.c.h.b16 %v259
  %v1414 = vunpack.c.l.b16 %v260
  %v1415 = vunpack.c.h.b16 %v260
  %v1416 = vunpack.c.l.b16 %v261
  %v1417 = vunpack.c.h.b16 %v261
  %v1418 = vunpack.c.l.b16 %v262
  %v1419 = vunpack.c.h.b16 %v262
  %v1420 = vunpack.c.l.b16 %v263
  %v1421 = vunpack.c.h.b16 %v263
  %v1422 = vunpack.c.l.b16 %v264
  %v1423 = vunpack.c.h.b16 %v264
  %v1424 = vunpack.c.l.b16 %v265
  %v1425 = vunpack.c.h.b16 %v265
  %v1426 = vunpack.c.l.b16 %v266
  %v1427 = vunpack.c.h.b16 %v266
  %v1428 = vunpack.c.l.b16 %v267
  %v1429 = vunpack.c.h.b16 %v267
  %v1430 = vunpack.c.l.b16 %v268
  %v1431 = vunpack.c.h.b16 %v268
  %v1432 = vunpack.c.l.b16 %v269
  %v1433 = vunpack.c.h.b16 %v269
  %v1434 = vunpack.c.l.b16 %v270
  %v1435 = vunpack.c.h.b16 %v270
  %v1436 = vunpack.c.l.b16 %v271
  %v1437 = vunpack.c.h.b16 %v271
  %v1438 = vunpack.c.l.b16 %v272
  %v1439 = vunpack.c.h.b16 %v272
  %v1440 = vunpack.c.l.b16 %v273
  %v1441 = vunpack.c.h.b16 %v273
  %v1442 = vunpack.c.l.b16 %v274
  %v1443 = vunpack.c.h.b16 %v274
  %v1444 = vunpack.c.l.b16 %v275
  %v1445 = vunpack.c.h.b16 %v275
  %v1446 = vunpack.c.l.b16 %v276
  %v1447 = vunpack.c.h.b16 %v276
  %v1448 = vunpack.c.l.b16 %v277
  %v1449 = vunpack.c.h.b16 %v277
  %v1450 = vunpack.c.l.b16 %v278
  %v1451 = vunpack.c.h.b16 %v278
  %v1452 = vunpack.c.l.b16 %v279
  %v1453 = vunpack.c.h.b16 %v279
  %v1454 = vunpack.c.l.b16 %v280
  %v1455 = vunpack.c.h.b16 %v280
  %v1456 = vunpack.c.l.b16 %v281
  %v1457 = vunpack.c.h.b16 %v281
  %v1458 = vunpack.c.l.b16 %v282
  %v1459 = vunpack.c.h.b16 %v282
  %v1460 = vunpack.c.l.b16 %v283
  %v1461 = vunpack.c.h.b16 %v283
  %v1462 = vunpack.c.l.b16 %v284
  %v1463 = vunpack.c.h.b16 %v284
  %v1464 = vunpack.c.l.b16 %v285
  %v1465 = vunpack.c.h.b16 %v285
  %v1466 = vunpack.c.l.b16 %v286
  %v1467 = vunpack.c.h.b16 %v286
  %v1468 = vunpack.c.l.b16 %v287
  %v1469 = vunpack.c.h.b16 %v287
  %v1470 = vunpack.c.l.b16 %v288
  %v1471 = vunpack.c.h.b16 %v288
  %v1472 = vunpack.c.l.b16 %v289
  %v1473 = vunpack.c.h.b16 %v289
  %v1474 = vunpack.c.l.b16 %v290
  %v1475 = vunpack.c.h.b16 %v290
  %v1476 = vunpack.c.l.b16 %v291
  %v1477 = vunpack.c.h.b16 %v291
  %v1478 = vunpack.c.l.b16 %v292
  %v1479 = vunpack.c.h.b16 %v292
  %v1480 = vunpack.c.l.b16 %v293
  %v1481 = vunpack.c.h.b16 %v293
  %v1482 = vunpack.c.l.b16 %v294
  %v1483 = vunpack.c.h.b16 %v294
  %v1484 = vunpack.c.l.b16 %v295
  %v1485 = vunpack.c.h.b16 %v295
  %v1486 = vunpack.c.l.b16 %v296
  %v1487 = vunpack.c.h.b16 %v296
  %v1488 = vunpack.c.l.b16 %v297
  %v1489 = vunpack.c.h.b16 %v297
  %v1490 = vunpack.c.l.b16 %v298
  %v1491 = vunpack.c.h.b16 %v298
  %v1492 = vunpack.c.l.b16 %v299
  %v1493 = vunpack.c.h.b16 %v299
  %v1494 = vunpack.c.l.b16 %v300
  %v1495 = vunpack.c.h.b16 %v300
  %v1496 = vunpack.c.l.b16 %v301
  %v1497 = vunpack.c.h.b16 %v301
  %v1498 = vunpack.c.l.b16 %v302
  %v1499 = vunpack.c.h.b16 %v302
  %v1500 = vunpack.c.l.b16 %v303
  %v1501 = vunpack.c.h.b16 %v303
  %v1502 = vunpack.c.l.b16 %v304
  %v1503 = vunpack.c.h.b16 %v304
  %v1504 = vunpack.c.l.b16 %v305
  %v1505 = vunpack.c.h.b16 %v305
  %v1506 = vunpack.c.l.b16 %v306
  %v1507 = vunpack.c.h.b16 %v306
  %v1508 = vunpack.c.l.b16 %v307
  %v1509 = vunpack.c.h.b16 %v307
  %v1510 = vunpack.c.l.b16 %v308
  %v1511 = vunpack.c.h.b16 %v308
  %v1512 = vunpack.c.l.b16 %v309
  %v1513 = vunpack.c.h.b16 %v309
  %v1514 = vunpack.c.l.b16 %v310
  %v1515 = vunpack.c.h.b16 %v310
  %v1516 = vunpack.c.l.b16 %v311
  %v1517 = vunpack.c.h.b16 %v311
  %v1518 = vunpack.c.l.b16 %v312
  %v1519 = vunpack.c.h.b16 %v312
  %v1520 = vunpack.c.l.b16 %v313
  %v1521 = vunpack.c.h.b16 %v313
  %v1522 = vunpack.c.l.b16 %v314
  %v1523 = vunpack.c.h.b16 %v314
  %v1524 = vunpack.c.l.b16 %v315
  %v1525 = vunpack.c.h.b16 %v315
  %v1526 = vunpack.c.l.b16 %v316
  %v1527 = vunpack.c.h.b16 %v316
  %v1528 = vunpack.c.l.b16 %v317
  %v1529 = vunpack.c.h.b16 %v317
  %v1530 = vunpack.c.l.b16 %v318
  %v1531 = vunpack.c.h.b16 %v318
  %v1532 = vunpack.c.l.b16 %v319
  %v1533 = vunpack.c.h.b16 %v319
  %v1534 = vunpack.c.l.b16 %v320
  %v1535 = vunpack.c.h.b16 %v320
  %v1536 = vunpack.c.l.b16 %v321
  %v1537 = vunpack.c.h.b16 %v321
  %v1538 = vunpack.c.l.b16 %v322
  %v1539 = vunpack.c.h.b16 %v322
  %v1540 = vunpack.c.l.b16 %v323
  %v1541 = vunpack.c.h.b16 %v323
  %v1542 = vunpack.c.l.b16 %v324
  %v1543 = vunpack.c.h.b16 %v324
  %v1544 = vunpack.c.l.b16 %v325
  %v1545 = vunpack.c.h.b16 %v325
  %v1546 = vunpack.c.l.b16 %v326
  %v1547 = vunpack.c.h.b16 %v326
  %v1548 = vunpack.c.l.b16 %v327
  %v1549 = vunpack.c.h.b16 %v327
  %v1550 = vunpack.c.l.b16 %v328
  %v1551 = vunpack.c.h.b16 %v328
  %v1552 = vunpack.c.l.b16 %v329
  %v1553 = vunpack.c.h.b16 %v329
  %v1554 = vunpack.c.l.b16 %v330
  %v1555 = vunpack.c.h.b16 %v330
  %v1556 = vunpack.c.l.b16 %v331
  %v1557 = vunpack.c.h.b16 %v331
  %v1558 = vunpack.c.l.b16 %v332
  %v1559 = vunpack.c.h.b16 %v332
  %v1560 = vunpack.c.l.b16 %v333
  %v1561 = vunpack.c.h.b16 %v333
  %v1562 = vunpack.c.l.b16 %v334
  %v1563 = vunpack.c.h.b16 %v334
  %v1564 = vunpack.c.l.b16 %v335
  %v1565 = vunpack.c.h.b16 %v335
  %v1566 = vunpack.c.l.b16 %v336
  %v1567 = vunpack.c.h.b16 %v336
  %v1568 = vunpack.c.l.b16 %v337
  %v1569 = vunpack.c.h.b16 %v337
  %v1570 = vunpack.c.l.b16 %v338
  %v1571 = vunpack.c.h.b16 %v338
  %v1572 = vunpack.c.l.b16 %v339
  %v1573 = vunpack.c.h.b16 %v339
  %v1574 = vunpack.c.l.b16 %v340
  %v1575 = vunpack.c.h.b16 %v340
  %v1576 = vunpack.c.l.b16 %v341
  %v1577 = vunpack.c.h.b16 %v341
  %v1578 = vunpack.c.l.b16 %v342
  %v1579 = vunpack.c.h.b16 %v342
  %v1580 = vunpack.c.l.b16 %v343
  %v1581 = vunpack.c.h.b16 %v343
  %v1582 = vunpack.c.l.b16 %v344
  %v1583 = vunpack.c.h.b16 %v344
  %v1584 = vunpack.c.l.b16 %v345
  %v1585 = vunpack.c.h.b16 %v345
  %v1586 = vunpack.c.l.b16 %v346
  %v1587 = vunpack.c.h.b16 %v346
  %v1588 = vunpack.c.l.b16 %v347
  %v1589 = vunpack.c.h.b16 %v347
  %v1590 = vunpack.c.l.b16 %v348
  %v1591 = vunpack.c.h.b16 %v348
  %v1592 = vunpack.c.l.b16 %v349
  %v1593 = vunpack.c.h.b16 %v349
  %v1594 = vpack.c.b16 %v1148, %v1146
  %v1595 = vpack.c.b16 %v1149, %v1147
  %v1596 = vpack.c.b16 %v1152, %v1150
  %v1597 = vpack.c.b16 %v1153, %v1151
  %v1598 = vpack.c.b16 %v1156, %v1154
  %v1599 = vpack.c.b16 %v1157, %v1155
  %v1600 = vpack.c.b16 %v1160, %v1158
  %v1601 = vpack.c.b16 %v1161, %v1159
  %v1602 = vpack.c.b16 %v1164, %v1162
  %v1603 = vpack.c.b16 %v1165, %v1163
  %v1604 = vpack.c.b16 %v1168, %v1166
  %v1605 = vpack.c.b16 %v1169, %v1167
  %v1606 = vpack.c.b16 %v1172, %v1170
  %v1607 = vpack.c.b16 %v1173, %v1171
  %v1608 = vpack.c.b16 %v1176, %v1174
  %v1609 = vpack.c.b16 %v1177, %v1175
  %v1610 = vpack.c.b16 %v1180, %v1178
  %v1611 = vpack.c.b16 %v1181, %v1179
  %v1612 = vpack.c.b16 %v1184, %v1182
  %v1613 = vpack.c.b16 %v1185, %v1183
  %v1614 = vpack.c.b16 %v1188, %v1186
  %v1615 = vpack.c.b16 %v1189, %v1187
  %v1616 = vpack.c.b16 %v1192, %v1190
  %v1617 = vpack.c.b16 %v1193, %v1191
  %v1618 = vpack.c.b16 %v1196, %v1194
  %v1619 = vpack.c.b16 %v1197, %v1195
  %v1620 = vpack.c.b16 %v1200, %v1198
  %v1621 = vpack.c.b16 %v1201, %v1199
  %v1622 = vpack.c.b16 %v1204, %v1202
  %v1623 = vpack.c.b16 %v1205, %v1203
  %v1624 = vpack.c.b16 %v1208, %v1206
  %v1625 = vpack.c.b16 %v1209, %v1207
  %v1626 = vpack.c.b16 %v1212, %v1210
  %v1627 = vpack.c.b16 %v1213, %v1211
  %v1628 = vpack.c.b16 %v1216, %v1214
  %v1629 = vpack.c.b16 %v1217, %v1215
  %v1630 = vpack.c.b16 %v1220, %v1218
  %v1631 = vpack.c.b16 %v1221, %v1219
  %v1632 = vpack.c.b16 %v1224, %v1222
  %v1633 = vpack.c.b16 %v1225, %v1223
  %v1634 = vpack.c.b16 %v1228, %v1226
  %v1635 = vpack.c.b16 %v1229, %v1227
  %v1636 = vpack.c.b16 %v1232, %v1230
  %v1637 = vpack.c.b16 %v1233, %v1231
  %v1638 = vpack.c.b16 %v1236, %v1234
  %v1639 = vpack.c.b16 %v1237, %v1235
  %v1640 = vpack.c.b16 %v1240, %v1238
  %v1641 = vpack.c.b16 %v1241, %v1239
  %v1642 = vpack.c.b16 %v1244, %v1242
  %v1643 = vpack.c.b16 %v1245, %v1243
  %v1644 = vpack.c.b16 %v1248, %v1246
  %v1645 = vpack.c.b16 %v1249, %v1247
  %v1646 = vpack.c.b16 %v1252, %v1250
  %v1647 = vpack.c.b16 %v1253, %v1251
  %v1648 = vpack.c.b16 %v1256, %v1254
  %v1649 = vpack.c.b16 %v1257, %v1255
  %v1650 = vpack.c.b16 %v1260, %v1258
  %v1651 = vpack.c.b16 %v1261, %v1259
  %v1652 = vpack.c.b16 %v1264, %v1262
  %v1653 = vpack.c.b16 %v1265, %v1263
  %v1654 = vpack.c.b16 %v1268, %v1266
  %v1655 = vpack.c.b16 %v1269, %v1267
  %v1656 = vpack.c.b16 %v1272, %v1270
  %v1657 = vpack.c.b16 %v1273, %v1271
  %v1658 = vpack.c.b16 %v1276, %v1274
  %v1659 = vpack.c.b16 %v1277, %v1275
  %v1660 = vpack.c.b16 %v1280, %v1278
  %v1661 = vpack.c.b16 %v1281, %v1279
  %v1662 = vpack.c.b16 %v1284, %v1282
  %v1663 = vpack.c.b16 %v1285, %v1283
  %v1664 = vpack.c.b16 %v1288, %v1286
  %v1665 = vpack.c.b16 %v1289, %v1287
  %v1666 = vpack.c.b16 %v1292, %v1290
  %v1667 = vpack.c.b16 %v1293, %v1291
  %v1668 = vpack.c.b16 %v1296, %v1294
  %v1669 = vpack.c.b16 %v1297, %v1295
  %v1670 = vpack.c.b16 %v1300, %v1298
  %v1671 = vpack.c.b16 %v1301, %v1299
  %v1672 = vpack.c.b16 %v1304, %v1302
  %v1673 = vpack.c.b16 %v1305, %v1303
  %v1674 = vpack.c.b16 %v1308, %v1306
  %v1675 = vpack.c.b16 %v1309, %v1307
  %v1676 = vpack.c.b16 %v1312, %v1310
  %v1677 = vpack.c.b16 %v1313, %v1311
  %v1678 = vpack.c.b16 %v1316, %v1314
  %v1679 = vpack.c.b16 %v1317, %v1315
  %v1680 = vpack.c.b16 %v1320, %v1318
  %v1681 = vpack.c.b16 %v1321, %v1319
  %v1682 = vpack.c.b16 %v1324, %v1322
  %v1683 = vpack.c.b16 %v1325, %v1323
  %v1684 = vpack.c.b16 %v1328, %v1326
  %v1685 = vpack.c.b16 %v1329, %v1327
  %v1686 = vpack.c.b16 %v1332, %v1330
  %v1687 = vpack.c.b16 %v1333, %v1331
  %v1688 = vpack.c.b16 %v1336, %v1334
  %v1689 = vpack.c.b16 %v1337, %v1335
  %v1690 = vpack.c.b16 %v1340, %v1338
  %v1691 = vpack.c.b16 %v1341, %v1339
  %v1692 = vpack.c.b16 %v1344, %v1342
  %v1693 = vpack.c.b16 %v1345, %v1343
  %v1694 = vpack.c.b16 %v1348, %v1346
  %v1695 = vpack.c.b16 %v1349, %v1347
  %v1696 = vpack.c.b16 %v1352, %v1350
  %v1697 = vpack.c.b16 %v1353, %v1351
  %v1698 = vpack.c.b16 %v1356, %v1354
  %v1699 = vpack.c.b16 %v1357, %v1355
  %v1700 = vpack.c.b16 %v1360, %v1358
  %v1701 = vpack.c.b16 %v1361, %v1359
  %v1702 = vpack.c.b16 %v1364, %v1362
  %v1703 = vpack.c.b16 %v1365, %v1363
  %v1704 = vpack.c.b16 %v1368, %v1366
  %v1705 = vpack.c.b16 %v1369, %v1367
  %v1706 = vpack.c.b16 %v1372, %v1370
  %v1707 = vpack.c.b16 %v1373, %v1371
  %v1708 = vpack.c.b16 %v1376, %v1374
  %v1709 = vpack.c.b16 %v1377, %v1375
  %v1710 = vpack.c.b16 %v1380, %v1378
  %v1711 = vpack.c.b16 %v1381, %v1379
  %v1712 = vpack.c.b16 %v1384, %v1382
  %v1713 = vpack.c.b16 %v1385, %v1383
  %v1714 = vpack.c.b16 %v1388, %v1386
  %v1715 = vpack.c.b16 %v1389, %v1387
  %v1716 = vpack.c.b16 %v1392, %v1390
  %v1717 = vpack.c.b16 %v1393, %v1391
  %v1718 = vpack.c.b16 %v1396, %v1394
  %v1719 = vpack.c.b16 %v1397, %v1395
  %v1720 = vpack.c.b16 %v1400, %v1398
  %v1721 = vpack.c.b16 %v1401, %v1399
  %v1722 = vpack.c.b16 %v1404, %v1402
  %v1723 = vpack.c.b16 %v1405, %v1403
  %v1724 = vpack.c.b16 %v1408, %v1406
  %v1725 = vpack.c.b16 %v1409, %v1407
  %v1726 = vpack.c.b16 %v1412, %v1410
  %v1727 = vpack.c.b16 %v1413, %v1411
  %v1728 = vpack.c.b16 %v1416, %v1414
  %v1729 = vpack.c.b16 %v1417, %v1415
  %v1730 = vpack.c.b16 %v1420, %v1418
  %v1731 = vpack.c.b16 %v1421, %v1419
  %v1732 = vpack.c.b16 %v1424, %v1422
  %v1733 = vpack.c.b16 %v1425, %v1423
  %v1734 = vpack.c.b16 %v1428, %v1426
  %v1735 = vpack.c.b16 %v1429, %v1427
  %v1736 = vpack.c.b16 %v1432, %v1430
  %v1737 = vpack.c.b16 %v1433, %v1431
  %v1738 = vpack.c.b16 %v1436, %v1434
  %v1739 = vpack.c.b16 %v1437, %v1435
  %v1740 = vpack.c.b16 %v1440, %v1438
  %v1741 = vpack.c.b16 %v1441, %v1439
  %v1742 = vpack.c.b16 %v1444, %v1442
  %v1743 = vpack.c.b16 %v1445, %v1443
  %v1744 = vpack.c.b16 %v1448, %v1446
  %v1745 = vpack.c.b16 %v1449, %v1447
  %v1746 = vpack.c.b16 %v1452, %v1450
  %v1747 = vpack.c.b16 %v1453, %v1451
  %v1748 = vpack.c.b16 %v1456, %v1454
  %v1749 = vpack.c.b16 %v1457, %v1455
  %v1750 = vpack.c.b16 %v1460, %v1458
  %v1751 = vpack.c.b16 %v1461, %v1459
  %v1752 = vpack.c.b16 %v1464, %v1462
  %v1753 = vpack.c.b16 %v1465, %v1463
  %v1754 = vpack.c.b16 %v1468, %v1466
  %v1755 = vpack.c.b16 %v1469, %v1467
  %v1756 = vpack.c.b16 %v1472, %v1470
  %v1757 = vpack.c.b16 %v1473, %v1471
  %v1758 = vpack.c.b16 %v1476, %v1474
  %v1759 = vpack.c.b16 %v1477, %v1475
  %v1760 = vpack.c.b16 %v1480, %v1478
  %v1761 = vpack.c.b16 %v1481, %v1479
  %v1762 = vpack.c.b16 %v1484, %v1482
  %v1763 = vpack.c.b16 %v1485, %v1483
  %v1764 = vpack.c.b16 %v1488, %v1486
  %v1765 = vpack.c.b16 %v1489, %v1487
  %v1766 = vpack.c.b16 %v1492, %v1490
  %v1767 = vpack.c.b16 %v1493, %v1491
  %v1768 = vpack.c.b16 %v1496, %v1494
  %v1769 = vpack.c.b16 %v1497, %v1495
  %v1770 = vpack.c.b16 %v1500, %v1498
  %v1771 = vpack.c.b16 %v1501, %v1499
  %v1772 = vpack.c.b16 %v1504, %v1502
  %v1773 = vpack.c.b16 %v1505, %v1503
  %v1774 = vpack.c.b16 %v1508, %v1506
  %v1775 = vpack.c.b16 %v1509, %v1507
  %v1776 = vpack.c.b16 %v1512, %v1510
  %v1777 = vpack.c.b16 %v1513, %v1511
  %v1778 = vpack.c.b16 %v1516, %v1514
  %v1779 = vpack.c.b16 %v1517, %v1515
  %v1780 = vpack.c.b16 %v1520, %v1518
  %v1781 = vpack.c.b16 %v1521, %v1519
  %v1782 = vpack.c.b16 %v1524, %v1522
  %v1783 = vpack.c.b16 %v1525, %v1523
  %v1784 = vpack.c.b16 %v1528, %v1526
  %v1785 = vpack.c.b16 %v1529, %v1527
  %v1786 = vpack.c.b16 %v1532, %v1530
  %v1787 = vpack.c.b16 %v1533, %v1531
  %v1788 = vpack.c.b16 %v1536, %v1534
  %v1789 = vpack.c.b16 %v1537, %v1535
  %v1790 = vpack.c.b16 %v1540, %v1538
  %v1791 = vpack.c.b16 %v1541, %v1539
  %v1792 = vpack.c.b16 %v1544, %v1542
  %v1793 = vpack.c.b16 %v1545, %v1543
  %v1794 = vpack.c.b16 %v1548, %v1546
  %v1795 = vpack.c.b16 %v1549, %v1547
  %v1796 = vpack.c.b16 %v1552, %v1550
  %v1797 = vpack.c.b16 %v1553, %v1551
  %v1798 = vpack.c.b16 %v1556, %v1554
  %v1799 = vpack.c.b16 %v1557, %v1555
  %v1800 = vpack.c.b16 %v1560, %v1558
  %v1801 = vpack.c.b16 %v1561, %v1559
  %v1802 = vpack.c.b16 %v1564, %v1562
  %v1803 = vpack.c.b16 %v1565, %v1563
  %v1804 = vpack.c.b16 %v1568, %v1566
  %v1805 = vpack.c.b16 %v1569, %v1567
  %v1806 = vpack.c.b16 %v1572, %v1570
  %v1807 = vpack.c.b16 %v1573, %v1571
  %v1808 = vpack.c.b16 %v1576, %v1574
  %v1809 = vpack.c.b16 %v1577, %v1575
  %v1810 = vpack.c.b16 %v1580, %v1578
  %v1811 = vpack.c.b16 %v1581, %v1579
  %v1812 = vpack.c.b16 %v1584, %v1582
  %v1813 = vpack.c.b16 %v1585, %v1583
  %v1814 = vpack.c.b16 %v1588, %v1586
  %v1815 = vpack.c.b16 %v1589, %v1587
  %v1816 = vpack.c.b16 %v1592, %v1590
  %v1817 = vpack.c.b16 %v1593, %v1591
  %2042 = vmatprep.subr.bf16.mxu0 %v1595
  %2043 = vmatpush1.bf16.msra.mxu0 %v1594
  %2044 = vmatprep.subr.bf16.mxu0 %v1597
  %2045 = vmatpush1.bf16.msra.mxu0 %v1596
  %2046 = vmatprep.subr.bf16.mxu0 %v1599
  %2047 = vmatpush1.bf16.msra.mxu0 %v1598
  %2048 = vmatprep.subr.bf16.mxu0 %v1601
  %2049 = vmatpush1.bf16.msra.mxu0 %v1600
  %2050 = vmatprep.subr.bf16.mxu0 %v1603
  %2051 = vmatpush1.bf16.msra.mxu0 %v1602
  %2052 = vmatprep.subr.bf16.mxu0 %v1605
  %2053 = vmatpush1.bf16.msra.mxu0 %v1604
  %2054 = vmatprep.subr.bf16.mxu0 %v1607
  %2055 = vmatpush1.bf16.msra.mxu0 %v1606
  %2056 = vmatprep.subr.bf16.mxu0 %v1609
  %2057 = vmatpush1.bf16.msra.mxu0 %v1608
  %2058 = vmatprep.subr.bf16.mxu0 %v1611
  %2059 = vmatpush1.bf16.msra.mxu0 %v1610
  %2060 = vmatprep.subr.bf16.mxu0 %v1613
  %2061 = vmatpush1.bf16.msra.mxu0 %v1612
  %2062 = vmatprep.subr.bf16.mxu0 %v1615
  %2063 = vmatpush1.bf16.msra.mxu0 %v1614
  %2064 = vmatprep.subr.bf16.mxu0 %v1617
  %2065 = vmatpush1.bf16.msra.mxu0 %v1616
  %2066 = vmatprep.subr.bf16.mxu0 %v1619
  %2067 = vmatpush1.bf16.msra.mxu0 %v1618
  %2068 = vmatprep.subr.bf16.mxu0 %v1621
  %2069 = vmatpush1.bf16.msra.mxu0 %v1620
  %2070 = vmatprep.subr.bf16.mxu0 %v1623
  %2071 = vmatpush1.bf16.msra.mxu0 %v1622
  %2072 = vmatprep.subr.bf16.mxu0 %v1625
  %2073 = vmatpush1.bf16.msra.mxu0 %v1624
  %2074 = vmatprep.mubr.bf16.mxu0 %v699
  %2075 = vmatmul.mubr.bf16.gmra.mrb[0].mxu0 %v698
  %v2076 = vpop.f32.mrb[0].mxu0
  %v2077 = vadd.f32 %v355, %v2076
  %v2078 = vpop.f32.mrb[0].mxu0
  %v2079 = vadd.f32 %v359, %v2078
  %v2080 = vpop.f32.mrb[0].mxu0
  %v2081 = vadd.f32 %v355, %v2080
  %v2082 = vpop.f32.mrb[0].mxu0
  %v2083 = vadd.f32 %v359, %v2082
  %2084 = vmatprep.mubr.bf16.mxu0 %v713
  %2085 = vmatmul.mubr.bf16.gmra.mrb[0].mxu0 %v712
  %v2086 = vpop.f32.mrb[0].mxu0
  %v2087 = vadd.f32 %v355, %v2086
  %v2088 = vpop.f32.mrb[0].mxu0
  %v2089 = vadd.f32 %v359, %v2088
  %v2090 = vpop.f32.mrb[0].mxu0
  %v2091 = vadd.f32 %v355, %v2090
  %v2092 = vpop.f32.mrb[0].mxu0
  %v2093 = vadd.f32 %v359, %v2092
  %2094 = vmatprep.mubr.bf16.mxu0 %v727
  %2095 = vmatmul.mubr.bf16.gmra.mrb[0].mxu0 %v726
  %v2096 = vpop.f32.mrb[0].mxu0
  %v2097 = vadd.f32 %v355, %v2096
  %v2098 = vpop.f32.mrb[0].mxu0
  %v2099 = vadd.f32 %v359, %v2098
  %v2100 = vpop.f32.mrb[0].mxu0
  %v2101 = vadd.f32 %v355, %v2100
  %v2102 = vpop.f32.mrb[0].mxu0
  %v2103 = vadd.f32 %v359, %v2102
  %2104 = vmatprep.mubr.bf16.mxu0 %v741
  %2105 = vmatmul.mubr.bf16.gmra.mrb[0].mxu0 %v740
  %v2106 = vpop.f32.mrb[0].mxu0
  %v2107 = vadd.f32 %v355, %v2106
  %v2108 = vpop.f32.mrb[0].mxu0
  %v2109 = vadd.f32 %v359, %v2108
  %v2110 = vpop.f32.mrb[0].mxu0
  %v2111 = vadd.f32 %v355, %v2110
  %v2112 = vpop.f32.mrb[0].mxu0
  %v2113 = vadd.f32 %v359, %v2112
  %2114 = vmatprep.mubr.bf16.mxu0 %v755
  %2115 = vmatmul.mubr.bf16.gmra.mrb[0].mxu0 %v754
  %v2116 = vpop.f32.mrb[0].mxu0
  %v2117 = vadd.f32 %v355, %v2116
  %v2118 = vpop.f32.mrb[0].mxu0
  %v2119 = vadd.f32 %v359, %v2118
  %v2120 = vpop.f32.mrb[0].mxu0
  %v2121 = vadd.f32 %v355, %v2120
  %v2122 = vpop.f32.mrb[0].mxu0
  %v2123 = vadd.f32 %v359, %v2122
  %2124 = vmatprep.mubr.bf16.mxu0 %v769
  %2125 = vmatmul.mubr.bf16.gmra.mrb[0].mxu0 %v768
  %v2126 = vpop.f32.mrb[0].mxu0
  %v2127 = vadd.f32 %v355, %v2126
  %v2128 = vpop.f32.mrb[0].mxu0
  %v2129 = vadd.f32 %v359, %v2128
  %v2130 = vpop.f32.mrb[0].mxu0
  %v2131 = vadd.f32 %v355, %v2130
  %v2132 = vpop.f32.mrb[0].mxu0
  %v2133 = vadd.f32 %v359, %v2132
  %2134 = vmatprep.mubr.bf16.mxu0 %v783
  %2135 = vmatmul.mubr.bf16.gmra.mrb[0].mxu0 %v782
  %v2136 = vpop.f32.mrb[0].mxu0
  %v2137 = vadd.f32 %v355, %v2136
  %v2138 = vpop.f32.mrb[0].mxu0
  %v2139 = vadd.f32 %v359, %v2138
  %v2140 = vpop.f32.mrb[0].mxu0
  %v2141 = vadd.f32 %v355, %v2140
  %v2142 = vpop.f32.mrb[0].mxu0
  %v2143 = vadd.f32 %v359, %v2142
  %2144 = vmatprep.mubr.bf16.mxu0 %v797
  %2145 = vmatmul.mubr.bf16.gmra.mrb[0].mxu0 %v796
  %v2146 = vpop.f32.mrb[0].mxu0
  %v2147 = vadd.f32 %v355, %v2146
  %v2148 = vpop.f32.mrb[0].mxu0
  %v2149 = vadd.f32 %v359, %v2148
  %v2150 = vpop.f32.mrb[0].mxu0
  %v2151 = vadd.f32 %v355, %v2150
  %v2152 = vpop.f32.mrb[0].mxu0
  %v2153 = vadd.f32 %v359, %v2152
  %2154 = vdwg.mxu0
  %2155 = vmatprep.subr.bf16.mxu0 %v1627
  %2156 = vmatpush1.bf16.msra.mxu0 %v1626
  %2157 = vmatprep.subr.bf16.mxu0 %v1629
  %2158 = vmatpush1.bf16.msra.mxu0 %v1628
  %2159 = vmatprep.subr.bf16.mxu0 %v1631
  %2160 = vmatpush1.bf16.msra.mxu0 %v1630
  %2161 = vmatprep.subr.bf16.mxu0 %v1633
  %2162 = vmatpush1.bf16.msra.mxu0 %v1632
  %2163 = vmatprep.subr.bf16.mxu0 %v1635
  %2164 = vmatpush1.bf16.msra.mxu0 %v1634
  %2165 = vmatprep.subr.bf16.mxu0 %v1637
  %2166 = vmatpush1.bf16.msra.mxu0 %v1636
  %2167 = vmatprep.subr.bf16.mxu0 %v1639
  %2168 = vmatpush1.bf16.msra.mxu0 %v1638
  %2169 = vmatprep.subr.bf16.mxu0 %v1641
  %2170 = vmatpush1.bf16.msra.mxu0 %v1640
  %2171 = vmatprep.subr.bf16.mxu0 %v1643
  %2172 = vmatpush1.bf16.msra.mxu0 %v1642
  %2173 = vmatprep.subr.bf16.mxu0 %v1645
  %2174 = vmatpush1.bf16.msra.mxu0 %v1644
  %2175 = vmatprep.subr.bf16.mxu0 %v1647
  %2176 = vmatpush1.bf16.msra.mxu0 %v1646
  %2177 = vmatprep.subr.bf16.mxu0 %v1649
  %2178 = vmatpush1.bf16.msra.mxu0 %v1648
  %2179 = vmatprep.subr.bf16.mxu0 %v1651
  %2180 = vmatpush1.bf16.msra.mxu0 %v1650
  %2181 = vmatprep.subr.bf16.mxu0 %v1653
  %2182 = vmatpush1.bf16.msra.mxu0 %v1652
  %2183 = vmatprep.subr.bf16.mxu0 %v1655
  %2184 = vmatpush1.bf16.msra.mxu0 %v1654
  %2185 = vmatprep.subr.bf16.mxu0 %v1657
  %2186 = vmatpush1.bf16.msra.mxu0 %v1656
  %2187 = vmatprep.mubr.bf16.mxu0 %v701
  %2188 = vmatmul.mubr.bf16.gmra.mrb[0].mxu0 %v700
  %v2189 = vpop.f32.mrb[0].mxu0
  %v2190 = vadd.f32 %v2077, %v2189
  %v2191 = vpop.f32.mrb[0].mxu0
  %v2192 = vadd.f32 %v2079, %v2191
  %v2193 = vpop.f32.mrb[0].mxu0
  %v2194 = vadd.f32 %v2081, %v2193
  %v2195 = vpop.f32.mrb[0].mxu0
  %v2196 = vadd.f32 %v2083, %v2195
  %2197 = vmatprep.mubr.bf16.mxu0 %v715
  %2198 = vmatmul.mubr.bf16.gmra.mrb[0].mxu0 %v714
  %v2199 = vpop.f32.mrb[0].mxu0
  %v2200 = vadd.f32 %v2087, %v2199
  %v2201 = vpop.f32.mrb[0].mxu0
  %v2202 = vadd.f32 %v2089, %v2201
  %v2203 = vpop.f32.mrb[0].mxu0
  %v2204 = vadd.f32 %v2091, %v2203
  %v2205 = vpop.f32.mrb[0].mxu0
  %v2206 = vadd.f32 %v2093, %v2205
  %2207 = vmatprep.mubr.bf16.mxu0 %v729
  %2208 = vmatmul.mubr.bf16.gmra.mrb[0].mxu0 %v728
  %v2209 = vpop.f32.mrb[0].mxu0
  %v2210 = vadd.f32 %v2097, %v2209
  %v2211 = vpop.f32.mrb[0].mxu0
  %v2212 = vadd.f32 %v2099, %v2211
  %v2213 = vpop.f32.mrb[0].mxu0
  %v2214 = vadd.f32 %v2101, %v2213
  %v2215 = vpop.f32.mrb[0].mxu0
  %v2216 = vadd.f32 %v2103, %v2215
  %2217 = vmatprep.mubr.bf16.mxu0 %v743
  %2218 = vmatmul.mubr.bf16.gmra.mrb[0].mxu0 %v742
  %v2219 = vpop.f32.mrb[0].mxu0
  %v2220 = vadd.f32 %v2107, %v2219
  %v2221 = vpop.f32.mrb[0].mxu0
  %v2222 = vadd.f32 %v2109, %v2221
  %v2223 = vpop.f32.mrb[0].mxu0
  %v2224 = vadd.f32 %v2111, %v2223
  %v2225 = vpop.f32.mrb[0].mxu0
  %v2226 = vadd.f32 %v2113, %v2225
  %2227 = vmatprep.mubr.bf16.mxu0 %v757
  %2228 = vmatmul.mubr.bf16.gmra.mrb[0].mxu0 %v756
  %v2229 = vpop.f32.mrb[0].mxu0
  %v2230 = vadd.f32 %v2117, %v2229
  %v2231 = vpop.f32.mrb[0].mxu0
  %v2232 = vadd.f32 %v2119, %v2231
  %v2233 = vpop.f32.mrb[0].mxu0
  %v2234 = vadd.f32 %v2121, %v2233
  %v2235 = vpop.f32.mrb[0].mxu0
  %v2236 = vadd.f32 %v2123, %v2235
  %2237 = vmatprep.mubr.bf16.mxu0 %v771
  %2238 = vmatmul.mubr.bf16.gmra.mrb[0].mxu0 %v770
  %v2239 = vpop.f32.mrb[0].mxu0
  %v2240 = vadd.f32 %v2127, %v2239
  %v2241 = vpop.f32.mrb[0].mxu0
  %v2242 = vadd.f32 %v2129, %v2241
  %v2243 = vpop.f32.mrb[0].mxu0
  %v2244 = vadd.f32 %v2131, %v2243
  %v2245 = vpop.f32.mrb[0].mxu0
  %v2246 = vadd.f32 %v2133, %v2245
  %2247 = vmatprep.mubr.bf16.mxu0 %v785
  %2248 = vmatmul.mubr.bf16.gmra.mrb[0].mxu0 %v784
  %v2249 = vpop.f32.mrb[0].mxu0
  %v2250 = vadd.f32 %v2137, %v2249
  %v2251 = vpop.f32.mrb[0].mxu0
  %v2252 = vadd.f32 %v2139, %v2251
  %v2253 = vpop.f32.mrb[0].mxu0
  %v2254 = vadd.f32 %v2141, %v2253
  %v2255 = vpop.f32.mrb[0].mxu0
  %v2256 = vadd.f32 %v2143, %v2255
  %2257 = vmatprep.mubr.bf16.mxu0 %v799
  %2258 = vmatmul.mubr.bf16.gmra.mrb[0].mxu0 %v798
  %v2259 = vpop.f32.mrb[0].mxu0
  %v2260 = vadd.f32 %v2147, %v2259
  %v2261 = vpop.f32.mrb[0].mxu0
  %v2262 = vadd.f32 %v2149, %v2261
  %v2263 = vpop.f32.mrb[0].mxu0
  %v2264 = vadd.f32 %v2151, %v2263
  %v2265 = vpop.f32.mrb[0].mxu0
  %v2266 = vadd.f32 %v2153, %v2265
  %2267 = vdwg.mxu0
  %2268 = vmatprep.subr.bf16.mxu0 %v1659
  %2269 = vmatpush1.bf16.msra.mxu0 %v1658
  %2270 = vmatprep.subr.bf16.mxu0 %v1661
  %2271 = vmatpush1.bf16.msra.mxu0 %v1660
  %2272 = vmatprep.subr.bf16.mxu0 %v1663
  %2273 = vmatpush1.bf16.msra.mxu0 %v1662
  %2274 = vmatprep.subr.bf16.mxu0 %v1665
  %2275 = vmatpush1.bf16.msra.mxu0 %v1664
  %2276 = vmatprep.subr.bf16.mxu0 %v1667
  %2277 = vmatpush1.bf16.msra.mxu0 %v1666
  %2278 = vmatprep.subr.bf16.mxu0 %v1669
  %2279 = vmatpush1.bf16.msra.mxu0 %v1668
  %2280 = vmatprep.subr.bf16.mxu0 %v1671
  %2281 = vmatpush1.bf16.msra.mxu0 %v1670
  %2282 = vmatprep.subr.bf16.mxu0 %v1673
  %2283 = vmatpush1.bf16.msra.mxu0 %v1672
  %2284 = vmatprep.subr.bf16.mxu0 %v1675
  %2285 = vmatpush1.bf16.msra.mxu0 %v1674
  %2286 = vmatprep.subr.bf16.mxu0 %v1677
  %2287 = vmatpush1.bf16.msra.mxu0 %v1676
  %2288 = vmatprep.subr.bf16.mxu0 %v1679
  %2289 = vmatpush1.bf16.msra.mxu0 %v1678
  %2290 = vmatprep.subr.bf16.mxu0 %v1681
  %2291 = vmatpush1.bf16.msra.mxu0 %v1680
  %2292 = vmatprep.subr.bf16.mxu0 %v1683
  %2293 = vmatpush1.bf16.msra.mxu0 %v1682
  %2294 = vmatprep.subr.bf16.mxu0 %v1685
  %2295 = vmatpush1.bf16.msra.mxu0 %v1684
  %2296 = vmatprep.subr.bf16.mxu0 %v1687
  %2297 = vmatpush1.bf16.msra.mxu0 %v1686
  %2298 = vmatprep.subr.bf16.mxu0 %v1689
  %2299 = vmatpush1.bf16.msra.mxu0 %v1688
  %2300 = vmatprep.mubr.bf16.mxu0 %v703
  %2301 = vmatmul.mubr.bf16.gmra.mrb[0].mxu0 %v702
  %v2302 = vpop.f32.mrb[0].mxu0
  %v2303 = vadd.f32 %v2190, %v2302
  %v2304 = vpop.f32.mrb[0].mxu0
  %v2305 = vadd.f32 %v2192, %v2304
  %v2306 = vpop.f32.mrb[0].mxu0
  %v2307 = vadd.f32 %v2194, %v2306
  %v2308 = vpop.f32.mrb[0].mxu0
  %v2309 = vadd.f32 %v2196, %v2308
  %2310 = vmatprep.mubr.bf16.mxu0 %v717
  %2311 = vmatmul.mubr.bf16.gmra.mrb[0].mxu0 %v716
  %v2312 = vpop.f32.mrb[0].mxu0
  %v2313 = vadd.f32 %v2200, %v2312
  %v2314 = vpop.f32.mrb[0].mxu0
  %v2315 = vadd.f32 %v2202, %v2314
  %v2316 = vpop.f32.mrb[0].mxu0
  %v2317 = vadd.f32 %v2204, %v2316
  %v2318 = vpop.f32.mrb[0].mxu0
  %v2319 = vadd.f32 %v2206, %v2318
  %2320 = vmatprep.mubr.bf16.mxu0 %v731
  %2321 = vmatmul.mubr.bf16.gmra.mrb[0].mxu0 %v730
  %v2322 = vpop.f32.mrb[0].mxu0
  %v2323 = vadd.f32 %v2210, %v2322
  %v2324 = vpop.f32.mrb[0].mxu0
  %v2325 = vadd.f32 %v2212, %v2324
  %v2326 = vpop.f32.mrb[0].mxu0
  %v2327 = vadd.f32 %v2214, %v2326
  %v2328 = vpop.f32.mrb[0].mxu0
  %v2329 = vadd.f32 %v2216, %v2328
  %2330 = vmatprep.mubr.bf16.mxu0 %v745
  %2331 = vmatmul.mubr.bf16.gmra.mrb[0].mxu0 %v744
  %v2332 = vpop.f32.mrb[0].mxu0
  %v2333 = vadd.f32 %v2220, %v2332
  %v2334 = vpop.f32.mrb[0].mxu0
  %v2335 = vadd.f32 %v2222, %v2334
  %v2336 = vpop.f32.mrb[0].mxu0
  %v2337 = vadd.f32 %v2224, %v2336
  %v2338 = vpop.f32.mrb[0].mxu0
  %v2339 = vadd.f32 %v2226, %v2338
  %2340 = vmatprep.mubr.bf16.mxu0 %v759
  %2341 = vmatmul.mubr.bf16.gmra.mrb[0].mxu0 %v758
  %v2342 = vpop.f32.mrb[0].mxu0
  %v2343 = vadd.f32 %v2230, %v2342
  %v2344 = vpop.f32.mrb[0].mxu0
  %v2345 = vadd.f32 %v2232, %v2344
  %v2346 = vpop.f32.mrb[0].mxu0
  %v2347 = vadd.f32 %v2234, %v2346
  %v2348 = vpop.f32.mrb[0].mxu0
  %v2349 = vadd.f32 %v2236, %v2348
  %2350 = vmatprep.mubr.bf16.mxu0 %v773
  %2351 = vmatmul.mubr.bf16.gmra.mrb[0].mxu0 %v772
  %v2352 = vpop.f32.mrb[0].mxu0
  %v2353 = vadd.f32 %v2240, %v2352
  %v2354 = vpop.f32.mrb[0].mxu0
  %v2355 = vadd.f32 %v2242, %v2354
  %v2356 = vpop.f32.mrb[0].mxu0
  %v2357 = vadd.f32 %v2244, %v2356
  %v2358 = vpop.f32.mrb[0].mxu0
  %v2359 = vadd.f32 %v2246, %v2358
  %2360 = vmatprep.mubr.bf16.mxu0 %v787
  %2361 = vmatmul.mubr.bf16.gmra.mrb[0].mxu0 %v786
  %v2362 = vpop.f32.mrb[0].mxu0
  %v2363 = vadd.f32 %v2250, %v2362
  %v2364 = vpop.f32.mrb[0].mxu0
  %v2365 = vadd.f32 %v2252, %v2364
  %v2366 = vpop.f32.mrb[0].mxu0
  %v2367 = vadd.f32 %v2254, %v2366
  %v2368 = vpop.f32.mrb[0].mxu0
  %v2369 = vadd.f32 %v2256, %v2368
  %2370 = vmatprep.mubr.bf16.mxu0 %v801
  %2371 = vmatmul.mubr.bf16.gmra.mrb[0].mxu0 %v800
  %v2372 = vpop.f32.mrb[0].mxu0
  %v2373 = vadd.f32 %v2260, %v2372
  %v2374 = vpop.f32.mrb[0].mxu0
  %v2375 = vadd.f32 %v2262, %v2374
  %v2376 = vpop.f32.mrb[0].mxu0
  %v2377 = vadd.f32 %v2264, %v2376
  %v2378 = vpop.f32.mrb[0].mxu0
  %v2379 = vadd.f32 %v2266, %v2378
  %2380 = vdwg.mxu0
  %2381 = vmatprep.subr.bf16.mxu0 %v1691
  %2382 = vmatpush1.bf16.msra.mxu0 %v1690
  %2383 = vmatprep.subr.bf16.mxu0 %v1693
  %2384 = vmatpush1.bf16.msra.mxu0 %v1692
  %2385 = vmatprep.subr.bf16.mxu0 %v1695
  %2386 = vmatpush1.bf16.msra.mxu0 %v1694
  %2387 = vmatprep.subr.bf16.mxu0 %v1697
  %2388 = vmatpush1.bf16.msra.mxu0 %v1696
  %2389 = vmatprep.subr.bf16.mxu0 %v1699
  %2390 = vmatpush1.bf16.msra.mxu0 %v1698
  %2391 = vmatprep.subr.bf16.mxu0 %v1701
  %2392 = vmatpush1.bf16.msra.mxu0 %v1700
  %2393 = vmatprep.subr.bf16.mxu0 %v1703
  %2394 = vmatpush1.bf16.msra.mxu0 %v1702
  %2395 = vmatprep.subr.bf16.mxu0 %v1705
  %2396 = vmatpush1.bf16.msra.mxu0 %v1704
  %2397 = vmatprep.subr.bf16.mxu0 %v1707
  %2398 = vmatpush1.bf16.msra.mxu0 %v1706
  %2399 = vmatprep.subr.bf16.mxu0 %v1709
  %2400 = vmatpush1.bf16.msra.mxu0 %v1708
  %2401 = vmatprep.subr.bf16.mxu0 %v1711
  %2402 = vmatpush1.bf16.msra.mxu0 %v1710
  %2403 = vmatprep.subr.bf16.mxu0 %v1713
  %2404 = vmatpush1.bf16.msra.mxu0 %v1712
  %2405 = vmatprep.subr.bf16.mxu0 %v1715
  %2406 = vmatpush1.bf16.msra.mxu0 %v1714
  %2407 = vmatprep.subr.bf16.mxu0 %v1717
  %2408 = vmatpush1.bf16.msra.mxu0 %v1716
  %2409 = vmatprep.subr.bf16.mxu0 %v1719
  %2410 = vmatpush1.bf16.msra.mxu0 %v1718
  %2411 = vmatprep.subr.bf16.mxu0 %v1721
  %2412 = vmatpush1.bf16.msra.mxu0 %v1720
  %2413 = vmatprep.mubr.bf16.mxu0 %v705
  %2414 = vmatmul.mubr.bf16.gmra.mrb[0].mxu0 %v704
  %v2415 = vpop.f32.mrb[0].mxu0
  %v2416 = vadd.f32 %v2303, %v2415
  %v2417 = vpop.f32.mrb[0].mxu0
  %v2418 = vadd.f32 %v2305, %v2417
  %v2419 = vpop.f32.mrb[0].mxu0
  %v2420 = vadd.f32 %v2307, %v2419
  %v2421 = vpop.f32.mrb[0].mxu0
  %v2422 = vadd.f32 %v2309, %v2421
  %2423 = vmatprep.mubr.bf16.mxu0 %v719
  %2424 = vmatmul.mubr.bf16.gmra.mrb[0].mxu0 %v718
  %v2425 = vpop.f32.mrb[0].mxu0
  %v2426 = vadd.f32 %v2313, %v2425
  %v2427 = vpop.f32.mrb[0].mxu0
  %v2428 = vadd.f32 %v2315, %v2427
  %v2429 = vpop.f32.mrb[0].mxu0
  %v2430 = vadd.f32 %v2317, %v2429
  %v2431 = vpop.f32.mrb[0].mxu0
  %v2432 = vadd.f32 %v2319, %v2431
  %2433 = vmatprep.mubr.bf16.mxu0 %v733
  %2434 = vmatmul.mubr.bf16.gmra.mrb[0].mxu0 %v732
  %v2435 = vpop.f32.mrb[0].mxu0
  %v2436 = vadd.f32 %v2323, %v2435
  %v2437 = vpop.f32.mrb[0].mxu0
  %v2438 = vadd.f32 %v2325, %v2437
  %v2439 = vpop.f32.mrb[0].mxu0
  %v2440 = vadd.f32 %v2327, %v2439
  %v2441 = vpop.f32.mrb[0].mxu0
  %v2442 = vadd.f32 %v2329, %v2441
  %2443 = vmatprep.mubr.bf16.mxu0 %v747
  %2444 = vmatmul.mubr.bf16.gmra.mrb[0].mxu0 %v746
  %v2445 = vpop.f32.mrb[0].mxu0
  %v2446 = vadd.f32 %v2333, %v2445
  %v2447 = vpop.f32.mrb[0].mxu0
  %v2448 = vadd.f32 %v2335, %v2447
  %v2449 = vpop.f32.mrb[0].mxu0
  %v2450 = vadd.f32 %v2337, %v2449
  %v2451 = vpop.f32.mrb[0].mxu0
  %v2452 = vadd.f32 %v2339, %v2451
  %2453 = vmatprep.mubr.bf16.mxu0 %v761
  %2454 = vmatmul.mubr.bf16.gmra.mrb[0].mxu0 %v760
  %v2455 = vpop.f32.mrb[0].mxu0
  %v2456 = vadd.f32 %v2343, %v2455
  %v2457 = vpop.f32.mrb[0].mxu0
  %v2458 = vadd.f32 %v2345, %v2457
  %v2459 = vpop.f32.mrb[0].mxu0
  %v2460 = vadd.f32 %v2347, %v2459
  %v2461 = vpop.f32.mrb[0].mxu0
  %v2462 = vadd.f32 %v2349, %v2461
  %2463 = vmatprep.mubr.bf16.mxu0 %v775
  %2464 = vmatmul.mubr.bf16.gmra.mrb[0].mxu0 %v774
  %v2465 = vpop.f32.mrb[0].mxu0
  %v2466 = vadd.f32 %v2353, %v2465
  %v2467 = vpop.f32.mrb[0].mxu0
  %v2468 = vadd.f32 %v2355, %v2467
  %v2469 = vpop.f32.mrb[0].mxu0
  %v2470 = vadd.f32 %v2357, %v2469
  %v2471 = vpop.f32.mrb[0].mxu0
  %v2472 = vadd.f32 %v2359, %v2471
  %2473 = vmatprep.mubr.bf16.mxu0 %v789
  %2474 = vmatmul.mubr.bf16.gmra.mrb[0].mxu0 %v788
  %v2475 = vpop.f32.mrb[0].mxu0
  %v2476 = vadd.f32 %v2363, %v2475
  %v2477 = vpop.f32.mrb[0].mxu0
  %v2478 = vadd.f32 %v2365, %v2477
  %v2479 = vpop.f32.mrb[0].mxu0
  %v2480 = vadd.f32 %v2367, %v2479
  %v2481 = vpop.f32.mrb[0].mxu0
  %v2482 = vadd.f32 %v2369, %v2481
  %2483 = vmatprep.mubr.bf16.mxu0 %v803
  %2484 = vmatmul.mubr.bf16.gmra.mrb[0].mxu0 %v802
  %v2485 = vpop.f32.mrb[0].mxu0
  %v2486 = vadd.f32 %v2373, %v2485
  %v2487 = vpop.f32.mrb[0].mxu0
  %v2488 = vadd.f32 %v2375, %v2487
  %v2489 = vpop.f32.mrb[0].mxu0
  %v2490 = vadd.f32 %v2377, %v2489
  %v2491 = vpop.f32.mrb[0].mxu0
  %v2492 = vadd.f32 %v2379, %v2491
  %2493 = vdwg.mxu0
  %2494 = vmatprep.subr.bf16.mxu0 %v1723
  %2495 = vmatpush1.bf16.msra.mxu0 %v1722
  %2496 = vmatprep.subr.bf16.mxu0 %v1725
  %2497 = vmatpush1.bf16.msra.mxu0 %v1724
  %2498 = vmatprep.subr.bf16.mxu0 %v1727
  %2499 = vmatpush1.bf16.msra.mxu0 %v1726
  %2500 = vmatprep.subr.bf16.mxu0 %v1729
  %2501 = vmatpush1.bf16.msra.mxu0 %v1728
  %2502 = vmatprep.subr.bf16.mxu0 %v1731
  %2503 = vmatpush1.bf16.msra.mxu0 %v1730
  %2504 = vmatprep.subr.bf16.mxu0 %v1733
  %2505 = vmatpush1.bf16.msra.mxu0 %v1732
  %2506 = vmatprep.subr.bf16.mxu0 %v1735
  %2507 = vmatpush1.bf16.msra.mxu0 %v1734
  %2508 = vmatprep.subr.bf16.mxu0 %v1737
  %2509 = vmatpush1.bf16.msra.mxu0 %v1736
  %2510 = vmatprep.subr.bf16.mxu0 %v1739
  %2511 = vmatpush1.bf16.msra.mxu0 %v1738
  %2512 = vmatprep.subr.bf16.mxu0 %v1741
  %2513 = vmatpush1.bf16.msra.mxu0 %v1740
  %2514 = vmatprep.subr.bf16.mxu0 %v1743
  %2515 = vmatpush1.bf16.msra.mxu0 %v1742
  %2516 = vmatprep.subr.bf16.mxu0 %v1745
  %2517 = vmatpush1.bf16.msra.mxu0 %v1744
  %2518 = vmatprep.subr.bf16.mxu0 %v1747
  %2519 = vmatpush1.bf16.msra.mxu0 %v1746
  %2520 = vmatprep.subr.bf16.mxu0 %v1749
  %2521 = vmatpush1.bf16.msra.mxu0 %v1748
  %2522 = vmatprep.subr.bf16.mxu0 %v1751
  %2523 = vmatpush1.bf16.msra.mxu0 %v1750
  %2524 = vmatprep.subr.bf16.mxu0 %v1753
  %2525 = vmatpush1.bf16.msra.mxu0 %v1752
  %2526 = vmatprep.mubr.bf16.mxu0 %v707
  %2527 = vmatmul.mubr.bf16.gmra.mrb[0].mxu0 %v706
  %v2528 = vpop.f32.mrb[0].mxu0
  %v2529 = vadd.f32 %v2416, %v2528
  %v2530 = vpop.f32.mrb[0].mxu0
  %v2531 = vadd.f32 %v2418, %v2530
  %v2532 = vpop.f32.mrb[0].mxu0
  %v2533 = vadd.f32 %v2420, %v2532
  %v2534 = vpop.f32.mrb[0].mxu0
  %v2535 = vadd.f32 %v2422, %v2534
  %2536 = vmatprep.mubr.bf16.mxu0 %v721
  %2537 = vmatmul.mubr.bf16.gmra.mrb[0].mxu0 %v720
  %v2538 = vpop.f32.mrb[0].mxu0
  %v2539 = vadd.f32 %v2426, %v2538
  %v2540 = vpop.f32.mrb[0].mxu0
  %v2541 = vadd.f32 %v2428, %v2540
  %v2542 = vpop.f32.mrb[0].mxu0
  %v2543 = vadd.f32 %v2430, %v2542
  %v2544 = vpop.f32.mrb[0].mxu0
  %v2545 = vadd.f32 %v2432, %v2544
  %2546 = vmatprep.mubr.bf16.mxu0 %v735
  %2547 = vmatmul.mubr.bf16.gmra.mrb[0].mxu0 %v734
  %v2548 = vpop.f32.mrb[0].mxu0
  %v2549 = vadd.f32 %v2436, %v2548
  %v2550 = vpop.f32.mrb[0].mxu0
  %v2551 = vadd.f32 %v2438, %v2550
  %v2552 = vpop.f32.mrb[0].mxu0
  %v2553 = vadd.f32 %v2440, %v2552
  %v2554 = vpop.f32.mrb[0].mxu0
  %v2555 = vadd.f32 %v2442, %v2554
  %2556 = vmatprep.mubr.bf16.mxu0 %v749
  %2557 = vmatmul.mubr.bf16.gmra.mrb[0].mxu0 %v748
  %v2558 = vpop.f32.mrb[0].mxu0
  %v2559 = vadd.f32 %v2446, %v2558
  %v2560 = vpop.f32.mrb[0].mxu0
  %v2561 = vadd.f32 %v2448, %v2560
  %v2562 = vpop.f32.mrb[0].mxu0
  %v2563 = vadd.f32 %v2450, %v2562
  %v2564 = vpop.f32.mrb[0].mxu0
  %v2565 = vadd.f32 %v2452, %v2564
  %2566 = vmatprep.mubr.bf16.mxu0 %v763
  %2567 = vmatmul.mubr.bf16.gmra.mrb[0].mxu0 %v762
  %v2568 = vpop.f32.mrb[0].mxu0
  %v2569 = vadd.f32 %v2456, %v2568
  %v2570 = vpop.f32.mrb[0].mxu0
  %v2571 = vadd.f32 %v2458, %v2570
  %v2572 = vpop.f32.mrb[0].mxu0
  %v2573 = vadd.f32 %v2460, %v2572
  %v2574 = vpop.f32.mrb[0].mxu0
  %v2575 = vadd.f32 %v2462, %v2574
  %2576 = vmatprep.mubr.bf16.mxu0 %v777
  %2577 = vmatmul.mubr.bf16.gmra.mrb[0].mxu0 %v776
  %v2578 = vpop.f32.mrb[0].mxu0
  %v2579 = vadd.f32 %v2466, %v2578
  %v2580 = vpop.f32.mrb[0].mxu0
  %v2581 = vadd.f32 %v2468, %v2580
  %v2582 = vpop.f32.mrb[0].mxu0
  %v2583 = vadd.f32 %v2470, %v2582
  %v2584 = vpop.f32.mrb[0].mxu0
  %v2585 = vadd.f32 %v2472, %v2584
  %2586 = vmatprep.mubr.bf16.mxu0 %v791
  %2587 = vmatmul.mubr.bf16.gmra.mrb[0].mxu0 %v790
  %v2588 = vpop.f32.mrb[0].mxu0
  %v2589 = vadd.f32 %v2476, %v2588
  %v2590 = vpop.f32.mrb[0].mxu0
  %v2591 = vadd.f32 %v2478, %v2590
  %v2592 = vpop.f32.mrb[0].mxu0
  %v2593 = vadd.f32 %v2480, %v2592
  %v2594 = vpop.f32.mrb[0].mxu0
  %v2595 = vadd.f32 %v2482, %v2594
  %2596 = vmatprep.mubr.bf16.mxu0 %v805
  %2597 = vmatmul.mubr.bf16.gmra.mrb[0].mxu0 %v804
  %v2598 = vpop.f32.mrb[0].mxu0
  %v2599 = vadd.f32 %v2486, %v2598
  %v2600 = vpop.f32.mrb[0].mxu0
  %v2601 = vadd.f32 %v2488, %v2600
  %v2602 = vpop.f32.mrb[0].mxu0
  %v2603 = vadd.f32 %v2490, %v2602
  %v2604 = vpop.f32.mrb[0].mxu0
  %v2605 = vadd.f32 %v2492, %v2604
  %2606 = vdwg.mxu0
  %2607 = vmatprep.subr.bf16.mxu0 %v1755
  %2608 = vmatpush1.bf16.msra.mxu0 %v1754
  %2609 = vmatprep.subr.bf16.mxu0 %v1757
  %2610 = vmatpush1.bf16.msra.mxu0 %v1756
  %2611 = vmatprep.subr.bf16.mxu0 %v1759
  %2612 = vmatpush1.bf16.msra.mxu0 %v1758
  %2613 = vmatprep.subr.bf16.mxu0 %v1761
  %2614 = vmatpush1.bf16.msra.mxu0 %v1760
  %2615 = vmatprep.subr.bf16.mxu0 %v1763
  %2616 = vmatpush1.bf16.msra.mxu0 %v1762
  %2617 = vmatprep.subr.bf16.mxu0 %v1765
  %2618 = vmatpush1.bf16.msra.mxu0 %v1764
  %2619 = vmatprep.subr.bf16.mxu0 %v1767
  %2620 = vmatpush1.bf16.msra.mxu0 %v1766
  %2621 = vmatprep.subr.bf16.mxu0 %v1769
  %2622 = vmatpush1.bf16.msra.mxu0 %v1768
  %2623 = vmatprep.subr.bf16.mxu0 %v1771
  %2624 = vmatpush1.bf16.msra.mxu0 %v1770
  %2625 = vmatprep.subr.bf16.mxu0 %v1773
  %2626 = vmatpush1.bf16.msra.mxu0 %v1772
  %2627 = vmatprep.subr.bf16.mxu0 %v1775
  %2628 = vmatpush1.bf16.msra.mxu0 %v1774
  %2629 = vmatprep.subr.bf16.mxu0 %v1777
  %2630 = vmatpush1.bf16.msra.mxu0 %v1776
  %2631 = vmatprep.subr.bf16.mxu0 %v1779
  %2632 = vmatpush1.bf16.msra.mxu0 %v1778
  %2633 = vmatprep.subr.bf16.mxu0 %v1781
  %2634 = vmatpush1.bf16.msra.mxu0 %v1780
  %2635 = vmatprep.subr.bf16.mxu0 %v1783
  %2636 = vmatpush1.bf16.msra.mxu0 %v1782
  %2637 = vmatprep.subr.bf16.mxu0 %v1785
  %2638 = vmatpush1.bf16.msra.mxu0 %v1784
  %2639 = vmatprep.mubr.bf16.mxu0 %v709
  %2640 = vmatmul.mubr.bf16.gmra.mrb[0].mxu0 %v708
  %v2641 = vpop.f32.mrb[0].mxu0
  %v2642 = vadd.f32 %v2529, %v2641
  %v2643 = vpop.f32.mrb[0].mxu0
  %v2644 = vadd.f32 %v2531, %v2643
  %v2645 = vpop.f32.mrb[0].mxu0
  %v2646 = vadd.f32 %v2533, %v2645
  %v2647 = vpop.f32.mrb[0].mxu0
  %v2648 = vadd.f32 %v2535, %v2647
  %2649 = vmatprep.mubr.bf16.mxu0 %v723
  %2650 = vmatmul.mubr.bf16.gmra.mrb[0].mxu0 %v722
  %v2651 = vpop.f32.mrb[0].mxu0
  %v2652 = vadd.f32 %v2539, %v2651
  %v2653 = vpop.f32.mrb[0].mxu0
  %v2654 = vadd.f32 %v2541, %v2653
  %v2655 = vpop.f32.mrb[0].mxu0
  %v2656 = vadd.f32 %v2543, %v2655
  %v2657 = vpop.f32.mrb[0].mxu0
  %v2658 = vadd.f32 %v2545, %v2657
  %2659 = vmatprep.mubr.bf16.mxu0 %v737
  %2660 = vmatmul.mubr.bf16.gmra.mrb[0].mxu0 %v736
  %v2661 = vpop.f32.mrb[0].mxu0
  %v2662 = vadd.f32 %v2549, %v2661
  %v2663 = vpop.f32.mrb[0].mxu0
  %v2664 = vadd.f32 %v2551, %v2663
  %v2665 = vpop.f32.mrb[0].mxu0
  %v2666 = vadd.f32 %v2553, %v2665
  %v2667 = vpop.f32.mrb[0].mxu0
  %v2668 = vadd.f32 %v2555, %v2667
  %2669 = vmatprep.mubr.bf16.mxu0 %v751
  %2670 = vmatmul.mubr.bf16.gmra.mrb[0].mxu0 %v750
  %v2671 = vpop.f32.mrb[0].mxu0
  %v2672 = vadd.f32 %v2559, %v2671
  %v2673 = vpop.f32.mrb[0].mxu0
  %v2674 = vadd.f32 %v2561, %v2673
  %v2675 = vpop.f32.mrb[0].mxu0
  %v2676 = vadd.f32 %v2563, %v2675
  %v2677 = vpop.f32.mrb[0].mxu0
  %v2678 = vadd.f32 %v2565, %v2677
  %2679 = vmatprep.mubr.bf16.mxu0 %v765
  %2680 = vmatmul.mubr.bf16.gmra.mrb[0].mxu0 %v764
  %v2681 = vpop.f32.mrb[0].mxu0
  %v2682 = vadd.f32 %v2569, %v2681
  %v2683 = vpop.f32.mrb[0].mxu0
  %v2684 = vadd.f32 %v2571, %v2683
  %v2685 = vpop.f32.mrb[0].mxu0
  %v2686 = vadd.f32 %v2573, %v2685
  %v2687 = vpop.f32.mrb[0].mxu0
  %v2688 = vadd.f32 %v2575, %v2687
  %2689 = vmatprep.mubr.bf16.mxu0 %v779
  %2690 = vmatmul.mubr.bf16.gmra.mrb[0].mxu0 %v778
  %v2691 = vpop.f32.mrb[0].mxu0
  %v2692 = vadd.f32 %v2579, %v2691
  %v2693 = vpop.f32.mrb[0].mxu0
  %v2694 = vadd.f32 %v2581, %v2693
  %v2695 = vpop.f32.mrb[0].mxu0
  %v2696 = vadd.f32 %v2583, %v2695
  %v2697 = vpop.f32.mrb[0].mxu0
  %v2698 = vadd.f32 %v2585, %v2697
  %2699 = vmatprep.mubr.bf16.mxu0 %v793
  %2700 = vmatmul.mubr.bf16.gmra.mrb[0].mxu0 %v792
  %v2701 = vpop.f32.mrb[0].mxu0
  %v2702 = vadd.f32 %v2589, %v2701
  %v2703 = vpop.f32.mrb[0].mxu0
  %v2704 = vadd.f32 %v2591, %v2703
  %v2705 = vpop.f32.mrb[0].mxu0
  %v2706 = vadd.f32 %v2593, %v2705
  %v2707 = vpop.f32.mrb[0].mxu0
  %v2708 = vadd.f32 %v2595, %v2707
  %2709 = vmatprep.mubr.bf16.mxu0 %v807
  %2710 = vmatmul.mubr.bf16.gmra.mrb[0].mxu0 %v806
  %v2711 = vpop.f32.mrb[0].mxu0
  %v2712 = vadd.f32 %v2599, %v2711
  %v2713 = vpop.f32.mrb[0].mxu0
  %v2714 = vadd.f32 %v2601, %v2713
  %v2715 = vpop.f32.mrb[0].mxu0
  %v2716 = vadd.f32 %v2603, %v2715
  %v2717 = vpop.f32.mrb[0].mxu0
  %v2718 = vadd.f32 %v2605, %v2717
  %2719 = vdwg.mxu0
  %2720 = vmatprep.subr.bf16.mxu0 %v1787
  %2721 = vmatpush1.bf16.msra.mxu0 %v1786
  %2722 = vmatprep.subr.bf16.mxu0 %v1789
  %2723 = vmatpush1.bf16.msra.mxu0 %v1788
  %2724 = vmatprep.subr.bf16.mxu0 %v1791
  %2725 = vmatpush1.bf16.msra.mxu0 %v1790
  %2726 = vmatprep.subr.bf16.mxu0 %v1793
  %2727 = vmatpush1.bf16.msra.mxu0 %v1792
  %2728 = vmatprep.subr.bf16.mxu0 %v1795
  %2729 = vmatpush1.bf16.msra.mxu0 %v1794
  %2730 = vmatprep.subr.bf16.mxu0 %v1797
  %2731 = vmatpush1.bf16.msra.mxu0 %v1796
  %2732 = vmatprep.subr.bf16.mxu0 %v1799
  %2733 = vmatpush1.bf16.msra.mxu0 %v1798
  %2734 = vmatprep.subr.bf16.mxu0 %v1801
  %2735 = vmatpush1.bf16.msra.mxu0 %v1800
  %2736 = vmatprep.subr.bf16.mxu0 %v1803
  %2737 = vmatpush1.bf16.msra.mxu0 %v1802
  %2738 = vmatprep.subr.bf16.mxu0 %v1805
  %2739 = vmatpush1.bf16.msra.mxu0 %v1804
  %2740 = vmatprep.subr.bf16.mxu0 %v1807
  %2741 = vmatpush1.bf16.msra.mxu0 %v1806
  %2742 = vmatprep.subr.bf16.mxu0 %v1809
  %2743 = vmatpush1.bf16.msra.mxu0 %v1808
  %2744 = vmatprep.subr.bf16.mxu0 %v1811
  %2745 = vmatpush1.bf16.msra.mxu0 %v1810
  %2746 = vmatprep.subr.bf16.mxu0 %v1813
  %2747 = vmatpush1.bf16.msra.mxu0 %v1812
  %2748 = vmatprep.subr.bf16.mxu0 %v1815
  %2749 = vmatpush1.bf16.msra.mxu0 %v1814
  %2750 = vmatprep.subr.bf16.mxu0 %v1817
  %2751 = vmatpush1.bf16.msra.mxu0 %v1816
  %2752 = vmatprep.mubr.bf16.mxu0 %v711
  %2753 = vmatmul.mubr.bf16.gmra.mrb[0].mxu0 %v710
  %v2754 = vpop.f32.mrb[0].mxu0
  %v2755 = vadd.f32 %v2642, %v2754
  %v2756 = vpop.f32.mrb[0].mxu0
  %v2757 = vadd.f32 %v2644, %v2756
  %v2758 = vpop.f32.mrb[0].mxu0
  %v2759 = vadd.f32 %v2646, %v2758
  %v2760 = vpop.f32.mrb[0].mxu0
  %v2761 = vadd.f32 %v2648, %v2760
  %2762 = vmatprep.mubr.bf16.mxu0 %v725
  %2763 = vmatmul.mubr.bf16.gmra.mrb[0].mxu0 %v724
  %v2764 = vpop.f32.mrb[0].mxu0
  %v2765 = vadd.f32 %v2652, %v2764
  %v2766 = vpop.f32.mrb[0].mxu0
  %v2767 = vadd.f32 %v2654, %v2766
  %v2768 = vpop.f32.mrb[0].mxu0
  %v2769 = vadd.f32 %v2656, %v2768
  %v2770 = vpop.f32.mrb[0].mxu0
  %v2771 = vadd.f32 %v2658, %v2770
  %2772 = vmatprep.mubr.bf16.mxu0 %v739
  %2773 = vmatmul.mubr.bf16.gmra.mrb[0].mxu0 %v738
  %v2774 = vpop.f32.mrb[0].mxu0
  %v2775 = vadd.f32 %v2662, %v2774
  %v2776 = vpop.f32.mrb[0].mxu0
  %v2777 = vadd.f32 %v2664, %v2776
  %v2778 = vpop.f32.mrb[0].mxu0
  %v2779 = vadd.f32 %v2666, %v2778
  %v2780 = vpop.f32.mrb[0].mxu0
  %v2781 = vadd.f32 %v2668, %v2780
  %2782 = vmatprep.mubr.bf16.mxu0 %v753
  %2783 = vmatmul.mubr.bf16.gmra.mrb[0].mxu0 %v752
  %v2784 = vpop.f32.mrb[0].mxu0
  %v2785 = vadd.f32 %v2672, %v2784
  %v2786 = vpop.f32.mrb[0].mxu0
  %v2787 = vadd.f32 %v2674, %v2786
  %v2788 = vpop.f32.mrb[0].mxu0
  %v2789 = vadd.f32 %v2676, %v2788
  %v2790 = vpop.f32.mrb[0].mxu0
  %v2791 = vadd.f32 %v2678, %v2790
  %2792 = vmatprep.mubr.bf16.mxu0 %v767
  %2793 = vmatmul.mubr.bf16.gmra.mrb[0].mxu0 %v766
  %v2794 = vpop.f32.mrb[0].mxu0
  %v2795 = vadd.f32 %v2682, %v2794
  %v2796 = vpop.f32.mrb[0].mxu0
  %v2797 = vadd.f32 %v2684, %v2796
  %v2798 = vpop.f32.mrb[0].mxu0
  %v2799 = vadd.f32 %v2686, %v2798
  %v2800 = vpop.f32.mrb[0].mxu0
  %v2801 = vadd.f32 %v2688, %v2800
  %2802 = vmatprep.mubr.bf16.mxu0 %v781
  %2803 = vmatmul.mubr.bf16.gmra.mrb[0].mxu0 %v780
  %v2804 = vpop.f32.mrb[0].mxu0
  %v2805 = vadd.f32 %v2692, %v2804
  %v2806 = vpop.f32.mrb[0].mxu0
  %v2807 = vadd.f32 %v2694, %v2806
  %v2808 = vpop.f32.mrb[0].mxu0
  %v2809 = vadd.f32 %v2696, %v2808
  %v2810 = vpop.f32.mrb[0].mxu0
  %v2811 = vadd.f32 %v2698, %v2810
  %2812 = vmatprep.mubr.bf16.mxu0 %v795
  %2813 = vmatmul.mubr.bf16.gmra.mrb[0].mxu0 %v794
  %v2814 = vpop.f32.mrb[0].mxu0
  %v2815 = vadd.f32 %v2702, %v2814
  %v2816 = vpop.f32.mrb[0].mxu0
  %v2817 = vadd.f32 %v2704, %v2816
  %v2818 = vpop.f32.mrb[0].mxu0
  %v2819 = vadd.f32 %v2706, %v2818
  %v2820 = vpop.f32.mrb[0].mxu0
  %v2821 = vadd.f32 %v2708, %v2820
  %2822 = vmatprep.mubr.bf16.mxu0 %v809
  %2823 = vmatmul.mubr.bf16.gmra.mrb[0].mxu0 %v808
  %v2824 = vpop.f32.mrb[0].mxu0
  %v2825 = vadd.f32 %v2712, %v2824
  %v2826 = vpop.f32.mrb[0].mxu0
  %v2827 = vadd.f32 %v2714, %v2826
  %v2828 = vpop.f32.mrb[0].mxu0
  %v2829 = vadd.f32 %v2716, %v2828
  %v2830 = vpop.f32.mrb[0].mxu0
  %v2831 = vadd.f32 %v2718, %v2830
  %2832 = vdwg.mxu0
  %v2833 = vmax.f32 %v2755, 0.0
  %v2834 = vmax.f32 %v2757, 0.0
  %v2835 = vmax.f32 %v2759, 0.0
  %v2836 = vmax.f32 %v2761, 0.0
  %v2837 = vmax.f32 %v2765, 0.0
  %v2838 = vmax.f32 %v2767, 0.0
  %v2839 = vmax.f32 %v2769, 0.0
  %v2840 = vmax.f32 %v2771, 0.0
  %v2841 = vmax.f32 %v2775, 0.0
  %v2842 = vmax.f32 %v2777, 0.0
  %v2843 = vmax.f32 %v2779, 0.0
  %v2844 = vmax.f32 %v2781, 0.0
  %v2845 = vmax.f32 %v2785, 0.0
  %v2846 = vmax.f32 %v2787, 0.0
  %v2847 = vmax.f32 %v2789, 0.0
  %v2848 = vmax.f32 %v2791, 0.0
  %v2849 = vmax.f32 %v2795, 0.0
  %v2850 = vmax.f32 %v2797, 0.0
  %v2851 = vmax.f32 %v2799, 0.0
  %v2852 = vmax.f32 %v2801, 0.0
  %v2853 = vmax.f32 %v2805, 0.0
  %v2854 = vmax.f32 %v2807, 0.0
  %v2855 = vmax.f32 %v2809, 0.0
  %v2856 = vmax.f32 %v2811, 0.0
  %v2857 = vmax.f32 %v2815, 0.0
  %v2858 = vmax.f32 %v2817, 0.0
  %v2859 = vmax.f32 %v2819, 0.0
  %v2860 = vmax.f32 %v2821, 0.0
  %v2861 = vmax.f32 %v2825, 0.0
  %v2862 = vmax.f32 %v2827, 0.0
  %v2863 = vmax.f32 %v2829, 0.0
  %v2864 = vmax.f32 %v2831, 0.0
  %2865 = vst [vmem:[%s3] sm:$0xff] %v2833
  %vm2866 = vcmask 523264
  %2867 = vst.msk [vmem:[%s3 + $0x8] sm:$0xff] %vm2866, %v2834
  %2868 = vst [vmem:[%s3 + $0x10] sm:$0xff] %v2835
  %2869 = vst.msk [vmem:[%s3 + $0x18] sm:$0xff] %vm2866, %v2836
  %2870 = vst [vmem:[%s3 + $0x20] sm:$0xff] %v2837
  %2871 = vst.msk [vmem:[%s3 + $0x28] sm:$0xff] %vm2866, %v2838
  %2872 = vst [vmem:[%s3 + $0x30] sm:$0xff] %v2839
  %2873 = vst.msk [vmem:[%s3 + $0x38] sm:$0xff] %vm2866, %v2840
  %2874 = vst [vmem:[%s3 + $0x40] sm:$0xff] %v2841
  %2875 = vst.msk [vmem:[%s3 + $0x48] sm:$0xff] %vm2866, %v2842
  %2876 = vst [vmem:[%s3 + $0x50] sm:$0xff] %v2843
  %2877 = vst.msk [vmem:[%s3 + $0x58] sm:$0xff] %vm2866, %v2844
  %2878 = vst [vmem:[%s3 + $0x60] sm:$0xff] %v2845
  %2879 = vst.msk [vmem:[%s3 + $0x68] sm:$0xff] %vm2866, %v2846
  %2880 = vst [vmem:[%s3 + $0x70] sm:$0xff] %v2847
  %2881 = vst.msk [vmem:[%s3 + $0x78] sm:$0xff] %vm2866, %v2848
  %2882 = vst [vmem:[%s3 + $0x80] sm:$0xff] %v2849
  %2883 = vst.msk [vmem:[%s3 + $0x88] sm:$0xff] %vm2866, %v2850
  %2884 = vst [vmem:[%s3 + $0x90] sm:$0xff] %v2851
  %2885 = vst.msk [vmem:[%s3 + $0x98] sm:$0xff] %vm2866, %v2852
  %2886 = vst [vmem:[%s3 + $0xa0] sm:$0xff] %v2853
  %2887 = vst.msk [vmem:[%s3 + $0xa8] sm:$0xff] %vm2866, %v2854
  %2888 = vst [vmem:[%s3 + $0xb0] sm:$0xff] %v2855
  %2889 = vst.msk [vmem:[%s3 + $0xb8] sm:$0xff] %vm2866, %v2856
  %2890 = vst [vmem:[%s3 + $0xc0] sm:$0xff] %v2857
  %2891 = vst.msk [vmem:[%s3 + $0xc8] sm:$0xff] %vm2866, %v2858
  %2892 = vst [vmem:[%s3 + $0xd0] sm:$0xff] %v2859
  %2893 = vst.msk [vmem:[%s3 + $0xd8] sm:$0xff] %vm2866, %v2860
  %2894 = vst [vmem:[%s3 + $0xe0] sm:$0xff] %v2861
  %2895 = vst.msk [vmem:[%s3 + $0xe8] sm:$0xff] %vm2866, %v2862
  %2896 = vst [vmem:[%s3 + $0xf0] sm:$0xff] %v2863
  %2897 = vst.msk [vmem:[%s3 + $0xf8] sm:$0xff] %vm2866, %v2864
  // Predicated region
  $region14: #{inception_d_forward.9} parent=0 // pred_check
    _
  $region15: #{inception_d_forward.9} parent=0 // pred_check_branch
    %2899 = sbr.rel (0) target = $region17
  $region16: #{inception_d_forward.9} parent=0 // pred_region
    _
  $region17: #{inception_d_forward.9} parent=0 // pred_fallthru
    _
  // Predicated region
  $region18: #{inception_d_forward.9} parent=0 // pred_check
    _
  $region19: #{inception_d_forward.9} parent=0 // pred_check_branch
    %2901 = sbr.rel (0) target = $region21
  $region20: #{inception_d_forward.9} parent=0 // pred_region
    _
  $region21: #{inception_d_forward.9} parent=0 // pred_fallthru
    _

// kernel: inception_d_forward.6
$region0: #{inception_d_forward.6}
  #allocation0 [shape = 'u32[]', space=smem, size = 0x4, offset = 0x4, fixed_abs, tag = 'smem constant byte address 0x4 - core index']
  #allocation1 [shape = 'u32[144,128]{1,0:T(1,128)}', space=vmem, size = 0x12000, scoped, tag = 'internal scratch']
  %s0 = inlined_call_operand.vmem [shape: bf16[128,1792], index: 0, kind: input, shape index: {}]
  %s1 = inlined_call_operand.vmem [shape: bf16[1792,320], index: 1, kind: input, shape index: {}]
  %s2 = inlined_call_operand.vmem [shape: f32[1,320], index: 2, kind: input, shape index: {}]
  %s3 = inlined_call_operand.vmem [shape: f32[128,320], index: 3, kind: output, shape index: {}]
  %s4 = sld [smem:[#allocation0]]
  $region22: #{inception_d_forward.6} parent=0
    _
  %s6 = ssub.s32 1, %s4
  %s7 = scalar_select 0, %s6, %s4
  // Predicated region
  $region2: #{inception_d_forward.6} parent=0 // pred_check
    _
  $region3: #{inception_d_forward.6} parent=0 // pred_check_branch
    %9 = sbr.rel (0) target = $region5
  $region4: #{inception_d_forward.6} parent=0 // pred_region
    _
  $region5: #{inception_d_forward.6} parent=0 // pred_fallthru
    _
  // Predicated region
  $region6: #{inception_d_forward.6} parent=0 // pred_check
    _
  $region7: #{inception_d_forward.6} parent=0 // pred_check_branch
    %11 = sbr.rel (0) target = $region9
  $region8: #{inception_d_forward.6} parent=0 // pred_region
    _
  $region9: #{inception_d_forward.6} parent=0 // pred_fallthru
    _
  // Predicated region
  $region10: #{inception_d_forward.6} parent=0 // pred_check
    _
  $region11: #{inception_d_forward.6} parent=0 // pred_check_branch
    %13 = sbr.rel (0) target = $region13
  $region12: #{inception_d_forward.6} parent=0 // pred_region
    _
  $region13: #{inception_d_forward.6} parent=0 // pred_fallthru
    _
  %v15 = vld [vmem:[%s0] sm:$0xff]
  %v16 = vld [vmem:[%s0 + $0x8] sm:$0xff]
  %v17 = vld [vmem:[%s0 + $0x10] sm:$0xff]
  %v18 = vld [vmem:[%s0 + $0x18] sm:$0xff]
  %v19 = vld [vmem:[%s0 + $0x20] sm:$0xff]
  %v20 = vld [vmem:[%s0 + $0x28] sm:$0xff]
  %v21 = vld [vmem:[%s0 + $0x30] sm:$0xff]
  %v22 = vld [vmem:[%s0 + $0x38] sm:$0xff]
  %v23 = vld [vmem:[%s0 + $0x40] sm:$0xff]
  %v24 = vld [vmem:[%s0 + $0x48] sm:$0xff]
  %v25 = vld [vmem:[%s0 + $0x50] sm:$0xff]
  %v26 = vld [vmem:[%s0 + $0x58] sm:$0xff]
  %v27 = vld [vmem:[%s0 + $0x60] sm:$0xff]
  %v28 = vld [vmem:[%s0 + $0x68] sm:$0xff]
  %v29 = vld [vmem:[%s0 + $0x70] sm:$0xff]
  %v30 = vld [vmem:[%s0 + $0x78] sm:$0xff]
  %v31 = vld [vmem:[%s0 + $0x80] sm:$0xff]
  %v32 = vld [vmem:[%s0 + $0x88] sm:$0xff]
  %v33 = vld [vmem:[%s0 + $0x90] sm:$0xff]
  %v34 = vld [vmem:[%s0 + $0x98] sm:$0xff]
  %v35 = vld [vmem:[%s0 + $0xa0] sm:$0xff]
  %v36 = vld [vmem:[%s0 + $0xa8] sm:$0xff]
  %v37 = vld [vmem:[%s0 + $0xb0] sm:$0xff]
  %v38 = vld [vmem:[%s0 + $0xb8] sm:$0xff]
  %v39 = vld [vmem:[%s0 + $0xc0] sm:$0xff]
  %v40 = vld [vmem:[%s0 + $0xc8] sm:$0xff]
  %v41 = vld [vmem:[%s0 + $0xd0] sm:$0xff]
  %v42 = vld [vmem:[%s0 + $0xd8] sm:$0xff]
  %v43 = vld [vmem:[%s0 + $0xe0] sm:$0xff]
  %v44 = vld [vmem:[%s0 + $0xe8] sm:$0xff]
  %v45 = vld [vmem:[%s0 + $0xf0] sm:$0xff]
  %v46 = vld [vmem:[%s0 + $0xf8] sm:$0xff]
  %v47 = vld [vmem:[%s0 + $0x100] sm:$0xff]
  %v48 = vld [vmem:[%s0 + $0x108] sm:$0xff]
  %v49 = vld [vmem:[%s0 + $0x110] sm:$0xff]
  %v50 = vld [vmem:[%s0 + $0x118] sm:$0xff]
  %v51 = vld [vmem:[%s0 + $0x120] sm:$0xff]
  %v52 = vld [vmem:[%s0 + $0x128] sm:$0xff]
  %v53 = vld [vmem:[%s0 + $0x130] sm:$0xff]
  %v54 = vld [vmem:[%s0 + $0x138] sm:$0xff]
  %v55 = vld [vmem:[%s0 + $0x140] sm:$0xff]
  %v56 = vld [vmem:[%s0 + $0x148] sm:$0xff]
  %v57 = vld [vmem:[%s0 + $0x150] sm:$0xff]
  %v58 = vld [vmem:[%s0 + $0x158] sm:$0xff]
  %v59 = vld [vmem:[%s0 + $0x160] sm:$0xff]
  %v60 = vld [vmem:[%s0 + $0x168] sm:$0xff]
  %v61 = vld [vmem:[%s0 + $0x170] sm:$0xff]
  %v62 = vld [vmem:[%s0 + $0x178] sm:$0xff]
  %v63 = vld [vmem:[%s0 + $0x180] sm:$0xff]
  %v64 = vld [vmem:[%s0 + $0x188] sm:$0xff]
  %v65 = vld [vmem:[%s0 + $0x190] sm:$0xff]
  %v66 = vld [vmem:[%s0 + $0x198] sm:$0xff]
  %v67 = vld [vmem:[%s0 + $0x1a0] sm:$0xff]
  %v68 = vld [vmem:[%s0 + $0x1a8] sm:$0xff]
  %v69 = vld [vmem:[%s0 + $0x1b0] sm:$0xff]
  %v70 = vld [vmem:[%s0 + $0x1b8] sm:$0xff]
  %v71 = vld [vmem:[%s0 + $0x1c0] sm:$0xff]
  %v72 = vld [vmem:[%s0 + $0x1c8] sm:$0xff]
  %v73 = vld [vmem:[%s0 + $0x1d0] sm:$0xff]
  %v74 = vld [vmem:[%s0 + $0x1d8] sm:$0xff]
  %v75 = vld [vmem:[%s0 + $0x1e0] sm:$0xff]
  %v76 = vld [vmem:[%s0 + $0x1e8] sm:$0xff]
  %v77 = vld [vmem:[%s0 + $0x1f0] sm:$0xff]
  %v78 = vld [vmem:[%s0 + $0x1f8] sm:$0xff]
  %v79 = vld [vmem:[%s0 + $0x200] sm:$0xff]
  %v80 = vld [vmem:[%s0 + $0x208] sm:$0xff]
  %v81 = vld [vmem:[%s0 + $0x210] sm:$0xff]
  %v82 = vld [vmem:[%s0 + $0x218] sm:$0xff]
  %v83 = vld [vmem:[%s0 + $0x220] sm:$0xff]
  %v84 = vld [vmem:[%s0 + $0x228] sm:$0xff]
  %v85 = vld [vmem:[%s0 + $0x230] sm:$0xff]
  %v86 = vld [vmem:[%s0 + $0x238] sm:$0xff]
  %v87 = vld [vmem:[%s0 + $0x240] sm:$0xff]
  %v88 = vld [vmem:[%s0 + $0x248] sm:$0xff]
  %v89 = vld [vmem:[%s0 + $0x250] sm:$0xff]
  %v90 = vld [vmem:[%s0 + $0x258] sm:$0xff]
  %v91 = vld [vmem:[%s0 + $0x260] sm:$0xff]
  %v92 = vld [vmem:[%s0 + $0x268] sm:$0xff]
  %v93 = vld [vmem:[%s0 + $0x270] sm:$0xff]
  %v94 = vld [vmem:[%s0 + $0x278] sm:$0xff]
  %v95 = vld [vmem:[%s0 + $0x280] sm:$0xff]
  %v96 = vld [vmem:[%s0 + $0x288] sm:$0xff]
  %v97 = vld [vmem:[%s0 + $0x290] sm:$0xff]
  %v98 = vld [vmem:[%s0 + $0x298] sm:$0xff]
  %v99 = vld [vmem:[%s0 + $0x2a0] sm:$0xff]
  %v100 = vld [vmem:[%s0 + $0x2a8] sm:$0xff]
  %v101 = vld [vmem:[%s0 + $0x2b0] sm:$0xff]
  %v102 = vld [vmem:[%s0 + $0x2b8] sm:$0xff]
  %v103 = vld [vmem:[%s0 + $0x2c0] sm:$0xff]
  %v104 = vld [vmem:[%s0 + $0x2c8] sm:$0xff]
  %v105 = vld [vmem:[%s0 + $0x2d0] sm:$0xff]
  %v106 = vld [vmem:[%s0 + $0x2d8] sm:$0xff]
  %v107 = vld [vmem:[%s0 + $0x2e0] sm:$0xff]
  %v108 = vld [vmem:[%s0 + $0x2e8] sm:$0xff]
  %v109 = vld [vmem:[%s0 + $0x2f0] sm:$0xff]
  %v110 = vld [vmem:[%s0 + $0x2f8] sm:$0xff]
  %v111 = vld [vmem:[%s0 + $0x300] sm:$0xff]
  %v112 = vld [vmem:[%s0 + $0x308] sm:$0xff]
  %v113 = vld [vmem:[%s0 + $0x310] sm:$0xff]
  %v114 = vld [vmem:[%s0 + $0x318] sm:$0xff]
  %v115 = vld [vmem:[%s0 + $0x320] sm:$0xff]
  %v116 = vld [vmem:[%s0 + $0x328] sm:$0xff]
  %v117 = vld [vmem:[%s0 + $0x330] sm:$0xff]
  %v118 = vld [vmem:[%s0 + $0x338] sm:$0xff]
  %v119 = vld [vmem:[%s0 + $0x340] sm:$0xff]
  %v120 = vld [vmem:[%s0 + $0x348] sm:$0xff]
  %v121 = vld [vmem:[%s0 + $0x350] sm:$0xff]
  %v122 = vld [vmem:[%s0 + $0x358] sm:$0xff]
  %v123 = vld [vmem:[%s0 + $0x360] sm:$0xff]
  %v124 = vld [vmem:[%s0 + $0x368] sm:$0xff]
  %v125 = vld [vmem:[%s0 + $0x370] sm:$0xff]
  %v126 = vld [vmem:[%s0 + $0x378] sm:$0xff]
  %v127 = vld [vmem:[%s1] sm:$0xff]
  %v128 = vld [vmem:[%s1 + $0x8] sm:$0xf]
  %v129 = vld [vmem:[%s1 + $0xc] sm:$0xff]
  %v130 = vld [vmem:[%s1 + $0x14] sm:$0xf]
  %v131 = vld [vmem:[%s1 + $0x18] sm:$0xff]
  %v132 = vld [vmem:[%s1 + $0x20] sm:$0xf]
  %v133 = vld [vmem:[%s1 + $0x24] sm:$0xff]
  %v134 = vld [vmem:[%s1 + $0x2c] sm:$0xf]
  %v135 = vld [vmem:[%s1 + $0x30] sm:$0xff]
  %v136 = vld [vmem:[%s1 + $0x38] sm:$0xf]
  %v137 = vld [vmem:[%s1 + $0x3c] sm:$0xff]
  %v138 = vld [vmem:[%s1 + $0x44] sm:$0xf]
  %v139 = vld [vmem:[%s1 + $0x48] sm:$0xff]
  %v140 = vld [vmem:[%s1 + $0x50] sm:$0xf]
  %v141 = vld [vmem:[%s1 + $0x54] sm:$0xff]
  %v142 = vld [vmem:[%s1 + $0x5c] sm:$0xf]
  %v143 = vld [vmem:[%s1 + $0x60] sm:$0xff]
  %v144 = vld [vmem:[%s1 + $0x68] sm:$0xf]
  %v145 = vld [vmem:[%s1 + $0x6c] sm:$0xff]
  %v146 = vld [vmem:[%s1 + $0x74] sm:$0xf]
  %v147 = vld [vmem:[%s1 + $0x78] sm:$0xff]
  %v148 = vld [vmem:[%s1 + $0x80] sm:$0xf]
  %v149 = vld [vmem:[%s1 + $0x84] sm:$0xff]
  %v150 = vld [vmem:[%s1 + $0x8c] sm:$0xf]
  %v151 = vld [vmem:[%s1 + $0x90] sm:$0xff]
  %v152 = vld [vmem:[%s1 + $0x98] sm:$0xf]
  %v153 = vld [vmem:[%s1 + $0x9c] sm:$0xff]
  %v154 = vld [vmem:[%s1 + $0xa4] sm:$0xf]
  %v155 = vld [vmem:[%s1 + $0xa8] sm:$0xff]
  %v156 = vld [vmem:[%s1 + $0xb0] sm:$0xf]
  %v157 = vld [vmem:[%s1 + $0xb4] sm:$0xff]
  %v158 = vld [vmem:[%s1 + $0xbc] sm:$0xf]
  %v159 = vld [vmem:[%s1 + $0xc0] sm:$0xff]
  %v160 = vld [vmem:[%s1 + $0xc8] sm:$0xf]
  %v161 = vld [vmem:[%s1 + $0xcc] sm:$0xff]
  %v162 = vld [vmem:[%s1 + $0xd4] sm:$0xf]
  %v163 = vld [vmem:[%s1 + $0xd8] sm:$0xff]
  %v164 = vld [vmem:[%s1 + $0xe0] sm:$0xf]
  %v165 = vld [vmem:[%s1 + $0xe4] sm:$0xff]
  %v166 = vld [vmem:[%s1 + $0xec] sm:$0xf]
  %v167 = vld [vmem:[%s1 + $0xf0] sm:$0xff]
  %v168 = vld [vmem:[%s1 + $0xf8] sm:$0xf]
  %v169 = vld [vmem:[%s1 + $0xfc] sm:$0xff]
  %v170 = vld [vmem:[%s1 + $0x104] sm:$0xf]
  %v171 = vld [vmem:[%s1 + $0x108] sm:$0xff]
  %v172 = vld [vmem:[%s1 + $0x110] sm:$0xf]
  %v173 = vld [vmem:[%s1 + $0x114] sm:$0xff]
  %v174 = vld [vmem:[%s1 + $0x11c] sm:$0xf]
  %v175 = vld [vmem:[%s1 + $0x120] sm:$0xff]
  %v176 = vld [vmem:[%s1 + $0x128] sm:$0xf]
  %v177 = vld [vmem:[%s1 + $0x12c] sm:$0xff]
  %v178 = vld [vmem:[%s1 + $0x134] sm:$0xf]
  %v179 = vld [vmem:[%s1 + $0x138] sm:$0xff]
  %v180 = vld [vmem:[%s1 + $0x140] sm:$0xf]
  %v181 = vld [vmem:[%s1 + $0x144] sm:$0xff]
  %v182 = vld [vmem:[%s1 + $0x14c] sm:$0xf]
  %v183 = vld [vmem:[%s1 + $0x150] sm:$0xff]
  %v184 = vld [vmem:[%s1 + $0x158] sm:$0xf]
  %v185 = vld [vmem:[%s1 + $0x15c] sm:$0xff]
  %v186 = vld [vmem:[%s1 + $0x164] sm:$0xf]
  %v187 = vld [vmem:[%s1 + $0x168] sm:$0xff]
  %v188 = vld [vmem:[%s1 + $0x170] sm:$0xf]
  %v189 = vld [vmem:[%s1 + $0x174] sm:$0xff]
  %v190 = vld [vmem:[%s1 + $0x17c] sm:$0xf]
  %v191 = vld [vmem:[%s1 + $0x180] sm:$0xff]
  %v192 = vld [vmem:[%s1 + $0x188] sm:$0xf]
  %v193 = vld [vmem:[%s1 + $0x18c] sm:$0xff]
  %v194 = vld [vmem:[%s1 + $0x194] sm:$0xf]
  %v195 = vld [vmem:[%s1 + $0x198] sm:$0xff]
  %v196 = vld [vmem:[%s1 + $0x1a0] sm:$0xf]
  %v197 = vld [vmem:[%s1 + $0x1a4] sm:$0xff]
  %v198 = vld [vmem:[%s1 + $0x1ac] sm:$0xf]
  %v199 = vld [vmem:[%s1 + $0x1b0] sm:$0xff]
  %v200 = vld [vmem:[%s1 + $0x1b8] sm:$0xf]
  %v201 = vld [vmem:[%s1 + $0x1bc] sm:$0xff]
  %v202 = vld [vmem:[%s1 + $0x1c4] sm:$0xf]
  %v203 = vld [vmem:[%s1 + $0x1c8] sm:$0xff]
  %v204 = vld [vmem:[%s1 + $0x1d0] sm:$0xf]
  %v205 = vld [vmem:[%s1 + $0x1d4] sm:$0xff]
  %v206 = vld [vmem:[%s1 + $0x1dc] sm:$0xf]
  %v207 = vld [vmem:[%s1 + $0x1e0] sm:$0xff]
  %v208 = vld [vmem:[%s1 + $0x1e8] sm:$0xf]
  %v209 = vld [vmem:[%s1 + $0x1ec] sm:$0xff]
  %v210 = vld [vmem:[%s1 + $0x1f4] sm:$0xf]
  %v211 = vld [vmem:[%s1 + $0x1f8] sm:$0xff]
  %v212 = vld [vmem:[%s1 + $0x200] sm:$0xf]
  %v213 = vld [vmem:[%s1 + $0x204] sm:$0xff]
  %v214 = vld [vmem:[%s1 + $0x20c] sm:$0xf]
  %v215 = vld [vmem:[%s1 + $0x210] sm:$0xff]
  %v216 = vld [vmem:[%s1 + $0x218] sm:$0xf]
  %v217 = vld [vmem:[%s1 + $0x21c] sm:$0xff]
  %v218 = vld [vmem:[%s1 + $0x224] sm:$0xf]
  %v219 = vld [vmem:[%s1 + $0x228] sm:$0xff]
  %v220 = vld [vmem:[%s1 + $0x230] sm:$0xf]
  %v221 = vld [vmem:[%s1 + $0x234] sm:$0xff]
  %v222 = vld [vmem:[%s1 + $0x23c] sm:$0xf]
  %v223 = vld [vmem:[%s1 + $0x240] sm:$0xff]
  %v224 = vld [vmem:[%s1 + $0x248] sm:$0xf]
  %v225 = vld [vmem:[%s1 + $0x24c] sm:$0xff]
  %v226 = vld [vmem:[%s1 + $0x254] sm:$0xf]
  %v227 = vld [vmem:[%s1 + $0x258] sm:$0xff]
  %v228 = vld [vmem:[%s1 + $0x260] sm:$0xf]
  %v229 = vld [vmem:[%s1 + $0x264] sm:$0xff]
  %v230 = vld [vmem:[%s1 + $0x26c] sm:$0xf]
  %v231 = vld [vmem:[%s1 + $0x270] sm:$0xff]
  %v232 = vld [vmem:[%s1 + $0x278] sm:$0xf]
  %v233 = vld [vmem:[%s1 + $0x27c] sm:$0xff]
  %v234 = vld [vmem:[%s1 + $0x284] sm:$0xf]
  %v235 = vld [vmem:[%s1 + $0x288] sm:$0xff]
  %v236 = vld [vmem:[%s1 + $0x290] sm:$0xf]
  %v237 = vld [vmem:[%s1 + $0x294] sm:$0xff]
  %v238 = vld [vmem:[%s1 + $0x29c] sm:$0xf]
  %v239 = vld [vmem:[%s1 + $0x2a0] sm:$0xff]
  %v240 = vld [vmem:[%s1 + $0x2a8] sm:$0xf]
  %v241 = vld [vmem:[%s1 + $0x2ac] sm:$0xff]
  %v242 = vld [vmem:[%s1 + $0x2b4] sm:$0xf]
  %v243 = vld [vmem:[%s1 + $0x2b8] sm:$0xff]
  %v244 = vld [vmem:[%s1 + $0x2c0] sm:$0xf]
  %v245 = vld [vmem:[%s1 + $0x2c4] sm:$0xff]
  %v246 = vld [vmem:[%s1 + $0x2cc] sm:$0xf]
  %v247 = vld [vmem:[%s1 + $0x2d0] sm:$0xff]
  %v248 = vld [vmem:[%s1 + $0x2d8] sm:$0xf]
  %v249 = vld [vmem:[%s1 + $0x2dc] sm:$0xff]
  %v250 = vld [vmem:[%s1 + $0x2e4] sm:$0xf]
  %v251 = vld [vmem:[%s1 + $0x2e8] sm:$0xff]
  %v252 = vld [vmem:[%s1 + $0x2f0] sm:$0xf]
  %v253 = vld [vmem:[%s1 + $0x2f4] sm:$0xff]
  %v254 = vld [vmem:[%s1 + $0x2fc] sm:$0xf]
  %v255 = vld [vmem:[%s1 + $0x300] sm:$0xff]
  %v256 = vld [vmem:[%s1 + $0x308] sm:$0xf]
  %v257 = vld [vmem:[%s1 + $0x30c] sm:$0xff]
  %v258 = vld [vmem:[%s1 + $0x314] sm:$0xf]
  %v259 = vld [vmem:[%s1 + $0x318] sm:$0xff]
  %v260 = vld [vmem:[%s1 + $0x320] sm:$0xf]
  %v261 = vld [vmem:[%s1 + $0x324] sm:$0xff]
  %v262 = vld [vmem:[%s1 + $0x32c] sm:$0xf]
  %v263 = vld [vmem:[%s1 + $0x330] sm:$0xff]
  %v264 = vld [vmem:[%s1 + $0x338] sm:$0xf]
  %v265 = vld [vmem:[%s1 + $0x33c] sm:$0xff]
  %v266 = vld [vmem:[%s1 + $0x344] sm:$0xf]
  %v267 = vld [vmem:[%s1 + $0x348] sm:$0xff]
  %v268 = vld [vmem:[%s1 + $0x350] sm:$0xf]
  %v269 = vld [vmem:[%s1 + $0x354] sm:$0xff]
  %v270 = vld [vmem:[%s1 + $0x35c] sm:$0xf]
  %v271 = vld [vmem:[%s1 + $0x360] sm:$0xff]
  %v272 = vld [vmem:[%s1 + $0x368] sm:$0xf]
  %v273 = vld [vmem:[%s1 + $0x36c] sm:$0xff]
  %v274 = vld [vmem:[%s1 + $0x374] sm:$0xf]
  %v275 = vld [vmem:[%s1 + $0x378] sm:$0xff]
  %v276 = vld [vmem:[%s1 + $0x380] sm:$0xf]
  %v277 = vld [vmem:[%s1 + $0x384] sm:$0xff]
  %v278 = vld [vmem:[%s1 + $0x38c] sm:$0xf]
  %v279 = vld [vmem:[%s1 + $0x390] sm:$0xff]
  %v280 = vld [vmem:[%s1 + $0x398] sm:$0xf]
  %v281 = vld [vmem:[%s1 + $0x39c] sm:$0xff]
  %v282 = vld [vmem:[%s1 + $0x3a4] sm:$0xf]
  %v283 = vld [vmem:[%s1 + $0x3a8] sm:$0xff]
  %v284 = vld [vmem:[%s1 + $0x3b0] sm:$0xf]
  %v285 = vld [vmem:[%s1 + $0x3b4] sm:$0xff]
  %v286 = vld [vmem:[%s1 + $0x3bc] sm:$0xf]
  %v287 = vld [vmem:[%s1 + $0x3c0] sm:$0xff]
  %v288 = vld [vmem:[%s1 + $0x3c8] sm:$0xf]
  %v289 = vld [vmem:[%s1 + $0x3cc] sm:$0xff]
  %v290 = vld [vmem:[%s1 + $0x3d4] sm:$0xf]
  %v291 = vld [vmem:[%s1 + $0x3d8] sm:$0xff]
  %v292 = vld [vmem:[%s1 + $0x3e0] sm:$0xf]
  %v293 = vld [vmem:[%s1 + $0x3e4] sm:$0xff]
  %v294 = vld [vmem:[%s1 + $0x3ec] sm:$0xf]
  %v295 = vld [vmem:[%s1 + $0x3f0] sm:$0xff]
  %v296 = vld [vmem:[%s1 + $0x3f8] sm:$0xf]
  %v297 = vld [vmem:[%s1 + $0x3fc] sm:$0xff]
  %v298 = vld [vmem:[%s1 + $0x404] sm:$0xf]
  %v299 = vld [vmem:[%s1 + $0x408] sm:$0xff]
  %v300 = vld [vmem:[%s1 + $0x410] sm:$0xf]
  %v301 = vld [vmem:[%s1 + $0x414] sm:$0xff]
  %v302 = vld [vmem:[%s1 + $0x41c] sm:$0xf]
  %v303 = vld [vmem:[%s1 + $0x420] sm:$0xff]
  %v304 = vld [vmem:[%s1 + $0x428] sm:$0xf]
  %v305 = vld [vmem:[%s1 + $0x42c] sm:$0xff]
  %v306 = vld [vmem:[%s1 + $0x434] sm:$0xf]
  %v307 = vld [vmem:[%s1 + $0x438] sm:$0xff]
  %v308 = vld [vmem:[%s1 + $0x440] sm:$0xf]
  %v309 = vld [vmem:[%s1 + $0x444] sm:$0xff]
  %v310 = vld [vmem:[%s1 + $0x44c] sm:$0xf]
  %v311 = vld [vmem:[%s1 + $0x450] sm:$0xff]
  %v312 = vld [vmem:[%s1 + $0x458] sm:$0xf]
  %v313 = vld [vmem:[%s1 + $0x45c] sm:$0xff]
  %v314 = vld [vmem:[%s1 + $0x464] sm:$0xf]
  %v315 = vld [vmem:[%s1 + $0x468] sm:$0xff]
  %v316 = vld [vmem:[%s1 + $0x470] sm:$0xf]
  %v317 = vld [vmem:[%s1 + $0x474] sm:$0xff]
  %v318 = vld [vmem:[%s1 + $0x47c] sm:$0xf]
  %v319 = vld [vmem:[%s1 + $0x480] sm:$0xff]
  %v320 = vld [vmem:[%s1 + $0x488] sm:$0xf]
  %v321 = vld [vmem:[%s1 + $0x48c] sm:$0xff]
  %v322 = vld [vmem:[%s1 + $0x494] sm:$0xf]
  %v323 = vld [vmem:[%s1 + $0x498] sm:$0xff]
  %v324 = vld [vmem:[%s1 + $0x4a0] sm:$0xf]
  %v325 = vld [vmem:[%s1 + $0x4a4] sm:$0xff]
  %v326 = vld [vmem:[%s1 + $0x4ac] sm:$0xf]
  %v327 = vld [vmem:[%s1 + $0x4b0] sm:$0xff]
  %v328 = vld [vmem:[%s1 + $0x4b8] sm:$0xf]
  %v329 = vld [vmem:[%s1 + $0x4bc] sm:$0xff]
  %v330 = vld [vmem:[%s1 + $0x4c4] sm:$0xf]
  %v331 = vld [vmem:[%s1 + $0x4c8] sm:$0xff]
  %v332 = vld [vmem:[%s1 + $0x4d0] sm:$0xf]
  %v333 = vld [vmem:[%s1 + $0x4d4] sm:$0xff]
  %v334 = vld [vmem:[%s1 + $0x4dc] sm:$0xf]
  %v335 = vld [vmem:[%s1 + $0x4e0] sm:$0xff]
  %v336 = vld [vmem:[%s1 + $0x4e8] sm:$0xf]
  %v337 = vld [vmem:[%s1 + $0x4ec] sm:$0xff]
  %v338 = vld [vmem:[%s1 + $0x4f4] sm:$0xf]
  %v339 = vld [vmem:[%s1 + $0x4f8] sm:$0xff]
  %v340 = vld [vmem:[%s1 + $0x500] sm:$0xf]
  %v341 = vld [vmem:[%s1 + $0x504] sm:$0xff]
  %v342 = vld [vmem:[%s1 + $0x50c] sm:$0xf]
  %v343 = vld [vmem:[%s1 + $0x510] sm:$0xff]
  %v344 = vld [vmem:[%s1 + $0x518] sm:$0xf]
  %v345 = vld [vmem:[%s1 + $0x51c] sm:$0xff]
  %v346 = vld [vmem:[%s1 + $0x524] sm:$0xf]
  %v347 = vld [vmem:[%s1 + $0x528] sm:$0xff]
  %v348 = vld [vmem:[%s1 + $0x530] sm:$0xf]
  %v349 = vld [vmem:[%s1 + $0x534] sm:$0xff]
  %v350 = vld [vmem:[%s1 + $0x53c] sm:$0xf]
  %v351 = vld [vmem:[%s1 + $0x540] sm:$0xff]
  %v352 = vld [vmem:[%s1 + $0x548] sm:$0xf]
  %v353 = vld [vmem:[%s1 + $0x54c] sm:$0xff]
  %v354 = vld [vmem:[%s1 + $0x554] sm:$0xf]
  %v355 = vld [vmem:[%s1 + $0x558] sm:$0xff]
  %v356 = vld [vmem:[%s1 + $0x560] sm:$0xf]
  %v357 = vld [vmem:[%s1 + $0x564] sm:$0xff]
  %v358 = vld [vmem:[%s1 + $0x56c] sm:$0xf]
  %v359 = vld [vmem:[%s1 + $0x570] sm:$0xff]
  %v360 = vld [vmem:[%s1 + $0x578] sm:$0xf]
  %v361 = vld [vmem:[%s1 + $0x57c] sm:$0xff]
  %v362 = vld [vmem:[%s1 + $0x584] sm:$0xf]
  %v363 = vld [vmem:[%s1 + $0x588] sm:$0xff]
  %v364 = vld [vmem:[%s1 + $0x590] sm:$0xf]
  %v365 = vld [vmem:[%s1 + $0x594] sm:$0xff]
  %v366 = vld [vmem:[%s1 + $0x59c] sm:$0xf]
  %v367 = vld [vmem:[%s1 + $0x5a0] sm:$0xff]
  %v368 = vld [vmem:[%s1 + $0x5a8] sm:$0xf]
  %v369 = vld [vmem:[%s1 + $0x5ac] sm:$0xff]
  %v370 = vld [vmem:[%s1 + $0x5b4] sm:$0xf]
  %v371 = vld [vmem:[%s1 + $0x5b8] sm:$0xff]
  %v372 = vld [vmem:[%s1 + $0x5c0] sm:$0xf]
  %v373 = vld [vmem:[%s1 + $0x5c4] sm:$0xff]
  %v374 = vld [vmem:[%s1 + $0x5cc] sm:$0xf]
  %v375 = vld [vmem:[%s1 + $0x5d0] sm:$0xff]
  %v376 = vld [vmem:[%s1 + $0x5d8] sm:$0xf]
  %v377 = vld [vmem:[%s1 + $0x5dc] sm:$0xff]
  %v378 = vld [vmem:[%s1 + $0x5e4] sm:$0xf]
  %v379 = vld [vmem:[%s1 + $0x5e8] sm:$0xff]
  %v380 = vld [vmem:[%s1 + $0x5f0] sm:$0xf]
  %v381 = vld [vmem:[%s1 + $0x5f4] sm:$0xff]
  %v382 = vld [vmem:[%s1 + $0x5fc] sm:$0xf]
  %v383 = vld [vmem:[%s1 + $0x600] sm:$0xff]
  %v384 = vld [vmem:[%s1 + $0x608] sm:$0xf]
  %v385 = vld [vmem:[%s1 + $0x60c] sm:$0xff]
  %v386 = vld [vmem:[%s1 + $0x614] sm:$0xf]
  %v387 = vld [vmem:[%s1 + $0x618] sm:$0xff]
  %v388 = vld [vmem:[%s1 + $0x620] sm:$0xf]
  %v389 = vld [vmem:[%s1 + $0x624] sm:$0xff]
  %v390 = vld [vmem:[%s1 + $0x62c] sm:$0xf]
  %v391 = vld [vmem:[%s1 + $0x630] sm:$0xff]
  %v392 = vld [vmem:[%s1 + $0x638] sm:$0xf]
  %v393 = vld [vmem:[%s1 + $0x63c] sm:$0xff]
  %v394 = vld [vmem:[%s1 + $0x644] sm:$0xf]
  %v395 = vld [vmem:[%s1 + $0x648] sm:$0xff]
  %v396 = vld [vmem:[%s1 + $0x650] sm:$0xf]
  %v397 = vld [vmem:[%s1 + $0x654] sm:$0xff]
  %v398 = vld [vmem:[%s1 + $0x65c] sm:$0xf]
  %v399 = vld [vmem:[%s1 + $0x660] sm:$0xff]
  %v400 = vld [vmem:[%s1 + $0x668] sm:$0xf]
  %v401 = vld [vmem:[%s1 + $0x66c] sm:$0xff]
  %v402 = vld [vmem:[%s1 + $0x674] sm:$0xf]
  %v403 = vld [vmem:[%s1 + $0x678] sm:$0xff]
  %v404 = vld [vmem:[%s1 + $0x680] sm:$0xf]
  %v405 = vld [vmem:[%s1 + $0x684] sm:$0xff]
  %v406 = vld [vmem:[%s1 + $0x68c] sm:$0xf]
  %v407 = vld [vmem:[%s1 + $0x690] sm:$0xff]
  %v408 = vld [vmem:[%s1 + $0x698] sm:$0xf]
  %v409 = vld [vmem:[%s1 + $0x69c] sm:$0xff]
  %v410 = vld [vmem:[%s1 + $0x6a4] sm:$0xf]
  %v411 = vld [vmem:[%s1 + $0x6a8] sm:$0xff]
  %v412 = vld [vmem:[%s1 + $0x6b0] sm:$0xf]
  %v413 = vld [vmem:[%s1 + $0x6b4] sm:$0xff]
  %v414 = vld [vmem:[%s1 + $0x6bc] sm:$0xf]
  %v415 = vld [vmem:[%s1 + $0x6c0] sm:$0xff]
  %v416 = vld [vmem:[%s1 + $0x6c8] sm:$0xf]
  %v417 = vld [vmem:[%s1 + $0x6cc] sm:$0xff]
  %v418 = vld [vmem:[%s1 + $0x6d4] sm:$0xf]
  %v419 = vld [vmem:[%s1 + $0x6d8] sm:$0xff]
  %v420 = vld [vmem:[%s1 + $0x6e0] sm:$0xf]
  %v421 = vld [vmem:[%s1 + $0x6e4] sm:$0xff]
  %v422 = vld [vmem:[%s1 + $0x6ec] sm:$0xf]
  %v423 = vld [vmem:[%s1 + $0x6f0] sm:$0xff]
  %v424 = vld [vmem:[%s1 + $0x6f8] sm:$0xf]
  %v425 = vld [vmem:[%s1 + $0x6fc] sm:$0xff]
  %v426 = vld [vmem:[%s1 + $0x704] sm:$0xf]
  %v427 = vld [vmem:[%s1 + $0x708] sm:$0xff]
  %v428 = vld [vmem:[%s1 + $0x710] sm:$0xf]
  %v429 = vld [vmem:[%s1 + $0x714] sm:$0xff]
  %v430 = vld [vmem:[%s1 + $0x71c] sm:$0xf]
  %v431 = vld [vmem:[%s1 + $0x720] sm:$0xff]
  %v432 = vld [vmem:[%s1 + $0x728] sm:$0xf]
  %v433 = vld [vmem:[%s1 + $0x72c] sm:$0xff]
  %v434 = vld [vmem:[%s1 + $0x734] sm:$0xf]
  %v435 = vld [vmem:[%s1 + $0x738] sm:$0xff]
  %v436 = vld [vmem:[%s1 + $0x740] sm:$0xf]
  %v437 = vld [vmem:[%s1 + $0x744] sm:$0xff]
  %v438 = vld [vmem:[%s1 + $0x74c] sm:$0xf]
  %v439 = vld [vmem:[%s1 + $0x750] sm:$0xff]
  %v440 = vld [vmem:[%s1 + $0x758] sm:$0xf]
  %v441 = vld [vmem:[%s1 + $0x75c] sm:$0xff]
  %v442 = vld [vmem:[%s1 + $0x764] sm:$0xf]
  %v443 = vld [vmem:[%s1 + $0x768] sm:$0xff]
  %v444 = vld [vmem:[%s1 + $0x770] sm:$0xf]
  %v445 = vld [vmem:[%s1 + $0x774] sm:$0xff]
  %v446 = vld [vmem:[%s1 + $0x77c] sm:$0xf]
  %v447 = vld [vmem:[%s1 + $0x780] sm:$0xff]
  %v448 = vld [vmem:[%s1 + $0x788] sm:$0xf]
  %v449 = vld [vmem:[%s1 + $0x78c] sm:$0xff]
  %v450 = vld [vmem:[%s1 + $0x794] sm:$0xf]
  %v451 = vld [vmem:[%s1 + $0x798] sm:$0xff]
  %v452 = vld [vmem:[%s1 + $0x7a0] sm:$0xf]
  %v453 = vld [vmem:[%s1 + $0x7a4] sm:$0xff]
  %v454 = vld [vmem:[%s1 + $0x7ac] sm:$0xf]
  %v455 = vld [vmem:[%s1 + $0x7b0] sm:$0xff]
  %v456 = vld [vmem:[%s1 + $0x7b8] sm:$0xf]
  %v457 = vld [vmem:[%s1 + $0x7bc] sm:$0xff]
  %v458 = vld [vmem:[%s1 + $0x7c4] sm:$0xf]
  %v459 = vld [vmem:[%s1 + $0x7c8] sm:$0xff]
  %v460 = vld [vmem:[%s1 + $0x7d0] sm:$0xf]
  %v461 = vld [vmem:[%s1 + $0x7d4] sm:$0xff]
  %v462 = vld [vmem:[%s1 + $0x7dc] sm:$0xf]
  %v463 = vld [vmem:[%s1 + $0x7e0] sm:$0xff]
  %v464 = vld [vmem:[%s1 + $0x7e8] sm:$0xf]
  %v465 = vld [vmem:[%s1 + $0x7ec] sm:$0xff]
  %v466 = vld [vmem:[%s1 + $0x7f4] sm:$0xf]
  %v467 = vld [vmem:[%s1 + $0x7f8] sm:$0xff]
  %v468 = vld [vmem:[%s1 + $0x800] sm:$0xf]
  %v469 = vld [vmem:[%s1 + $0x804] sm:$0xff]
  %v470 = vld [vmem:[%s1 + $0x80c] sm:$0xf]
  %v471 = vld [vmem:[%s1 + $0x810] sm:$0xff]
  %v472 = vld [vmem:[%s1 + $0x818] sm:$0xf]
  %v473 = vld [vmem:[%s1 + $0x81c] sm:$0xff]
  %v474 = vld [vmem:[%s1 + $0x824] sm:$0xf]
  %v475 = vld [vmem:[%s1 + $0x828] sm:$0xff]
  %v476 = vld [vmem:[%s1 + $0x830] sm:$0xf]
  %v477 = vld [vmem:[%s1 + $0x834] sm:$0xff]
  %v478 = vld [vmem:[%s1 + $0x83c] sm:$0xf]
  %v479 = vld [vmem:[%s1 + $0x840] sm:$0xff]
  %v480 = vld [vmem:[%s1 + $0x848] sm:$0xf]
  %v481 = vld [vmem:[%s1 + $0x84c] sm:$0xff]
  %v482 = vld [vmem:[%s1 + $0x854] sm:$0xf]
  %v483 = vld [vmem:[%s1 + $0x858] sm:$0xff]
  %v484 = vld [vmem:[%s1 + $0x860] sm:$0xf]
  %v485 = vld [vmem:[%s1 + $0x864] sm:$0xff]
  %v486 = vld [vmem:[%s1 + $0x86c] sm:$0xf]
  %v487 = vld [vmem:[%s1 + $0x870] sm:$0xff]
  %v488 = vld [vmem:[%s1 + $0x878] sm:$0xf]
  %v489 = vld [vmem:[%s1 + $0x87c] sm:$0xff]
  %v490 = vld [vmem:[%s1 + $0x884] sm:$0xf]
  %v491 = vld [vmem:[%s1 + $0x888] sm:$0xff]
  %v492 = vld [vmem:[%s1 + $0x890] sm:$0xf]
  %v493 = vld [vmem:[%s1 + $0x894] sm:$0xff]
  %v494 = vld [vmem:[%s1 + $0x89c] sm:$0xf]
  %v495 = vld [vmem:[%s1 + $0x8a0] sm:$0xff]
  %v496 = vld [vmem:[%s1 + $0x8a8] sm:$0xf]
  %v497 = vld [vmem:[%s1 + $0x8ac] sm:$0xff]
  %v498 = vld [vmem:[%s1 + $0x8b4] sm:$0xf]
  %v499 = vld [vmem:[%s1 + $0x8b8] sm:$0xff]
  %v500 = vld [vmem:[%s1 + $0x8c0] sm:$0xf]
  %v501 = vld [vmem:[%s1 + $0x8c4] sm:$0xff]
  %v502 = vld [vmem:[%s1 + $0x8cc] sm:$0xf]
  %v503 = vld [vmem:[%s1 + $0x8d0] sm:$0xff]
  %v504 = vld [vmem:[%s1 + $0x8d8] sm:$0xf]
  %v505 = vld [vmem:[%s1 + $0x8dc] sm:$0xff]
  %v506 = vld [vmem:[%s1 + $0x8e4] sm:$0xf]
  %v507 = vld [vmem:[%s1 + $0x8e8] sm:$0xff]
  %v508 = vld [vmem:[%s1 + $0x8f0] sm:$0xf]
  %v509 = vld [vmem:[%s1 + $0x8f4] sm:$0xff]
  %v510 = vld [vmem:[%s1 + $0x8fc] sm:$0xf]
  %v511 = vld [vmem:[%s1 + $0x900] sm:$0xff]
  %v512 = vld [vmem:[%s1 + $0x908] sm:$0xf]
  %v513 = vld [vmem:[%s1 + $0x90c] sm:$0xff]
  %v514 = vld [vmem:[%s1 + $0x914] sm:$0xf]
  %v515 = vld [vmem:[%s1 + $0x918] sm:$0xff]
  %v516 = vld [vmem:[%s1 + $0x920] sm:$0xf]
  %v517 = vld [vmem:[%s1 + $0x924] sm:$0xff]
  %v518 = vld [vmem:[%s1 + $0x92c] sm:$0xf]
  %v519 = vld [vmem:[%s1 + $0x930] sm:$0xff]
  %v520 = vld [vmem:[%s1 + $0x938] sm:$0xf]
  %v521 = vld [vmem:[%s1 + $0x93c] sm:$0xff]
  %v522 = vld [vmem:[%s1 + $0x944] sm:$0xf]
  %v523 = vld [vmem:[%s1 + $0x948] sm:$0xff]
  %v524 = vld [vmem:[%s1 + $0x950] sm:$0xf]
  %v525 = vld [vmem:[%s1 + $0x954] sm:$0xff]
  %v526 = vld [vmem:[%s1 + $0x95c] sm:$0xf]
  %v527 = vld [vmem:[%s1 + $0x960] sm:$0xff]
  %v528 = vld [vmem:[%s1 + $0x968] sm:$0xf]
  %v529 = vld [vmem:[%s1 + $0x96c] sm:$0xff]
  %v530 = vld [vmem:[%s1 + $0x974] sm:$0xf]
  %v531 = vld [vmem:[%s1 + $0x978] sm:$0xff]
  %v532 = vld [vmem:[%s1 + $0x980] sm:$0xf]
  %v533 = vld [vmem:[%s1 + $0x984] sm:$0xff]
  %v534 = vld [vmem:[%s1 + $0x98c] sm:$0xf]
  %v535 = vld [vmem:[%s1 + $0x990] sm:$0xff]
  %v536 = vld [vmem:[%s1 + $0x998] sm:$0xf]
  %v537 = vld [vmem:[%s1 + $0x99c] sm:$0xff]
  %v538 = vld [vmem:[%s1 + $0x9a4] sm:$0xf]
  %v539 = vld [vmem:[%s1 + $0x9a8] sm:$0xff]
  %v540 = vld [vmem:[%s1 + $0x9b0] sm:$0xf]
  %v541 = vld [vmem:[%s1 + $0x9b4] sm:$0xff]
  %v542 = vld [vmem:[%s1 + $0x9bc] sm:$0xf]
  %v543 = vld [vmem:[%s1 + $0x9c0] sm:$0xff]
  %v544 = vld [vmem:[%s1 + $0x9c8] sm:$0xf]
  %v545 = vld [vmem:[%s1 + $0x9cc] sm:$0xff]
  %v546 = vld [vmem:[%s1 + $0x9d4] sm:$0xf]
  %v547 = vld [vmem:[%s1 + $0x9d8] sm:$0xff]
  %v548 = vld [vmem:[%s1 + $0x9e0] sm:$0xf]
  %v549 = vld [vmem:[%s1 + $0x9e4] sm:$0xff]
  %v550 = vld [vmem:[%s1 + $0x9ec] sm:$0xf]
  %v551 = vld [vmem:[%s1 + $0x9f0] sm:$0xff]
  %v552 = vld [vmem:[%s1 + $0x9f8] sm:$0xf]
  %v553 = vld [vmem:[%s1 + $0x9fc] sm:$0xff]
  %v554 = vld [vmem:[%s1 + $0xa04] sm:$0xf]
  %v555 = vld [vmem:[%s1 + $0xa08] sm:$0xff]
  %v556 = vld [vmem:[%s1 + $0xa10] sm:$0xf]
  %v557 = vld [vmem:[%s1 + $0xa14] sm:$0xff]
  %v558 = vld [vmem:[%s1 + $0xa1c] sm:$0xf]
  %v559 = vld [vmem:[%s1 + $0xa20] sm:$0xff]
  %v560 = vld [vmem:[%s1 + $0xa28] sm:$0xf]
  %v561 = vld [vmem:[%s1 + $0xa2c] sm:$0xff]
  %v562 = vld [vmem:[%s1 + $0xa34] sm:$0xf]
  %v563 = vld [vmem:[%s1 + $0xa38] sm:$0xff]
  %v564 = vld [vmem:[%s1 + $0xa40] sm:$0xf]
  %v565 = vld [vmem:[%s1 + $0xa44] sm:$0xff]
  %v566 = vld [vmem:[%s1 + $0xa4c] sm:$0xf]
  %v567 = vld [vmem:[%s1 + $0xa50] sm:$0xff]
  %v568 = vld [vmem:[%s1 + $0xa58] sm:$0xf]
  %v569 = vld [vmem:[%s1 + $0xa5c] sm:$0xff]
  %v570 = vld [vmem:[%s1 + $0xa64] sm:$0xf]
  %v571 = vld [vmem:[%s1 + $0xa68] sm:$0xff]
  %v572 = vld [vmem:[%s1 + $0xa70] sm:$0xf]
  %v573 = vld [vmem:[%s1 + $0xa74] sm:$0xff]
  %v574 = vld [vmem:[%s1 + $0xa7c] sm:$0xf]
  %v575 = vld [vmem:[%s2] sm:$0x7]
  %v577 = vlaneseq
  %v578 = vshrl.u32 %v577, 7
  %v579 = vsub.s32 0, %v578
  %v580 = vrot.slane %v575, %v579
  %v581 = vlaneseq
  %v582 = vshrl.u32 %v581, 7
  %v583 = vsub.s32 1, %v582
  %v584 = vrot.slane %v575, %v583
  %v585 = vlaneseq
  %v586 = vshrl.u32 %v585, 7
  %v587 = vsub.s32 2, %v586
  %v588 = vrot.slane %v575, %v587
  %v704 = vunpack.c.l.b16 %v15
  %v705 = vunpack.c.h.b16 %v15
  %v706 = vunpack.c.l.b16 %v16
  %v707 = vunpack.c.h.b16 %v16
  %v708 = vunpack.c.l.b16 %v17
  %v709 = vunpack.c.h.b16 %v17
  %v710 = vunpack.c.l.b16 %v18
  %v711 = vunpack.c.h.b16 %v18
  %v712 = vunpack.c.l.b16 %v19
  %v713 = vunpack.c.h.b16 %v19
  %v714 = vunpack.c.l.b16 %v20
  %v715 = vunpack.c.h.b16 %v20
  %v716 = vunpack.c.l.b16 %v21
  %v717 = vunpack.c.h.b16 %v21
  %v718 = vunpack.c.l.b16 %v22
  %v719 = vunpack.c.h.b16 %v22
  %v720 = vunpack.c.l.b16 %v23
  %v721 = vunpack.c.h.b16 %v23
  %v722 = vunpack.c.l.b16 %v24
  %v723 = vunpack.c.h.b16 %v24
  %v724 = vunpack.c.l.b16 %v25
  %v725 = vunpack.c.h.b16 %v25
  %v726 = vunpack.c.l.b16 %v26
  %v727 = vunpack.c.h.b16 %v26
  %v728 = vunpack.c.l.b16 %v27
  %v729 = vunpack.c.h.b16 %v27
  %v730 = vunpack.c.l.b16 %v28
  %v731 = vunpack.c.h.b16 %v28
  %v732 = vunpack.c.l.b16 %v29
  %v733 = vunpack.c.h.b16 %v29
  %v734 = vunpack.c.l.b16 %v30
  %v735 = vunpack.c.h.b16 %v30
  %v736 = vunpack.c.l.b16 %v31
  %v737 = vunpack.c.h.b16 %v31
  %v738 = vunpack.c.l.b16 %v32
  %v739 = vunpack.c.h.b16 %v32
  %v740 = vunpack.c.l.b16 %v33
  %v741 = vunpack.c.h.b16 %v33
  %v742 = vunpack.c.l.b16 %v34
  %v743 = vunpack.c.h.b16 %v34
  %v744 = vunpack.c.l.b16 %v35
  %v745 = vunpack.c.h.b16 %v35
  %v746 = vunpack.c.l.b16 %v36
  %v747 = vunpack.c.h.b16 %v36
  %v748 = vunpack.c.l.b16 %v37
  %v749 = vunpack.c.h.b16 %v37
  %v750 = vunpack.c.l.b16 %v38
  %v751 = vunpack.c.h.b16 %v38
  %v752 = vunpack.c.l.b16 %v39
  %v753 = vunpack.c.h.b16 %v39
  %v754 = vunpack.c.l.b16 %v40
  %v755 = vunpack.c.h.b16 %v40
  %v756 = vunpack.c.l.b16 %v41
  %v757 = vunpack.c.h.b16 %v41
  %v758 = vunpack.c.l.b16 %v42
  %v759 = vunpack.c.h.b16 %v42
  %v760 = vunpack.c.l.b16 %v43
  %v761 = vunpack.c.h.b16 %v43
  %v762 = vunpack.c.l.b16 %v44
  %v763 = vunpack.c.h.b16 %v44
  %v764 = vunpack.c.l.b16 %v45
  %v765 = vunpack.c.h.b16 %v45
  %v766 = vunpack.c.l.b16 %v46
  %v767 = vunpack.c.h.b16 %v46
  %v768 = vunpack.c.l.b16 %v47
  %v769 = vunpack.c.h.b16 %v47
  %v770 = vunpack.c.l.b16 %v48
  %v771 = vunpack.c.h.b16 %v48
  %v772 = vunpack.c.l.b16 %v49
  %v773 = vunpack.c.h.b16 %v49
  %v774 = vunpack.c.l.b16 %v50
  %v775 = vunpack.c.h.b16 %v50
  %v776 = vunpack.c.l.b16 %v51
  %v777 = vunpack.c.h.b16 %v51
  %v778 = vunpack.c.l.b16 %v52
  %v779 = vunpack.c.h.b16 %v52
  %v780 = vunpack.c.l.b16 %v53
  %v781 = vunpack.c.h.b16 %v53
  %v782 = vunpack.c.l.b16 %v54
  %v783 = vunpack.c.h.b16 %v54
  %v784 = vunpack.c.l.b16 %v55
  %v785 = vunpack.c.h.b16 %v55
  %v786 = vunpack.c.l.b16 %v56
  %v787 = vunpack.c.h.b16 %v56
  %v788 = vunpack.c.l.b16 %v57
  %v789 = vunpack.c.h.b16 %v57
  %v790 = vunpack.c.l.b16 %v58
  %v791 = vunpack.c.h.b16 %v58
  %v792 = vunpack.c.l.b16 %v59
  %v793 = vunpack.c.h.b16 %v59
  %v794 = vunpack.c.l.b16 %v60
  %v795 = vunpack.c.h.b16 %v60
  %v796 = vunpack.c.l.b16 %v61
  %v797 = vunpack.c.h.b16 %v61
  %v798 = vunpack.c.l.b16 %v62
  %v799 = vunpack.c.h.b16 %v62
  %v800 = vunpack.c.l.b16 %v63
  %v801 = vunpack.c.h.b16 %v63
  %v802 = vunpack.c.l.b16 %v64
  %v803 = vunpack.c.h.b16 %v64
  %v804 = vunpack.c.l.b16 %v65
  %v805 = vunpack.c.h.b16 %v65
  %v806 = vunpack.c.l.b16 %v66
  %v807 = vunpack.c.h.b16 %v66
  %v808 = vunpack.c.l.b16 %v67
  %v809 = vunpack.c.h.b16 %v67
  %v810 = vunpack.c.l.b16 %v68
  %v811 = vunpack.c.h.b16 %v68
  %v812 = vunpack.c.l.b16 %v69
  %v813 = vunpack.c.h.b16 %v69
  %v814 = vunpack.c.l.b16 %v70
  %v815 = vunpack.c.h.b16 %v70
  %v816 = vunpack.c.l.b16 %v71
  %v817 = vunpack.c.h.b16 %v71
  %v818 = vunpack.c.l.b16 %v72
  %v819 = vunpack.c.h.b16 %v72
  %v820 = vunpack.c.l.b16 %v73
  %v821 = vunpack.c.h.b16 %v73
  %v822 = vunpack.c.l.b16 %v74
  %v823 = vunpack.c.h.b16 %v74
  %v824 = vunpack.c.l.b16 %v75
  %v825 = vunpack.c.h.b16 %v75
  %v826 = vunpack.c.l.b16 %v76
  %v827 = vunpack.c.h.b16 %v76
  %v828 = vunpack.c.l.b16 %v77
  %v829 = vunpack.c.h.b16 %v77
  %v830 = vunpack.c.l.b16 %v78
  %v831 = vunpack.c.h.b16 %v78
  %v832 = vunpack.c.l.b16 %v79
  %v833 = vunpack.c.h.b16 %v79
  %v834 = vunpack.c.l.b16 %v80
  %v835 = vunpack.c.h.b16 %v80
  %v836 = vunpack.c.l.b16 %v81
  %v837 = vunpack.c.h.b16 %v81
  %v838 = vunpack.c.l.b16 %v82
  %v839 = vunpack.c.h.b16 %v82
  %v840 = vunpack.c.l.b16 %v83
  %v841 = vunpack.c.h.b16 %v83
  %v842 = vunpack.c.l.b16 %v84
  %v843 = vunpack.c.h.b16 %v84
  %v844 = vunpack.c.l.b16 %v85
  %v845 = vunpack.c.h.b16 %v85
  %v846 = vunpack.c.l.b16 %v86
  %v847 = vunpack.c.h.b16 %v86
  %v848 = vunpack.c.l.b16 %v87
  %v849 = vunpack.c.h.b16 %v87
  %v850 = vunpack.c.l.b16 %v88
  %v851 = vunpack.c.h.b16 %v88
  %v852 = vunpack.c.l.b16 %v89
  %v853 = vunpack.c.h.b16 %v89
  %v854 = vunpack.c.l.b16 %v90
  %v855 = vunpack.c.h.b16 %v90
  %v856 = vunpack.c.l.b16 %v91
  %v857 = vunpack.c.h.b16 %v91
  %v858 = vunpack.c.l.b16 %v92
  %v859 = vunpack.c.h.b16 %v92
  %v860 = vunpack.c.l.b16 %v93
  %v861 = vunpack.c.h.b16 %v93
  %v862 = vunpack.c.l.b16 %v94
  %v863 = vunpack.c.h.b16 %v94
  %v864 = vunpack.c.l.b16 %v95
  %v865 = vunpack.c.h.b16 %v95
  %v866 = vunpack.c.l.b16 %v96
  %v867 = vunpack.c.h.b16 %v96
  %v868 = vunpack.c.l.b16 %v97
  %v869 = vunpack.c.h.b16 %v97
  %v870 = vunpack.c.l.b16 %v98
  %v871 = vunpack.c.h.b16 %v98
  %v872 = vunpack.c.l.b16 %v99
  %v873 = vunpack.c.h.b16 %v99
  %v874 = vunpack.c.l.b16 %v100
  %v875 = vunpack.c.h.b16 %v100
  %v876 = vunpack.c.l.b16 %v101
  %v877 = vunpack.c.h.b16 %v101
  %v878 = vunpack.c.l.b16 %v102
  %v879 = vunpack.c.h.b16 %v102
  %v880 = vunpack.c.l.b16 %v103
  %v881 = vunpack.c.h.b16 %v103
  %v882 = vunpack.c.l.b16 %v104
  %v883 = vunpack.c.h.b16 %v104
  %v884 = vunpack.c.l.b16 %v105
  %v885 = vunpack.c.h.b16 %v105
  %v886 = vunpack.c.l.b16 %v106
  %v887 = vunpack.c.h.b16 %v106
  %v888 = vunpack.c.l.b16 %v107
  %v889 = vunpack.c.h.b16 %v107
  %v890 = vunpack.c.l.b16 %v108
  %v891 = vunpack.c.h.b16 %v108
  %v892 = vunpack.c.l.b16 %v109
  %v893 = vunpack.c.h.b16 %v109
  %v894 = vunpack.c.l.b16 %v110
  %v895 = vunpack.c.h.b16 %v110
  %v896 = vunpack.c.l.b16 %v111
  %v897 = vunpack.c.h.b16 %v111
  %v898 = vunpack.c.l.b16 %v112
  %v899 = vunpack.c.h.b16 %v112
  %v900 = vunpack.c.l.b16 %v113
  %v901 = vunpack.c.h.b16 %v113
  %v902 = vunpack.c.l.b16 %v114
  %v903 = vunpack.c.h.b16 %v114
  %v904 = vunpack.c.l.b16 %v115
  %v905 = vunpack.c.h.b16 %v115
  %v906 = vunpack.c.l.b16 %v116
  %v907 = vunpack.c.h.b16 %v116
  %v908 = vunpack.c.l.b16 %v117
  %v909 = vunpack.c.h.b16 %v117
  %v910 = vunpack.c.l.b16 %v118
  %v911 = vunpack.c.h.b16 %v118
  %v912 = vunpack.c.l.b16 %v119
  %v913 = vunpack.c.h.b16 %v119
  %v914 = vunpack.c.l.b16 %v120
  %v915 = vunpack.c.h.b16 %v120
  %v916 = vunpack.c.l.b16 %v121
  %v917 = vunpack.c.h.b16 %v121
  %v918 = vunpack.c.l.b16 %v122
  %v919 = vunpack.c.h.b16 %v122
  %v920 = vunpack.c.l.b16 %v123
  %v921 = vunpack.c.h.b16 %v123
  %v922 = vunpack.c.l.b16 %v124
  %v923 = vunpack.c.h.b16 %v124
  %v924 = vunpack.c.l.b16 %v125
  %v925 = vunpack.c.h.b16 %v125
  %v926 = vunpack.c.l.b16 %v126
  %v927 = vunpack.c.h.b16 %v126
  %v928 = vpack.c.b16 %v718, %v704
  %v929 = vpack.c.b16 %v719, %v705
  %v930 = vpack.c.b16 %v720, %v706
  %v931 = vpack.c.b16 %v721, %v707
  %v932 = vpack.c.b16 %v722, %v708
  %v933 = vpack.c.b16 %v723, %v709
  %v934 = vpack.c.b16 %v724, %v710
  %v935 = vpack.c.b16 %v725, %v711
  %v936 = vpack.c.b16 %v726, %v712
  %v937 = vpack.c.b16 %v727, %v713
  %v938 = vpack.c.b16 %v728, %v714
  %v939 = vpack.c.b16 %v729, %v715
  %v940 = vpack.c.b16 %v730, %v716
  %v941 = vpack.c.b16 %v731, %v717
  %v942 = vpack.c.b16 %v746, %v732
  %v943 = vpack.c.b16 %v747, %v733
  %v944 = vpack.c.b16 %v748, %v734
  %v945 = vpack.c.b16 %v749, %v735
  %v946 = vpack.c.b16 %v750, %v736
  %v947 = vpack.c.b16 %v751, %v737
  %v948 = vpack.c.b16 %v752, %v738
  %v949 = vpack.c.b16 %v753, %v739
  %v950 = vpack.c.b16 %v754, %v740
  %v951 = vpack.c.b16 %v755, %v741
  %v952 = vpack.c.b16 %v756, %v742
  %v953 = vpack.c.b16 %v757, %v743
  %v954 = vpack.c.b16 %v758, %v744
  %v955 = vpack.c.b16 %v759, %v745
  %v956 = vpack.c.b16 %v774, %v760
  %v957 = vpack.c.b16 %v775, %v761
  %v958 = vpack.c.b16 %v776, %v762
  %v959 = vpack.c.b16 %v777, %v763
  %v960 = vpack.c.b16 %v778, %v764
  %v961 = vpack.c.b16 %v779, %v765
  %v962 = vpack.c.b16 %v780, %v766
  %v963 = vpack.c.b16 %v781, %v767
  %v964 = vpack.c.b16 %v782, %v768
  %v965 = vpack.c.b16 %v783, %v769
  %v966 = vpack.c.b16 %v784, %v770
  %v967 = vpack.c.b16 %v785, %v771
  %v968 = vpack.c.b16 %v786, %v772
  %v969 = vpack.c.b16 %v787, %v773
  %v970 = vpack.c.b16 %v802, %v788
  %v971 = vpack.c.b16 %v803, %v789
  %v972 = vpack.c.b16 %v804, %v790
  %v973 = vpack.c.b16 %v805, %v791
  %v974 = vpack.c.b16 %v806, %v792
  %v975 = vpack.c.b16 %v807, %v793
  %v976 = vpack.c.b16 %v808, %v794
  %v977 = vpack.c.b16 %v809, %v795
  %v978 = vpack.c.b16 %v810, %v796
  %v979 = vpack.c.b16 %v811, %v797
  %v980 = vpack.c.b16 %v812, %v798
  %v981 = vpack.c.b16 %v813, %v799
  %v982 = vpack.c.b16 %v814, %v800
  %v983 = vpack.c.b16 %v815, %v801
  %v984 = vpack.c.b16 %v830, %v816
  %v985 = vpack.c.b16 %v831, %v817
  %v986 = vpack.c.b16 %v832, %v818
  %v987 = vpack.c.b16 %v833, %v819
  %v988 = vpack.c.b16 %v834, %v820
  %v989 = vpack.c.b16 %v835, %v821
  %v990 = vpack.c.b16 %v836, %v822
  %v991 = vpack.c.b16 %v837, %v823
  %v992 = vpack.c.b16 %v838, %v824
  %v993 = vpack.c.b16 %v839, %v825
  %v994 = vpack.c.b16 %v840, %v826
  %v995 = vpack.c.b16 %v841, %v827
  %v996 = vpack.c.b16 %v842, %v828
  %v997 = vpack.c.b16 %v843, %v829
  %v998 = vpack.c.b16 %v858, %v844
  %v999 = vpack.c.b16 %v859, %v845
  %v1000 = vpack.c.b16 %v860, %v846
  %v1001 = vpack.c.b16 %v861, %v847
  %v1002 = vpack.c.b16 %v862, %v848
  %v1003 = vpack.c.b16 %v863, %v849
  %v1004 = vpack.c.b16 %v864, %v850
  %v1005 = vpack.c.b16 %v865, %v851
  %v1006 = vpack.c.b16 %v866, %v852
  %v1007 = vpack.c.b16 %v867, %v853
  %v1008 = vpack.c.b16 %v868, %v854
  %v1009 = vpack.c.b16 %v869, %v855
  %v1010 = vpack.c.b16 %v870, %v856
  %v1011 = vpack.c.b16 %v871, %v857
  %v1012 = vpack.c.b16 %v886, %v872
  %v1013 = vpack.c.b16 %v887, %v873
  %v1014 = vpack.c.b16 %v888, %v874
  %v1015 = vpack.c.b16 %v889, %v875
  %v1016 = vpack.c.b16 %v890, %v876
  %v1017 = vpack.c.b16 %v891, %v877
  %v1018 = vpack.c.b16 %v892, %v878
  %v1019 = vpack.c.b16 %v893, %v879
  %v1020 = vpack.c.b16 %v894, %v880
  %v1021 = vpack.c.b16 %v895, %v881
  %v1022 = vpack.c.b16 %v896, %v882
  %v1023 = vpack.c.b16 %v897, %v883
  %v1024 = vpack.c.b16 %v898, %v884
  %v1025 = vpack.c.b16 %v899, %v885
  %v1026 = vpack.c.b16 %v914, %v900
  %v1027 = vpack.c.b16 %v915, %v901
  %v1028 = vpack.c.b16 %v916, %v902
  %v1029 = vpack.c.b16 %v917, %v903
  %v1030 = vpack.c.b16 %v918, %v904
  %v1031 = vpack.c.b16 %v919, %v905
  %v1032 = vpack.c.b16 %v920, %v906
  %v1033 = vpack.c.b16 %v921, %v907
  %v1034 = vpack.c.b16 %v922, %v908
  %v1035 = vpack.c.b16 %v923, %v909
  %v1036 = vpack.c.b16 %v924, %v910
  %v1037 = vpack.c.b16 %v925, %v911
  %v1038 = vpack.c.b16 %v926, %v912
  %v1039 = vpack.c.b16 %v927, %v913
  %v1600 = vunpack.c.l.b16 %v127
  %v1601 = vunpack.c.h.b16 %v127
  %v1602 = vunpack.c.l.b16 %v128
  %v1603 = vunpack.c.l.b16 %v129
  %v1604 = vunpack.c.h.b16 %v129
  %v1605 = vunpack.c.l.b16 %v130
  %v1606 = vunpack.c.l.b16 %v131
  %v1607 = vunpack.c.h.b16 %v131
  %v1608 = vunpack.c.l.b16 %v132
  %v1609 = vunpack.c.l.b16 %v133
  %v1610 = vunpack.c.h.b16 %v133
  %v1611 = vunpack.c.l.b16 %v134
  %v1612 = vunpack.c.l.b16 %v135
  %v1613 = vunpack.c.h.b16 %v135
  %v1614 = vunpack.c.l.b16 %v136
  %v1615 = vunpack.c.l.b16 %v137
  %v1616 = vunpack.c.h.b16 %v137
  %v1617 = vunpack.c.l.b16 %v138
  %v1618 = vunpack.c.l.b16 %v139
  %v1619 = vunpack.c.h.b16 %v139
  %v1620 = vunpack.c.l.b16 %v140
  %v1621 = vunpack.c.l.b16 %v141
  %v1622 = vunpack.c.h.b16 %v141
  %v1623 = vunpack.c.l.b16 %v142
  %v1624 = vunpack.c.l.b16 %v143
  %v1625 = vunpack.c.h.b16 %v143
  %v1626 = vunpack.c.l.b16 %v144
  %v1627 = vunpack.c.l.b16 %v145
  %v1628 = vunpack.c.h.b16 %v145
  %v1629 = vunpack.c.l.b16 %v146
  %v1630 = vunpack.c.l.b16 %v147
  %v1631 = vunpack.c.h.b16 %v147
  %v1632 = vunpack.c.l.b16 %v148
  %v1633 = vunpack.c.l.b16 %v149
  %v1634 = vunpack.c.h.b16 %v149
  %v1635 = vunpack.c.l.b16 %v150
  %v1636 = vunpack.c.l.b16 %v151
  %v1637 = vunpack.c.h.b16 %v151
  %v1638 = vunpack.c.l.b16 %v152
  %v1639 = vunpack.c.l.b16 %v153
  %v1640 = vunpack.c.h.b16 %v153
  %v1641 = vunpack.c.l.b16 %v154
  %v1642 = vunpack.c.l.b16 %v155
  %v1643 = vunpack.c.h.b16 %v155
  %v1644 = vunpack.c.l.b16 %v156
  %v1645 = vunpack.c.l.b16 %v157
  %v1646 = vunpack.c.h.b16 %v157
  %v1647 = vunpack.c.l.b16 %v158
  %v1648 = vunpack.c.l.b16 %v159
  %v1649 = vunpack.c.h.b16 %v159
  %v1650 = vunpack.c.l.b16 %v160
  %v1651 = vunpack.c.l.b16 %v161
  %v1652 = vunpack.c.h.b16 %v161
  %v1653 = vunpack.c.l.b16 %v162
  %v1654 = vunpack.c.l.b16 %v163
  %v1655 = vunpack.c.h.b16 %v163
  %v1656 = vunpack.c.l.b16 %v164
  %v1657 = vunpack.c.l.b16 %v165
  %v1658 = vunpack.c.h.b16 %v165
  %v1659 = vunpack.c.l.b16 %v166
  %v1660 = vunpack.c.l.b16 %v167
  %v1661 = vunpack.c.h.b16 %v167
  %v1662 = vunpack.c.l.b16 %v168
  %v1663 = vunpack.c.l.b16 %v169
  %v1664 = vunpack.c.h.b16 %v169
  %v1665 = vunpack.c.l.b16 %v170
  %v1666 = vunpack.c.l.b16 %v171
  %v1667 = vunpack.c.h.b16 %v171
  %v1668 = vunpack.c.l.b16 %v172
  %v1669 = vunpack.c.l.b16 %v173
  %v1670 = vunpack.c.h.b16 %v173
  %v1671 = vunpack.c.l.b16 %v174
  %v1672 = vunpack.c.l.b16 %v175
  %v1673 = vunpack.c.h.b16 %v175
  %v1674 = vunpack.c.l.b16 %v176
  %v1675 = vunpack.c.l.b16 %v177
  %v1676 = vunpack.c.h.b16 %v177
  %v1677 = vunpack.c.l.b16 %v178
  %v1678 = vunpack.c.l.b16 %v179
  %v1679 = vunpack.c.h.b16 %v179
  %v1680 = vunpack.c.l.b16 %v180
  %v1681 = vunpack.c.l.b16 %v181
  %v1682 = vunpack.c.h.b16 %v181
  %v1683 = vunpack.c.l.b16 %v182
  %v1684 = vunpack.c.l.b16 %v183
  %v1685 = vunpack.c.h.b16 %v183
  %v1686 = vunpack.c.l.b16 %v184
  %v1687 = vunpack.c.l.b16 %v185
  %v1688 = vunpack.c.h.b16 %v185
  %v1689 = vunpack.c.l.b16 %v186
  %v1690 = vunpack.c.l.b16 %v187
  %v1691 = vunpack.c.h.b16 %v187
  %v1692 = vunpack.c.l.b16 %v188
  %v1693 = vunpack.c.l.b16 %v189
  %v1694 = vunpack.c.h.b16 %v189
  %v1695 = vunpack.c.l.b16 %v190
  %v1696 = vunpack.c.l.b16 %v191
  %v1697 = vunpack.c.h.b16 %v191
  %v1698 = vunpack.c.l.b16 %v192
  %v1699 = vunpack.c.l.b16 %v193
  %v1700 = vunpack.c.h.b16 %v193
  %v1701 = vunpack.c.l.b16 %v194
  %v1702 = vunpack.c.l.b16 %v195
  %v1703 = vunpack.c.h.b16 %v195
  %v1704 = vunpack.c.l.b16 %v196
  %v1705 = vunpack.c.l.b16 %v197
  %v1706 = vunpack.c.h.b16 %v197
  %v1707 = vunpack.c.l.b16 %v198
  %v1708 = vunpack.c.l.b16 %v199
  %v1709 = vunpack.c.h.b16 %v199
  %v1710 = vunpack.c.l.b16 %v200
  %v1711 = vunpack.c.l.b16 %v201
  %v1712 = vunpack.c.h.b16 %v201
  %v1713 = vunpack.c.l.b16 %v202
  %v1714 = vunpack.c.l.b16 %v203
  %v1715 = vunpack.c.h.b16 %v203
  %v1716 = vunpack.c.l.b16 %v204
  %v1717 = vunpack.c.l.b16 %v205
  %v1718 = vunpack.c.h.b16 %v205
  %v1719 = vunpack.c.l.b16 %v206
  %v1720 = vunpack.c.l.b16 %v207
  %v1721 = vunpack.c.h.b16 %v207
  %v1722 = vunpack.c.l.b16 %v208
  %v1723 = vunpack.c.l.b16 %v209
  %v1724 = vunpack.c.h.b16 %v209
  %v1725 = vunpack.c.l.b16 %v210
  %v1726 = vunpack.c.l.b16 %v211
  %v1727 = vunpack.c.h.b16 %v211
  %v1728 = vunpack.c.l.b16 %v212
  %v1729 = vunpack.c.l.b16 %v213
  %v1730 = vunpack.c.h.b16 %v213
  %v1731 = vunpack.c.l.b16 %v214
  %v1732 = vunpack.c.l.b16 %v215
  %v1733 = vunpack.c.h.b16 %v215
  %v1734 = vunpack.c.l.b16 %v216
  %v1735 = vunpack.c.l.b16 %v217
  %v1736 = vunpack.c.h.b16 %v217
  %v1737 = vunpack.c.l.b16 %v218
  %v1738 = vunpack.c.l.b16 %v219
  %v1739 = vunpack.c.h.b16 %v219
  %v1740 = vunpack.c.l.b16 %v220
  %v1741 = vunpack.c.l.b16 %v221
  %v1742 = vunpack.c.h.b16 %v221
  %v1743 = vunpack.c.l.b16 %v222
  %v1744 = vunpack.c.l.b16 %v223
  %v1745 = vunpack.c.h.b16 %v223
  %v1746 = vunpack.c.l.b16 %v224
  %v1747 = vunpack.c.l.b16 %v225
  %v1748 = vunpack.c.h.b16 %v225
  %v1749 = vunpack.c.l.b16 %v226
  %v1750 = vunpack.c.l.b16 %v227
  %v1751 = vunpack.c.h.b16 %v227
  %v1752 = vunpack.c.l.b16 %v228
  %v1753 = vunpack.c.l.b16 %v229
  %v1754 = vunpack.c.h.b16 %v229
  %v1755 = vunpack.c.l.b16 %v230
  %v1756 = vunpack.c.l.b16 %v231
  %v1757 = vunpack.c.h.b16 %v231
  %v1758 = vunpack.c.l.b16 %v232
  %v1759 = vunpack.c.l.b16 %v233
  %v1760 = vunpack.c.h.b16 %v233
  %v1761 = vunpack.c.l.b16 %v234
  %v1762 = vunpack.c.l.b16 %v235
  %v1763 = vunpack.c.h.b16 %v235
  %v1764 = vunpack.c.l.b16 %v236
  %v1765 = vunpack.c.l.b16 %v237
  %v1766 = vunpack.c.h.b16 %v237
  %v1767 = vunpack.c.l.b16 %v238
  %v1768 = vunpack.c.l.b16 %v239
  %v1769 = vunpack.c.h.b16 %v239
  %v1770 = vunpack.c.l.b16 %v240
  %v1771 = vunpack.c.l.b16 %v241
  %v1772 = vunpack.c.h.b16 %v241
  %v1773 = vunpack.c.l.b16 %v242
  %v1774 = vunpack.c.l.b16 %v243
  %v1775 = vunpack.c.h.b16 %v243
  %v1776 = vunpack.c.l.b16 %v244
  %v1777 = vunpack.c.l.b16 %v245
  %v1778 = vunpack.c.h.b16 %v245
  %v1779 = vunpack.c.l.b16 %v246
  %v1780 = vunpack.c.l.b16 %v247
  %v1781 = vunpack.c.h.b16 %v247
  %v1782 = vunpack.c.l.b16 %v248
  %v1783 = vunpack.c.l.b16 %v249
  %v1784 = vunpack.c.h.b16 %v249
  %v1785 = vunpack.c.l.b16 %v250
  %v1786 = vunpack.c.l.b16 %v251
  %v1787 = vunpack.c.h.b16 %v251
  %v1788 = vunpack.c.l.b16 %v252
  %v1789 = vunpack.c.l.b16 %v253
  %v1790 = vunpack.c.h.b16 %v253
  %v1791 = vunpack.c.l.b16 %v254
  %v1792 = vunpack.c.l.b16 %v255
  %v1793 = vunpack.c.h.b16 %v255
  %v1794 = vunpack.c.l.b16 %v256
  %v1795 = vunpack.c.l.b16 %v257
  %v1796 = vunpack.c.h.b16 %v257
  %v1797 = vunpack.c.l.b16 %v258
  %v1798 = vunpack.c.l.b16 %v259
  %v1799 = vunpack.c.h.b16 %v259
  %v1800 = vunpack.c.l.b16 %v260
  %v1801 = vunpack.c.l.b16 %v261
  %v1802 = vunpack.c.h.b16 %v261
  %v1803 = vunpack.c.l.b16 %v262
  %v1804 = vunpack.c.l.b16 %v263
  %v1805 = vunpack.c.h.b16 %v263
  %v1806 = vunpack.c.l.b16 %v264
  %v1807 = vunpack.c.l.b16 %v265
  %v1808 = vunpack.c.h.b16 %v265
  %v1809 = vunpack.c.l.b16 %v266
  %v1810 = vunpack.c.l.b16 %v267
  %v1811 = vunpack.c.h.b16 %v267
  %v1812 = vunpack.c.l.b16 %v268
  %v1813 = vunpack.c.l.b16 %v269
  %v1814 = vunpack.c.h.b16 %v269
  %v1815 = vunpack.c.l.b16 %v270
  %v1816 = vunpack.c.l.b16 %v271
  %v1817 = vunpack.c.h.b16 %v271
  %v1818 = vunpack.c.l.b16 %v272
  %v1819 = vunpack.c.l.b16 %v273
  %v1820 = vunpack.c.h.b16 %v273
  %v1821 = vunpack.c.l.b16 %v274
  %v1822 = vunpack.c.l.b16 %v275
  %v1823 = vunpack.c.h.b16 %v275
  %v1824 = vunpack.c.l.b16 %v276
  %v1825 = vunpack.c.l.b16 %v277
  %v1826 = vunpack.c.h.b16 %v277
  %v1827 = vunpack.c.l.b16 %v278
  %v1828 = vunpack.c.l.b16 %v279
  %v1829 = vunpack.c.h.b16 %v279
  %v1830 = vunpack.c.l.b16 %v280
  %v1831 = vunpack.c.l.b16 %v281
  %v1832 = vunpack.c.h.b16 %v281
  %v1833 = vunpack.c.l.b16 %v282
  %v1834 = vunpack.c.l.b16 %v283
  %v1835 = vunpack.c.h.b16 %v283
  %v1836 = vunpack.c.l.b16 %v284
  %v1837 = vunpack.c.l.b16 %v285
  %v1838 = vunpack.c.h.b16 %v285
  %v1839 = vunpack.c.l.b16 %v286
  %v1840 = vunpack.c.l.b16 %v287
  %v1841 = vunpack.c.h.b16 %v287
  %v1842 = vunpack.c.l.b16 %v288
  %v1843 = vunpack.c.l.b16 %v289
  %v1844 = vunpack.c.h.b16 %v289
  %v1845 = vunpack.c.l.b16 %v290
  %v1846 = vunpack.c.l.b16 %v291
  %v1847 = vunpack.c.h.b16 %v291
  %v1848 = vunpack.c.l.b16 %v292
  %v1849 = vunpack.c.l.b16 %v293
  %v1850 = vunpack.c.h.b16 %v293
  %v1851 = vunpack.c.l.b16 %v294
  %v1852 = vunpack.c.l.b16 %v295
  %v1853 = vunpack.c.h.b16 %v295
  %v1854 = vunpack.c.l.b16 %v296
  %v1855 = vunpack.c.l.b16 %v297
  %v1856 = vunpack.c.h.b16 %v297
  %v1857 = vunpack.c.l.b16 %v298
  %v1858 = vunpack.c.l.b16 %v299
  %v1859 = vunpack.c.h.b16 %v299
  %v1860 = vunpack.c.l.b16 %v300
  %v1861 = vunpack.c.l.b16 %v301
  %v1862 = vunpack.c.h.b16 %v301
  %v1863 = vunpack.c.l.b16 %v302
  %v1864 = vunpack.c.l.b16 %v303
  %v1865 = vunpack.c.h.b16 %v303
  %v1866 = vunpack.c.l.b16 %v304
  %v1867 = vunpack.c.l.b16 %v305
  %v1868 = vunpack.c.h.b16 %v305
  %v1869 = vunpack.c.l.b16 %v306
  %v1870 = vunpack.c.l.b16 %v307
  %v1871 = vunpack.c.h.b16 %v307
  %v1872 = vunpack.c.l.b16 %v308
  %v1873 = vunpack.c.l.b16 %v309
  %v1874 = vunpack.c.h.b16 %v309
  %v1875 = vunpack.c.l.b16 %v310
  %v1876 = vunpack.c.l.b16 %v311
  %v1877 = vunpack.c.h.b16 %v311
  %v1878 = vunpack.c.l.b16 %v312
  %v1879 = vunpack.c.l.b16 %v313
  %v1880 = vunpack.c.h.b16 %v313
  %v1881 = vunpack.c.l.b16 %v314
  %v1882 = vunpack.c.l.b16 %v315
  %v1883 = vunpack.c.h.b16 %v315
  %v1884 = vunpack.c.l.b16 %v316
  %v1885 = vunpack.c.l.b16 %v317
  %v1886 = vunpack.c.h.b16 %v317
  %v1887 = vunpack.c.l.b16 %v318
  %v1888 = vunpack.c.l.b16 %v319
  %v1889 = vunpack.c.h.b16 %v319
  %v1890 = vunpack.c.l.b16 %v320
  %v1891 = vunpack.c.l.b16 %v321
  %v1892 = vunpack.c.h.b16 %v321
  %v1893 = vunpack.c.l.b16 %v322
  %v1894 = vunpack.c.l.b16 %v323
  %v1895 = vunpack.c.h.b16 %v323
  %v1896 = vunpack.c.l.b16 %v324
  %v1897 = vunpack.c.l.b16 %v325
  %v1898 = vunpack.c.h.b16 %v325
  %v1899 = vunpack.c.l.b16 %v326
  %v1900 = vunpack.c.l.b16 %v327
  %v1901 = vunpack.c.h.b16 %v327
  %v1902 = vunpack.c.l.b16 %v328
  %v1903 = vunpack.c.l.b16 %v329
  %v1904 = vunpack.c.h.b16 %v329
  %v1905 = vunpack.c.l.b16 %v330
  %v1906 = vunpack.c.l.b16 %v331
  %v1907 = vunpack.c.h.b16 %v331
  %v1908 = vunpack.c.l.b16 %v332
  %v1909 = vunpack.c.l.b16 %v333
  %v1910 = vunpack.c.h.b16 %v333
  %v1911 = vunpack.c.l.b16 %v334
  %v1912 = vunpack.c.l.b16 %v335
  %v1913 = vunpack.c.h.b16 %v335
  %v1914 = vunpack.c.l.b16 %v336
  %v1915 = vunpack.c.l.b16 %v337
  %v1916 = vunpack.c.h.b16 %v337
  %v1917 = vunpack.c.l.b16 %v338
  %v1918 = vunpack.c.l.b16 %v339
  %v1919 = vunpack.c.h.b16 %v339
  %v1920 = vunpack.c.l.b16 %v340
  %v1921 = vunpack.c.l.b16 %v341
  %v1922 = vunpack.c.h.b16 %v341
  %v1923 = vunpack.c.l.b16 %v342
  %v1924 = vunpack.c.l.b16 %v343
  %v1925 = vunpack.c.h.b16 %v343
  %v1926 = vunpack.c.l.b16 %v344
  %v1927 = vunpack.c.l.b16 %v345
  %v1928 = vunpack.c.h.b16 %v345
  %v1929 = vunpack.c.l.b16 %v346
  %v1930 = vunpack.c.l.b16 %v347
  %v1931 = vunpack.c.h.b16 %v347
  %v1932 = vunpack.c.l.b16 %v348
  %v1933 = vunpack.c.l.b16 %v349
  %v1934 = vunpack.c.h.b16 %v349
  %v1935 = vunpack.c.l.b16 %v350
  %v1936 = vunpack.c.l.b16 %v351
  %v1937 = vunpack.c.h.b16 %v351
  %v1938 = vunpack.c.l.b16 %v352
  %v1939 = vunpack.c.l.b16 %v353
  %v1940 = vunpack.c.h.b16 %v353
  %v1941 = vunpack.c.l.b16 %v354
  %v1942 = vunpack.c.l.b16 %v355
  %v1943 = vunpack.c.h.b16 %v355
  %v1944 = vunpack.c.l.b16 %v356
  %v1945 = vunpack.c.l.b16 %v357
  %v1946 = vunpack.c.h.b16 %v357
  %v1947 = vunpack.c.l.b16 %v358
  %v1948 = vunpack.c.l.b16 %v359
  %v1949 = vunpack.c.h.b16 %v359
  %v1950 = vunpack.c.l.b16 %v360
  %v1951 = vunpack.c.l.b16 %v361
  %v1952 = vunpack.c.h.b16 %v361
  %v1953 = vunpack.c.l.b16 %v362
  %v1954 = vunpack.c.l.b16 %v363
  %v1955 = vunpack.c.h.b16 %v363
  %v1956 = vunpack.c.l.b16 %v364
  %v1957 = vunpack.c.l.b16 %v365
  %v1958 = vunpack.c.h.b16 %v365
  %v1959 = vunpack.c.l.b16 %v366
  %v1960 = vunpack.c.l.b16 %v367
  %v1961 = vunpack.c.h.b16 %v367
  %v1962 = vunpack.c.l.b16 %v368
  %v1963 = vunpack.c.l.b16 %v369
  %v1964 = vunpack.c.h.b16 %v369
  %v1965 = vunpack.c.l.b16 %v370
  %v1966 = vunpack.c.l.b16 %v371
  %v1967 = vunpack.c.h.b16 %v371
  %v1968 = vunpack.c.l.b16 %v372
  %v1969 = vunpack.c.l.b16 %v373
  %v1970 = vunpack.c.h.b16 %v373
  %v1971 = vunpack.c.l.b16 %v374
  %v1972 = vunpack.c.l.b16 %v375
  %v1973 = vunpack.c.h.b16 %v375
  %v1974 = vunpack.c.l.b16 %v376
  %v1975 = vunpack.c.l.b16 %v377
  %v1976 = vunpack.c.h.b16 %v377
  %v1977 = vunpack.c.l.b16 %v378
  %v1978 = vunpack.c.l.b16 %v379
  %v1979 = vunpack.c.h.b16 %v379
  %v1980 = vunpack.c.l.b16 %v380
  %v1981 = vunpack.c.l.b16 %v381
  %v1982 = vunpack.c.h.b16 %v381
  %v1983 = vunpack.c.l.b16 %v382
  %v1984 = vunpack.c.l.b16 %v383
  %v1985 = vunpack.c.h.b16 %v383
  %v1986 = vunpack.c.l.b16 %v384
  %v1987 = vunpack.c.l.b16 %v385
  %v1988 = vunpack.c.h.b16 %v385
  %v1989 = vunpack.c.l.b16 %v386
  %v1990 = vunpack.c.l.b16 %v387
  %v1991 = vunpack.c.h.b16 %v387
  %v1992 = vunpack.c.l.b16 %v388
  %v1993 = vunpack.c.l.b16 %v389
  %v1994 = vunpack.c.h.b16 %v389
  %v1995 = vunpack.c.l.b16 %v390
  %v1996 = vunpack.c.l.b16 %v391
  %v1997 = vunpack.c.h.b16 %v391
  %v1998 = vunpack.c.l.b16 %v392
  %v1999 = vunpack.c.l.b16 %v393
  %v2000 = vunpack.c.h.b16 %v393
  %v2001 = vunpack.c.l.b16 %v394
  %v2002 = vunpack.c.l.b16 %v395
  %v2003 = vunpack.c.h.b16 %v395
  %v2004 = vunpack.c.l.b16 %v396
  %v2005 = vunpack.c.l.b16 %v397
  %v2006 = vunpack.c.h.b16 %v397
  %v2007 = vunpack.c.l.b16 %v398
  %v2008 = vunpack.c.l.b16 %v399
  %v2009 = vunpack.c.h.b16 %v399
  %v2010 = vunpack.c.l.b16 %v400
  %v2011 = vunpack.c.l.b16 %v401
  %v2012 = vunpack.c.h.b16 %v401
  %v2013 = vunpack.c.l.b16 %v402
  %v2014 = vunpack.c.l.b16 %v403
  %v2015 = vunpack.c.h.b16 %v403
  %v2016 = vunpack.c.l.b16 %v404
  %v2017 = vunpack.c.l.b16 %v405
  %v2018 = vunpack.c.h.b16 %v405
  %v2019 = vunpack.c.l.b16 %v406
  %v2020 = vunpack.c.l.b16 %v407
  %v2021 = vunpack.c.h.b16 %v407
  %v2022 = vunpack.c.l.b16 %v408
  %v2023 = vunpack.c.l.b16 %v409
  %v2024 = vunpack.c.h.b16 %v409
  %v2025 = vunpack.c.l.b16 %v410
  %v2026 = vunpack.c.l.b16 %v411
  %v2027 = vunpack.c.h.b16 %v411
  %v2028 = vunpack.c.l.b16 %v412
  %v2029 = vunpack.c.l.b16 %v413
  %v2030 = vunpack.c.h.b16 %v413
  %v2031 = vunpack.c.l.b16 %v414
  %v2032 = vunpack.c.l.b16 %v415
  %v2033 = vunpack.c.h.b16 %v415
  %v2034 = vunpack.c.l.b16 %v416
  %v2035 = vunpack.c.l.b16 %v417
  %v2036 = vunpack.c.h.b16 %v417
  %v2037 = vunpack.c.l.b16 %v418
  %v2038 = vunpack.c.l.b16 %v419
  %v2039 = vunpack.c.h.b16 %v419
  %v2040 = vunpack.c.l.b16 %v420
  %v2041 = vunpack.c.l.b16 %v421
  %v2042 = vunpack.c.h.b16 %v421
  %v2043 = vunpack.c.l.b16 %v422
  %v2044 = vunpack.c.l.b16 %v423
  %v2045 = vunpack.c.h.b16 %v423
  %v2046 = vunpack.c.l.b16 %v424
  %v2047 = vunpack.c.l.b16 %v425
  %v2048 = vunpack.c.h.b16 %v425
  %v2049 = vunpack.c.l.b16 %v426
  %v2050 = vunpack.c.l.b16 %v427
  %v2051 = vunpack.c.h.b16 %v427
  %v2052 = vunpack.c.l.b16 %v428
  %v2053 = vunpack.c.l.b16 %v429
  %v2054 = vunpack.c.h.b16 %v429
  %v2055 = vunpack.c.l.b16 %v430
  %v2056 = vunpack.c.l.b16 %v431
  %v2057 = vunpack.c.h.b16 %v431
  %v2058 = vunpack.c.l.b16 %v432
  %v2059 = vunpack.c.l.b16 %v433
  %v2060 = vunpack.c.h.b16 %v433
  %v2061 = vunpack.c.l.b16 %v434
  %v2062 = vunpack.c.l.b16 %v435
  %v2063 = vunpack.c.h.b16 %v435
  %v2064 = vunpack.c.l.b16 %v436
  %v2065 = vunpack.c.l.b16 %v437
  %v2066 = vunpack.c.h.b16 %v437
  %v2067 = vunpack.c.l.b16 %v438
  %v2068 = vunpack.c.l.b16 %v439
  %v2069 = vunpack.c.h.b16 %v439
  %v2070 = vunpack.c.l.b16 %v440
  %v2071 = vunpack.c.l.b16 %v441
  %v2072 = vunpack.c.h.b16 %v441
  %v2073 = vunpack.c.l.b16 %v442
  %v2074 = vunpack.c.l.b16 %v443
  %v2075 = vunpack.c.h.b16 %v443
  %v2076 = vunpack.c.l.b16 %v444
  %v2077 = vunpack.c.l.b16 %v445
  %v2078 = vunpack.c.h.b16 %v445
  %v2079 = vunpack.c.l.b16 %v446
  %v2080 = vunpack.c.l.b16 %v447
  %v2081 = vunpack.c.h.b16 %v447
  %v2082 = vunpack.c.l.b16 %v448
  %v2083 = vunpack.c.l.b16 %v449
  %v2084 = vunpack.c.h.b16 %v449
  %v2085 = vunpack.c.l.b16 %v450
  %v2086 = vunpack.c.l.b16 %v451
  %v2087 = vunpack.c.h.b16 %v451
  %v2088 = vunpack.c.l.b16 %v452
  %v2089 = vunpack.c.l.b16 %v453
  %v2090 = vunpack.c.h.b16 %v453
  %v2091 = vunpack.c.l.b16 %v454
  %v2092 = vunpack.c.l.b16 %v455
  %v2093 = vunpack.c.h.b16 %v455
  %v2094 = vunpack.c.l.b16 %v456
  %v2095 = vunpack.c.l.b16 %v457
  %v2096 = vunpack.c.h.b16 %v457
  %v2097 = vunpack.c.l.b16 %v458
  %v2098 = vunpack.c.l.b16 %v459
  %v2099 = vunpack.c.h.b16 %v459
  %v2100 = vunpack.c.l.b16 %v460
  %v2101 = vunpack.c.l.b16 %v461
  %v2102 = vunpack.c.h.b16 %v461
  %v2103 = vunpack.c.l.b16 %v462
  %v2104 = vunpack.c.l.b16 %v463
  %v2105 = vunpack.c.h.b16 %v463
  %v2106 = vunpack.c.l.b16 %v464
  %v2107 = vunpack.c.l.b16 %v465
  %v2108 = vunpack.c.h.b16 %v465
  %v2109 = vunpack.c.l.b16 %v466
  %v2110 = vunpack.c.l.b16 %v467
  %v2111 = vunpack.c.h.b16 %v467
  %v2112 = vunpack.c.l.b16 %v468
  %v2113 = vunpack.c.l.b16 %v469
  %v2114 = vunpack.c.h.b16 %v469
  %v2115 = vunpack.c.l.b16 %v470
  %v2116 = vunpack.c.l.b16 %v471
  %v2117 = vunpack.c.h.b16 %v471
  %v2118 = vunpack.c.l.b16 %v472
  %v2119 = vunpack.c.l.b16 %v473
  %v2120 = vunpack.c.h.b16 %v473
  %v2121 = vunpack.c.l.b16 %v474
  %v2122 = vunpack.c.l.b16 %v475
  %v2123 = vunpack.c.h.b16 %v475
  %v2124 = vunpack.c.l.b16 %v476
  %v2125 = vunpack.c.l.b16 %v477
  %v2126 = vunpack.c.h.b16 %v477
  %v2127 = vunpack.c.l.b16 %v478
  %v2128 = vunpack.c.l.b16 %v479
  %v2129 = vunpack.c.h.b16 %v479
  %v2130 = vunpack.c.l.b16 %v480
  %v2131 = vunpack.c.l.b16 %v481
  %v2132 = vunpack.c.h.b16 %v481
  %v2133 = vunpack.c.l.b16 %v482
  %v2134 = vunpack.c.l.b16 %v483
  %v2135 = vunpack.c.h.b16 %v483
  %v2136 = vunpack.c.l.b16 %v484
  %v2137 = vunpack.c.l.b16 %v485
  %v2138 = vunpack.c.h.b16 %v485
  %v2139 = vunpack.c.l.b16 %v486
  %v2140 = vunpack.c.l.b16 %v487
  %v2141 = vunpack.c.h.b16 %v487
  %v2142 = vunpack.c.l.b16 %v488
  %v2143 = vunpack.c.l.b16 %v489
  %v2144 = vunpack.c.h.b16 %v489
  %v2145 = vunpack.c.l.b16 %v490
  %v2146 = vunpack.c.l.b16 %v491
  %v2147 = vunpack.c.h.b16 %v491
  %v2148 = vunpack.c.l.b16 %v492
  %v2149 = vunpack.c.l.b16 %v493
  %v2150 = vunpack.c.h.b16 %v493
  %v2151 = vunpack.c.l.b16 %v494
  %v2152 = vunpack.c.l.b16 %v495
  %v2153 = vunpack.c.h.b16 %v495
  %v2154 = vunpack.c.l.b16 %v496
  %v2155 = vunpack.c.l.b16 %v497
  %v2156 = vunpack.c.h.b16 %v497
  %v2157 = vunpack.c.l.b16 %v498
  %v2158 = vunpack.c.l.b16 %v499
  %v2159 = vunpack.c.h.b16 %v499
  %v2160 = vunpack.c.l.b16 %v500
  %v2161 = vunpack.c.l.b16 %v501
  %v2162 = vunpack.c.h.b16 %v501
  %v2163 = vunpack.c.l.b16 %v502
  %v2164 = vunpack.c.l.b16 %v503
  %v2165 = vunpack.c.h.b16 %v503
  %v2166 = vunpack.c.l.b16 %v504
  %v2167 = vunpack.c.l.b16 %v505
  %v2168 = vunpack.c.h.b16 %v505
  %v2169 = vunpack.c.l.b16 %v506
  %v2170 = vunpack.c.l.b16 %v507
  %v2171 = vunpack.c.h.b16 %v507
  %v2172 = vunpack.c.l.b16 %v508
  %v2173 = vunpack.c.l.b16 %v509
  %v2174 = vunpack.c.h.b16 %v509
  %v2175 = vunpack.c.l.b16 %v510
  %v2176 = vunpack.c.l.b16 %v511
  %v2177 = vunpack.c.h.b16 %v511
  %v2178 = vunpack.c.l.b16 %v512
  %v2179 = vunpack.c.l.b16 %v513
  %v2180 = vunpack.c.h.b16 %v513
  %v2181 = vunpack.c.l.b16 %v514
  %v2182 = vunpack.c.l.b16 %v515
  %v2183 = vunpack.c.h.b16 %v515
  %v2184 = vunpack.c.l.b16 %v516
  %v2185 = vunpack.c.l.b16 %v517
  %v2186 = vunpack.c.h.b16 %v517
  %v2187 = vunpack.c.l.b16 %v518
  %v2188 = vunpack.c.l.b16 %v519
  %v2189 = vunpack.c.h.b16 %v519
  %v2190 = vunpack.c.l.b16 %v520
  %v2191 = vunpack.c.l.b16 %v521
  %v2192 = vunpack.c.h.b16 %v521
  %v2193 = vunpack.c.l.b16 %v522
  %v2194 = vunpack.c.l.b16 %v523
  %v2195 = vunpack.c.h.b16 %v523
  %v2196 = vunpack.c.l.b16 %v524
  %v2197 = vunpack.c.l.b16 %v525
  %v2198 = vunpack.c.h.b16 %v525
  %v2199 = vunpack.c.l.b16 %v526
  %v2200 = vunpack.c.l.b16 %v527
  %v2201 = vunpack.c.h.b16 %v527
  %v2202 = vunpack.c.l.b16 %v528
  %v2203 = vunpack.c.l.b16 %v529
  %v2204 = vunpack.c.h.b16 %v529
  %v2205 = vunpack.c.l.b16 %v530
  %v2206 = vunpack.c.l.b16 %v531
  %v2207 = vunpack.c.h.b16 %v531
  %v2208 = vunpack.c.l.b16 %v532
  %v2209 = vunpack.c.l.b16 %v533
  %v2210 = vunpack.c.h.b16 %v533
  %v2211 = vunpack.c.l.b16 %v534
  %v2212 = vunpack.c.l.b16 %v535
  %v2213 = vunpack.c.h.b16 %v535
  %v2214 = vunpack.c.l.b16 %v536
  %v2215 = vunpack.c.l.b16 %v537
  %v2216 = vunpack.c.h.b16 %v537
  %v2217 = vunpack.c.l.b16 %v538
  %v2218 = vunpack.c.l.b16 %v539
  %v2219 = vunpack.c.h.b16 %v539
  %v2220 = vunpack.c.l.b16 %v540
  %v2221 = vunpack.c.l.b16 %v541
  %v2222 = vunpack.c.h.b16 %v541
  %v2223 = vunpack.c.l.b16 %v542
  %v2224 = vunpack.c.l.b16 %v543
  %v2225 = vunpack.c.h.b16 %v543
  %v2226 = vunpack.c.l.b16 %v544
  %v2227 = vunpack.c.l.b16 %v545
  %v2228 = vunpack.c.h.b16 %v545
  %v2229 = vunpack.c.l.b16 %v546
  %v2230 = vunpack.c.l.b16 %v547
  %v2231 = vunpack.c.h.b16 %v547
  %v2232 = vunpack.c.l.b16 %v548
  %v2233 = vunpack.c.l.b16 %v549
  %v2234 = vunpack.c.h.b16 %v549
  %v2235 = vunpack.c.l.b16 %v550
  %v2236 = vunpack.c.l.b16 %v551
  %v2237 = vunpack.c.h.b16 %v551
  %v2238 = vunpack.c.l.b16 %v552
  %v2239 = vunpack.c.l.b16 %v553
  %v2240 = vunpack.c.h.b16 %v553
  %v2241 = vunpack.c.l.b16 %v554
  %v2242 = vunpack.c.l.b16 %v555
  %v2243 = vunpack.c.h.b16 %v555
  %v2244 = vunpack.c.l.b16 %v556
  %v2245 = vunpack.c.l.b16 %v557
  %v2246 = vunpack.c.h.b16 %v557
  %v2247 = vunpack.c.l.b16 %v558
  %v2248 = vunpack.c.l.b16 %v559
  %v2249 = vunpack.c.h.b16 %v559
  %v2250 = vunpack.c.l.b16 %v560
  %v2251 = vunpack.c.l.b16 %v561
  %v2252 = vunpack.c.h.b16 %v561
  %v2253 = vunpack.c.l.b16 %v562
  %v2254 = vunpack.c.l.b16 %v563
  %v2255 = vunpack.c.h.b16 %v563
  %v2256 = vunpack.c.l.b16 %v564
  %v2257 = vunpack.c.l.b16 %v565
  %v2258 = vunpack.c.h.b16 %v565
  %v2259 = vunpack.c.l.b16 %v566
  %v2260 = vunpack.c.l.b16 %v567
  %v2261 = vunpack.c.h.b16 %v567
  %v2262 = vunpack.c.l.b16 %v568
  %v2263 = vunpack.c.l.b16 %v569
  %v2264 = vunpack.c.h.b16 %v569
  %v2265 = vunpack.c.l.b16 %v570
  %v2266 = vunpack.c.l.b16 %v571
  %v2267 = vunpack.c.h.b16 %v571
  %v2268 = vunpack.c.l.b16 %v572
  %v2269 = vunpack.c.l.b16 %v573
  %v2270 = vunpack.c.h.b16 %v573
  %v2271 = vunpack.c.l.b16 %v574
  %v2272 = vpack.c.b16 %v1603, %v1600
  %v2273 = vpack.c.b16 %v1604, %v1601
  %v2274 = vpack.c.b16 %v1605, %v1602
  %v2275 = vpack.c.b16 %v1609, %v1606
  %v2276 = vpack.c.b16 %v1610, %v1607
  %v2277 = vpack.c.b16 %v1611, %v1608
  %v2278 = vpack.c.b16 %v1615, %v1612
  %v2279 = vpack.c.b16 %v1616, %v1613
  %v2280 = vpack.c.b16 %v1617, %v1614
  %v2281 = vpack.c.b16 %v1621, %v1618
  %v2282 = vpack.c.b16 %v1622, %v1619
  %v2283 = vpack.c.b16 %v1623, %v1620
  %v2284 = vpack.c.b16 %v1627, %v1624
  %v2285 = vpack.c.b16 %v1628, %v1625
  %v2286 = vpack.c.b16 %v1629, %v1626
  %v2287 = vpack.c.b16 %v1633, %v1630
  %v2288 = vpack.c.b16 %v1634, %v1631
  %v2289 = vpack.c.b16 %v1635, %v1632
  %v2290 = vpack.c.b16 %v1639, %v1636
  %v2291 = vpack.c.b16 %v1640, %v1637
  %v2292 = vpack.c.b16 %v1641, %v1638
  %v2293 = vpack.c.b16 %v1645, %v1642
  %v2294 = vpack.c.b16 %v1646, %v1643
  %v2295 = vpack.c.b16 %v1647, %v1644
  %v2296 = vpack.c.b16 %v1651, %v1648
  %v2297 = vpack.c.b16 %v1652, %v1649
  %v2298 = vpack.c.b16 %v1653, %v1650
  %v2299 = vpack.c.b16 %v1657, %v1654
  %v2300 = vpack.c.b16 %v1658, %v1655
  %v2301 = vpack.c.b16 %v1659, %v1656
  %v2302 = vpack.c.b16 %v1663, %v1660
  %v2303 = vpack.c.b16 %v1664, %v1661
  %v2304 = vpack.c.b16 %v1665, %v1662
  %v2305 = vpack.c.b16 %v1669, %v1666
  %v2306 = vpack.c.b16 %v1670, %v1667
  %v2307 = vpack.c.b16 %v1671, %v1668
  %v2308 = vpack.c.b16 %v1675, %v1672
  %v2309 = vpack.c.b16 %v1676, %v1673
  %v2310 = vpack.c.b16 %v1677, %v1674
  %v2311 = vpack.c.b16 %v1681, %v1678
  %v2312 = vpack.c.b16 %v1682, %v1679
  %v2313 = vpack.c.b16 %v1683, %v1680
  %v2314 = vpack.c.b16 %v1687, %v1684
  %v2315 = vpack.c.b16 %v1688, %v1685
  %v2316 = vpack.c.b16 %v1689, %v1686
  %v2317 = vpack.c.b16 %v1693, %v1690
  %v2318 = vpack.c.b16 %v1694, %v1691
  %v2319 = vpack.c.b16 %v1695, %v1692
  %v2320 = vpack.c.b16 %v1699, %v1696
  %v2321 = vpack.c.b16 %v1700, %v1697
  %v2322 = vpack.c.b16 %v1701, %v1698
  %v2323 = vpack.c.b16 %v1705, %v1702
  %v2324 = vpack.c.b16 %v1706, %v1703
  %v2325 = vpack.c.b16 %v1707, %v1704
  %v2326 = vpack.c.b16 %v1711, %v1708
  %v2327 = vpack.c.b16 %v1712, %v1709
  %v2328 = vpack.c.b16 %v1713, %v1710
  %v2329 = vpack.c.b16 %v1717, %v1714
  %v2330 = vpack.c.b16 %v1718, %v1715
  %v2331 = vpack.c.b16 %v1719, %v1716
  %v2332 = vpack.c.b16 %v1723, %v1720
  %v2333 = vpack.c.b16 %v1724, %v1721
  %v2334 = vpack.c.b16 %v1725, %v1722
  %v2335 = vpack.c.b16 %v1729, %v1726
  %v2336 = vpack.c.b16 %v1730, %v1727
  %v2337 = vpack.c.b16 %v1731, %v1728
  %v2338 = vpack.c.b16 %v1735, %v1732
  %v2339 = vpack.c.b16 %v1736, %v1733
  %v2340 = vpack.c.b16 %v1737, %v1734
  %v2341 = vpack.c.b16 %v1741, %v1738
  %v2342 = vpack.c.b16 %v1742, %v1739
  %v2343 = vpack.c.b16 %v1743, %v1740
  %v2344 = vpack.c.b16 %v1747, %v1744
  %v2345 = vpack.c.b16 %v1748, %v1745
  %v2346 = vpack.c.b16 %v1749, %v1746
  %v2347 = vpack.c.b16 %v1753, %v1750
  %v2348 = vpack.c.b16 %v1754, %v1751
  %v2349 = vpack.c.b16 %v1755, %v1752
  %v2350 = vpack.c.b16 %v1759, %v1756
  %v2351 = vpack.c.b16 %v1760, %v1757
  %v2352 = vpack.c.b16 %v1761, %v1758
  %v2353 = vpack.c.b16 %v1765, %v1762
  %v2354 = vpack.c.b16 %v1766, %v1763
  %v2355 = vpack.c.b16 %v1767, %v1764
  %v2356 = vpack.c.b16 %v1771, %v1768
  %v2357 = vpack.c.b16 %v1772, %v1769
  %v2358 = vpack.c.b16 %v1773, %v1770
  %v2359 = vpack.c.b16 %v1777, %v1774
  %v2360 = vpack.c.b16 %v1778, %v1775
  %v2361 = vpack.c.b16 %v1779, %v1776
  %v2362 = vpack.c.b16 %v1783, %v1780
  %v2363 = vpack.c.b16 %v1784, %v1781
  %v2364 = vpack.c.b16 %v1785, %v1782
  %v2365 = vpack.c.b16 %v1789, %v1786
  %v2366 = vpack.c.b16 %v1790, %v1787
  %v2367 = vpack.c.b16 %v1791, %v1788
  %v2368 = vpack.c.b16 %v1795, %v1792
  %v2369 = vpack.c.b16 %v1796, %v1793
  %v2370 = vpack.c.b16 %v1797, %v1794
  %v2371 = vpack.c.b16 %v1801, %v1798
  %v2372 = vpack.c.b16 %v1802, %v1799
  %v2373 = vpack.c.b16 %v1803, %v1800
  %v2374 = vpack.c.b16 %v1807, %v1804
  %v2375 = vpack.c.b16 %v1808, %v1805
  %v2376 = vpack.c.b16 %v1809, %v1806
  %v2377 = vpack.c.b16 %v1813, %v1810
  %v2378 = vpack.c.b16 %v1814, %v1811
  %v2379 = vpack.c.b16 %v1815, %v1812
  %v2380 = vpack.c.b16 %v1819, %v1816
  %v2381 = vpack.c.b16 %v1820, %v1817
  %v2382 = vpack.c.b16 %v1821, %v1818
  %v2383 = vpack.c.b16 %v1825, %v1822
  %v2384 = vpack.c.b16 %v1826, %v1823
  %v2385 = vpack.c.b16 %v1827, %v1824
  %v2386 = vpack.c.b16 %v1831, %v1828
  %v2387 = vpack.c.b16 %v1832, %v1829
  %v2388 = vpack.c.b16 %v1833, %v1830
  %v2389 = vpack.c.b16 %v1837, %v1834
  %v2390 = vpack.c.b16 %v1838, %v1835
  %v2391 = vpack.c.b16 %v1839, %v1836
  %v2392 = vpack.c.b16 %v1843, %v1840
  %v2393 = vpack.c.b16 %v1844, %v1841
  %v2394 = vpack.c.b16 %v1845, %v1842
  %v2395 = vpack.c.b16 %v1849, %v1846
  %v2396 = vpack.c.b16 %v1850, %v1847
  %v2397 = vpack.c.b16 %v1851, %v1848
  %v2398 = vpack.c.b16 %v1855, %v1852
  %v2399 = vpack.c.b16 %v1856, %v1853
  %v2400 = vpack.c.b16 %v1857, %v1854
  %v2401 = vpack.c.b16 %v1861, %v1858
  %v2402 = vpack.c.b16 %v1862, %v1859
  %v2403 = vpack.c.b16 %v1863, %v1860
  %v2404 = vpack.c.b16 %v1867, %v1864
  %v2405 = vpack.c.b16 %v1868, %v1865
  %v2406 = vpack.c.b16 %v1869, %v1866
  %v2407 = vpack.c.b16 %v1873, %v1870
  %v2408 = vpack.c.b16 %v1874, %v1871
  %v2409 = vpack.c.b16 %v1875, %v1872
  %v2410 = vpack.c.b16 %v1879, %v1876
  %v2411 = vpack.c.b16 %v1880, %v1877
  %v2412 = vpack.c.b16 %v1881, %v1878
  %v2413 = vpack.c.b16 %v1885, %v1882
  %v2414 = vpack.c.b16 %v1886, %v1883
  %v2415 = vpack.c.b16 %v1887, %v1884
  %v2416 = vpack.c.b16 %v1891, %v1888
  %v2417 = vpack.c.b16 %v1892, %v1889
  %v2418 = vpack.c.b16 %v1893, %v1890
  %v2419 = vpack.c.b16 %v1897, %v1894
  %v2420 = vpack.c.b16 %v1898, %v1895
  %v2421 = vpack.c.b16 %v1899, %v1896
  %v2422 = vpack.c.b16 %v1903, %v1900
  %v2423 = vpack.c.b16 %v1904, %v1901
  %v2424 = vpack.c.b16 %v1905, %v1902
  %v2425 = vpack.c.b16 %v1909, %v1906
  %v2426 = vpack.c.b16 %v1910, %v1907
  %v2427 = vpack.c.b16 %v1911, %v1908
  %v2428 = vpack.c.b16 %v1915, %v1912
  %v2429 = vpack.c.b16 %v1916, %v1913
  %v2430 = vpack.c.b16 %v1917, %v1914
  %v2431 = vpack.c.b16 %v1921, %v1918
  %v2432 = vpack.c.b16 %v1922, %v1919
  %v2433 = vpack.c.b16 %v1923, %v1920
  %v2434 = vpack.c.b16 %v1927, %v1924
  %v2435 = vpack.c.b16 %v1928, %v1925
  %v2436 = vpack.c.b16 %v1929, %v1926
  %v2437 = vpack.c.b16 %v1933, %v1930
  %v2438 = vpack.c.b16 %v1934, %v1931
  %v2439 = vpack.c.b16 %v1935, %v1932
  %v2440 = vpack.c.b16 %v1939, %v1936
  %v2441 = vpack.c.b16 %v1940, %v1937
  %v2442 = vpack.c.b16 %v1941, %v1938
  %v2443 = vpack.c.b16 %v1945, %v1942
  %v2444 = vpack.c.b16 %v1946, %v1943
  %v2445 = vpack.c.b16 %v1947, %v1944
  %v2446 = vpack.c.b16 %v1951, %v1948
  %v2447 = vpack.c.b16 %v1952, %v1949
  %v2448 = vpack.c.b16 %v1953, %v1950
  %v2449 = vpack.c.b16 %v1957, %v1954
  %v2450 = vpack.c.b16 %v1958, %v1955
  %v2451 = vpack.c.b16 %v1959, %v1956
  %v2452 = vpack.c.b16 %v1963, %v1960
  %v2453 = vpack.c.b16 %v1964, %v1961
  %v2454 = vpack.c.b16 %v1965, %v1962
  %v2455 = vpack.c.b16 %v1969, %v1966
  %v2456 = vpack.c.b16 %v1970, %v1967
  %v2457 = vpack.c.b16 %v1971, %v1968
  %v2458 = vpack.c.b16 %v1975, %v1972
  %v2459 = vpack.c.b16 %v1976, %v1973
  %v2460 = vpack.c.b16 %v1977, %v1974
  %v2461 = vpack.c.b16 %v1981, %v1978
  %v2462 = vpack.c.b16 %v1982, %v1979
  %v2463 = vpack.c.b16 %v1983, %v1980
  %v2464 = vpack.c.b16 %v1987, %v1984
  %v2465 = vpack.c.b16 %v1988, %v1985
  %v2466 = vpack.c.b16 %v1989, %v1986
  %v2467 = vpack.c.b16 %v1993, %v1990
  %v2468 = vpack.c.b16 %v1994, %v1991
  %v2469 = vpack.c.b16 %v1995, %v1992
  %v2470 = vpack.c.b16 %v1999, %v1996
  %v2471 = vpack.c.b16 %v2000, %v1997
  %v2472 = vpack.c.b16 %v2001, %v1998
  %v2473 = vpack.c.b16 %v2005, %v2002
  %v2474 = vpack.c.b16 %v2006, %v2003
  %v2475 = vpack.c.b16 %v2007, %v2004
  %v2476 = vpack.c.b16 %v2011, %v2008
  %v2477 = vpack.c.b16 %v2012, %v2009
  %v2478 = vpack.c.b16 %v2013, %v2010
  %v2479 = vpack.c.b16 %v2017, %v2014
  %v2480 = vpack.c.b16 %v2018, %v2015
  %v2481 = vpack.c.b16 %v2019, %v2016
  %v2482 = vpack.c.b16 %v2023, %v2020
  %v2483 = vpack.c.b16 %v2024, %v2021
  %v2484 = vpack.c.b16 %v2025, %v2022
  %v2485 = vpack.c.b16 %v2029, %v2026
  %v2486 = vpack.c.b16 %v2030, %v2027
  %v2487 = vpack.c.b16 %v2031, %v2028
  %v2488 = vpack.c.b16 %v2035, %v2032
  %v2489 = vpack.c.b16 %v2036, %v2033
  %v2490 = vpack.c.b16 %v2037, %v2034
  %v2491 = vpack.c.b16 %v2041, %v2038
  %v2492 = vpack.c.b16 %v2042, %v2039
  %v2493 = vpack.c.b16 %v2043, %v2040
  %v2494 = vpack.c.b16 %v2047, %v2044
  %v2495 = vpack.c.b16 %v2048, %v2045
  %v2496 = vpack.c.b16 %v2049, %v2046
  %v2497 = vpack.c.b16 %v2053, %v2050
  %v2498 = vpack.c.b16 %v2054, %v2051
  %v2499 = vpack.c.b16 %v2055, %v2052
  %v2500 = vpack.c.b16 %v2059, %v2056
  %v2501 = vpack.c.b16 %v2060, %v2057
  %v2502 = vpack.c.b16 %v2061, %v2058
  %v2503 = vpack.c.b16 %v2065, %v2062
  %v2504 = vpack.c.b16 %v2066, %v2063
  %v2505 = vpack.c.b16 %v2067, %v2064
  %v2506 = vpack.c.b16 %v2071, %v2068
  %v2507 = vpack.c.b16 %v2072, %v2069
  %v2508 = vpack.c.b16 %v2073, %v2070
  %v2509 = vpack.c.b16 %v2077, %v2074
  %v2510 = vpack.c.b16 %v2078, %v2075
  %v2511 = vpack.c.b16 %v2079, %v2076
  %v2512 = vpack.c.b16 %v2083, %v2080
  %v2513 = vpack.c.b16 %v2084, %v2081
  %v2514 = vpack.c.b16 %v2085, %v2082
  %v2515 = vpack.c.b16 %v2089, %v2086
  %v2516 = vpack.c.b16 %v2090, %v2087
  %v2517 = vpack.c.b16 %v2091, %v2088
  %v2518 = vpack.c.b16 %v2095, %v2092
  %v2519 = vpack.c.b16 %v2096, %v2093
  %v2520 = vpack.c.b16 %v2097, %v2094
  %v2521 = vpack.c.b16 %v2101, %v2098
  %v2522 = vpack.c.b16 %v2102, %v2099
  %v2523 = vpack.c.b16 %v2103, %v2100
  %v2524 = vpack.c.b16 %v2107, %v2104
  %v2525 = vpack.c.b16 %v2108, %v2105
  %v2526 = vpack.c.b16 %v2109, %v2106
  %v2527 = vpack.c.b16 %v2113, %v2110
  %v2528 = vpack.c.b16 %v2114, %v2111
  %v2529 = vpack.c.b16 %v2115, %v2112
  %v2530 = vpack.c.b16 %v2119, %v2116
  %v2531 = vpack.c.b16 %v2120, %v2117
  %v2532 = vpack.c.b16 %v2121, %v2118
  %v2533 = vpack.c.b16 %v2125, %v2122
  %v2534 = vpack.c.b16 %v2126, %v2123
  %v2535 = vpack.c.b16 %v2127, %v2124
  %v2536 = vpack.c.b16 %v2131, %v2128
  %v2537 = vpack.c.b16 %v2132, %v2129
  %v2538 = vpack.c.b16 %v2133, %v2130
  %v2539 = vpack.c.b16 %v2137, %v2134
  %v2540 = vpack.c.b16 %v2138, %v2135
  %v2541 = vpack.c.b16 %v2139, %v2136
  %v2542 = vpack.c.b16 %v2143, %v2140
  %v2543 = vpack.c.b16 %v2144, %v2141
  %v2544 = vpack.c.b16 %v2145, %v2142
  %v2545 = vpack.c.b16 %v2149, %v2146
  %v2546 = vpack.c.b16 %v2150, %v2147
  %v2547 = vpack.c.b16 %v2151, %v2148
  %v2548 = vpack.c.b16 %v2155, %v2152
  %v2549 = vpack.c.b16 %v2156, %v2153
  %v2550 = vpack.c.b16 %v2157, %v2154
  %v2551 = vpack.c.b16 %v2161, %v2158
  %v2552 = vpack.c.b16 %v2162, %v2159
  %v2553 = vpack.c.b16 %v2163, %v2160
  %v2554 = vpack.c.b16 %v2167, %v2164
  %v2555 = vpack.c.b16 %v2168, %v2165
  %v2556 = vpack.c.b16 %v2169, %v2166
  %v2557 = vpack.c.b16 %v2173, %v2170
  %v2558 = vpack.c.b16 %v2174, %v2171
  %v2559 = vpack.c.b16 %v2175, %v2172
  %v2560 = vpack.c.b16 %v2179, %v2176
  %v2561 = vpack.c.b16 %v2180, %v2177
  %v2562 = vpack.c.b16 %v2181, %v2178
  %v2563 = vpack.c.b16 %v2185, %v2182
  %v2564 = vpack.c.b16 %v2186, %v2183
  %v2565 = vpack.c.b16 %v2187, %v2184
  %v2566 = vpack.c.b16 %v2191, %v2188
  %v2567 = vpack.c.b16 %v2192, %v2189
  %v2568 = vpack.c.b16 %v2193, %v2190
  %v2569 = vpack.c.b16 %v2197, %v2194
  %v2570 = vpack.c.b16 %v2198, %v2195
  %v2571 = vpack.c.b16 %v2199, %v2196
  %v2572 = vpack.c.b16 %v2203, %v2200
  %v2573 = vpack.c.b16 %v2204, %v2201
  %v2574 = vpack.c.b16 %v2205, %v2202
  %v2575 = vpack.c.b16 %v2209, %v2206
  %v2576 = vpack.c.b16 %v2210, %v2207
  %v2577 = vpack.c.b16 %v2211, %v2208
  %v2578 = vpack.c.b16 %v2215, %v2212
  %v2579 = vpack.c.b16 %v2216, %v2213
  %v2580 = vpack.c.b16 %v2217, %v2214
  %v2581 = vpack.c.b16 %v2221, %v2218
  %v2582 = vpack.c.b16 %v2222, %v2219
  %v2583 = vpack.c.b16 %v2223, %v2220
  %v2584 = vpack.c.b16 %v2227, %v2224
  %v2585 = vpack.c.b16 %v2228, %v2225
  %v2586 = vpack.c.b16 %v2229, %v2226
  %v2587 = vpack.c.b16 %v2233, %v2230
  %v2588 = vpack.c.b16 %v2234, %v2231
  %v2589 = vpack.c.b16 %v2235, %v2232
  %v2590 = vpack.c.b16 %v2239, %v2236
  %v2591 = vpack.c.b16 %v2240, %v2237
  %v2592 = vpack.c.b16 %v2241, %v2238
  %v2593 = vpack.c.b16 %v2245, %v2242
  %v2594 = vpack.c.b16 %v2246, %v2243
  %v2595 = vpack.c.b16 %v2247, %v2244
  %v2596 = vpack.c.b16 %v2251, %v2248
  %v2597 = vpack.c.b16 %v2252, %v2249
  %v2598 = vpack.c.b16 %v2253, %v2250
  %v2599 = vpack.c.b16 %v2257, %v2254
  %v2600 = vpack.c.b16 %v2258, %v2255
  %v2601 = vpack.c.b16 %v2259, %v2256
  %v2602 = vpack.c.b16 %v2263, %v2260
  %v2603 = vpack.c.b16 %v2264, %v2261
  %v2604 = vpack.c.b16 %v2265, %v2262
  %v2605 = vpack.c.b16 %v2269, %v2266
  %v2606 = vpack.c.b16 %v2270, %v2267
  %v2607 = vpack.c.b16 %v2271, %v2268
  %2944 = vmatprep.subr.bf16.mxu0 %v2273
  %2945 = vmatpush1.bf16.msra.mxu0 %v2272
  %2946 = vmatprep.subr.bf16.mxu0 %v2276
  %2947 = vmatpush1.bf16.msra.mxu0 %v2275
  %2948 = vmatprep.subr.bf16.mxu0 %v2279
  %2949 = vmatpush1.bf16.msra.mxu0 %v2278
  %2950 = vmatprep.subr.bf16.mxu0 %v2282
  %2951 = vmatpush1.bf16.msra.mxu0 %v2281
  %2952 = vmatprep.subr.bf16.mxu0 %v2285
  %2953 = vmatpush1.bf16.msra.mxu0 %v2284
  %2954 = vmatprep.subr.bf16.mxu0 %v2288
  %2955 = vmatpush1.bf16.msra.mxu0 %v2287
  %2956 = vmatprep.subr.bf16.mxu0 %v2291
  %2957 = vmatpush1.bf16.msra.mxu0 %v2290
  %2958 = vmatprep.subr.bf16.mxu0 %v2294
  %2959 = vmatpush1.bf16.msra.mxu0 %v2293
  %2960 = vmatprep.subr.bf16.mxu0 %v2297
  %2961 = vmatpush1.bf16.msra.mxu0 %v2296
  %2962 = vmatprep.subr.bf16.mxu0 %v2300
  %2963 = vmatpush1.bf16.msra.mxu0 %v2299
  %2964 = vmatprep.subr.bf16.mxu0 %v2303
  %2965 = vmatpush1.bf16.msra.mxu0 %v2302
  %2966 = vmatprep.subr.bf16.mxu0 %v2306
  %2967 = vmatpush1.bf16.msra.mxu0 %v2305
  %2968 = vmatprep.subr.bf16.mxu0 %v2309
  %2969 = vmatpush1.bf16.msra.mxu0 %v2308
  %2970 = vmatprep.subr.bf16.mxu0 %v2312
  %2971 = vmatpush1.bf16.msra.mxu0 %v2311
  %2972 = vmatprep.subr.bf16.mxu0 %v2315
  %2973 = vmatpush1.bf16.msra.mxu0 %v2314
  %2974 = vmatprep.subr.bf16.mxu0 %v2318
  %2975 = vmatpush1.bf16.msra.mxu0 %v2317
  %2976 = vmatprep.mubr.bf16.mxu0 %v929
  %2977 = vmatmul.mubr.bf16.gmra.mrb[0].mxu0 %v928
  %v2978 = vpop.f32.mrb[0].mxu0
  %v2979 = vadd.f32 %v580, %v2978
  %v2980 = vpop.f32.mrb[0].mxu0
  %v2981 = vadd.f32 %v584, %v2980
  %v2982 = vpop.f32.mrb[0].mxu0
  %v2983 = vadd.f32 %v580, %v2982
  %v2984 = vpop.f32.mrb[0].mxu0
  %v2985 = vadd.f32 %v584, %v2984
  %2986 = vmatprep.mubr.bf16.mxu0 %v943
  %2987 = vmatmul.mubr.bf16.gmra.mrb[0].mxu0 %v942
  %v2988 = vpop.f32.mrb[0].mxu0
  %v2989 = vadd.f32 %v580, %v2988
  %v2990 = vpop.f32.mrb[0].mxu0
  %v2991 = vadd.f32 %v584, %v2990
  %v2992 = vpop.f32.mrb[0].mxu0
  %v2993 = vadd.f32 %v580, %v2992
  %v2994 = vpop.f32.mrb[0].mxu0
  %v2995 = vadd.f32 %v584, %v2994
  %2996 = vmatprep.mubr.bf16.mxu0 %v957
  %2997 = vmatmul.mubr.bf16.gmra.mrb[0].mxu0 %v956
  %v2998 = vpop.f32.mrb[0].mxu0
  %v2999 = vadd.f32 %v580, %v2998
  %v3000 = vpop.f32.mrb[0].mxu0
  %v3001 = vadd.f32 %v584, %v3000
  %v3002 = vpop.f32.mrb[0].mxu0
  %v3003 = vadd.f32 %v580, %v3002
  %v3004 = vpop.f32.mrb[0].mxu0
  %v3005 = vadd.f32 %v584, %v3004
  %3006 = vmatprep.mubr.bf16.mxu0 %v971
  %3007 = vmatmul.mubr.bf16.gmra.mrb[0].mxu0 %v970
  %v3008 = vpop.f32.mrb[0].mxu0
  %v3009 = vadd.f32 %v580, %v3008
  %v3010 = vpop.f32.mrb[0].mxu0
  %v3011 = vadd.f32 %v584, %v3010
  %v3012 = vpop.f32.mrb[0].mxu0
  %v3013 = vadd.f32 %v580, %v3012
  %v3014 = vpop.f32.mrb[0].mxu0
  %v3015 = vadd.f32 %v584, %v3014
  %3016 = vmatprep.mubr.bf16.mxu0 %v985
  %3017 = vmatmul.mubr.bf16.gmra.mrb[0].mxu0 %v984
  %v3018 = vpop.f32.mrb[0].mxu0
  %v3019 = vadd.f32 %v580, %v3018
  %v3020 = vpop.f32.mrb[0].mxu0
  %v3021 = vadd.f32 %v584, %v3020
  %v3022 = vpop.f32.mrb[0].mxu0
  %v3023 = vadd.f32 %v580, %v3022
  %v3024 = vpop.f32.mrb[0].mxu0
  %v3025 = vadd.f32 %v584, %v3024
  %3026 = vmatprep.mubr.bf16.mxu0 %v999
  %3027 = vmatmul.mubr.bf16.gmra.mrb[0].mxu0 %v998
  %v3028 = vpop.f32.mrb[0].mxu0
  %v3029 = vadd.f32 %v580, %v3028
  %v3030 = vpop.f32.mrb[0].mxu0
  %v3031 = vadd.f32 %v584, %v3030
  %v3032 = vpop.f32.mrb[0].mxu0
  %v3033 = vadd.f32 %v580, %v3032
  %v3034 = vpop.f32.mrb[0].mxu0
  %v3035 = vadd.f32 %v584, %v3034
  %3036 = vmatprep.mubr.bf16.mxu0 %v1013
  %3037 = vmatmul.mubr.bf16.gmra.mrb[0].mxu0 %v1012
  %v3038 = vpop.f32.mrb[0].mxu0
  %v3039 = vadd.f32 %v580, %v3038
  %v3040 = vpop.f32.mrb[0].mxu0
  %v3041 = vadd.f32 %v584, %v3040
  %v3042 = vpop.f32.mrb[0].mxu0
  %v3043 = vadd.f32 %v580, %v3042
  %v3044 = vpop.f32.mrb[0].mxu0
  %v3045 = vadd.f32 %v584, %v3044
  %3046 = vmatprep.mubr.bf16.mxu0 %v1027
  %3047 = vmatmul.mubr.bf16.gmra.mrb[0].mxu0 %v1026
  %v3048 = vpop.f32.mrb[0].mxu0
  %v3049 = vadd.f32 %v580, %v3048
  %v3050 = vpop.f32.mrb[0].mxu0
  %v3051 = vadd.f32 %v584, %v3050
  %v3052 = vpop.f32.mrb[0].mxu0
  %v3053 = vadd.f32 %v580, %v3052
  %v3054 = vpop.f32.mrb[0].mxu0
  %v3055 = vadd.f32 %v584, %v3054
  %3056 = vdwg.mxu0
  %3057 = vmatprep.subr.bf16.mxu0 %v2321
  %3058 = vmatpush1.bf16.msra.mxu0 %v2320
  %3059 = vmatprep.subr.bf16.mxu0 %v2324
  %3060 = vmatpush1.bf16.msra.mxu0 %v2323
  %3061 = vmatprep.subr.bf16.mxu0 %v2327
  %3062 = vmatpush1.bf16.msra.mxu0 %v2326
  %3063 = vmatprep.subr.bf16.mxu0 %v2330
  %3064 = vmatpush1.bf16.msra.mxu0 %v2329
  %3065 = vmatprep.subr.bf16.mxu0 %v2333
  %3066 = vmatpush1.bf16.msra.mxu0 %v2332
  %3067 = vmatprep.subr.bf16.mxu0 %v2336
  %3068 = vmatpush1.bf16.msra.mxu0 %v2335
  %3069 = vmatprep.subr.bf16.mxu0 %v2339
  %3070 = vmatpush1.bf16.msra.mxu0 %v2338
  %3071 = vmatprep.subr.bf16.mxu0 %v2342
  %3072 = vmatpush1.bf16.msra.mxu0 %v2341
  %3073 = vmatprep.subr.bf16.mxu0 %v2345
  %3074 = vmatpush1.bf16.msra.mxu0 %v2344
  %3075 = vmatprep.subr.bf16.mxu0 %v2348
  %3076 = vmatpush1.bf16.msra.mxu0 %v2347
  %3077 = vmatprep.subr.bf16.mxu0 %v2351
  %3078 = vmatpush1.bf16.msra.mxu0 %v2350
  %3079 = vmatprep.subr.bf16.mxu0 %v2354
  %3080 = vmatpush1.bf16.msra.mxu0 %v2353
  %3081 = vmatprep.subr.bf16.mxu0 %v2357
  %3082 = vmatpush1.bf16.msra.mxu0 %v2356
  %3083 = vmatprep.subr.bf16.mxu0 %v2360
  %3084 = vmatpush1.bf16.msra.mxu0 %v2359
  %3085 = vmatprep.subr.bf16.mxu0 %v2363
  %3086 = vmatpush1.bf16.msra.mxu0 %v2362
  %3087 = vmatprep.subr.bf16.mxu0 %v2366
  %3088 = vmatpush1.bf16.msra.mxu0 %v2365
  %3089 = vmatprep.mubr.bf16.mxu0 %v931
  %3090 = vmatmul.mubr.bf16.gmra.mrb[0].mxu0 %v930
  %v3091 = vpop.f32.mrb[0].mxu0
  %v3092 = vadd.f32 %v2979, %v3091
  %v3093 = vpop.f32.mrb[0].mxu0
  %v3094 = vadd.f32 %v2981, %v3093
  %v3095 = vpop.f32.mrb[0].mxu0
  %v3096 = vadd.f32 %v2983, %v3095
  %v3097 = vpop.f32.mrb[0].mxu0
  %v3098 = vadd.f32 %v2985, %v3097
  %3099 = vmatprep.mubr.bf16.mxu0 %v945
  %3100 = vmatmul.mubr.bf16.gmra.mrb[0].mxu0 %v944
  %v3101 = vpop.f32.mrb[0].mxu0
  %v3102 = vadd.f32 %v2989, %v3101
  %v3103 = vpop.f32.mrb[0].mxu0
  %v3104 = vadd.f32 %v2991, %v3103
  %v3105 = vpop.f32.mrb[0].mxu0
  %v3106 = vadd.f32 %v2993, %v3105
  %v3107 = vpop.f32.mrb[0].mxu0
  %v3108 = vadd.f32 %v2995, %v3107
  %3109 = vmatprep.mubr.bf16.mxu0 %v959
  %3110 = vmatmul.mubr.bf16.gmra.mrb[0].mxu0 %v958
  %v3111 = vpop.f32.mrb[0].mxu0
  %v3112 = vadd.f32 %v2999, %v3111
  %v3113 = vpop.f32.mrb[0].mxu0
  %v3114 = vadd.f32 %v3001, %v3113
  %v3115 = vpop.f32.mrb[0].mxu0
  %v3116 = vadd.f32 %v3003, %v3115
  %v3117 = vpop.f32.mrb[0].mxu0
  %v3118 = vadd.f32 %v3005, %v3117
  %3119 = vmatprep.mubr.bf16.mxu0 %v973
  %3120 = vmatmul.mubr.bf16.gmra.mrb[0].mxu0 %v972
  %v3121 = vpop.f32.mrb[0].mxu0
  %v3122 = vadd.f32 %v3009, %v3121
  %v3123 = vpop.f32.mrb[0].mxu0
  %v3124 = vadd.f32 %v3011, %v3123
  %v3125 = vpop.f32.mrb[0].mxu0
  %v3126 = vadd.f32 %v3013, %v3125
  %v3127 = vpop.f32.mrb[0].mxu0
  %v3128 = vadd.f32 %v3015, %v3127
  %3129 = vmatprep.mubr.bf16.mxu0 %v987
  %3130 = vmatmul.mubr.bf16.gmra.mrb[0].mxu0 %v986
  %v3131 = vpop.f32.mrb[0].mxu0
  %v3132 = vadd.f32 %v3019, %v3131
  %v3133 = vpop.f32.mrb[0].mxu0
  %v3134 = vadd.f32 %v3021, %v3133
  %v3135 = vpop.f32.mrb[0].mxu0
  %v3136 = vadd.f32 %v3023, %v3135
  %v3137 = vpop.f32.mrb[0].mxu0
  %v3138 = vadd.f32 %v3025, %v3137
  %3139 = vmatprep.mubr.bf16.mxu0 %v1001
  %3140 = vmatmul.mubr.bf16.gmra.mrb[0].mxu0 %v1000
  %v3141 = vpop.f32.mrb[0].mxu0
  %v3142 = vadd.f32 %v3029, %v3141
  %v3143 = vpop.f32.mrb[0].mxu0
  %v3144 = vadd.f32 %v3031, %v3143
  %v3145 = vpop.f32.mrb[0].mxu0
  %v3146 = vadd.f32 %v3033, %v3145
  %v3147 = vpop.f32.mrb[0].mxu0
  %v3148 = vadd.f32 %v3035, %v3147
  %3149 = vmatprep.mubr.bf16.mxu0 %v1015
  %3150 = vmatmul.mubr.bf16.gmra.mrb[0].mxu0 %v1014
  %v3151 = vpop.f32.mrb[0].mxu0
  %v3152 = vadd.f32 %v3039, %v3151
  %v3153 = vpop.f32.mrb[0].mxu0
  %v3154 = vadd.f32 %v3041, %v3153
  %v3155 = vpop.f32.mrb[0].mxu0
  %v3156 = vadd.f32 %v3043, %v3155
  %v3157 = vpop.f32.mrb[0].mxu0
  %v3158 = vadd.f32 %v3045, %v3157
  %3159 = vmatprep.mubr.bf16.mxu0 %v1029
  %3160 = vmatmul.mubr.bf16.gmra.mrb[0].mxu0 %v1028
  %v3161 = vpop.f32.mrb[0].mxu0
  %v3162 = vadd.f32 %v3049, %v3161
  %v3163 = vpop.f32.mrb[0].mxu0
  %v3164 = vadd.f32 %v3051, %v3163
  %v3165 = vpop.f32.mrb[0].mxu0
  %v3166 = vadd.f32 %v3053, %v3165
  %v3167 = vpop.f32.mrb[0].mxu0
  %v3168 = vadd.f32 %v3055, %v3167
  %3169 = vdwg.mxu0
  %3170 = vmatprep.subr.bf16.mxu0 %v2369
  %3171 = vmatpush1.bf16.msra.mxu0 %v2368
  %3172 = vmatprep.subr.bf16.mxu0 %v2372
  %3173 = vmatpush1.bf16.msra.mxu0 %v2371
  %3174 = vmatprep.subr.bf16.mxu0 %v2375
  %3175 = vmatpush1.bf16.msra.mxu0 %v2374
  %3176 = vmatprep.subr.bf16.mxu0 %v2378
  %3177 = vmatpush1.bf16.msra.mxu0 %v2377
  %3178 = vmatprep.subr.bf16.mxu0 %v2381
  %3179 = vmatpush1.bf16.msra.mxu0 %v2380
  %3180 = vmatprep.subr.bf16.mxu0 %v2384
  %3181 = vmatpush1.bf16.msra.mxu0 %v2383
  %3182 = vmatprep.subr.bf16.mxu0 %v2387
  %3183 = vmatpush1.bf16.msra.mxu0 %v2386
  %3184 = vmatprep.subr.bf16.mxu0 %v2390
  %3185 = vmatpush1.bf16.msra.mxu0 %v2389
  %3186 = vmatprep.subr.bf16.mxu0 %v2393
  %3187 = vmatpush1.bf16.msra.mxu0 %v2392
  %3188 = vmatprep.subr.bf16.mxu0 %v2396
  %3189 = vmatpush1.bf16.msra.mxu0 %v2395
  %3190 = vmatprep.subr.bf16.mxu0 %v2399
  %3191 = vmatpush1.bf16.msra.mxu0 %v2398
  %3192 = vmatprep.subr.bf16.mxu0 %v2402
  %3193 = vmatpush1.bf16.msra.mxu0 %v2401
  %3194 = vmatprep.subr.bf16.mxu0 %v2405
  %3195 = vmatpush1.bf16.msra.mxu0 %v2404
  %3196 = vmatprep.subr.bf16.mxu0 %v2408
  %3197 = vmatpush1.bf16.msra.mxu0 %v2407
  %3198 = vmatprep.subr.bf16.mxu0 %v2411
  %3199 = vmatpush1.bf16.msra.mxu0 %v2410
  %3200 = vmatprep.subr.bf16.mxu0 %v2414
  %3201 = vmatpush1.bf16.msra.mxu0 %v2413
  %3202 = vmatprep.mubr.bf16.mxu0 %v933
  %3203 = vmatmul.mubr.bf16.gmra.mrb[0].mxu0 %v932
  %v3204 = vpop.f32.mrb[0].mxu0
  %v3205 = vadd.f32 %v3092, %v3204
  %v3206 = vpop.f32.mrb[0].mxu0
  %v3207 = vadd.f32 %v3094, %v3206
  %v3208 = vpop.f32.mrb[0].mxu0
  %v3209 = vadd.f32 %v3096, %v3208
  %v3210 = vpop.f32.mrb[0].mxu0
  %v3211 = vadd.f32 %v3098, %v3210
  %3212 = vmatprep.mubr.bf16.mxu0 %v947
  %3213 = vmatmul.mubr.bf16.gmra.mrb[0].mxu0 %v946
  %v3214 = vpop.f32.mrb[0].mxu0
  %v3215 = vadd.f32 %v3102, %v3214
  %v3216 = vpop.f32.mrb[0].mxu0
  %v3217 = vadd.f32 %v3104, %v3216
  %v3218 = vpop.f32.mrb[0].mxu0
  %v3219 = vadd.f32 %v3106, %v3218
  %v3220 = vpop.f32.mrb[0].mxu0
  %v3221 = vadd.f32 %v3108, %v3220
  %3222 = vmatprep.mubr.bf16.mxu0 %v961
  %3223 = vmatmul.mubr.bf16.gmra.mrb[0].mxu0 %v960
  %v3224 = vpop.f32.mrb[0].mxu0
  %v3225 = vadd.f32 %v3112, %v3224
  %v3226 = vpop.f32.mrb[0].mxu0
  %v3227 = vadd.f32 %v3114, %v3226
  %v3228 = vpop.f32.mrb[0].mxu0
  %v3229 = vadd.f32 %v3116, %v3228
  %v3230 = vpop.f32.mrb[0].mxu0
  %v3231 = vadd.f32 %v3118, %v3230
  %3232 = vmatprep.mubr.bf16.mxu0 %v975
  %3233 = vmatmul.mubr.bf16.gmra.mrb[0].mxu0 %v974
  %v3234 = vpop.f32.mrb[0].mxu0
  %v3235 = vadd.f32 %v3122, %v3234
  %v3236 = vpop.f32.mrb[0].mxu0
  %v3237 = vadd.f32 %v3124, %v3236
  %v3238 = vpop.f32.mrb[0].mxu0
  %v3239 = vadd.f32 %v3126, %v3238
  %v3240 = vpop.f32.mrb[0].mxu0
  %v3241 = vadd.f32 %v3128, %v3240
  %3242 = vmatprep.mubr.bf16.mxu0 %v989
  %3243 = vmatmul.mubr.bf16.gmra.mrb[0].mxu0 %v988
  %v3244 = vpop.f32.mrb[0].mxu0
  %v3245 = vadd.f32 %v3132, %v3244
  %v3246 = vpop.f32.mrb[0].mxu0
  %v3247 = vadd.f32 %v3134, %v3246
  %v3248 = vpop.f32.mrb[0].mxu0
  %v3249 = vadd.f32 %v3136, %v3248
  %v3250 = vpop.f32.mrb[0].mxu0
  %v3251 = vadd.f32 %v3138, %v3250
  %3252 = vmatprep.mubr.bf16.mxu0 %v1003
  %3253 = vmatmul.mubr.bf16.gmra.mrb[0].mxu0 %v1002
  %v3254 = vpop.f32.mrb[0].mxu0
  %v3255 = vadd.f32 %v3142, %v3254
  %v3256 = vpop.f32.mrb[0].mxu0
  %v3257 = vadd.f32 %v3144, %v3256
  %v3258 = vpop.f32.mrb[0].mxu0
  %v3259 = vadd.f32 %v3146, %v3258
  %v3260 = vpop.f32.mrb[0].mxu0
  %v3261 = vadd.f32 %v3148, %v3260
  %3262 = vmatprep.mubr.bf16.mxu0 %v1017
  %3263 = vmatmul.mubr.bf16.gmra.mrb[0].mxu0 %v1016
  %v3264 = vpop.f32.mrb[0].mxu0
  %v3265 = vadd.f32 %v3152, %v3264
  %v3266 = vpop.f32.mrb[0].mxu0
  %v3267 = vadd.f32 %v3154, %v3266
  %v3268 = vpop.f32.mrb[0].mxu0
  %v3269 = vadd.f32 %v3156, %v3268
  %v3270 = vpop.f32.mrb[0].mxu0
  %v3271 = vadd.f32 %v3158, %v3270
  %3272 = vmatprep.mubr.bf16.mxu0 %v1031
  %3273 = vmatmul.mubr.bf16.gmra.mrb[0].mxu0 %v1030
  %v3274 = vpop.f32.mrb[0].mxu0
  %v3275 = vadd.f32 %v3162, %v3274
  %v3276 = vpop.f32.mrb[0].mxu0
  %v3277 = vadd.f32 %v3164, %v3276
  %v3278 = vpop.f32.mrb[0].mxu0
  %v3279 = vadd.f32 %v3166, %v3278
  %v3280 = vpop.f32.mrb[0].mxu0
  %v3281 = vadd.f32 %v3168, %v3280
  %3282 = vdwg.mxu0
  %3283 = vmatprep.subr.bf16.mxu0 %v2417
  %3284 = vmatpush1.bf16.msra.mxu0 %v2416
  %3285 = vmatprep.subr.bf16.mxu0 %v2420
  %3286 = vmatpush1.bf16.msra.mxu0 %v2419
  %3287 = vmatprep.subr.bf16.mxu0 %v2423
  %3288 = vmatpush1.bf16.msra.mxu0 %v2422
  %3289 = vmatprep.subr.bf16.mxu0 %v2426
  %3290 = vmatpush1.bf16.msra.mxu0 %v2425
  %3291 = vmatprep.subr.bf16.mxu0 %v2429
  %3292 = vmatpush1.bf16.msra.mxu0 %v2428
  %3293 = vmatprep.subr.bf16.mxu0 %v2432
  %3294 = vmatpush1.bf16.msra.mxu0 %v2431
  %3295 = vmatprep.subr.bf16.mxu0 %v2435
  %3296 = vmatpush1.bf16.msra.mxu0 %v2434
  %3297 = vmatprep.subr.bf16.mxu0 %v2438
  %3298 = vmatpush1.bf16.msra.mxu0 %v2437
  %3299 = vmatprep.subr.bf16.mxu0 %v2441
  %3300 = vmatpush1.bf16.msra.mxu0 %v2440
  %3301 = vmatprep.subr.bf16.mxu0 %v2444
  %3302 = vmatpush1.bf16.msra.mxu0 %v2443
  %3303 = vmatprep.subr.bf16.mxu0 %v2447
  %3304 = vmatpush1.bf16.msra.mxu0 %v2446
  %3305 = vmatprep.subr.bf16.mxu0 %v2450
  %3306 = vmatpush1.bf16.msra.mxu0 %v2449
  %3307 = vmatprep.subr.bf16.mxu0 %v2453
  %3308 = vmatpush1.bf16.msra.mxu0 %v2452
  %3309 = vmatprep.subr.bf16.mxu0 %v2456
  %3310 = vmatpush1.bf16.msra.mxu0 %v2455
  %3311 = vmatprep.subr.bf16.mxu0 %v2459
  %3312 = vmatpush1.bf16.msra.mxu0 %v2458
  %3313 = vmatprep.subr.bf16.mxu0 %v2462
  %3314 = vmatpush1.bf16.msra.mxu0 %v2461
  %3315 = vmatprep.mubr.bf16.mxu0 %v935
  %3316 = vmatmul.mubr.bf16.gmra.mrb[0].mxu0 %v934
  %v3317 = vpop.f32.mrb[0].mxu0
  %v3318 = vadd.f32 %v3205, %v3317
  %v3319 = vpop.f32.mrb[0].mxu0
  %v3320 = vadd.f32 %v3207, %v3319
  %v3321 = vpop.f32.mrb[0].mxu0
  %v3322 = vadd.f32 %v3209, %v3321
  %v3323 = vpop.f32.mrb[0].mxu0
  %v3324 = vadd.f32 %v3211, %v3323
  %3325 = vmatprep.mubr.bf16.mxu0 %v949
  %3326 = vmatmul.mubr.bf16.gmra.mrb[0].mxu0 %v948
  %v3327 = vpop.f32.mrb[0].mxu0
  %v3328 = vadd.f32 %v3215, %v3327
  %v3329 = vpop.f32.mrb[0].mxu0
  %v3330 = vadd.f32 %v3217, %v3329
  %v3331 = vpop.f32.mrb[0].mxu0
  %v3332 = vadd.f32 %v3219, %v3331
  %v3333 = vpop.f32.mrb[0].mxu0
  %v3334 = vadd.f32 %v3221, %v3333
  %3335 = vmatprep.mubr.bf16.mxu0 %v963
  %3336 = vmatmul.mubr.bf16.gmra.mrb[0].mxu0 %v962
  %v3337 = vpop.f32.mrb[0].mxu0
  %v3338 = vadd.f32 %v3225, %v3337
  %v3339 = vpop.f32.mrb[0].mxu0
  %v3340 = vadd.f32 %v3227, %v3339
  %v3341 = vpop.f32.mrb[0].mxu0
  %v3342 = vadd.f32 %v3229, %v3341
  %v3343 = vpop.f32.mrb[0].mxu0
  %v3344 = vadd.f32 %v3231, %v3343
  %3345 = vmatprep.mubr.bf16.mxu0 %v977
  %3346 = vmatmul.mubr.bf16.gmra.mrb[0].mxu0 %v976
  %v3347 = vpop.f32.mrb[0].mxu0
  %v3348 = vadd.f32 %v3235, %v3347
  %v3349 = vpop.f32.mrb[0].mxu0
  %v3350 = vadd.f32 %v3237, %v3349
  %v3351 = vpop.f32.mrb[0].mxu0
  %v3352 = vadd.f32 %v3239, %v3351
  %v3353 = vpop.f32.mrb[0].mxu0
  %v3354 = vadd.f32 %v3241, %v3353
  %3355 = vmatprep.mubr.bf16.mxu0 %v991
  %3356 = vmatmul.mubr.bf16.gmra.mrb[0].mxu0 %v990
  %v3357 = vpop.f32.mrb[0].mxu0
  %v3358 = vadd.f32 %v3245, %v3357
  %v3359 = vpop.f32.mrb[0].mxu0
  %v3360 = vadd.f32 %v3247, %v3359
  %v3361 = vpop.f32.mrb[0].mxu0
  %v3362 = vadd.f32 %v3249, %v3361
  %v3363 = vpop.f32.mrb[0].mxu0
  %v3364 = vadd.f32 %v3251, %v3363
  %3365 = vmatprep.mubr.bf16.mxu0 %v1005
  %3366 = vmatmul.mubr.bf16.gmra.mrb[0].mxu0 %v1004
  %v3367 = vpop.f32.mrb[0].mxu0
  %v3368 = vadd.f32 %v3255, %v3367
  %v3369 = vpop.f32.mrb[0].mxu0
  %v3370 = vadd.f32 %v3257, %v3369
  %v3371 = vpop.f32.mrb[0].mxu0
  %v3372 = vadd.f32 %v3259, %v3371
  %v3373 = vpop.f32.mrb[0].mxu0
  %v3374 = vadd.f32 %v3261, %v3373
  %3375 = vmatprep.mubr.bf16.mxu0 %v1019
  %3376 = vmatmul.mubr.bf16.gmra.mrb[0].mxu0 %v1018
  %v3377 = vpop.f32.mrb[0].mxu0
  %v3378 = vadd.f32 %v3265, %v3377
  %v3379 = vpop.f32.mrb[0].mxu0
  %v3380 = vadd.f32 %v3267, %v3379
  %v3381 = vpop.f32.mrb[0].mxu0
  %v3382 = vadd.f32 %v3269, %v3381
  %v3383 = vpop.f32.mrb[0].mxu0
  %v3384 = vadd.f32 %v3271, %v3383
  %3385 = vmatprep.mubr.bf16.mxu0 %v1033
  %3386 = vmatmul.mubr.bf16.gmra.mrb[0].mxu0 %v1032
  %v3387 = vpop.f32.mrb[0].mxu0
  %v3388 = vadd.f32 %v3275, %v3387
  %v3389 = vpop.f32.mrb[0].mxu0
  %v3390 = vadd.f32 %v3277, %v3389
  %v3391 = vpop.f32.mrb[0].mxu0
  %v3392 = vadd.f32 %v3279, %v3391
  %v3393 = vpop.f32.mrb[0].mxu0
  %v3394 = vadd.f32 %v3281, %v3393
  %3395 = vdwg.mxu0
  %3396 = vmatprep.subr.bf16.mxu0 %v2465
  %3397 = vmatpush1.bf16.msra.mxu0 %v2464
  %3398 = vmatprep.subr.bf16.mxu0 %v2468
  %3399 = vmatpush1.bf16.msra.mxu0 %v2467
  %3400 = vmatprep.subr.bf16.mxu0 %v2471
  %3401 = vmatpush1.bf16.msra.mxu0 %v2470
  %3402 = vmatprep.subr.bf16.mxu0 %v2474
  %3403 = vmatpush1.bf16.msra.mxu0 %v2473
  %3404 = vmatprep.subr.bf16.mxu0 %v2477
  %3405 = vmatpush1.bf16.msra.mxu0 %v2476
  %3406 = vmatprep.subr.bf16.mxu0 %v2480
  %3407 = vmatpush1.bf16.msra.mxu0 %v2479
  %3408 = vmatprep.subr.bf16.mxu0 %v2483
  %3409 = vmatpush1.bf16.msra.mxu0 %v2482
  %3410 = vmatprep.subr.bf16.mxu0 %v2486
  %3411 = vmatpush1.bf16.msra.mxu0 %v2485
  %3412 = vmatprep.subr.bf16.mxu0 %v2489
  %3413 = vmatpush1.bf16.msra.mxu0 %v2488
  %3414 = vmatprep.subr.bf16.mxu0 %v2492
  %3415 = vmatpush1.bf16.msra.mxu0 %v2491
  %3416 = vmatprep.subr.bf16.mxu0 %v2495
  %3417 = vmatpush1.bf16.msra.mxu0 %v2494
  %3418 = vmatprep.subr.bf16.mxu0 %v2498
  %3419 = vmatpush1.bf16.msra.mxu0 %v2497
  %3420 = vmatprep.subr.bf16.mxu0 %v2501
  %3421 = vmatpush1.bf16.msra.mxu0 %v2500
  %3422 = vmatprep.subr.bf16.mxu0 %v2504
  %3423 = vmatpush1.bf16.msra.mxu0 %v2503
  %3424 = vmatprep.subr.bf16.mxu0 %v2507
  %3425 = vmatpush1.bf16.msra.mxu0 %v2506
  %3426 = vmatprep.subr.bf16.mxu0 %v2510
  %3427 = vmatpush1.bf16.msra.mxu0 %v2509
  %3428 = vmatprep.mubr.bf16.mxu0 %v937
  %3429 = vmatmul.mubr.bf16.gmra.mrb[0].mxu0 %v936
  %v3430 = vpop.f32.mrb[0].mxu0
  %v3431 = vadd.f32 %v3318, %v3430
  %v3432 = vpop.f32.mrb[0].mxu0
  %v3433 = vadd.f32 %v3320, %v3432
  %v3434 = vpop.f32.mrb[0].mxu0
  %v3435 = vadd.f32 %v3322, %v3434
  %v3436 = vpop.f32.mrb[0].mxu0
  %v3437 = vadd.f32 %v3324, %v3436
  %3438 = vmatprep.mubr.bf16.mxu0 %v951
  %3439 = vmatmul.mubr.bf16.gmra.mrb[0].mxu0 %v950
  %v3440 = vpop.f32.mrb[0].mxu0
  %v3441 = vadd.f32 %v3328, %v3440
  %v3442 = vpop.f32.mrb[0].mxu0
  %v3443 = vadd.f32 %v3330, %v3442
  %v3444 = vpop.f32.mrb[0].mxu0
  %v3445 = vadd.f32 %v3332, %v3444
  %v3446 = vpop.f32.mrb[0].mxu0
  %v3447 = vadd.f32 %v3334, %v3446
  %3448 = vmatprep.mubr.bf16.mxu0 %v965
  %3449 = vmatmul.mubr.bf16.gmra.mrb[0].mxu0 %v964
  %v3450 = vpop.f32.mrb[0].mxu0
  %v3451 = vadd.f32 %v3338, %v3450
  %v3452 = vpop.f32.mrb[0].mxu0
  %v3453 = vadd.f32 %v3340, %v3452
  %v3454 = vpop.f32.mrb[0].mxu0
  %v3455 = vadd.f32 %v3342, %v3454
  %v3456 = vpop.f32.mrb[0].mxu0
  %v3457 = vadd.f32 %v3344, %v3456
  %3458 = vmatprep.mubr.bf16.mxu0 %v979
  %3459 = vmatmul.mubr.bf16.gmra.mrb[0].mxu0 %v978
  %v3460 = vpop.f32.mrb[0].mxu0
  %v3461 = vadd.f32 %v3348, %v3460
  %v3462 = vpop.f32.mrb[0].mxu0
  %v3463 = vadd.f32 %v3350, %v3462
  %v3464 = vpop.f32.mrb[0].mxu0
  %v3465 = vadd.f32 %v3352, %v3464
  %v3466 = vpop.f32.mrb[0].mxu0
  %v3467 = vadd.f32 %v3354, %v3466
  %3468 = vmatprep.mubr.bf16.mxu0 %v993
  %3469 = vmatmul.mubr.bf16.gmra.mrb[0].mxu0 %v992
  %v3470 = vpop.f32.mrb[0].mxu0
  %v3471 = vadd.f32 %v3358, %v3470
  %v3472 = vpop.f32.mrb[0].mxu0
  %v3473 = vadd.f32 %v3360, %v3472
  %v3474 = vpop.f32.mrb[0].mxu0
  %v3475 = vadd.f32 %v3362, %v3474
  %v3476 = vpop.f32.mrb[0].mxu0
  %v3477 = vadd.f32 %v3364, %v3476
  %3478 = vmatprep.mubr.bf16.mxu0 %v1007
  %3479 = vmatmul.mubr.bf16.gmra.mrb[0].mxu0 %v1006
  %v3480 = vpop.f32.mrb[0].mxu0
  %v3481 = vadd.f32 %v3368, %v3480
  %v3482 = vpop.f32.mrb[0].mxu0
  %v3483 = vadd.f32 %v3370, %v3482
  %v3484 = vpop.f32.mrb[0].mxu0
  %v3485 = vadd.f32 %v3372, %v3484
  %v3486 = vpop.f32.mrb[0].mxu0
  %v3487 = vadd.f32 %v3374, %v3486
  %3488 = vmatprep.mubr.bf16.mxu0 %v1021
  %3489 = vmatmul.mubr.bf16.gmra.mrb[0].mxu0 %v1020
  %v3490 = vpop.f32.mrb[0].mxu0
  %v3491 = vadd.f32 %v3378, %v3490
  %v3492 = vpop.f32.mrb[0].mxu0
  %v3493 = vadd.f32 %v3380, %v3492
  %v3494 = vpop.f32.mrb[0].mxu0
  %v3495 = vadd.f32 %v3382, %v3494
  %v3496 = vpop.f32.mrb[0].mxu0
  %v3497 = vadd.f32 %v3384, %v3496
  %3498 = vmatprep.mubr.bf16.mxu0 %v1035
  %3499 = vmatmul.mubr.bf16.gmra.mrb[0].mxu0 %v1034
  %v3500 = vpop.f32.mrb[0].mxu0
  %v3501 = vadd.f32 %v3388, %v3500
  %v3502 = vpop.f32.mrb[0].mxu0
  %v3503 = vadd.f32 %v3390, %v3502
  %v3504 = vpop.f32.mrb[0].mxu0
  %v3505 = vadd.f32 %v3392, %v3504
  %v3506 = vpop.f32.mrb[0].mxu0
  %v3507 = vadd.f32 %v3394, %v3506
  %3508 = vdwg.mxu0
  %3509 = vmatprep.subr.bf16.mxu0 %v2513
  %3510 = vmatpush1.bf16.msra.mxu0 %v2512
  %3511 = vmatprep.subr.bf16.mxu0 %v2516
  %3512 = vmatpush1.bf16.msra.mxu0 %v2515
  %3513 = vmatprep.subr.bf16.mxu0 %v2519
  %3514 = vmatpush1.bf16.msra.mxu0 %v2518
  %3515 = vmatprep.subr.bf16.mxu0 %v2522
  %3516 = vmatpush1.bf16.msra.mxu0 %v2521
  %3517 = vmatprep.subr.bf16.mxu0 %v2525
  %3518 = vmatpush1.bf16.msra.mxu0 %v2524
  %3519 = vmatprep.subr.bf16.mxu0 %v2528
  %3520 = vmatpush1.bf16.msra.mxu0 %v2527
  %3521 = vmatprep.subr.bf16.mxu0 %v2531
  %3522 = vmatpush1.bf16.msra.mxu0 %v2530
  %3523 = vmatprep.subr.bf16.mxu0 %v2534
  %3524 = vmatpush1.bf16.msra.mxu0 %v2533
  %3525 = vmatprep.subr.bf16.mxu0 %v2537
  %3526 = vmatpush1.bf16.msra.mxu0 %v2536
  %3527 = vmatprep.subr.bf16.mxu0 %v2540
  %3528 = vmatpush1.bf16.msra.mxu0 %v2539
  %3529 = vmatprep.subr.bf16.mxu0 %v2543
  %3530 = vmatpush1.bf16.msra.mxu0 %v2542
  %3531 = vmatprep.subr.bf16.mxu0 %v2546
  %3532 = vmatpush1.bf16.msra.mxu0 %v2545
  %3533 = vmatprep.subr.bf16.mxu0 %v2549
  %3534 = vmatpush1.bf16.msra.mxu0 %v2548
  %3535 = vmatprep.subr.bf16.mxu0 %v2552
  %3536 = vmatpush1.bf16.msra.mxu0 %v2551
  %3537 = vmatprep.subr.bf16.mxu0 %v2555
  %3538 = vmatpush1.bf16.msra.mxu0 %v2554
  %3539 = vmatprep.subr.bf16.mxu0 %v2558
  %3540 = vmatpush1.bf16.msra.mxu0 %v2557
  %3541 = vmatprep.mubr.bf16.mxu0 %v939
  %3542 = vmatmul.mubr.bf16.gmra.mrb[0].mxu0 %v938
  %v3543 = vpop.f32.mrb[0].mxu0
  %v3544 = vadd.f32 %v3431, %v3543
  %v3545 = vpop.f32.mrb[0].mxu0
  %v3546 = vadd.f32 %v3433, %v3545
  %v3547 = vpop.f32.mrb[0].mxu0
  %v3548 = vadd.f32 %v3435, %v3547
  %v3549 = vpop.f32.mrb[0].mxu0
  %v3550 = vadd.f32 %v3437, %v3549
  %3551 = vmatprep.mubr.bf16.mxu0 %v953
  %3552 = vmatmul.mubr.bf16.gmra.mrb[0].mxu0 %v952
  %v3553 = vpop.f32.mrb[0].mxu0
  %v3554 = vadd.f32 %v3441, %v3553
  %v3555 = vpop.f32.mrb[0].mxu0
  %v3556 = vadd.f32 %v3443, %v3555
  %v3557 = vpop.f32.mrb[0].mxu0
  %v3558 = vadd.f32 %v3445, %v3557
  %v3559 = vpop.f32.mrb[0].mxu0
  %v3560 = vadd.f32 %v3447, %v3559
  %3561 = vmatprep.mubr.bf16.mxu0 %v967
  %3562 = vmatmul.mubr.bf16.gmra.mrb[0].mxu0 %v966
  %v3563 = vpop.f32.mrb[0].mxu0
  %v3564 = vadd.f32 %v3451, %v3563
  %v3565 = vpop.f32.mrb[0].mxu0
  %v3566 = vadd.f32 %v3453, %v3565
  %v3567 = vpop.f32.mrb[0].mxu0
  %v3568 = vadd.f32 %v3455, %v3567
  %v3569 = vpop.f32.mrb[0].mxu0
  %v3570 = vadd.f32 %v3457, %v3569
  %3571 = vmatprep.mubr.bf16.mxu0 %v981
  %3572 = vmatmul.mubr.bf16.gmra.mrb[0].mxu0 %v980
  %v3573 = vpop.f32.mrb[0].mxu0
  %v3574 = vadd.f32 %v3461, %v3573
  %v3575 = vpop.f32.mrb[0].mxu0
  %v3576 = vadd.f32 %v3463, %v3575
  %v3577 = vpop.f32.mrb[0].mxu0
  %v3578 = vadd.f32 %v3465, %v3577
  %v3579 = vpop.f32.mrb[0].mxu0
  %v3580 = vadd.f32 %v3467, %v3579
  %3581 = vmatprep.mubr.bf16.mxu0 %v995
  %3582 = vmatmul.mubr.bf16.gmra.mrb[0].mxu0 %v994
  %v3583 = vpop.f32.mrb[0].mxu0
  %v3584 = vadd.f32 %v3471, %v3583
  %v3585 = vpop.f32.mrb[0].mxu0
  %v3586 = vadd.f32 %v3473, %v3585
  %v3587 = vpop.f32.mrb[0].mxu0
  %v3588 = vadd.f32 %v3475, %v3587
  %v3589 = vpop.f32.mrb[0].mxu0
  %v3590 = vadd.f32 %v3477, %v3589
  %3591 = vmatprep.mubr.bf16.mxu0 %v1009
  %3592 = vmatmul.mubr.bf16.gmra.mrb[0].mxu0 %v1008
  %v3593 = vpop.f32.mrb[0].mxu0
  %v3594 = vadd.f32 %v3481, %v3593
  %v3595 = vpop.f32.mrb[0].mxu0
  %v3596 = vadd.f32 %v3483, %v3595
  %v3597 = vpop.f32.mrb[0].mxu0
  %v3598 = vadd.f32 %v3485, %v3597
  %v3599 = vpop.f32.mrb[0].mxu0
  %v3600 = vadd.f32 %v3487, %v3599
  %3601 = vmatprep.mubr.bf16.mxu0 %v1023
  %3602 = vmatmul.mubr.bf16.gmra.mrb[0].mxu0 %v1022
  %v3603 = vpop.f32.mrb[0].mxu0
  %v3604 = vadd.f32 %v3491, %v3603
  %v3605 = vpop.f32.mrb[0].mxu0
  %v3606 = vadd.f32 %v3493, %v3605
  %v3607 = vpop.f32.mrb[0].mxu0
  %v3608 = vadd.f32 %v3495, %v3607
  %v3609 = vpop.f32.mrb[0].mxu0
  %v3610 = vadd.f32 %v3497, %v3609
  %3611 = vmatprep.mubr.bf16.mxu0 %v1037
  %3612 = vmatmul.mubr.bf16.gmra.mrb[0].mxu0 %v1036
  %v3613 = vpop.f32.mrb[0].mxu0
  %v3614 = vadd.f32 %v3501, %v3613
  %v3615 = vpop.f32.mrb[0].mxu0
  %v3616 = vadd.f32 %v3503, %v3615
  %v3617 = vpop.f32.mrb[0].mxu0
  %v3618 = vadd.f32 %v3505, %v3617
  %v3619 = vpop.f32.mrb[0].mxu0
  %v3620 = vadd.f32 %v3507, %v3619
  %3621 = vdwg.mxu0
  %3622 = vmatprep.subr.bf16.mxu0 %v2561
  %3623 = vmatpush1.bf16.msra.mxu0 %v2560
  %3624 = vmatprep.subr.bf16.mxu0 %v2564
  %3625 = vmatpush1.bf16.msra.mxu0 %v2563
  %3626 = vmatprep.subr.bf16.mxu0 %v2567
  %3627 = vmatpush1.bf16.msra.mxu0 %v2566
  %3628 = vmatprep.subr.bf16.mxu0 %v2570
  %3629 = vmatpush1.bf16.msra.mxu0 %v2569
  %3630 = vmatprep.subr.bf16.mxu0 %v2573
  %3631 = vmatpush1.bf16.msra.mxu0 %v2572
  %3632 = vmatprep.subr.bf16.mxu0 %v2576
  %3633 = vmatpush1.bf16.msra.mxu0 %v2575
  %3634 = vmatprep.subr.bf16.mxu0 %v2579
  %3635 = vmatpush1.bf16.msra.mxu0 %v2578
  %3636 = vmatprep.subr.bf16.mxu0 %v2582
  %3637 = vmatpush1.bf16.msra.mxu0 %v2581
  %3638 = vmatprep.subr.bf16.mxu0 %v2585
  %3639 = vmatpush1.bf16.msra.mxu0 %v2584
  %3640 = vmatprep.subr.bf16.mxu0 %v2588
  %3641 = vmatpush1.bf16.msra.mxu0 %v2587
  %3642 = vmatprep.subr.bf16.mxu0 %v2591
  %3643 = vmatpush1.bf16.msra.mxu0 %v2590
  %3644 = vmatprep.subr.bf16.mxu0 %v2594
  %3645 = vmatpush1.bf16.msra.mxu0 %v2593
  %3646 = vmatprep.subr.bf16.mxu0 %v2597
  %3647 = vmatpush1.bf16.msra.mxu0 %v2596
  %3648 = vmatprep.subr.bf16.mxu0 %v2600
  %3649 = vmatpush1.bf16.msra.mxu0 %v2599
  %3650 = vmatprep.subr.bf16.mxu0 %v2603
  %3651 = vmatpush1.bf16.msra.mxu0 %v2602
  %3652 = vmatprep.subr.bf16.mxu0 %v2606
  %3653 = vmatpush1.bf16.msra.mxu0 %v2605
  %3654 = vmatprep.mubr.bf16.mxu0 %v941
  %3655 = vmatmul.mubr.bf16.gmra.mrb[0].mxu0 %v940
  %v3656 = vpop.f32.mrb[0].mxu0
  %v3657 = vadd.f32 %v3544, %v3656
  %v3658 = vpop.f32.mrb[0].mxu0
  %v3659 = vadd.f32 %v3546, %v3658
  %v3660 = vpop.f32.mrb[0].mxu0
  %v3661 = vadd.f32 %v3548, %v3660
  %v3662 = vpop.f32.mrb[0].mxu0
  %v3663 = vadd.f32 %v3550, %v3662
  %3664 = vmatprep.mubr.bf16.mxu0 %v955
  %3665 = vmatmul.mubr.bf16.gmra.mrb[0].mxu0 %v954
  %v3666 = vpop.f32.mrb[0].mxu0
  %v3667 = vadd.f32 %v3554, %v3666
  %v3668 = vpop.f32.mrb[0].mxu0
  %v3669 = vadd.f32 %v3556, %v3668
  %v3670 = vpop.f32.mrb[0].mxu0
  %v3671 = vadd.f32 %v3558, %v3670
  %v3672 = vpop.f32.mrb[0].mxu0
  %v3673 = vadd.f32 %v3560, %v3672
  %3674 = vmatprep.mubr.bf16.mxu0 %v969
  %3675 = vmatmul.mubr.bf16.gmra.mrb[0].mxu0 %v968
  %v3676 = vpop.f32.mrb[0].mxu0
  %v3677 = vadd.f32 %v3564, %v3676
  %v3678 = vpop.f32.mrb[0].mxu0
  %v3679 = vadd.f32 %v3566, %v3678
  %v3680 = vpop.f32.mrb[0].mxu0
  %v3681 = vadd.f32 %v3568, %v3680
  %v3682 = vpop.f32.mrb[0].mxu0
  %v3683 = vadd.f32 %v3570, %v3682
  %3684 = vmatprep.mubr.bf16.mxu0 %v983
  %3685 = vmatmul.mubr.bf16.gmra.mrb[0].mxu0 %v982
  %v3686 = vpop.f32.mrb[0].mxu0
  %v3687 = vadd.f32 %v3574, %v3686
  %v3688 = vpop.f32.mrb[0].mxu0
  %v3689 = vadd.f32 %v3576, %v3688
  %v3690 = vpop.f32.mrb[0].mxu0
  %v3691 = vadd.f32 %v3578, %v3690
  %v3692 = vpop.f32.mrb[0].mxu0
  %v3693 = vadd.f32 %v3580, %v3692
  %3694 = vmatprep.mubr.bf16.mxu0 %v997
  %3695 = vmatmul.mubr.bf16.gmra.mrb[0].mxu0 %v996
  %v3696 = vpop.f32.mrb[0].mxu0
  %v3697 = vadd.f32 %v3584, %v3696
  %v3698 = vpop.f32.mrb[0].mxu0
  %v3699 = vadd.f32 %v3586, %v3698
  %v3700 = vpop.f32.mrb[0].mxu0
  %v3701 = vadd.f32 %v3588, %v3700
  %v3702 = vpop.f32.mrb[0].mxu0
  %v3703 = vadd.f32 %v3590, %v3702
  %3704 = vmatprep.mubr.bf16.mxu0 %v1011
  %3705 = vmatmul.mubr.bf16.gmra.mrb[0].mxu0 %v1010
  %v3706 = vpop.f32.mrb[0].mxu0
  %v3707 = vadd.f32 %v3594, %v3706
  %v3708 = vpop.f32.mrb[0].mxu0
  %v3709 = vadd.f32 %v3596, %v3708
  %v3710 = vpop.f32.mrb[0].mxu0
  %v3711 = vadd.f32 %v3598, %v3710
  %v3712 = vpop.f32.mrb[0].mxu0
  %v3713 = vadd.f32 %v3600, %v3712
  %3714 = vmatprep.mubr.bf16.mxu0 %v1025
  %3715 = vmatmul.mubr.bf16.gmra.mrb[0].mxu0 %v1024
  %v3716 = vpop.f32.mrb[0].mxu0
  %v3717 = vadd.f32 %v3604, %v3716
  %v3718 = vpop.f32.mrb[0].mxu0
  %v3719 = vadd.f32 %v3606, %v3718
  %v3720 = vpop.f32.mrb[0].mxu0
  %v3721 = vadd.f32 %v3608, %v3720
  %v3722 = vpop.f32.mrb[0].mxu0
  %v3723 = vadd.f32 %v3610, %v3722
  %3724 = vmatprep.mubr.bf16.mxu0 %v1039
  %3725 = vmatmul.mubr.bf16.gmra.mrb[0].mxu0 %v1038
  %v3726 = vpop.f32.mrb[0].mxu0
  %v3727 = vadd.f32 %v3614, %v3726
  %v3728 = vpop.f32.mrb[0].mxu0
  %v3729 = vadd.f32 %v3616, %v3728
  %v3730 = vpop.f32.mrb[0].mxu0
  %v3731 = vadd.f32 %v3618, %v3730
  %v3732 = vpop.f32.mrb[0].mxu0
  %v3733 = vadd.f32 %v3620, %v3732
  %3734 = vdwg.mxu0
  %3735 = vmatprep.subr.bf16.mxu0 0
  %3736 = vmatpush1.bf16.msra.mxu0 %v2274
  %3737 = vmatprep.subr.bf16.mxu0 0
  %3738 = vmatpush1.bf16.msra.mxu0 %v2277
  %3739 = vmatprep.subr.bf16.mxu0 0
  %3740 = vmatpush1.bf16.msra.mxu0 %v2280
  %3741 = vmatprep.subr.bf16.mxu0 0
  %3742 = vmatpush1.bf16.msra.mxu0 %v2283
  %3743 = vmatprep.subr.bf16.mxu0 0
  %3744 = vmatpush1.bf16.msra.mxu0 %v2286
  %3745 = vmatprep.subr.bf16.mxu0 0
  %3746 = vmatpush1.bf16.msra.mxu0 %v2289
  %3747 = vmatprep.subr.bf16.mxu0 0
  %3748 = vmatpush1.bf16.msra.mxu0 %v2292
  %3749 = vmatprep.subr.bf16.mxu0 0
  %3750 = vmatpush1.bf16.msra.mxu0 %v2295
  %3751 = vmatprep.subr.bf16.mxu0 0
  %3752 = vmatpush1.bf16.msra.mxu0 %v2298
  %3753 = vmatprep.subr.bf16.mxu0 0
  %3754 = vmatpush1.bf16.msra.mxu0 %v2301
  %3755 = vmatprep.subr.bf16.mxu0 0
  %3756 = vmatpush1.bf16.msra.mxu0 %v2304
  %3757 = vmatprep.subr.bf16.mxu0 0
  %3758 = vmatpush1.bf16.msra.mxu0 %v2307
  %3759 = vmatprep.subr.bf16.mxu0 0
  %3760 = vmatpush1.bf16.msra.mxu0 %v2310
  %3761 = vmatprep.subr.bf16.mxu0 0
  %3762 = vmatpush1.bf16.msra.mxu0 %v2313
  %3763 = vmatprep.subr.bf16.mxu0 0
  %3764 = vmatpush1.bf16.msra.mxu0 %v2316
  %3765 = vmatprep.subr.bf16.mxu0 0
  %3766 = vmatpush1.bf16.msra.mxu0 %v2319
  %3767 = vmatprep.mubr.bf16.mxu0 %v929
  %3768 = vmatmul.mubr.bf16.gmra.mrb[0].mxu0 %v928
  %v3769 = vpop.f32.mrb[0].mxu0
  %v3770 = vadd.f32 %v588, %v3769
  %v3771 = vpop.f32.mrb[0].mxu0
  %v3772 = vpop.f32.mrb[0].mxu0
  %v3773 = vadd.f32 %v588, %v3772
  %v3774 = vpop.f32.mrb[0].mxu0
  %3775 = vmatprep.mubr.bf16.mxu0 %v943
  %3776 = vmatmul.mubr.bf16.gmra.mrb[0].mxu0 %v942
  %v3777 = vpop.f32.mrb[0].mxu0
  %v3778 = vadd.f32 %v588, %v3777
  %v3779 = vpop.f32.mrb[0].mxu0
  %v3780 = vpop.f32.mrb[0].mxu0
  %v3781 = vadd.f32 %v588, %v3780
  %v3782 = vpop.f32.mrb[0].mxu0
  %3783 = vmatprep.mubr.bf16.mxu0 %v957
  %3784 = vmatmul.mubr.bf16.gmra.mrb[0].mxu0 %v956
  %v3785 = vpop.f32.mrb[0].mxu0
  %v3786 = vadd.f32 %v588, %v3785
  %v3787 = vpop.f32.mrb[0].mxu0
  %v3788 = vpop.f32.mrb[0].mxu0
  %v3789 = vadd.f32 %v588, %v3788
  %v3790 = vpop.f32.mrb[0].mxu0
  %3791 = vmatprep.mubr.bf16.mxu0 %v971
  %3792 = vmatmul.mubr.bf16.gmra.mrb[0].mxu0 %v970
  %v3793 = vpop.f32.mrb[0].mxu0
  %v3794 = vadd.f32 %v588, %v3793
  %v3795 = vpop.f32.mrb[0].mxu0
  %v3796 = vpop.f32.mrb[0].mxu0
  %v3797 = vadd.f32 %v588, %v3796
  %v3798 = vpop.f32.mrb[0].mxu0
  %3799 = vmatprep.mubr.bf16.mxu0 %v985
  %3800 = vmatmul.mubr.bf16.gmra.mrb[0].mxu0 %v984
  %v3801 = vpop.f32.mrb[0].mxu0
  %v3802 = vadd.f32 %v588, %v3801
  %v3803 = vpop.f32.mrb[0].mxu0
  %v3804 = vpop.f32.mrb[0].mxu0
  %v3805 = vadd.f32 %v588, %v3804
  %v3806 = vpop.f32.mrb[0].mxu0
  %3807 = vmatprep.mubr.bf16.mxu0 %v999
  %3808 = vmatmul.mubr.bf16.gmra.mrb[0].mxu0 %v998
  %v3809 = vpop.f32.mrb[0].mxu0
  %v3810 = vadd.f32 %v588, %v3809
  %v3811 = vpop.f32.mrb[0].mxu0
  %v3812 = vpop.f32.mrb[0].mxu0
  %v3813 = vadd.f32 %v588, %v3812
  %v3814 = vpop.f32.mrb[0].mxu0
  %3815 = vmatprep.mubr.bf16.mxu0 %v1013
  %3816 = vmatmul.mubr.bf16.gmra.mrb[0].mxu0 %v1012
  %v3817 = vpop.f32.mrb[0].mxu0
  %v3818 = vadd.f32 %v588, %v3817
  %v3819 = vpop.f32.mrb[0].mxu0
  %v3820 = vpop.f32.mrb[0].mxu0
  %v3821 = vadd.f32 %v588, %v3820
  %v3822 = vpop.f32.mrb[0].mxu0
  %3823 = vmatprep.mubr.bf16.mxu0 %v1027
  %3824 = vmatmul.mubr.bf16.gmra.mrb[0].mxu0 %v1026
  %v3825 = vpop.f32.mrb[0].mxu0
  %v3826 = vadd.f32 %v588, %v3825
  %v3827 = vpop.f32.mrb[0].mxu0
  %v3828 = vpop.f32.mrb[0].mxu0
  %v3829 = vadd.f32 %v588, %v3828
  %v3830 = vpop.f32.mrb[0].mxu0
  %3831 = vdwg.mxu0
  %3832 = vmatprep.subr.bf16.mxu0 0
  %3833 = vmatpush1.bf16.msra.mxu0 %v2322
  %3834 = vmatprep.subr.bf16.mxu0 0
  %3835 = vmatpush1.bf16.msra.mxu0 %v2325
  %3836 = vmatprep.subr.bf16.mxu0 0
  %3837 = vmatpush1.bf16.msra.mxu0 %v2328
  %3838 = vmatprep.subr.bf16.mxu0 0
  %3839 = vmatpush1.bf16.msra.mxu0 %v2331
  %3840 = vmatprep.subr.bf16.mxu0 0
  %3841 = vmatpush1.bf16.msra.mxu0 %v2334
  %3842 = vmatprep.subr.bf16.mxu0 0
  %3843 = vmatpush1.bf16.msra.mxu0 %v2337
  %3844 = vmatprep.subr.bf16.mxu0 0
  %3845 = vmatpush1.bf16.msra.mxu0 %v2340
  %3846 = vmatprep.subr.bf16.mxu0 0
  %3847 = vmatpush1.bf16.msra.mxu0 %v2343
  %3848 = vmatprep.subr.bf16.mxu0 0
  %3849 = vmatpush1.bf16.msra.mxu0 %v2346
  %3850 = vmatprep.subr.bf16.mxu0 0
  %3851 = vmatpush1.bf16.msra.mxu0 %v2349
  %3852 = vmatprep.subr.bf16.mxu0 0
  %3853 = vmatpush1.bf16.msra.mxu0 %v2352
  %3854 = vmatprep.subr.bf16.mxu0 0
  %3855 = vmatpush1.bf16.msra.mxu0 %v2355
  %3856 = vmatprep.subr.bf16.mxu0 0
  %3857 = vmatpush1.bf16.msra.mxu0 %v2358
  %3858 = vmatprep.subr.bf16.mxu0 0
  %3859 = vmatpush1.bf16.msra.mxu0 %v2361
  %3860 = vmatprep.subr.bf16.mxu0 0
  %3861 = vmatpush1.bf16.msra.mxu0 %v2364
  %3862 = vmatprep.subr.bf16.mxu0 0
  %3863 = vmatpush1.bf16.msra.mxu0 %v2367
  %3864 = vmatprep.mubr.bf16.mxu0 %v931
  %3865 = vmatmul.mubr.bf16.gmra.mrb[0].mxu0 %v930
  %v3866 = vpop.f32.mrb[0].mxu0
  %v3867 = vadd.f32 %v3770, %v3866
  %v3868 = vpop.f32.mrb[0].mxu0
  %v3869 = vpop.f32.mrb[0].mxu0
  %v3870 = vadd.f32 %v3773, %v3869
  %v3871 = vpop.f32.mrb[0].mxu0
  %3872 = vmatprep.mubr.bf16.mxu0 %v945
  %3873 = vmatmul.mubr.bf16.gmra.mrb[0].mxu0 %v944
  %v3874 = vpop.f32.mrb[0].mxu0
  %v3875 = vadd.f32 %v3778, %v3874
  %v3876 = vpop.f32.mrb[0].mxu0
  %v3877 = vpop.f32.mrb[0].mxu0
  %v3878 = vadd.f32 %v3781, %v3877
  %v3879 = vpop.f32.mrb[0].mxu0
  %3880 = vmatprep.mubr.bf16.mxu0 %v959
  %3881 = vmatmul.mubr.bf16.gmra.mrb[0].mxu0 %v958
  %v3882 = vpop.f32.mrb[0].mxu0
  %v3883 = vadd.f32 %v3786, %v3882
  %v3884 = vpop.f32.mrb[0].mxu0
  %v3885 = vpop.f32.mrb[0].mxu0
  %v3886 = vadd.f32 %v3789, %v3885
  %v3887 = vpop.f32.mrb[0].mxu0
  %3888 = vmatprep.mubr.bf16.mxu0 %v973
  %3889 = vmatmul.mubr.bf16.gmra.mrb[0].mxu0 %v972
  %v3890 = vpop.f32.mrb[0].mxu0
  %v3891 = vadd.f32 %v3794, %v3890
  %v3892 = vpop.f32.mrb[0].mxu0
  %v3893 = vpop.f32.mrb[0].mxu0
  %v3894 = vadd.f32 %v3797, %v3893
  %v3895 = vpop.f32.mrb[0].mxu0
  %3896 = vmatprep.mubr.bf16.mxu0 %v987
  %3897 = vmatmul.mubr.bf16.gmra.mrb[0].mxu0 %v986
  %v3898 = vpop.f32.mrb[0].mxu0
  %v3899 = vadd.f32 %v3802, %v3898
  %v3900 = vpop.f32.mrb[0].mxu0
  %v3901 = vpop.f32.mrb[0].mxu0
  %v3902 = vadd.f32 %v3805, %v3901
  %v3903 = vpop.f32.mrb[0].mxu0
  %3904 = vmatprep.mubr.bf16.mxu0 %v1001
  %3905 = vmatmul.mubr.bf16.gmra.mrb[0].mxu0 %v1000
  %v3906 = vpop.f32.mrb[0].mxu0
  %v3907 = vadd.f32 %v3810, %v3906
  %v3908 = vpop.f32.mrb[0].mxu0
  %v3909 = vpop.f32.mrb[0].mxu0
  %v3910 = vadd.f32 %v3813, %v3909
  %v3911 = vpop.f32.mrb[0].mxu0
  %3912 = vmatprep.mubr.bf16.mxu0 %v1015
  %3913 = vmatmul.mubr.bf16.gmra.mrb[0].mxu0 %v1014
  %v3914 = vpop.f32.mrb[0].mxu0
  %v3915 = vadd.f32 %v3818, %v3914
  %v3916 = vpop.f32.mrb[0].mxu0
  %v3917 = vpop.f32.mrb[0].mxu0
  %v3918 = vadd.f32 %v3821, %v3917
  %v3919 = vpop.f32.mrb[0].mxu0
  %3920 = vmatprep.mubr.bf16.mxu0 %v1029
  %3921 = vmatmul.mubr.bf16.gmra.mrb[0].mxu0 %v1028
  %v3922 = vpop.f32.mrb[0].mxu0
  %v3923 = vadd.f32 %v3826, %v3922
  %v3924 = vpop.f32.mrb[0].mxu0
  %v3925 = vpop.f32.mrb[0].mxu0
  %v3926 = vadd.f32 %v3829, %v3925
  %v3927 = vpop.f32.mrb[0].mxu0
  %3928 = vdwg.mxu0
  %3929 = vmatprep.subr.bf16.mxu0 0
  %3930 = vmatpush1.bf16.msra.mxu0 %v2370
  %3931 = vmatprep.subr.bf16.mxu0 0
  %3932 = vmatpush1.bf16.msra.mxu0 %v2373
  %3933 = vmatprep.subr.bf16.mxu0 0
  %3934 = vmatpush1.bf16.msra.mxu0 %v2376
  %3935 = vmatprep.subr.bf16.mxu0 0
  %3936 = vmatpush1.bf16.msra.mxu0 %v2379
  %3937 = vmatprep.subr.bf16.mxu0 0
  %3938 = vmatpush1.bf16.msra.mxu0 %v2382
  %3939 = vmatprep.subr.bf16.mxu0 0
  %3940 = vmatpush1.bf16.msra.mxu0 %v2385
  %3941 = vmatprep.subr.bf16.mxu0 0
  %3942 = vmatpush1.bf16.msra.mxu0 %v2388
  %3943 = vmatprep.subr.bf16.mxu0 0
  %3944 = vmatpush1.bf16.msra.mxu0 %v2391
  %3945 = vmatprep.subr.bf16.mxu0 0
  %3946 = vmatpush1.bf16.msra.mxu0 %v2394
  %3947 = vmatprep.subr.bf16.mxu0 0
  %3948 = vmatpush1.bf16.msra.mxu0 %v2397
  %3949 = vmatprep.subr.bf16.mxu0 0
  %3950 = vmatpush1.bf16.msra.mxu0 %v2400
  %3951 = vmatprep.subr.bf16.mxu0 0
  %3952 = vmatpush1.bf16.msra.mxu0 %v2403
  %3953 = vmatprep.subr.bf16.mxu0 0
  %3954 = vmatpush1.bf16.msra.mxu0 %v2406
  %3955 = vmatprep.subr.bf16.mxu0 0
  %3956 = vmatpush1.bf16.msra.mxu0 %v2409
  %3957 = vmatprep.subr.bf16.mxu0 0
  %3958 = vmatpush1.bf16.msra.mxu0 %v2412
  %3959 = vmatprep.subr.bf16.mxu0 0
  %3960 = vmatpush1.bf16.msra.mxu0 %v2415
  %3961 = vmatprep.mubr.bf16.mxu0 %v933
  %3962 = vmatmul.mubr.bf16.gmra.mrb[0].mxu0 %v932
  %v3963 = vpop.f32.mrb[0].mxu0
  %v3964 = vadd.f32 %v3867, %v3963
  %v3965 = vpop.f32.mrb[0].mxu0
  %v3966 = vpop.f32.mrb[0].mxu0
  %v3967 = vadd.f32 %v3870, %v3966
  %v3968 = vpop.f32.mrb[0].mxu0
  %3969 = vmatprep.mubr.bf16.mxu0 %v947
  %3970 = vmatmul.mubr.bf16.gmra.mrb[0].mxu0 %v946
  %v3971 = vpop.f32.mrb[0].mxu0
  %v3972 = vadd.f32 %v3875, %v3971
  %v3973 = vpop.f32.mrb[0].mxu0
  %v3974 = vpop.f32.mrb[0].mxu0
  %v3975 = vadd.f32 %v3878, %v3974
  %v3976 = vpop.f32.mrb[0].mxu0
  %3977 = vmatprep.mubr.bf16.mxu0 %v961
  %3978 = vmatmul.mubr.bf16.gmra.mrb[0].mxu0 %v960
  %v3979 = vpop.f32.mrb[0].mxu0
  %v3980 = vadd.f32 %v3883, %v3979
  %v3981 = vpop.f32.mrb[0].mxu0
  %v3982 = vpop.f32.mrb[0].mxu0
  %v3983 = vadd.f32 %v3886, %v3982
  %v3984 = vpop.f32.mrb[0].mxu0
  %3985 = vmatprep.mubr.bf16.mxu0 %v975
  %3986 = vmatmul.mubr.bf16.gmra.mrb[0].mxu0 %v974
  %v3987 = vpop.f32.mrb[0].mxu0
  %v3988 = vadd.f32 %v3891, %v3987
  %v3989 = vpop.f32.mrb[0].mxu0
  %v3990 = vpop.f32.mrb[0].mxu0
  %v3991 = vadd.f32 %v3894, %v3990
  %v3992 = vpop.f32.mrb[0].mxu0
  %3993 = vmatprep.mubr.bf16.mxu0 %v989
  %3994 = vmatmul.mubr.bf16.gmra.mrb[0].mxu0 %v988
  %v3995 = vpop.f32.mrb[0].mxu0
  %v3996 = vadd.f32 %v3899, %v3995
  %v3997 = vpop.f32.mrb[0].mxu0
  %v3998 = vpop.f32.mrb[0].mxu0
  %v3999 = vadd.f32 %v3902, %v3998
  %v4000 = vpop.f32.mrb[0].mxu0
  %4001 = vmatprep.mubr.bf16.mxu0 %v1003
  %4002 = vmatmul.mubr.bf16.gmra.mrb[0].mxu0 %v1002
  %v4003 = vpop.f32.mrb[0].mxu0
  %v4004 = vadd.f32 %v3907, %v4003
  %v4005 = vpop.f32.mrb[0].mxu0
  %v4006 = vpop.f32.mrb[0].mxu0
  %v4007 = vadd.f32 %v3910, %v4006
  %v4008 = vpop.f32.mrb[0].mxu0
  %4009 = vmatprep.mubr.bf16.mxu0 %v1017
  %4010 = vmatmul.mubr.bf16.gmra.mrb[0].mxu0 %v1016
  %v4011 = vpop.f32.mrb[0].mxu0
  %v4012 = vadd.f32 %v3915, %v4011
  %v4013 = vpop.f32.mrb[0].mxu0
  %v4014 = vpop.f32.mrb[0].mxu0
  %v4015 = vadd.f32 %v3918, %v4014
  %v4016 = vpop.f32.mrb[0].mxu0
  %4017 = vmatprep.mubr.bf16.mxu0 %v1031
  %4018 = vmatmul.mubr.bf16.gmra.mrb[0].mxu0 %v1030
  %v4019 = vpop.f32.mrb[0].mxu0
  %v4020 = vadd.f32 %v3923, %v4019
  %v4021 = vpop.f32.mrb[0].mxu0
  %v4022 = vpop.f32.mrb[0].mxu0
  %v4023 = vadd.f32 %v3926, %v4022
  %v4024 = vpop.f32.mrb[0].mxu0
  %4025 = vdwg.mxu0
  %4026 = vmatprep.subr.bf16.mxu0 0
  %4027 = vmatpush1.bf16.msra.mxu0 %v2418
  %4028 = vmatprep.subr.bf16.mxu0 0
  %4029 = vmatpush1.bf16.msra.mxu0 %v2421
  %4030 = vmatprep.subr.bf16.mxu0 0
  %4031 = vmatpush1.bf16.msra.mxu0 %v2424
  %4032 = vmatprep.subr.bf16.mxu0 0
  %4033 = vmatpush1.bf16.msra.mxu0 %v2427
  %4034 = vmatprep.subr.bf16.mxu0 0
  %4035 = vmatpush1.bf16.msra.mxu0 %v2430
  %4036 = vmatprep.subr.bf16.mxu0 0
  %4037 = vmatpush1.bf16.msra.mxu0 %v2433
  %4038 = vmatprep.subr.bf16.mxu0 0
  %4039 = vmatpush1.bf16.msra.mxu0 %v2436
  %4040 = vmatprep.subr.bf16.mxu0 0
  %4041 = vmatpush1.bf16.msra.mxu0 %v2439
  %4042 = vmatprep.subr.bf16.mxu0 0
  %4043 = vmatpush1.bf16.msra.mxu0 %v2442
  %4044 = vmatprep.subr.bf16.mxu0 0
  %4045 = vmatpush1.bf16.msra.mxu0 %v2445
  %4046 = vmatprep.subr.bf16.mxu0 0
  %4047 = vmatpush1.bf16.msra.mxu0 %v2448
  %4048 = vmatprep.subr.bf16.mxu0 0
  %4049 = vmatpush1.bf16.msra.mxu0 %v2451
  %4050 = vmatprep.subr.bf16.mxu0 0
  %4051 = vmatpush1.bf16.msra.mxu0 %v2454
  %4052 = vmatprep.subr.bf16.mxu0 0
  %4053 = vmatpush1.bf16.msra.mxu0 %v2457
  %4054 = vmatprep.subr.bf16.mxu0 0
  %4055 = vmatpush1.bf16.msra.mxu0 %v2460
  %4056 = vmatprep.subr.bf16.mxu0 0
  %4057 = vmatpush1.bf16.msra.mxu0 %v2463
  %4058 = vmatprep.mubr.bf16.mxu0 %v935
  %4059 = vmatmul.mubr.bf16.gmra.mrb[0].mxu0 %v934
  %v4060 = vpop.f32.mrb[0].mxu0
  %v4061 = vadd.f32 %v3964, %v4060
  %v4062 = vpop.f32.mrb[0].mxu0
  %v4063 = vpop.f32.mrb[0].mxu0
  %v4064 = vadd.f32 %v3967, %v4063
  %v4065 = vpop.f32.mrb[0].mxu0
  %4066 = vmatprep.mubr.bf16.mxu0 %v949
  %4067 = vmatmul.mubr.bf16.gmra.mrb[0].mxu0 %v948
  %v4068 = vpop.f32.mrb[0].mxu0
  %v4069 = vadd.f32 %v3972, %v4068
  %v4070 = vpop.f32.mrb[0].mxu0
  %v4071 = vpop.f32.mrb[0].mxu0
  %v4072 = vadd.f32 %v3975, %v4071
  %v4073 = vpop.f32.mrb[0].mxu0
  %4074 = vmatprep.mubr.bf16.mxu0 %v963
  %4075 = vmatmul.mubr.bf16.gmra.mrb[0].mxu0 %v962
  %v4076 = vpop.f32.mrb[0].mxu0
  %v4077 = vadd.f32 %v3980, %v4076
  %v4078 = vpop.f32.mrb[0].mxu0
  %v4079 = vpop.f32.mrb[0].mxu0
  %v4080 = vadd.f32 %v3983, %v4079
  %v4081 = vpop.f32.mrb[0].mxu0
  %4082 = vmatprep.mubr.bf16.mxu0 %v977
  %4083 = vmatmul.mubr.bf16.gmra.mrb[0].mxu0 %v976
  %v4084 = vpop.f32.mrb[0].mxu0
  %v4085 = vadd.f32 %v3988, %v4084
  %v4086 = vpop.f32.mrb[0].mxu0
  %v4087 = vpop.f32.mrb[0].mxu0
  %v4088 = vadd.f32 %v3991, %v4087
  %v4089 = vpop.f32.mrb[0].mxu0
  %4090 = vmatprep.mubr.bf16.mxu0 %v991
  %4091 = vmatmul.mubr.bf16.gmra.mrb[0].mxu0 %v990
  %v4092 = vpop.f32.mrb[0].mxu0
  %v4093 = vadd.f32 %v3996, %v4092
  %v4094 = vpop.f32.mrb[0].mxu0
  %v4095 = vpop.f32.mrb[0].mxu0
  %v4096 = vadd.f32 %v3999, %v4095
  %v4097 = vpop.f32.mrb[0].mxu0
  %4098 = vmatprep.mubr.bf16.mxu0 %v1005
  %4099 = vmatmul.mubr.bf16.gmra.mrb[0].mxu0 %v1004
  %v4100 = vpop.f32.mrb[0].mxu0
  %v4101 = vadd.f32 %v4004, %v4100
  %v4102 = vpop.f32.mrb[0].mxu0
  %v4103 = vpop.f32.mrb[0].mxu0
  %v4104 = vadd.f32 %v4007, %v4103
  %v4105 = vpop.f32.mrb[0].mxu0
  %4106 = vmatprep.mubr.bf16.mxu0 %v1019
  %4107 = vmatmul.mubr.bf16.gmra.mrb[0].mxu0 %v1018
  %v4108 = vpop.f32.mrb[0].mxu0
  %v4109 = vadd.f32 %v4012, %v4108
  %v4110 = vpop.f32.mrb[0].mxu0
  %v4111 = vpop.f32.mrb[0].mxu0
  %v4112 = vadd.f32 %v4015, %v4111
  %v4113 = vpop.f32.mrb[0].mxu0
  %4114 = vmatprep.mubr.bf16.mxu0 %v1033
  %4115 = vmatmul.mubr.bf16.gmra.mrb[0].mxu0 %v1032
  %v4116 = vpop.f32.mrb[0].mxu0
  %v4117 = vadd.f32 %v4020, %v4116
  %v4118 = vpop.f32.mrb[0].mxu0
  %v4119 = vpop.f32.mrb[0].mxu0
  %v4120 = vadd.f32 %v4023, %v4119
  %v4121 = vpop.f32.mrb[0].mxu0
  %4122 = vdwg.mxu0
  %4123 = vmatprep.subr.bf16.mxu0 0
  %4124 = vmatpush1.bf16.msra.mxu0 %v2466
  %4125 = vmatprep.subr.bf16.mxu0 0
  %4126 = vmatpush1.bf16.msra.mxu0 %v2469
  %4127 = vmatprep.subr.bf16.mxu0 0
  %4128 = vmatpush1.bf16.msra.mxu0 %v2472
  %4129 = vmatprep.subr.bf16.mxu0 0
  %4130 = vmatpush1.bf16.msra.mxu0 %v2475
  %4131 = vmatprep.subr.bf16.mxu0 0
  %4132 = vmatpush1.bf16.msra.mxu0 %v2478
  %4133 = vmatprep.subr.bf16.mxu0 0
  %4134 = vmatpush1.bf16.msra.mxu0 %v2481
  %4135 = vmatprep.subr.bf16.mxu0 0
  %4136 = vmatpush1.bf16.msra.mxu0 %v2484
  %4137 = vmatprep.subr.bf16.mxu0 0
  %4138 = vmatpush1.bf16.msra.mxu0 %v2487
  %4139 = vmatprep.subr.bf16.mxu0 0
  %4140 = vmatpush1.bf16.msra.mxu0 %v2490
  %4141 = vmatprep.subr.bf16.mxu0 0
  %4142 = vmatpush1.bf16.msra.mxu0 %v2493
  %4143 = vmatprep.subr.bf16.mxu0 0
  %4144 = vmatpush1.bf16.msra.mxu0 %v2496
  %4145 = vmatprep.subr.bf16.mxu0 0
  %4146 = vmatpush1.bf16.msra.mxu0 %v2499
  %4147 = vmatprep.subr.bf16.mxu0 0
  %4148 = vmatpush1.bf16.msra.mxu0 %v2502
  %4149 = vmatprep.subr.bf16.mxu0 0
  %4150 = vmatpush1.bf16.msra.mxu0 %v2505
  %4151 = vmatprep.subr.bf16.mxu0 0
  %4152 = vmatpush1.bf16.msra.mxu0 %v2508
  %4153 = vmatprep.subr.bf16.mxu0 0
  %4154 = vmatpush1.bf16.msra.mxu0 %v2511
  %4155 = vmatprep.mubr.bf16.mxu0 %v937
  %4156 = vmatmul.mubr.bf16.gmra.mrb[0].mxu0 %v936
  %v4157 = vpop.f32.mrb[0].mxu0
  %v4158 = vadd.f32 %v4061, %v4157
  %v4159 = vpop.f32.mrb[0].mxu0
  %v4160 = vpop.f32.mrb[0].mxu0
  %v4161 = vadd.f32 %v4064, %v4160
  %v4162 = vpop.f32.mrb[0].mxu0
  %4163 = vmatprep.mubr.bf16.mxu0 %v951
  %4164 = vmatmul.mubr.bf16.gmra.mrb[0].mxu0 %v950
  %v4165 = vpop.f32.mrb[0].mxu0
  %v4166 = vadd.f32 %v4069, %v4165
  %v4167 = vpop.f32.mrb[0].mxu0
  %v4168 = vpop.f32.mrb[0].mxu0
  %v4169 = vadd.f32 %v4072, %v4168
  %v4170 = vpop.f32.mrb[0].mxu0
  %4171 = vmatprep.mubr.bf16.mxu0 %v965
  %4172 = vmatmul.mubr.bf16.gmra.mrb[0].mxu0 %v964
  %v4173 = vpop.f32.mrb[0].mxu0
  %v4174 = vadd.f32 %v4077, %v4173
  %v4175 = vpop.f32.mrb[0].mxu0
  %v4176 = vpop.f32.mrb[0].mxu0
  %v4177 = vadd.f32 %v4080, %v4176
  %v4178 = vpop.f32.mrb[0].mxu0
  %4179 = vmatprep.mubr.bf16.mxu0 %v979
  %4180 = vmatmul.mubr.bf16.gmra.mrb[0].mxu0 %v978
  %v4181 = vpop.f32.mrb[0].mxu0
  %v4182 = vadd.f32 %v4085, %v4181
  %v4183 = vpop.f32.mrb[0].mxu0
  %v4184 = vpop.f32.mrb[0].mxu0
  %v4185 = vadd.f32 %v4088, %v4184
  %v4186 = vpop.f32.mrb[0].mxu0
  %4187 = vmatprep.mubr.bf16.mxu0 %v993
  %4188 = vmatmul.mubr.bf16.gmra.mrb[0].mxu0 %v992
  %v4189 = vpop.f32.mrb[0].mxu0
  %v4190 = vadd.f32 %v4093, %v4189
  %v4191 = vpop.f32.mrb[0].mxu0
  %v4192 = vpop.f32.mrb[0].mxu0
  %v4193 = vadd.f32 %v4096, %v4192
  %v4194 = vpop.f32.mrb[0].mxu0
  %4195 = vmatprep.mubr.bf16.mxu0 %v1007
  %4196 = vmatmul.mubr.bf16.gmra.mrb[0].mxu0 %v1006
  %v4197 = vpop.f32.mrb[0].mxu0
  %v4198 = vadd.f32 %v4101, %v4197
  %v4199 = vpop.f32.mrb[0].mxu0
  %v4200 = vpop.f32.mrb[0].mxu0
  %v4201 = vadd.f32 %v4104, %v4200
  %v4202 = vpop.f32.mrb[0].mxu0
  %4203 = vmatprep.mubr.bf16.mxu0 %v1021
  %4204 = vmatmul.mubr.bf16.gmra.mrb[0].mxu0 %v1020
  %v4205 = vpop.f32.mrb[0].mxu0
  %v4206 = vadd.f32 %v4109, %v4205
  %v4207 = vpop.f32.mrb[0].mxu0
  %v4208 = vpop.f32.mrb[0].mxu0
  %v4209 = vadd.f32 %v4112, %v4208
  %v4210 = vpop.f32.mrb[0].mxu0
  %4211 = vmatprep.mubr.bf16.mxu0 %v1035
  %4212 = vmatmul.mubr.bf16.gmra.mrb[0].mxu0 %v1034
  %v4213 = vpop.f32.mrb[0].mxu0
  %v4214 = vadd.f32 %v4117, %v4213
  %v4215 = vpop.f32.mrb[0].mxu0
  %v4216 = vpop.f32.mrb[0].mxu0
  %v4217 = vadd.f32 %v4120, %v4216
  %v4218 = vpop.f32.mrb[0].mxu0
  %4219 = vdwg.mxu0
  %4220 = vmatprep.subr.bf16.mxu0 0
  %4221 = vmatpush1.bf16.msra.mxu0 %v2514
  %4222 = vmatprep.subr.bf16.mxu0 0
  %4223 = vmatpush1.bf16.msra.mxu0 %v2517
  %4224 = vmatprep.subr.bf16.mxu0 0
  %4225 = vmatpush1.bf16.msra.mxu0 %v2520
  %4226 = vmatprep.subr.bf16.mxu0 0
  %4227 = vmatpush1.bf16.msra.mxu0 %v2523
  %4228 = vmatprep.subr.bf16.mxu0 0
  %4229 = vmatpush1.bf16.msra.mxu0 %v2526
  %4230 = vmatprep.subr.bf16.mxu0 0
  %4231 = vmatpush1.bf16.msra.mxu0 %v2529
  %4232 = vmatprep.subr.bf16.mxu0 0
  %4233 = vmatpush1.bf16.msra.mxu0 %v2532
  %4234 = vmatprep.subr.bf16.mxu0 0
  %4235 = vmatpush1.bf16.msra.mxu0 %v2535
  %4236 = vmatprep.subr.bf16.mxu0 0
  %4237 = vmatpush1.bf16.msra.mxu0 %v2538
  %4238 = vmatprep.subr.bf16.mxu0 0
  %4239 = vmatpush1.bf16.msra.mxu0 %v2541
  %4240 = vmatprep.subr.bf16.mxu0 0
  %4241 = vmatpush1.bf16.msra.mxu0 %v2544
  %4242 = vmatprep.subr.bf16.mxu0 0
  %4243 = vmatpush1.bf16.msra.mxu0 %v2547
  %4244 = vmatprep.subr.bf16.mxu0 0
  %4245 = vmatpush1.bf16.msra.mxu0 %v2550
  %4246 = vmatprep.subr.bf16.mxu0 0
  %4247 = vmatpush1.bf16.msra.mxu0 %v2553
  %4248 = vmatprep.subr.bf16.mxu0 0
  %4249 = vmatpush1.bf16.msra.mxu0 %v2556
  %4250 = vmatprep.subr.bf16.mxu0 0
  %4251 = vmatpush1.bf16.msra.mxu0 %v2559
  %4252 = vmatprep.mubr.bf16.mxu0 %v939
  %4253 = vmatmul.mubr.bf16.gmra.mrb[0].mxu0 %v938
  %v4254 = vpop.f32.mrb[0].mxu0
  %v4255 = vadd.f32 %v4158, %v4254
  %v4256 = vpop.f32.mrb[0].mxu0
  %v4257 = vpop.f32.mrb[0].mxu0
  %v4258 = vadd.f32 %v4161, %v4257
  %v4259 = vpop.f32.mrb[0].mxu0
  %4260 = vmatprep.mubr.bf16.mxu0 %v953
  %4261 = vmatmul.mubr.bf16.gmra.mrb[0].mxu0 %v952
  %v4262 = vpop.f32.mrb[0].mxu0
  %v4263 = vadd.f32 %v4166, %v4262
  %v4264 = vpop.f32.mrb[0].mxu0
  %v4265 = vpop.f32.mrb[0].mxu0
  %v4266 = vadd.f32 %v4169, %v4265
  %v4267 = vpop.f32.mrb[0].mxu0
  %4268 = vmatprep.mubr.bf16.mxu0 %v967
  %4269 = vmatmul.mubr.bf16.gmra.mrb[0].mxu0 %v966
  %v4270 = vpop.f32.mrb[0].mxu0
  %v4271 = vadd.f32 %v4174, %v4270
  %v4272 = vpop.f32.mrb[0].mxu0
  %v4273 = vpop.f32.mrb[0].mxu0
  %v4274 = vadd.f32 %v4177, %v4273
  %v4275 = vpop.f32.mrb[0].mxu0
  %4276 = vmatprep.mubr.bf16.mxu0 %v981
  %4277 = vmatmul.mubr.bf16.gmra.mrb[0].mxu0 %v980
  %v4278 = vpop.f32.mrb[0].mxu0
  %v4279 = vadd.f32 %v4182, %v4278
  %v4280 = vpop.f32.mrb[0].mxu0
  %v4281 = vpop.f32.mrb[0].mxu0
  %v4282 = vadd.f32 %v4185, %v4281
  %v4283 = vpop.f32.mrb[0].mxu0
  %4284 = vmatprep.mubr.bf16.mxu0 %v995
  %4285 = vmatmul.mubr.bf16.gmra.mrb[0].mxu0 %v994
  %v4286 = vpop.f32.mrb[0].mxu0
  %v4287 = vadd.f32 %v4190, %v4286
  %v4288 = vpop.f32.mrb[0].mxu0
  %v4289 = vpop.f32.mrb[0].mxu0
  %v4290 = vadd.f32 %v4193, %v4289
  %v4291 = vpop.f32.mrb[0].mxu0
  %4292 = vmatprep.mubr.bf16.mxu0 %v1009
  %4293 = vmatmul.mubr.bf16.gmra.mrb[0].mxu0 %v1008
  %v4294 = vpop.f32.mrb[0].mxu0
  %v4295 = vadd.f32 %v4198, %v4294
  %v4296 = vpop.f32.mrb[0].mxu0
  %v4297 = vpop.f32.mrb[0].mxu0
  %v4298 = vadd.f32 %v4201, %v4297
  %v4299 = vpop.f32.mrb[0].mxu0
  %4300 = vmatprep.mubr.bf16.mxu0 %v1023
  %4301 = vmatmul.mubr.bf16.gmra.mrb[0].mxu0 %v1022
  %v4302 = vpop.f32.mrb[0].mxu0
  %v4303 = vadd.f32 %v4206, %v4302
  %v4304 = vpop.f32.mrb[0].mxu0
  %v4305 = vpop.f32.mrb[0].mxu0
  %v4306 = vadd.f32 %v4209, %v4305
  %v4307 = vpop.f32.mrb[0].mxu0
  %4308 = vmatprep.mubr.bf16.mxu0 %v1037
  %4309 = vmatmul.mubr.bf16.gmra.mrb[0].mxu0 %v1036
  %v4310 = vpop.f32.mrb[0].mxu0
  %v4311 = vadd.f32 %v4214, %v4310
  %v4312 = vpop.f32.mrb[0].mxu0
  %v4313 = vpop.f32.mrb[0].mxu0
  %v4314 = vadd.f32 %v4217, %v4313
  %v4315 = vpop.f32.mrb[0].mxu0
  %4316 = vdwg.mxu0
  %4317 = vmatprep.subr.bf16.mxu0 0
  %4318 = vmatpush1.bf16.msra.mxu0 %v2562
  %4319 = vmatprep.subr.bf16.mxu0 0
  %4320 = vmatpush1.bf16.msra.mxu0 %v2565
  %4321 = vmatprep.subr.bf16.mxu0 0
  %4322 = vmatpush1.bf16.msra.mxu0 %v2568
  %4323 = vmatprep.subr.bf16.mxu0 0
  %4324 = vmatpush1.bf16.msra.mxu0 %v2571
  %4325 = vmatprep.subr.bf16.mxu0 0
  %4326 = vmatpush1.bf16.msra.mxu0 %v2574
  %4327 = vmatprep.subr.bf16.mxu0 0
  %4328 = vmatpush1.bf16.msra.mxu0 %v2577
  %4329 = vmatprep.subr.bf16.mxu0 0
  %4330 = vmatpush1.bf16.msra.mxu0 %v2580
  %4331 = vmatprep.subr.bf16.mxu0 0
  %4332 = vmatpush1.bf16.msra.mxu0 %v2583
  %4333 = vmatprep.subr.bf16.mxu0 0
  %4334 = vmatpush1.bf16.msra.mxu0 %v2586
  %4335 = vmatprep.subr.bf16.mxu0 0
  %4336 = vmatpush1.bf16.msra.mxu0 %v2589
  %4337 = vmatprep.subr.bf16.mxu0 0
  %4338 = vmatpush1.bf16.msra.mxu0 %v2592
  %4339 = vmatprep.subr.bf16.mxu0 0
  %4340 = vmatpush1.bf16.msra.mxu0 %v2595
  %4341 = vmatprep.subr.bf16.mxu0 0
  %4342 = vmatpush1.bf16.msra.mxu0 %v2598
  %4343 = vmatprep.subr.bf16.mxu0 0
  %4344 = vmatpush1.bf16.msra.mxu0 %v2601
  %4345 = vmatprep.subr.bf16.mxu0 0
  %4346 = vmatpush1.bf16.msra.mxu0 %v2604
  %4347 = vmatprep.subr.bf16.mxu0 0
  %4348 = vmatpush1.bf16.msra.mxu0 %v2607
  %4349 = vmatprep.mubr.bf16.mxu0 %v941
  %4350 = vmatmul.mubr.bf16.gmra.mrb[0].mxu0 %v940
  %v4351 = vpop.f32.mrb[0].mxu0
  %v4352 = vadd.f32 %v4255, %v4351
  %v4353 = vpop.f32.mrb[0].mxu0
  %v4354 = vpop.f32.mrb[0].mxu0
  %v4355 = vadd.f32 %v4258, %v4354
  %v4356 = vpop.f32.mrb[0].mxu0
  %4357 = vmatprep.mubr.bf16.mxu0 %v955
  %4358 = vmatmul.mubr.bf16.gmra.mrb[0].mxu0 %v954
  %v4359 = vpop.f32.mrb[0].mxu0
  %v4360 = vadd.f32 %v4263, %v4359
  %v4361 = vpop.f32.mrb[0].mxu0
  %v4362 = vpop.f32.mrb[0].mxu0
  %v4363 = vadd.f32 %v4266, %v4362
  %v4364 = vpop.f32.mrb[0].mxu0
  %4365 = vmatprep.mubr.bf16.mxu0 %v969
  %4366 = vmatmul.mubr.bf16.gmra.mrb[0].mxu0 %v968
  %v4367 = vpop.f32.mrb[0].mxu0
  %v4368 = vadd.f32 %v4271, %v4367
  %v4369 = vpop.f32.mrb[0].mxu0
  %v4370 = vpop.f32.mrb[0].mxu0
  %v4371 = vadd.f32 %v4274, %v4370
  %v4372 = vpop.f32.mrb[0].mxu0
  %4373 = vmatprep.mubr.bf16.mxu0 %v983
  %4374 = vmatmul.mubr.bf16.gmra.mrb[0].mxu0 %v982
  %v4375 = vpop.f32.mrb[0].mxu0
  %v4376 = vadd.f32 %v4279, %v4375
  %v4377 = vpop.f32.mrb[0].mxu0
  %v4378 = vpop.f32.mrb[0].mxu0
  %v4379 = vadd.f32 %v4282, %v4378
  %v4380 = vpop.f32.mrb[0].mxu0
  %4381 = vmatprep.mubr.bf16.mxu0 %v997
  %4382 = vmatmul.mubr.bf16.gmra.mrb[0].mxu0 %v996
  %v4383 = vpop.f32.mrb[0].mxu0
  %v4384 = vadd.f32 %v4287, %v4383
  %v4385 = vpop.f32.mrb[0].mxu0
  %v4386 = vpop.f32.mrb[0].mxu0
  %v4387 = vadd.f32 %v4290, %v4386
  %v4388 = vpop.f32.mrb[0].mxu0
  %4389 = vmatprep.mubr.bf16.mxu0 %v1011
  %4390 = vmatmul.mubr.bf16.gmra.mrb[0].mxu0 %v1010
  %v4391 = vpop.f32.mrb[0].mxu0
  %v4392 = vadd.f32 %v4295, %v4391
  %v4393 = vpop.f32.mrb[0].mxu0
  %v4394 = vpop.f32.mrb[0].mxu0
  %v4395 = vadd.f32 %v4298, %v4394
  %v4396 = vpop.f32.mrb[0].mxu0
  %4397 = vmatprep.mubr.bf16.mxu0 %v1025
  %4398 = vmatmul.mubr.bf16.gmra.mrb[0].mxu0 %v1024
  %v4399 = vpop.f32.mrb[0].mxu0
  %v4400 = vadd.f32 %v4303, %v4399
  %v4401 = vpop.f32.mrb[0].mxu0
  %v4402 = vpop.f32.mrb[0].mxu0
  %v4403 = vadd.f32 %v4306, %v4402
  %v4404 = vpop.f32.mrb[0].mxu0
  %4405 = vmatprep.mubr.bf16.mxu0 %v1039
  %4406 = vmatmul.mubr.bf16.gmra.mrb[0].mxu0 %v1038
  %v4407 = vpop.f32.mrb[0].mxu0
  %v4408 = vadd.f32 %v4311, %v4407
  %v4409 = vpop.f32.mrb[0].mxu0
  %v4410 = vpop.f32.mrb[0].mxu0
  %v4411 = vadd.f32 %v4314, %v4410
  %v4412 = vpop.f32.mrb[0].mxu0
  %4413 = vdwg.mxu0
  %v4414 = vmax.f32 %v3657, 0.0
  %v4415 = vmax.f32 %v3659, 0.0
  %v4416 = vmax.f32 %v4352, 0.0
  %v4417 = vmax.f32 %v3661, 0.0
  %v4418 = vmax.f32 %v3663, 0.0
  %v4419 = vmax.f32 %v4355, 0.0
  %v4420 = vmax.f32 %v3667, 0.0
  %v4421 = vmax.f32 %v3669, 0.0
  %v4422 = vmax.f32 %v4360, 0.0
  %v4423 = vmax.f32 %v3671, 0.0
  %v4424 = vmax.f32 %v3673, 0.0
  %v4425 = vmax.f32 %v4363, 0.0
  %v4426 = vmax.f32 %v3677, 0.0
  %v4427 = vmax.f32 %v3679, 0.0
  %v4428 = vmax.f32 %v4368, 0.0
  %v4429 = vmax.f32 %v3681, 0.0
  %v4430 = vmax.f32 %v3683, 0.0
  %v4431 = vmax.f32 %v4371, 0.0
  %v4432 = vmax.f32 %v3687, 0.0
  %v4433 = vmax.f32 %v3689, 0.0
  %v4434 = vmax.f32 %v4376, 0.0
  %v4435 = vmax.f32 %v3691, 0.0
  %v4436 = vmax.f32 %v3693, 0.0
  %v4437 = vmax.f32 %v4379, 0.0
  %v4438 = vmax.f32 %v3697, 0.0
  %v4439 = vmax.f32 %v3699, 0.0
  %v4440 = vmax.f32 %v4384, 0.0
  %v4441 = vmax.f32 %v3701, 0.0
  %v4442 = vmax.f32 %v3703, 0.0
  %v4443 = vmax.f32 %v4387, 0.0
  %v4444 = vmax.f32 %v3707, 0.0
  %v4445 = vmax.f32 %v3709, 0.0
  %v4446 = vmax.f32 %v4392, 0.0
  %v4447 = vmax.f32 %v3711, 0.0
  %v4448 = vmax.f32 %v3713, 0.0
  %v4449 = vmax.f32 %v4395, 0.0
  %v4450 = vmax.f32 %v3717, 0.0
  %v4451 = vmax.f32 %v3719, 0.0
  %v4452 = vmax.f32 %v4400, 0.0
  %v4453 = vmax.f32 %v3721, 0.0
  %v4454 = vmax.f32 %v3723, 0.0
  %v4455 = vmax.f32 %v4403, 0.0
  %v4456 = vmax.f32 %v3727, 0.0
  %v4457 = vmax.f32 %v3729, 0.0
  %v4458 = vmax.f32 %v4408, 0.0
  %v4459 = vmax.f32 %v3731, 0.0
  %v4460 = vmax.f32 %v3733, 0.0
  %v4461 = vmax.f32 %v4411, 0.0
  %4462 = vst [vmem:[%s3] sm:$0xff] %v4414
  %4463 = vst [vmem:[%s3 + $0x8] sm:$0xff] %v4415
  %vm4464 = vcmask 523264
  %4465 = vst.msk [vmem:[%s3 + $0x10] sm:$0xff] %vm4464, %v4416
  %4466 = vst [vmem:[%s3 + $0x18] sm:$0xff] %v4417
  %4467 = vst [vmem:[%s3 + $0x20] sm:$0xff] %v4418
  %4468 = vst.msk [vmem:[%s3 + $0x28] sm:$0xff] %vm4464, %v4419
  %4469 = vst [vmem:[%s3 + $0x30] sm:$0xff] %v4420
  %4470 = vst [vmem:[%s3 + $0x38] sm:$0xff] %v4421
  %4471 = vst.msk [vmem:[%s3 + $0x40] sm:$0xff] %vm4464, %v4422
  %4472 = vst [vmem:[%s3 + $0x48] sm:$0xff] %v4423
  %4473 = vst [vmem:[%s3 + $0x50] sm:$0xff] %v4424
  %4474 = vst.msk [vmem:[%s3 + $0x58] sm:$0xff] %vm4464, %v4425
  %4475 = vst [vmem:[%s3 + $0x60] sm:$0xff] %v4426
  %4476 = vst [vmem:[%s3 + $0x68] sm:$0xff] %v4427
  %4477 = vst.msk [vmem:[%s3 + $0x70] sm:$0xff] %vm4464, %v4428
  %4478 = vst [vmem:[%s3 + $0x78] sm:$0xff] %v4429
  %4479 = vst [vmem:[%s3 + $0x80] sm:$0xff] %v4430
  %4480 = vst.msk [vmem:[%s3 + $0x88] sm:$0xff] %vm4464, %v4431
  %4481 = vst [vmem:[%s3 + $0x90] sm:$0xff] %v4432
  %4482 = vst [vmem:[%s3 + $0x98] sm:$0xff] %v4433
  %4483 = vst.msk [vmem:[%s3 + $0xa0] sm:$0xff] %vm4464, %v4434
  %4484 = vst [vmem:[%s3 + $0xa8] sm:$0xff] %v4435
  %4485 = vst [vmem:[%s3 + $0xb0] sm:$0xff] %v4436
  %4486 = vst.msk [vmem:[%s3 + $0xb8] sm:$0xff] %vm4464, %v4437
  %4487 = vst [vmem:[%s3 + $0xc0] sm:$0xff] %v4438
  %4488 = vst [vmem:[%s3 + $0xc8] sm:$0xff] %v4439
  %4489 = vst.msk [vmem:[%s3 + $0xd0] sm:$0xff] %vm4464, %v4440
  %4490 = vst [vmem:[%s3 + $0xd8] sm:$0xff] %v4441
  %4491 = vst [vmem:[%s3 + $0xe0] sm:$0xff] %v4442
  %4492 = vst.msk [vmem:[%s3 + $0xe8] sm:$0xff] %vm4464, %v4443
  %4493 = vst [vmem:[%s3 + $0xf0] sm:$0xff] %v4444
  %4494 = vst [vmem:[%s3 + $0xf8] sm:$0xff] %v4445
  %4495 = vst.msk [vmem:[%s3 + $0x100] sm:$0xff] %vm4464, %v4446
  %4496 = vst [vmem:[%s3 + $0x108] sm:$0xff] %v4447
  %4497 = vst [vmem:[%s3 + $0x110] sm:$0xff] %v4448
  %4498 = vst.msk [vmem:[%s3 + $0x118] sm:$0xff] %vm4464, %v4449
  %4499 = vst [vmem:[%s3 + $0x120] sm:$0xff] %v4450
  %4500 = vst [vmem:[%s3 + $0x128] sm:$0xff] %v4451
  %4501 = vst.msk [vmem:[%s3 + $0x130] sm:$0xff] %vm4464, %v4452
  %4502 = vst [vmem:[%s3 + $0x138] sm:$0xff] %v4453
  %4503 = vst [vmem:[%s3 + $0x140] sm:$0xff] %v4454
  %4504 = vst.msk [vmem:[%s3 + $0x148] sm:$0xff] %vm4464, %v4455
  %4505 = vst [vmem:[%s3 + $0x150] sm:$0xff] %v4456
  %4506 = vst [vmem:[%s3 + $0x158] sm:$0xff] %v4457
  %4507 = vst.msk [vmem:[%s3 + $0x160] sm:$0xff] %vm4464, %v4458
  %4508 = vst [vmem:[%s3 + $0x168] sm:$0xff] %v4459
  %4509 = vst [vmem:[%s3 + $0x170] sm:$0xff] %v4460
  %4510 = vst.msk [vmem:[%s3 + $0x178] sm:$0xff] %vm4464, %v4461
  // Predicated region
  $region14: #{inception_d_forward.6} parent=0 // pred_check
    _
  $region15: #{inception_d_forward.6} parent=0 // pred_check_branch
    %4512 = sbr.rel (0) target = $region17
  $region16: #{inception_d_forward.6} parent=0 // pred_region
    _
  $region17: #{inception_d_forward.6} parent=0 // pred_fallthru
    _
  // Predicated region
  $region18: #{inception_d_forward.6} parent=0 // pred_check
    _
  $region19: #{inception_d_forward.6} parent=0 // pred_check_branch
    %4514 = sbr.rel (0) target = $region21
  $region20: #{inception_d_forward.6} parent=0 // pred_region
    _
  $region21: #{inception_d_forward.6} parent=0 // pred_fallthru
    _

</llo_original>
